<compile_context>
chip_gen: v7x
topology: tpu7x:2x2x1
jax: 0.10.0
libtpu: 0.0.40
codegen_flags: <defaults>
</compile_context>

<pallas_src>
import functools

import jax
import jax.numpy as jnp
import numpy as np
from jax.experimental import pallas as pl
from jax.experimental.pallas import tpu as pltpu


# ----------------------------------------------------------------------------
# Fused Pallas kernel: the whole mixed_dilations_block_1 forward for 1 sample
# ----------------------------------------------------------------------------
def _mixed_block_kernel(xr_ref, xi_ref, mask_ref, *refs, dilations, Wp, Lp):
    n_conv = 6                                     # inconv, conv1, conv1_d2, conv2, conv2_d3, conv3
    prm = refs[: 4 * n_conv]
    outr_ref = refs[4 * n_conv]
    outi_ref = refs[4 * n_conv + 1]
    stk_r = refs[4 * n_conv + 2]                   # (K_max, Lp) f32 scratch: stacked real taps
    stk_i = refs[4 * n_conv + 3]                   # (K_max, Lp) f32 scratch: stacked imag taps

    def bundle(i):
        return prm[4 * i], prm[4 * i + 1], prm[4 * i + 2], prm[4 * i + 3]

    mask = mask_ref[...]                           # (1, Lp): 1.0 on valid pixels, 0.0 on pad band / tail
    xr = xr_ref[0]                                 # (Cin_pad, Lp) f32, zero-padded flat frame
    xi = xi_ref[0]

    # Zero the stack scratch so never-written slot-pad rows are exactly 0
    # (their weight columns are 0, but 0 * uninitialized-VMEM could be NaN).
    stk_r[...] = jnp.zeros_like(stk_r)
    stk_i[...] = jnp.zeros_like(stk_i)

    def fill_stack(parts, dil):
        """Write the 9 dilated-tap shifted views of cat(parts) into the stack scratch.

        parts: list of (real, imag) f32 arrays (rows, Lp); each part occupies its own
        8-row-aligned slot inside every tap block (so all stores are sublane-aligned).
        Returns the stacked (K, Lp) bf16 real/imag operands for the MXU.
        """
        slots = [((pr.shape[0] + 7) // 8) * 8 for pr, _ in parts]
        block = sum(slots)
        for ky in range(3):
            for kx in range(3):
                t = ky * 3 + kx
                off = ((ky - 1) * Wp + (kx - 1)) * dil     # static flat spatial offset
                shift = (-off) % Lp                        # view[q] = x[q + off]
                base = t * block
                for (pr, pi), slot in zip(parts, slots):
                    rows = pr.shape[0]
                    if shift == 0:
                        rv, iv = pr, pi
                    else:
                        rv = pltpu.roll(pr, shift=shift, axis=1)
                        iv = pltpu.roll(pi, shift=shift, axis=1)
                    stk_r[base:base + rows, :] = rv
                    stk_i[base:base + rows, :] = iv
                    base += slot
        k = 9 * block
        return (stk_r[0:k, :].astype(jnp.bfloat16),
                stk_i[0:k, :].astype(jnp.bfloat16))

    def cconv(sr, si, widx, apply_mask=True):
        """Complex 3x3 conv as 4 MXU matmuls over the stacked taps; bias + pad re-zero."""
        wr_ref, wi_ref, br_ref, bi_ref = bundle(widx)
        wr = wr_ref[...]                           # (Cout, K) bf16, tap-stacked columns
        wi = wi_ref[...]
        rr = jnp.dot(wr, sr, preferred_element_type=jnp.float32)
        ii = jnp.dot(wi, si, preferred_element_type=jnp.float32)
        ri = jnp.dot(wr, si, preferred_element_type=jnp.float32)
        ir = jnp.dot(wi, sr, preferred_element_type=jnp.float32)
        outr = rr - ii + br_ref[...]
        outi = ri + ir + bi_ref[...]
        if apply_mask:
            outr = outr * mask
            outi = outi * mask
        return outr, outi

    d2, d3 = dilations

    # --- stage 1: inconv + conv1 share one stacked input (same source, same dilation) ---
    s_r, s_i = fill_stack([(xr, xi)], 1)
    x0_1r, x0_1i = cconv(s_r, s_i, 0)              # inconv
    x1_1r, x1_1i = cconv(s_r, s_i, 1)              # conv1
    s_r, s_i = fill_stack([(xr, xi)], d2)
    x1_2r, x1_2i = cconv(s_r, s_i, 2)              # conv1_d2

    # --- stage 2: x2 = cat([x1_1, x1_2]) realized as two aligned slots per tap block ---
    s_r, s_i = fill_stack([(x1_1r, x1_1i), (x1_2r, x1_2i)], 1)
    x2_1r, x2_1i = cconv(s_r, s_i, 3)              # conv2
    s_r, s_i = fill_stack([(x1_1r, x1_1i), (x1_2r, x1_2i)], d3)
    x2_3r, x2_3i = cconv(s_r, s_i, 4)              # conv2_d3

    # --- stage 3: x3 = cat([x0_1, x2_1, x2_3]); final conv (border cropped in wrapper) ---
    s_r, s_i = fill_stack([(x0_1r, x0_1i), (x2_1r, x2_1i), (x2_3r, x2_3i)], 1)
    yr, yi = cconv(s_r, s_i, 5, apply_mask=False)  # conv3

    outr_ref[0] = yr
    outi_ref[0] = yi


# ----------------------------------------------------------------------------
# Parameter init (deterministic, synthetic; PyTorch weight layout (Cout,Cin,3,3))
# ----------------------------------------------------------------------------
def _init_complex_conv(key, cin, cout):
    k1, k2, k3, k4 = jax.random.split(key, 4)
    scale = 1.0 / np.sqrt(9 * cin)
    wr = jax.random.normal(k1, (cout, cin, 3, 3), jnp.float32) * scale
    wi = jax.random.normal(k2, (cout, cin, 3, 3), jnp.float32) * scale
    br = jax.random.normal(k3, (cout, 1), jnp.float32) * 0.01
    bi = jax.random.normal(k4, (cout, 1), jnp.float32) * 0.01
    return dict(wr=wr, wi=wi, br=br, bi=bi)


def init_mixed_dilations_params(key, in_ch, out_ch):
    ks = jax.random.split(key, 6)
    c13 = out_ch // 3
    c12 = out_ch // 2
    return dict(
        inconv=_init_complex_conv(ks[0], in_ch, c13),
        conv1=_init_complex_conv(ks[1], in_ch, c12),
        conv1_d2=_init_complex_conv(ks[2], in_ch, out_ch - c12),
        conv2=_init_complex_conv(ks[3], out_ch, c13),
        conv2_d3=_init_complex_conv(ks[4], out_ch, out_ch - 2 * c13),
        conv3=_init_complex_conv(ks[5], out_ch, out_ch),
    )


def _pack_stacked(p, part_sizes):
    """Pack (Cout,Cin,3,3) weights into the tap-stacked (Cout, 9*block) matmul layout.

    Column index = tap*(block) + slot_offset + channel_within_part, matching the rows
    written by the kernel's fill_stack; pad channels inside a slot get zero columns.
    """
    def pack_w(w):
        cout = w.shape[0]
        pieces, o = [], 0
        for s in part_sizes:
            slot = ((s + 7) // 8) * 8
            pieces.append(jnp.pad(w[:, o:o + s], ((0, 0), (0, slot - s), (0, 0), (0, 0))))
            o += s
        wcat = jnp.concatenate(pieces, axis=1) if len(pieces) > 1 else pieces[0]
        c = wcat.shape[1]
        # (Cout, C, ky, kx) -> (Cout, ky, kx, C) -> (Cout, 9*C): col = (ky*3+kx)*C + c
        return jnp.transpose(wcat, (0, 2, 3, 1)).reshape(cout, 9 * c).astype(jnp.bfloat16)

    return dict(wr=pack_w(p['wr']), wi=pack_w(p['wi']), br=p['br'], bi=p['bi'])


# ----------------------------------------------------------------------------
# Forward wrapper: pad/flatten, single fused pallas_call over grid=(N,), crop
# ----------------------------------------------------------------------------
def mixed_dilations_block_1_forward(xr_nchw, xi_nchw, params, dilations=(2, 3)):
    n, cin, h, w = xr_nchw.shape
    out_ch = params['conv3']['wr'].shape[0]
    c13, c12 = out_ch // 3, out_ch // 2
    pad = max(1, *dilations)                      # one common pad band covers every dilation
    hp, wp = h + 2 * pad, w + 2 * pad
    lp_real = hp * wp
    lp = ((lp_real + 127) // 128) * 128           # lane-dense flat frame (multiple of 128)
    cin_p = ((cin + 7) // 8) * 8                  # sublane-aligned input channel count

    def flat_pad(x):
        xp = jnp.pad(x, ((0, 0), (0, cin_p - cin), (pad, pad), (pad, pad)))
        xp = xp.reshape(n, cin_p, lp_real)
        return jnp.pad(xp, ((0, 0), (0, 0), (0, lp - lp_real)))

    xr_f = flat_pad(xr_nchw)
    xi_f = flat_pad(xi_nchw)

    m2d = np.zeros((hp, wp), np.float32)
    m2d[pad:pad + h, pad:pad + w] = 1.0
    mask_np = np.zeros((1, lp), np.float32)
    mask_np[0, :lp_real] = m2d.reshape(-1)
    mask = jnp.asarray(mask_np)

    part_sizes = [
        [cin],                          # inconv      (input x)
        [cin],                          # conv1       (input x)
        [cin],                          # conv1_d2    (input x)
        [c12, out_ch - c12],            # conv2       (input cat[x1_1, x1_2])
        [c12, out_ch - c12],            # conv2_d3    (input cat[x1_1, x1_2])
        [c13, c13, out_ch - 2 * c13],   # conv3       (input cat[x0_1, x2_1, x2_3])
    ]
    names = ['inconv', 'conv1', 'conv1_d2', 'conv2', 'conv2_d3', 'conv3']
    bundles = [_pack_stacked(params[nm], ps) for nm, ps in zip(names, part_sizes)]

    inputs = [xr_f, xi_f, mask]
    in_specs = [
        pl.BlockSpec((1, cin_p, lp), lambda nn: (nn, 0, 0)),
        pl.BlockSpec((1, cin_p, lp), lambda nn: (nn, 0, 0)),
        pl.BlockSpec((1, lp), lambda nn: (0, 0)),
    ]
    for b in bundles:
        for k in ('wr', 'wi', 'br', 'bi'):
            a = b[k]
            inputs.append(a)
            in_specs.append(pl.BlockSpec(a.shape, lambda nn, _nd=a.ndim: (0,) * _nd))

    # Largest stacked-tap buffer needed by any conv (rows are slot-padded to 8).
    k_max = 9 * max(sum(((s + 7) // 8) * 8 for s in ps) for ps in part_sizes)

    kernel = functools.partial(_mixed_block_kernel, dilations=dilations, Wp=wp, Lp=lp)

    out_shape = (jax.ShapeDtypeStruct((n, out_ch, lp), jnp.float32),
                 jax.ShapeDtypeStruct((n, out_ch, lp), jnp.float32))
    out_specs = (pl.BlockSpec((1, out_ch, lp), lambda nn: (nn, 0, 0)),
                 pl.BlockSpec((1, out_ch, lp), lambda nn: (nn, 0, 0)))

    yr_f, yi_f = pl.pallas_call(
        kernel,
        out_shape=out_shape,
        grid=(n,),
        in_specs=in_specs,
        out_specs=out_specs,
        scratch_shapes=[pltpu.VMEM((k_max, lp), jnp.float32),
                        pltpu.VMEM((k_max, lp), jnp.float32)],
        compiler_params=pltpu.CompilerParams(
            dimension_semantics=("parallel",),
            vmem_limit_bytes=32 * 1024 * 1024,
        ),
    )(*inputs)

    def crop(y):
        y = y[:, :, :lp_real].reshape(n, out_ch, hp, wp)
        return y[:, :, pad:pad + h, pad:pad + w]

    return crop(yr_f), crop(yi_f)


if __name__ == "__main__":
    key = jax.random.PRNGKey(0)
    k_xr, k_xi, k_p = jax.random.split(key, 3)

    N, C_IN, H, W = 2, 4, 16, 16
    OUT_CH = 12

    x_real = jax.random.normal(k_xr, (N, C_IN, H, W), jnp.float32)
    x_imag = jax.random.normal(k_xi, (N, C_IN, H, W), jnp.float32)

    params = init_mixed_dilations_params(k_p, in_ch=C_IN, out_ch=OUT_CH)

    fwd = jax.jit(mixed_dilations_block_1_forward)
    yr, yi = fwd(x_real, x_imag, params)
    jax.block_until_ready((yr, yi))

    assert yr.shape == (N, OUT_CH, H, W), yr.shape
    assert yi.shape == (N, OUT_CH, H, W), yi.shape
    print("KERNEL_OK")
</pallas_src>

<mosaic_0001>
module attributes {stable_mosaic.version = 11 : i64} {
  func.func @_mixed_block_kernel(%arg0: i32, %arg1: memref<1x8x512xf32, #tpu.memory_space<vmem>>, %arg2: memref<1x8x512xf32, #tpu.memory_space<vmem>>, %arg3: memref<1x512xf32, #tpu.memory_space<vmem>>, %arg4: memref<4x72xbf16, #tpu.memory_space<vmem>>, %arg5: memref<4x72xbf16, #tpu.memory_space<vmem>>, %arg6: memref<4x1xf32, #tpu.memory_space<vmem>>, %arg7: memref<4x1xf32, #tpu.memory_space<vmem>>, %arg8: memref<6x72xbf16, #tpu.memory_space<vmem>>, %arg9: memref<6x72xbf16, #tpu.memory_space<vmem>>, %arg10: memref<6x1xf32, #tpu.memory_space<vmem>>, %arg11: memref<6x1xf32, #tpu.memory_space<vmem>>, %arg12: memref<6x72xbf16, #tpu.memory_space<vmem>>, %arg13: memref<6x72xbf16, #tpu.memory_space<vmem>>, %arg14: memref<6x1xf32, #tpu.memory_space<vmem>>, %arg15: memref<6x1xf32, #tpu.memory_space<vmem>>, %arg16: memref<4x144xbf16, #tpu.memory_space<vmem>>, %arg17: memref<4x144xbf16, #tpu.memory_space<vmem>>, %arg18: memref<4x1xf32, #tpu.memory_space<vmem>>, %arg19: memref<4x1xf32, #tpu.memory_space<vmem>>, %arg20: memref<4x144xbf16, #tpu.memory_space<vmem>>, %arg21: memref<4x144xbf16, #tpu.memory_space<vmem>>, %arg22: memref<4x1xf32, #tpu.memory_space<vmem>>, %arg23: memref<4x1xf32, #tpu.memory_space<vmem>>, %arg24: memref<12x216xbf16, #tpu.memory_space<vmem>>, %arg25: memref<12x216xbf16, #tpu.memory_space<vmem>>, %arg26: memref<12x1xf32, #tpu.memory_space<vmem>>, %arg27: memref<12x1xf32, #tpu.memory_space<vmem>>, %arg28: memref<1x12x512xf32, #tpu.memory_space<vmem>>, %arg29: memref<1x12x512xf32, #tpu.memory_space<vmem>>, %arg30: memref<216x512xf32, #tpu.memory_space<vmem>>, %arg31: memref<216x512xf32, #tpu.memory_space<vmem>>) attributes {dimension_semantics = [#tpu.dimension_semantics<parallel>], iteration_bounds = array<i64: 2>, scalar_prefetch = 0 : i64, scratch_operands = 2 : i64, tpu.core_type = #tpu.core_type<tc>, window_params = [{transform_indices = @transform_0, window_bounds = array<i64: 1, 8, 512>}, {transform_indices = @transform_1, window_bounds = array<i64: 1, 8, 512>}, {pipeline_mode = #tpu.pipeline_mode<synchronous>, transform_indices = @transform_2, window_bounds = array<i64: 1, 512>}, {pipeline_mode = #tpu.pipeline_mode<synchronous>, transform_indices = @transform_3, window_bounds = array<i64: 4, 72>}, {pipeline_mode = #tpu.pipeline_mode<synchronous>, transform_indices = @transform_4, window_bounds = array<i64: 4, 72>}, {pipeline_mode = #tpu.pipeline_mode<synchronous>, transform_indices = @transform_5, window_bounds = array<i64: 4, 1>}, {pipeline_mode = #tpu.pipeline_mode<synchronous>, transform_indices = @transform_6, window_bounds = array<i64: 4, 1>}, {pipeline_mode = #tpu.pipeline_mode<synchronous>, transform_indices = @transform_7, window_bounds = array<i64: 6, 72>}, {pipeline_mode = #tpu.pipeline_mode<synchronous>, transform_indices = @transform_8, window_bounds = array<i64: 6, 72>}, {pipeline_mode = #tpu.pipeline_mode<synchronous>, transform_indices = @transform_9, window_bounds = array<i64: 6, 1>}, {pipeline_mode = #tpu.pipeline_mode<synchronous>, transform_indices = @transform_10, window_bounds = array<i64: 6, 1>}, {pipeline_mode = #tpu.pipeline_mode<synchronous>, transform_indices = @transform_11, window_bounds = array<i64: 6, 72>}, {pipeline_mode = #tpu.pipeline_mode<synchronous>, transform_indices = @transform_12, window_bounds = array<i64: 6, 72>}, {pipeline_mode = #tpu.pipeline_mode<synchronous>, transform_indices = @transform_13, window_bounds = array<i64: 6, 1>}, {pipeline_mode = #tpu.pipeline_mode<synchronous>, transform_indices = @transform_14, window_bounds = array<i64: 6, 1>}, {pipeline_mode = #tpu.pipeline_mode<synchronous>, transform_indices = @transform_15, window_bounds = array<i64: 4, 144>}, {pipeline_mode = #tpu.pipeline_mode<synchronous>, transform_indices = @transform_16, window_bounds = array<i64: 4, 144>}, {pipeline_mode = #tpu.pipeline_mode<synchronous>, transform_indices = @transform_17, window_bounds = array<i64: 4, 1>}, {pipeline_mode = #tpu.pipeline_mode<synchronous>, transform_indices = @transform_18, window_bounds = array<i64: 4, 1>}, {pipeline_mode = #tpu.pipeline_mode<synchronous>, transform_indices = @transform_19, window_bounds = array<i64: 4, 144>}, {pipeline_mode = #tpu.pipeline_mode<synchronous>, transform_indices = @transform_20, window_bounds = array<i64: 4, 144>}, {pipeline_mode = #tpu.pipeline_mode<synchronous>, transform_indices = @transform_21, window_bounds = array<i64: 4, 1>}, {pipeline_mode = #tpu.pipeline_mode<synchronous>, transform_indices = @transform_22, window_bounds = array<i64: 4, 1>}, {pipeline_mode = #tpu.pipeline_mode<synchronous>, transform_indices = @transform_23, window_bounds = array<i64: 12, 216>}, {pipeline_mode = #tpu.pipeline_mode<synchronous>, transform_indices = @transform_24, window_bounds = array<i64: 12, 216>}, {pipeline_mode = #tpu.pipeline_mode<synchronous>, transform_indices = @transform_25, window_bounds = array<i64: 12, 1>}, {pipeline_mode = #tpu.pipeline_mode<synchronous>, transform_indices = @transform_26, window_bounds = array<i64: 12, 1>}, {transform_indices = @transform_27, window_bounds = array<i64: 1, 12, 512>}, {transform_indices = @transform_28, window_bounds = array<i64: 1, 12, 512>}]} {
    %c0 = arith.constant 0 : index
    %c0_0 = arith.constant 0 : index
    %0 = vector.load %arg3[%c0, %c0_0] : memref<1x512xf32, #tpu.memory_space<vmem>>, vector<1x512xf32>
    %c0_1 = arith.constant 0 : index
    %c0_2 = arith.constant 0 : index
    %c0_3 = arith.constant 0 : index
    %1 = vector.load %arg1[%c0_1, %c0_2, %c0_3] : memref<1x8x512xf32, #tpu.memory_space<vmem>>, vector<1x8x512xf32>
    %2 = vector.shape_cast %1 : vector<1x8x512xf32> to vector<8x512xf32>
    %c0_4 = arith.constant 0 : index
    %c0_5 = arith.constant 0 : index
    %c0_6 = arith.constant 0 : index
    %3 = vector.load %arg2[%c0_4, %c0_5, %c0_6] : memref<1x8x512xf32, #tpu.memory_space<vmem>>, vector<1x8x512xf32>
    %4 = vector.shape_cast %3 : vector<1x8x512xf32> to vector<8x512xf32>
    %cst = arith.constant 0.000000e+00 : f32
    %5 = vector.broadcast %cst : f32 to vector<216x512xf32>
    %c0_7 = arith.constant 0 : index
    %c0_8 = arith.constant 0 : index
    %6 = vector.load %arg30[%c0_7, %c0_8] : memref<216x512xf32, #tpu.memory_space<vmem>>, vector<216x512xf32>
    tpu.vector_store %arg30[%c0_7, %c0_8], %5 {strides = array<i32>} : memref<216x512xf32, #tpu.memory_space<vmem>>, vector<216x512xf32>,
    %cst_9 = arith.constant 0.000000e+00 : f32
    %7 = vector.broadcast %cst_9 : f32 to vector<216x512xf32>
    %c0_10 = arith.constant 0 : index
    %c0_11 = arith.constant 0 : index
    %8 = vector.load %arg31[%c0_10, %c0_11] : memref<216x512xf32, #tpu.memory_space<vmem>>, vector<216x512xf32>
    tpu.vector_store %arg31[%c0_10, %c0_11], %7 {strides = array<i32>} : memref<216x512xf32, #tpu.memory_space<vmem>>, vector<216x512xf32>,
    %c23_i32 = arith.constant 23 : i32
    %9 = tpu.dynamic_rotate %2 by %c23_i32 dim 1 : vector<8x512xf32>, i32 -> vector<8x512xf32>
    %c23_i32_12 = arith.constant 23 : i32
    %10 = tpu.dynamic_rotate %4 by %c23_i32_12 dim 1 : vector<8x512xf32>, i32 -> vector<8x512xf32>
    %c0_13 = arith.constant 0 : index
    %c0_14 = arith.constant 0 : index
    %11 = vector.load %arg30[%c0_13, %c0_14] : memref<216x512xf32, #tpu.memory_space<vmem>>, vector<8x512xf32>
    tpu.vector_store %arg30[%c0_13, %c0_14], %9 {strides = array<i32>} : memref<216x512xf32, #tpu.memory_space<vmem>>, vector<8x512xf32>,
    %c0_15 = arith.constant 0 : index
    %c0_16 = arith.constant 0 : index
    %12 = vector.load %arg31[%c0_15, %c0_16] : memref<216x512xf32, #tpu.memory_space<vmem>>, vector<8x512xf32>
    tpu.vector_store %arg31[%c0_15, %c0_16], %10 {strides = array<i32>} : memref<216x512xf32, #tpu.memory_space<vmem>>, vector<8x512xf32>,
    %c22_i32 = arith.constant 22 : i32
    %13 = tpu.dynamic_rotate %2 by %c22_i32 dim 1 : vector<8x512xf32>, i32 -> vector<8x512xf32>
    %c22_i32_17 = arith.constant 22 : i32
    %14 = tpu.dynamic_rotate %4 by %c22_i32_17 dim 1 : vector<8x512xf32>, i32 -> vector<8x512xf32>
    %c8 = arith.constant 8 : index
    %c0_18 = arith.constant 0 : index
    %15 = vector.load %arg30[%c8, %c0_18] : memref<216x512xf32, #tpu.memory_space<vmem>>, vector<8x512xf32>
    tpu.vector_store %arg30[%c8, %c0_18], %13 {strides = array<i32>} : memref<216x512xf32, #tpu.memory_space<vmem>>, vector<8x512xf32>,
    %c8_19 = arith.constant 8 : index
    %c0_20 = arith.constant 0 : index
    %16 = vector.load %arg31[%c8_19, %c0_20] : memref<216x512xf32, #tpu.memory_space<vmem>>, vector<8x512xf32>
    tpu.vector_store %arg31[%c8_19, %c0_20], %14 {strides = array<i32>} : memref<216x512xf32, #tpu.memory_space<vmem>>, vector<8x512xf32>,
    %c21_i32 = arith.constant 21 : i32
    %17 = tpu.dynamic_rotate %2 by %c21_i32 dim 1 : vector<8x512xf32>, i32 -> vector<8x512xf32>
    %c21_i32_21 = arith.constant 21 : i32
    %18 = tpu.dynamic_rotate %4 by %c21_i32_21 dim 1 : vector<8x512xf32>, i32 -> vector<8x512xf32>
    %c16 = arith.constant 16 : index
    %c0_22 = arith.constant 0 : index
    %19 = vector.load %arg30[%c16, %c0_22] : memref<216x512xf32, #tpu.memory_space<vmem>>, vector<8x512xf32>
    tpu.vector_store %arg30[%c16, %c0_22], %17 {strides = array<i32>} : memref<216x512xf32, #tpu.memory_space<vmem>>, vector<8x512xf32>,
    %c16_23 = arith.constant 16 : index
    %c0_24 = arith.constant 0 : index
    %20 = vector.load %arg31[%c16_23, %c0_24] : memref<216x512xf32, #tpu.memory_space<vmem>>, vector<8x512xf32>
    tpu.vector_store %arg31[%c16_23, %c0_24], %18 {strides = array<i32>} : memref<216x512xf32, #tpu.memory_space<vmem>>, vector<8x512xf32>,
    %c1_i32 = arith.constant 1 : i32
    %21 = tpu.dynamic_rotate %2 by %c1_i32 dim 1 : vector<8x512xf32>, i32 -> vector<8x512xf32>
    %c1_i32_25 = arith.constant 1 : i32
    %22 = tpu.dynamic_rotate %4 by %c1_i32_25 dim 1 : vector<8x512xf32>, i32 -> vector<8x512xf32>
    %c24 = arith.constant 24 : index
    %c0_26 = arith.constant 0 : index
    %23 = vector.load %arg30[%c24, %c0_26] : memref<216x512xf32, #tpu.memory_space<vmem>>, vector<8x512xf32>
    tpu.vector_store %arg30[%c24, %c0_26], %21 {strides = array<i32>} : memref<216x512xf32, #tpu.memory_space<vmem>>, vector<8x512xf32>,
    %c24_27 = arith.constant 24 : index
    %c0_28 = arith.constant 0 : index
    %24 = vector.load %arg31[%c24_27, %c0_28] : memref<216x512xf32, #tpu.memory_space<vmem>>, vector<8x512xf32>
    tpu.vector_store %arg31[%c24_27, %c0_28], %22 {strides = array<i32>} : memref<216x512xf32, #tpu.memory_space<vmem>>, vector<8x512xf32>,
    %c32 = arith.constant 32 : index
    %c0_29 = arith.constant 0 : index
    %25 = vector.load %arg30[%c32, %c0_29] : memref<216x512xf32, #tpu.memory_space<vmem>>, vector<8x512xf32>
    tpu.vector_store %arg30[%c32, %c0_29], %2 {strides = array<i32>} : memref<216x512xf32, #tpu.memory_space<vmem>>, vector<8x512xf32>,
    %c32_30 = arith.constant 32 : index
    %c0_31 = arith.constant 0 : index
    %26 = vector.load %arg31[%c32_30, %c0_31] : memref<216x512xf32, #tpu.memory_space<vmem>>, vector<8x512xf32>
    tpu.vector_store %arg31[%c32_30, %c0_31], %4 {strides = array<i32>} : memref<216x512xf32, #tpu.memory_space<vmem>>, vector<8x512xf32>,
    %c511_i32 = arith.constant 511 : i32
    %27 = tpu.dynamic_rotate %2 by %c511_i32 dim 1 : vector<8x512xf32>, i32 -> vector<8x512xf32>
    %c511_i32_32 = arith.constant 511 : i32
    %28 = tpu.dynamic_rotate %4 by %c511_i32_32 dim 1 : vector<8x512xf32>, i32 -> vector<8x512xf32>
    %c40 = arith.constant 40 : index
    %c0_33 = arith.constant 0 : index
    %29 = vector.load %arg30[%c40, %c0_33] : memref<216x512xf32, #tpu.memory_space<vmem>>, vector<8x512xf32>
    tpu.vector_store %arg30[%c40, %c0_33], %27 {strides = array<i32>} : memref<216x512xf32, #tpu.memory_space<vmem>>, vector<8x512xf32>,
    %c40_34 = arith.constant 40 : index
    %c0_35 = arith.constant 0 : index
    %30 = vector.load %arg31[%c40_34, %c0_35] : memref<216x512xf32, #tpu.memory_space<vmem>>, vector<8x512xf32>
    tpu.vector_store %arg31[%c40_34, %c0_35], %28 {strides = array<i32>} : memref<216x512xf32, #tpu.memory_space<vmem>>, vector<8x512xf32>,
    %c491_i32 = arith.constant 491 : i32
    %31 = tpu.dynamic_rotate %2 by %c491_i32 dim 1 : vector<8x512xf32>, i32 -> vector<8x512xf32>
    %c491_i32_36 = arith.constant 491 : i32
    %32 = tpu.dynamic_rotate %4 by %c491_i32_36 dim 1 : vector<8x512xf32>, i32 -> vector<8x512xf32>
    %c48 = arith.constant 48 : index
    %c0_37 = arith.constant 0 : index
    %33 = vector.load %arg30[%c48, %c0_37] : memref<216x512xf32, #tpu.memory_space<vmem>>, vector<8x512xf32>
    tpu.vector_store %arg30[%c48, %c0_37], %31 {strides = array<i32>} : memref<216x512xf32, #tpu.memory_space<vmem>>, vector<8x512xf32>,
    %c48_38 = arith.constant 48 : index
    %c0_39 = arith.constant 0 : index
    %34 = vector.load %arg31[%c48_38, %c0_39] : memref<216x512xf32, #tpu.memory_space<vmem>>, vector<8x512xf32>
    tpu.vector_store %arg31[%c48_38, %c0_39], %32 {strides = array<i32>} : memref<216x512xf32, #tpu.memory_space<vmem>>, vector<8x512xf32>,
    %c490_i32 = arith.constant 490 : i32
    %35 = tpu.dynamic_rotate %2 by %c490_i32 dim 1 : vector<8x512xf32>, i32 -> vector<8x512xf32>
    %c490_i32_40 = arith.constant 490 : i32
    %36 = tpu.dynamic_rotate %4 by %c490_i32_40 dim 1 : vector<8x512xf32>, i32 -> vector<8x512xf32>
    %c56 = arith.constant 56 : index
    %c0_41 = arith.constant 0 : index
    %37 = vector.load %arg30[%c56, %c0_41] : memref<216x512xf32, #tpu.memory_space<vmem>>, vector<8x512xf32>
    tpu.vector_store %arg30[%c56, %c0_41], %35 {strides = array<i32>} : memref<216x512xf32, #tpu.memory_space<vmem>>, vector<8x512xf32>,
    %c56_42 = arith.constant 56 : index
    %c0_43 = arith.constant 0 : index
    %38 = vector.load %arg31[%c56_42, %c0_43] : memref<216x512xf32, #tpu.memory_space<vmem>>, vector<8x512xf32>
    tpu.vector_store %arg31[%c56_42, %c0_43], %36 {strides = array<i32>} : memref<216x512xf32, #tpu.memory_space<vmem>>, vector<8x512xf32>,
    %c489_i32 = arith.constant 489 : i32
    %39 = tpu.dynamic_rotate %2 by %c489_i32 dim 1 : vector<8x512xf32>, i32 -> vector<8x512xf32>
    %c489_i32_44 = arith.constant 489 : i32
    %40 = tpu.dynamic_rotate %4 by %c489_i32_44 dim 1 : vector<8x512xf32>, i32 -> vector<8x512xf32>
    %c64 = arith.constant 64 : index
    %c0_45 = arith.constant 0 : index
    %41 = vector.load %arg30[%c64, %c0_45] : memref<216x512xf32, #tpu.memory_space<vmem>>, vector<8x512xf32>
    tpu.vector_store %arg30[%c64, %c0_45], %39 {strides = array<i32>} : memref<216x512xf32, #tpu.memory_space<vmem>>, vector<8x512xf32>,
    %c64_46 = arith.constant 64 : index
    %c0_47 = arith.constant 0 : index
    %42 = vector.load %arg31[%c64_46, %c0_47] : memref<216x512xf32, #tpu.memory_space<vmem>>, vector<8x512xf32>
    tpu.vector_store %arg31[%c64_46, %c0_47], %40 {strides = array<i32>} : memref<216x512xf32, #tpu.memory_space<vmem>>, vector<8x512xf32>,
    %c0_48 = arith.constant 0 : index
    %c0_49 = arith.constant 0 : index
    %43 = vector.load %arg30[%c0_48, %c0_49] : memref<216x512xf32, #tpu.memory_space<vmem>>, vector<72x512xf32>
    %44 = arith.truncf %43 : vector<72x512xf32> to vector<72x512xbf16>
    %c0_50 = arith.constant 0 : index
    %c0_51 = arith.constant 0 : index
    %45 = vector.load %arg31[%c0_50, %c0_51] : memref<216x512xf32, #tpu.memory_space<vmem>>, vector<72x512xf32>
    %46 = arith.truncf %45 : vector<72x512xf32> to vector<72x512xbf16>
    %c0_52 = arith.constant 0 : index
    %c0_53 = arith.constant 0 : index
    %47 = vector.load %arg4[%c0_52, %c0_53] : memref<4x72xbf16, #tpu.memory_space<vmem>>, vector<4x72xbf16>
    %c0_54 = arith.constant 0 : index
    %c0_55 = arith.constant 0 : index
    %48 = vector.load %arg5[%c0_54, %c0_55] : memref<4x72xbf16, #tpu.memory_space<vmem>>, vector<4x72xbf16>
    %cst_56 = arith.constant dense<0.000000e+00> : vector<4x512xf32>
    %49 = tpu.matmul %47, %44, %cst_56 {dimension_numbers = #tpu.dot_dimension_numbers<[1], [0], [0], [1], [0, 0, 1, 1], [], []>} : vector<4x72xbf16>, vector<72x512xbf16>, vector<4x512xf32> -> vector<4x512xf32>
    %cst_57 = arith.constant dense<0.000000e+00> : vector<4x512xf32>
    %50 = tpu.matmul %48, %46, %cst_57 {dimension_numbers = #tpu.dot_dimension_numbers<[1], [0], [0], [1], [0, 0, 1, 1], [], []>} : vector<4x72xbf16>, vector<72x512xbf16>, vector<4x512xf32> -> vector<4x512xf32>
    %cst_58 = arith.constant dense<0.000000e+00> : vector<4x512xf32>
    %51 = tpu.matmul %47, %46, %cst_58 {dimension_numbers = #tpu.dot_dimension_numbers<[1], [0], [0], [1], [0, 0, 1, 1], [], []>} : vector<4x72xbf16>, vector<72x512xbf16>, vector<4x512xf32> -> vector<4x512xf32>
    %cst_59 = arith.constant dense<0.000000e+00> : vector<4x512xf32>
    %52 = tpu.matmul %48, %44, %cst_59 {dimension_numbers = #tpu.dot_dimension_numbers<[1], [0], [0], [1], [0, 0, 1, 1], [], []>} : vector<4x72xbf16>, vector<72x512xbf16>, vector<4x512xf32> -> vector<4x512xf32>
    %53 = arith.subf %49, %50 : vector<4x512xf32>
    %c0_60 = arith.constant 0 : index
    %c0_61 = arith.constant 0 : index
    %54 = vector.load %arg6[%c0_60, %c0_61] : memref<4x1xf32, #tpu.memory_space<vmem>>, vector<4x1xf32>
    %55 = vector.broadcast %54 : vector<4x1xf32> to vector<4x512xf32>
    %56 = arith.addf %53, %55 : vector<4x512xf32>
    %57 = arith.addf %51, %52 : vector<4x512xf32>
    %c0_62 = arith.constant 0 : index
    %c0_63 = arith.constant 0 : index
    %58 = vector.load %arg7[%c0_62, %c0_63] : memref<4x1xf32, #tpu.memory_space<vmem>>, vector<4x1xf32>
    %59 = vector.broadcast %58 : vector<4x1xf32> to vector<4x512xf32>
    %60 = arith.addf %57, %59 : vector<4x512xf32>
    %61 = vector.broadcast %0 : vector<1x512xf32> to vector<4x512xf32>
    %62 = arith.mulf %56, %61 : vector<4x512xf32>
    %63 = vector.broadcast %0 : vector<1x512xf32> to vector<4x512xf32>
    %64 = arith.mulf %60, %63 : vector<4x512xf32>
    %c0_64 = arith.constant 0 : index
    %c0_65 = arith.constant 0 : index
    %65 = vector.load %arg8[%c0_64, %c0_65] : memref<6x72xbf16, #tpu.memory_space<vmem>>, vector<6x72xbf16>
    %c0_66 = arith.constant 0 : index
    %c0_67 = arith.constant 0 : index
    %66 = vector.load %arg9[%c0_66, %c0_67] : memref<6x72xbf16, #tpu.memory_space<vmem>>, vector<6x72xbf16>
    %cst_68 = arith.constant dense<0.000000e+00> : vector<6x512xf32>
    %67 = tpu.matmul %65, %44, %cst_68 {dimension_numbers = #tpu.dot_dimension_numbers<[1], [0], [0], [1], [0, 0, 1, 1], [], []>} : vector<6x72xbf16>, vector<72x512xbf16>, vector<6x512xf32> -> vector<6x512xf32>
    %cst_69 = arith.constant dense<0.000000e+00> : vector<6x512xf32>
    %68 = tpu.matmul %66, %46, %cst_69 {dimension_numbers = #tpu.dot_dimension_numbers<[1], [0], [0], [1], [0, 0, 1, 1], [], []>} : vector<6x72xbf16>, vector<72x512xbf16>, vector<6x512xf32> -> vector<6x512xf32>
    %cst_70 = arith.constant dense<0.000000e+00> : vector<6x512xf32>
    %69 = tpu.matmul %65, %46, %cst_70 {dimension_numbers = #tpu.dot_dimension_numbers<[1], [0], [0], [1], [0, 0, 1, 1], [], []>} : vector<6x72xbf16>, vector<72x512xbf16>, vector<6x512xf32> -> vector<6x512xf32>
    %cst_71 = arith.constant dense<0.000000e+00> : vector<6x512xf32>
    %70 = tpu.matmul %66, %44, %cst_71 {dimension_numbers = #tpu.dot_dimension_numbers<[1], [0], [0], [1], [0, 0, 1, 1], [], []>} : vector<6x72xbf16>, vector<72x512xbf16>, vector<6x512xf32> -> vector<6x512xf32>
    %71 = arith.subf %67, %68 : vector<6x512xf32>
    %c0_72 = arith.constant 0 : index
    %c0_73 = arith.constant 0 : index
    %72 = vector.load %arg10[%c0_72, %c0_73] : memref<6x1xf32, #tpu.memory_space<vmem>>, vector<6x1xf32>
    %73 = vector.broadcast %72 : vector<6x1xf32> to vector<6x512xf32>
    %74 = arith.addf %71, %73 : vector<6x512xf32>
    %75 = arith.addf %69, %70 : vector<6x512xf32>
    %c0_74 = arith.constant 0 : index
    %c0_75 = arith.constant 0 : index
    %76 = vector.load %arg11[%c0_74, %c0_75] : memref<6x1xf32, #tpu.memory_space<vmem>>, vector<6x1xf32>
    %77 = vector.broadcast %76 : vector<6x1xf32> to vector<6x512xf32>
    %78 = arith.addf %75, %77 : vector<6x512xf32>
    %79 = vector.broadcast %0 : vector<1x512xf32> to vector<6x512xf32>
    %80 = arith.mulf %74, %79 : vector<6x512xf32>
    %81 = vector.broadcast %0 : vector<1x512xf32> to vector<6x512xf32>
    %82 = arith.mulf %78, %81 : vector<6x512xf32>
    %c46_i32 = arith.constant 46 : i32
    %83 = tpu.dynamic_rotate %2 by %c46_i32 dim 1 : vector<8x512xf32>, i32 -> vector<8x512xf32>
    %c46_i32_76 = arith.constant 46 : i32
    %84 = tpu.dynamic_rotate %4 by %c46_i32_76 dim 1 : vector<8x512xf32>, i32 -> vector<8x512xf32>
    %c0_77 = arith.constant 0 : index
    %c0_78 = arith.constant 0 : index
    %85 = vector.load %arg30[%c0_77, %c0_78] : memref<216x512xf32, #tpu.memory_space<vmem>>, vector<8x512xf32>
    tpu.vector_store %arg30[%c0_77, %c0_78], %83 {strides = array<i32>} : memref<216x512xf32, #tpu.memory_space<vmem>>, vector<8x512xf32>,
    %c0_79 = arith.constant 0 : index
    %c0_80 = arith.constant 0 : index
    %86 = vector.load %arg31[%c0_79, %c0_80] : memref<216x512xf32, #tpu.memory_space<vmem>>, vector<8x512xf32>
    tpu.vector_store %arg31[%c0_79, %c0_80], %84 {strides = array<i32>} : memref<216x512xf32, #tpu.memory_space<vmem>>, vector<8x512xf32>,
    %c44_i32 = arith.constant 44 : i32
    %87 = tpu.dynamic_rotate %2 by %c44_i32 dim 1 : vector<8x512xf32>, i32 -> vector<8x512xf32>
    %c44_i32_81 = arith.constant 44 : i32
    %88 = tpu.dynamic_rotate %4 by %c44_i32_81 dim 1 : vector<8x512xf32>, i32 -> vector<8x512xf32>
    %c8_82 = arith.constant 8 : index
    %c0_83 = arith.constant 0 : index
    %89 = vector.load %arg30[%c8_82, %c0_83] : memref<216x512xf32, #tpu.memory_space<vmem>>, vector<8x512xf32>
    tpu.vector_store %arg30[%c8_82, %c0_83], %87 {strides = array<i32>} : memref<216x512xf32, #tpu.memory_space<vmem>>, vector<8x512xf32>,
    %c8_84 = arith.constant 8 : index
    %c0_85 = arith.constant 0 : index
    %90 = vector.load %arg31[%c8_84, %c0_85] : memref<216x512xf32, #tpu.memory_space<vmem>>, vector<8x512xf32>
    tpu.vector_store %arg31[%c8_84, %c0_85], %88 {strides = array<i32>} : memref<216x512xf32, #tpu.memory_space<vmem>>, vector<8x512xf32>,
    %c42_i32 = arith.constant 42 : i32
    %91 = tpu.dynamic_rotate %2 by %c42_i32 dim 1 : vector<8x512xf32>, i32 -> vector<8x512xf32>
    %c42_i32_86 = arith.constant 42 : i32
    %92 = tpu.dynamic_rotate %4 by %c42_i32_86 dim 1 : vector<8x512xf32>, i32 -> vector<8x512xf32>
    %c16_87 = arith.constant 16 : index
    %c0_88 = arith.constant 0 : index
    %93 = vector.load %arg30[%c16_87, %c0_88] : memref<216x512xf32, #tpu.memory_space<vmem>>, vector<8x512xf32>
    tpu.vector_store %arg30[%c16_87, %c0_88], %91 {strides = array<i32>} : memref<216x512xf32, #tpu.memory_space<vmem>>, vector<8x512xf32>,
    %c16_89 = arith.constant 16 : index
    %c0_90 = arith.constant 0 : index
    %94 = vector.load %arg31[%c16_89, %c0_90] : memref<216x512xf32, #tpu.memory_space<vmem>>, vector<8x512xf32>
    tpu.vector_store %arg31[%c16_89, %c0_90], %92 {strides = array<i32>} : memref<216x512xf32, #tpu.memory_space<vmem>>, vector<8x512xf32>,
    %c2_i32 = arith.constant 2 : i32
    %95 = tpu.dynamic_rotate %2 by %c2_i32 dim 1 : vector<8x512xf32>, i32 -> vector<8x512xf32>
    %c2_i32_91 = arith.constant 2 : i32
    %96 = tpu.dynamic_rotate %4 by %c2_i32_91 dim 1 : vector<8x512xf32>, i32 -> vector<8x512xf32>
    %c24_92 = arith.constant 24 : index
    %c0_93 = arith.constant 0 : index
    %97 = vector.load %arg30[%c24_92, %c0_93] : memref<216x512xf32, #tpu.memory_space<vmem>>, vector<8x512xf32>
    tpu.vector_store %arg30[%c24_92, %c0_93], %95 {strides = array<i32>} : memref<216x512xf32, #tpu.memory_space<vmem>>, vector<8x512xf32>,
    %c24_94 = arith.constant 24 : index
    %c0_95 = arith.constant 0 : index
    %98 = vector.load %arg31[%c24_94, %c0_95] : memref<216x512xf32, #tpu.memory_space<vmem>>, vector<8x512xf32>
    tpu.vector_store %arg31[%c24_94, %c0_95], %96 {strides = array<i32>} : memref<216x512xf32, #tpu.memory_space<vmem>>, vector<8x512xf32>,
    %c32_96 = arith.constant 32 : index
    %c0_97 = arith.constant 0 : index
    %99 = vector.load %arg30[%c32_96, %c0_97] : memref<216x512xf32, #tpu.memory_space<vmem>>, vector<8x512xf32>
    tpu.vector_store %arg30[%c32_96, %c0_97], %2 {strides = array<i32>} : memref<216x512xf32, #tpu.memory_space<vmem>>, vector<8x512xf32>,
    %c32_98 = arith.constant 32 : index
    %c0_99 = arith.constant 0 : index
    %100 = vector.load %arg31[%c32_98, %c0_99] : memref<216x512xf32, #tpu.memory_space<vmem>>, vector<8x512xf32>
    tpu.vector_store %arg31[%c32_98, %c0_99], %4 {strides = array<i32>} : memref<216x512xf32, #tpu.memory_space<vmem>>, vector<8x512xf32>,
    %c510_i32 = arith.constant 510 : i32
    %101 = tpu.dynamic_rotate %2 by %c510_i32 dim 1 : vector<8x512xf32>, i32 -> vector<8x512xf32>
    %c510_i32_100 = arith.constant 510 : i32
    %102 = tpu.dynamic_rotate %4 by %c510_i32_100 dim 1 : vector<8x512xf32>, i32 -> vector<8x512xf32>
    %c40_101 = arith.constant 40 : index
    %c0_102 = arith.constant 0 : index
    %103 = vector.load %arg30[%c40_101, %c0_102] : memref<216x512xf32, #tpu.memory_space<vmem>>, vector<8x512xf32>
    tpu.vector_store %arg30[%c40_101, %c0_102], %101 {strides = array<i32>} : memref<216x512xf32, #tpu.memory_space<vmem>>, vector<8x512xf32>,
    %c40_103 = arith.constant 40 : index
    %c0_104 = arith.constant 0 : index
    %104 = vector.load %arg31[%c40_103, %c0_104] : memref<216x512xf32, #tpu.memory_space<vmem>>, vector<8x512xf32>
    tpu.vector_store %arg31[%c40_103, %c0_104], %102 {strides = array<i32>} : memref<216x512xf32, #tpu.memory_space<vmem>>, vector<8x512xf32>,
    %c470_i32 = arith.constant 470 : i32
    %105 = tpu.dynamic_rotate %2 by %c470_i32 dim 1 : vector<8x512xf32>, i32 -> vector<8x512xf32>
    %c470_i32_105 = arith.constant 470 : i32
    %106 = tpu.dynamic_rotate %4 by %c470_i32_105 dim 1 : vector<8x512xf32>, i32 -> vector<8x512xf32>
    %c48_106 = arith.constant 48 : index
    %c0_107 = arith.constant 0 : index
    %107 = vector.load %arg30[%c48_106, %c0_107] : memref<216x512xf32, #tpu.memory_space<vmem>>, vector<8x512xf32>
    tpu.vector_store %arg30[%c48_106, %c0_107], %105 {strides = array<i32>} : memref<216x512xf32, #tpu.memory_space<vmem>>, vector<8x512xf32>,
    %c48_108 = arith.constant 48 : index
    %c0_109 = arith.constant 0 : index
    %108 = vector.load %arg31[%c48_108, %c0_109] : memref<216x512xf32, #tpu.memory_space<vmem>>, vector<8x512xf32>
    tpu.vector_store %arg31[%c48_108, %c0_109], %106 {strides = array<i32>} : memref<216x512xf32, #tpu.memory_space<vmem>>, vector<8x512xf32>,
    %c468_i32 = arith.constant 468 : i32
    %109 = tpu.dynamic_rotate %2 by %c468_i32 dim 1 : vector<8x512xf32>, i32 -> vector<8x512xf32>
    %c468_i32_110 = arith.constant 468 : i32
    %110 = tpu.dynamic_rotate %4 by %c468_i32_110 dim 1 : vector<8x512xf32>, i32 -> vector<8x512xf32>
    %c56_111 = arith.constant 56 : index
    %c0_112 = arith.constant 0 : index
    %111 = vector.load %arg30[%c56_111, %c0_112] : memref<216x512xf32, #tpu.memory_space<vmem>>, vector<8x512xf32>
    tpu.vector_store %arg30[%c56_111, %c0_112], %109 {strides = array<i32>} : memref<216x512xf32, #tpu.memory_space<vmem>>, vector<8x512xf32>,
    %c56_113 = arith.constant 56 : index
    %c0_114 = arith.constant 0 : index
    %112 = vector.load %arg31[%c56_113, %c0_114] : memref<216x512xf32, #tpu.memory_space<vmem>>, vector<8x512xf32>
    tpu.vector_store %arg31[%c56_113, %c0_114], %110 {strides = array<i32>} : memref<216x512xf32, #tpu.memory_space<vmem>>, vector<8x512xf32>,
    %c466_i32 = arith.constant 466 : i32
    %113 = tpu.dynamic_rotate %2 by %c466_i32 dim 1 : vector<8x512xf32>, i32 -> vector<8x512xf32>
    %c466_i32_115 = arith.constant 466 : i32
    %114 = tpu.dynamic_rotate %4 by %c466_i32_115 dim 1 : vector<8x512xf32>, i32 -> vector<8x512xf32>
    %c64_116 = arith.constant 64 : index
    %c0_117 = arith.constant 0 : index
    %115 = vector.load %arg30[%c64_116, %c0_117] : memref<216x512xf32, #tpu.memory_space<vmem>>, vector<8x512xf32>
    tpu.vector_store %arg30[%c64_116, %c0_117], %113 {strides = array<i32>} : memref<216x512xf32, #tpu.memory_space<vmem>>, vector<8x512xf32>,
    %c64_118 = arith.constant 64 : index
    %c0_119 = arith.constant 0 : index
    %116 = vector.load %arg31[%c64_118, %c0_119] : memref<216x512xf32, #tpu.memory_space<vmem>>, vector<8x512xf32>
    tpu.vector_store %arg31[%c64_118, %c0_119], %114 {strides = array<i32>} : memref<216x512xf32, #tpu.memory_space<vmem>>, vector<8x512xf32>,
    %c0_120 = arith.constant 0 : index
    %c0_121 = arith.constant 0 : index
    %117 = vector.load %arg30[%c0_120, %c0_121] : memref<216x512xf32, #tpu.memory_space<vmem>>, vector<72x512xf32>
    %118 = arith.truncf %117 : vector<72x512xf32> to vector<72x512xbf16>
    %c0_122 = arith.constant 0 : index
    %c0_123 = arith.constant 0 : index
    %119 = vector.load %arg31[%c0_122, %c0_123] : memref<216x512xf32, #tpu.memory_space<vmem>>, vector<72x512xf32>
    %120 = arith.truncf %119 : vector<72x512xf32> to vector<72x512xbf16>
    %c0_124 = arith.constant 0 : index
    %c0_125 = arith.constant 0 : index
    %121 = vector.load %arg12[%c0_124, %c0_125] : memref<6x72xbf16, #tpu.memory_space<vmem>>, vector<6x72xbf16>
    %c0_126 = arith.constant 0 : index
    %c0_127 = arith.constant 0 : index
    %122 = vector.load %arg13[%c0_126, %c0_127] : memref<6x72xbf16, #tpu.memory_space<vmem>>, vector<6x72xbf16>
    %cst_128 = arith.constant dense<0.000000e+00> : vector<6x512xf32>
    %123 = tpu.matmul %121, %118, %cst_128 {dimension_numbers = #tpu.dot_dimension_numbers<[1], [0], [0], [1], [0, 0, 1, 1], [], []>} : vector<6x72xbf16>, vector<72x512xbf16>, vector<6x512xf32> -> vector<6x512xf32>
    %cst_129 = arith.constant dense<0.000000e+00> : vector<6x512xf32>
    %124 = tpu.matmul %122, %120, %cst_129 {dimension_numbers = #tpu.dot_dimension_numbers<[1], [0], [0], [1], [0, 0, 1, 1], [], []>} : vector<6x72xbf16>, vector<72x512xbf16>, vector<6x512xf32> -> vector<6x512xf32>
    %cst_130 = arith.constant dense<0.000000e+00> : vector<6x512xf32>
    %125 = tpu.matmul %121, %120, %cst_130 {dimension_numbers = #tpu.dot_dimension_numbers<[1], [0], [0], [1], [0, 0, 1, 1], [], []>} : vector<6x72xbf16>, vector<72x512xbf16>, vector<6x512xf32> -> vector<6x512xf32>
    %cst_131 = arith.constant dense<0.000000e+00> : vector<6x512xf32>
    %126 = tpu.matmul %122, %118, %cst_131 {dimension_numbers = #tpu.dot_dimension_numbers<[1], [0], [0], [1], [0, 0, 1, 1], [], []>} : vector<6x72xbf16>, vector<72x512xbf16>, vector<6x512xf32> -> vector<6x512xf32>
    %127 = arith.subf %123, %124 : vector<6x512xf32>
    %c0_132 = arith.constant 0 : index
    %c0_133 = arith.constant 0 : index
    %128 = vector.load %arg14[%c0_132, %c0_133] : memref<6x1xf32, #tpu.memory_space<vmem>>, vector<6x1xf32>
    %129 = vector.broadcast %128 : vector<6x1xf32> to vector<6x512xf32>
    %130 = arith.addf %127, %129 : vector<6x512xf32>
    %131 = arith.addf %125, %126 : vector<6x512xf32>
    %c0_134 = arith.constant 0 : index
    %c0_135 = arith.constant 0 : index
    %132 = vector.load %arg15[%c0_134, %c0_135] : memref<6x1xf32, #tpu.memory_space<vmem>>, vector<6x1xf32>
    %133 = vector.broadcast %132 : vector<6x1xf32> to vector<6x512xf32>
    %134 = arith.addf %131, %133 : vector<6x512xf32>
    %135 = vector.broadcast %0 : vector<1x512xf32> to vector<6x512xf32>
    %136 = arith.mulf %130, %135 : vector<6x512xf32>
    %137 = vector.broadcast %0 : vector<1x512xf32> to vector<6x512xf32>
    %138 = arith.mulf %134, %137 : vector<6x512xf32>
    %c23_i32_136 = arith.constant 23 : i32
    %139 = tpu.dynamic_rotate %80 by %c23_i32_136 dim 1 : vector<6x512xf32>, i32 -> vector<6x512xf32>
    %c23_i32_137 = arith.constant 23 : i32
    %140 = tpu.dynamic_rotate %82 by %c23_i32_137 dim 1 : vector<6x512xf32>, i32 -> vector<6x512xf32>
    %c0_138 = arith.constant 0 : index
    %c0_139 = arith.constant 0 : index
    %141 = vector.load %arg30[%c0_138, %c0_139] : memref<216x512xf32, #tpu.memory_space<vmem>>, vector<6x512xf32>
    tpu.vector_store %arg30[%c0_138, %c0_139], %139 {strides = array<i32>} : memref<216x512xf32, #tpu.memory_space<vmem>>, vector<6x512xf32>,
    %c0_140 = arith.constant 0 : index
    %c0_141 = arith.constant 0 : index
    %142 = vector.load %arg31[%c0_140, %c0_141] : memref<216x512xf32, #tpu.memory_space<vmem>>, vector<6x512xf32>
    tpu.vector_store %arg31[%c0_140, %c0_141], %140 {strides = array<i32>} : memref<216x512xf32, #tpu.memory_space<vmem>>, vector<6x512xf32>,
    %c23_i32_142 = arith.constant 23 : i32
    %143 = tpu.dynamic_rotate %136 by %c23_i32_142 dim 1 : vector<6x512xf32>, i32 -> vector<6x512xf32>
    %c23_i32_143 = arith.constant 23 : i32
    %144 = tpu.dynamic_rotate %138 by %c23_i32_143 dim 1 : vector<6x512xf32>, i32 -> vector<6x512xf32>
    %c8_144 = arith.constant 8 : index
    %c0_145 = arith.constant 0 : index
    %145 = vector.load %arg30[%c8_144, %c0_145] : memref<216x512xf32, #tpu.memory_space<vmem>>, vector<6x512xf32>
    tpu.vector_store %arg30[%c8_144, %c0_145], %143 {strides = array<i32>} : memref<216x512xf32, #tpu.memory_space<vmem>>, vector<6x512xf32>,
    %c8_146 = arith.constant 8 : index
    %c0_147 = arith.constant 0 : index
    %146 = vector.load %arg31[%c8_146, %c0_147] : memref<216x512xf32, #tpu.memory_space<vmem>>, vector<6x512xf32>
    tpu.vector_store %arg31[%c8_146, %c0_147], %144 {strides = array<i32>} : memref<216x512xf32, #tpu.memory_space<vmem>>, vector<6x512xf32>,
    %c22_i32_148 = arith.constant 22 : i32
    %147 = tpu.dynamic_rotate %80 by %c22_i32_148 dim 1 : vector<6x512xf32>, i32 -> vector<6x512xf32>
    %c22_i32_149 = arith.constant 22 : i32
    %148 = tpu.dynamic_rotate %82 by %c22_i32_149 dim 1 : vector<6x512xf32>, i32 -> vector<6x512xf32>
    %c16_150 = arith.constant 16 : index
    %c0_151 = arith.constant 0 : index
    %149 = vector.load %arg30[%c16_150, %c0_151] : memref<216x512xf32, #tpu.memory_space<vmem>>, vector<6x512xf32>
    tpu.vector_store %arg30[%c16_150, %c0_151], %147 {strides = array<i32>} : memref<216x512xf32, #tpu.memory_space<vmem>>, vector<6x512xf32>,
    %c16_152 = arith.constant 16 : index
    %c0_153 = arith.constant 0 : index
    %150 = vector.load %arg31[%c16_152, %c0_153] : memref<216x512xf32, #tpu.memory_space<vmem>>, vector<6x512xf32>
    tpu.vector_store %arg31[%c16_152, %c0_153], %148 {strides = array<i32>} : memref<216x512xf32, #tpu.memory_space<vmem>>, vector<6x512xf32>,
    %c22_i32_154 = arith.constant 22 : i32
    %151 = tpu.dynamic_rotate %136 by %c22_i32_154 dim 1 : vector<6x512xf32>, i32 -> vector<6x512xf32>
    %c22_i32_155 = arith.constant 22 : i32
    %152 = tpu.dynamic_rotate %138 by %c22_i32_155 dim 1 : vector<6x512xf32>, i32 -> vector<6x512xf32>
    %c24_156 = arith.constant 24 : index
    %c0_157 = arith.constant 0 : index
    %153 = vector.load %arg30[%c24_156, %c0_157] : memref<216x512xf32, #tpu.memory_space<vmem>>, vector<6x512xf32>
    tpu.vector_store %arg30[%c24_156, %c0_157], %151 {strides = array<i32>} : memref<216x512xf32, #tpu.memory_space<vmem>>, vector<6x512xf32>,
    %c24_158 = arith.constant 24 : index
    %c0_159 = arith.constant 0 : index
    %154 = vector.load %arg31[%c24_158, %c0_159] : memref<216x512xf32, #tpu.memory_space<vmem>>, vector<6x512xf32>
    tpu.vector_store %arg31[%c24_158, %c0_159], %152 {strides = array<i32>} : memref<216x512xf32, #tpu.memory_space<vmem>>, vector<6x512xf32>,
    %c21_i32_160 = arith.constant 21 : i32
    %155 = tpu.dynamic_rotate %80 by %c21_i32_160 dim 1 : vector<6x512xf32>, i32 -> vector<6x512xf32>
    %c21_i32_161 = arith.constant 21 : i32
    %156 = tpu.dynamic_rotate %82 by %c21_i32_161 dim 1 : vector<6x512xf32>, i32 -> vector<6x512xf32>
    %c32_162 = arith.constant 32 : index
    %c0_163 = arith.constant 0 : index
    %157 = vector.load %arg30[%c32_162, %c0_163] : memref<216x512xf32, #tpu.memory_space<vmem>>, vector<6x512xf32>
    tpu.vector_store %arg30[%c32_162, %c0_163], %155 {strides = array<i32>} : memref<216x512xf32, #tpu.memory_space<vmem>>, vector<6x512xf32>,
    %c32_164 = arith.constant 32 : index
    %c0_165 = arith.constant 0 : index
    %158 = vector.load %arg31[%c32_164, %c0_165] : memref<216x512xf32, #tpu.memory_space<vmem>>, vector<6x512xf32>
    tpu.vector_store %arg31[%c32_164, %c0_165], %156 {strides = array<i32>} : memref<216x512xf32, #tpu.memory_space<vmem>>, vector<6x512xf32>,
    %c21_i32_166 = arith.constant 21 : i32
    %159 = tpu.dynamic_rotate %136 by %c21_i32_166 dim 1 : vector<6x512xf32>, i32 -> vector<6x512xf32>
    %c21_i32_167 = arith.constant 21 : i32
    %160 = tpu.dynamic_rotate %138 by %c21_i32_167 dim 1 : vector<6x512xf32>, i32 -> vector<6x512xf32>
    %c40_168 = arith.constant 40 : index
    %c0_169 = arith.constant 0 : index
    %161 = vector.load %arg30[%c40_168, %c0_169] : memref<216x512xf32, #tpu.memory_space<vmem>>, vector<6x512xf32>
    tpu.vector_store %arg30[%c40_168, %c0_169], %159 {strides = array<i32>} : memref<216x512xf32, #tpu.memory_space<vmem>>, vector<6x512xf32>,
    %c40_170 = arith.constant 40 : index
    %c0_171 = arith.constant 0 : index
    %162 = vector.load %arg31[%c40_170, %c0_171] : memref<216x512xf32, #tpu.memory_space<vmem>>, vector<6x512xf32>
    tpu.vector_store %arg31[%c40_170, %c0_171], %160 {strides = array<i32>} : memref<216x512xf32, #tpu.memory_space<vmem>>, vector<6x512xf32>,
    %c1_i32_172 = arith.constant 1 : i32
    %163 = tpu.dynamic_rotate %80 by %c1_i32_172 dim 1 : vector<6x512xf32>, i32 -> vector<6x512xf32>
    %c1_i32_173 = arith.constant 1 : i32
    %164 = tpu.dynamic_rotate %82 by %c1_i32_173 dim 1 : vector<6x512xf32>, i32 -> vector<6x512xf32>
    %c48_174 = arith.constant 48 : index
    %c0_175 = arith.constant 0 : index
    %165 = vector.load %arg30[%c48_174, %c0_175] : memref<216x512xf32, #tpu.memory_space<vmem>>, vector<6x512xf32>
    tpu.vector_store %arg30[%c48_174, %c0_175], %163 {strides = array<i32>} : memref<216x512xf32, #tpu.memory_space<vmem>>, vector<6x512xf32>,
    %c48_176 = arith.constant 48 : index
    %c0_177 = arith.constant 0 : index
    %166 = vector.load %arg31[%c48_176, %c0_177] : memref<216x512xf32, #tpu.memory_space<vmem>>, vector<6x512xf32>
    tpu.vector_store %arg31[%c48_176, %c0_177], %164 {strides = array<i32>} : memref<216x512xf32, #tpu.memory_space<vmem>>, vector<6x512xf32>,
    %c1_i32_178 = arith.constant 1 : i32
    %167 = tpu.dynamic_rotate %136 by %c1_i32_178 dim 1 : vector<6x512xf32>, i32 -> vector<6x512xf32>
    %c1_i32_179 = arith.constant 1 : i32
    %168 = tpu.dynamic_rotate %138 by %c1_i32_179 dim 1 : vector<6x512xf32>, i32 -> vector<6x512xf32>
    %c56_180 = arith.constant 56 : index
    %c0_181 = arith.constant 0 : index
    %169 = vector.load %arg30[%c56_180, %c0_181] : memref<216x512xf32, #tpu.memory_space<vmem>>, vector<6x512xf32>
    tpu.vector_store %arg30[%c56_180, %c0_181], %167 {strides = array<i32>} : memref<216x512xf32, #tpu.memory_space<vmem>>, vector<6x512xf32>,
    %c56_182 = arith.constant 56 : index
    %c0_183 = arith.constant 0 : index
    %170 = vector.load %arg31[%c56_182, %c0_183] : memref<216x512xf32, #tpu.memory_space<vmem>>, vector<6x512xf32>
    tpu.vector_store %arg31[%c56_182, %c0_183], %168 {strides = array<i32>} : memref<216x512xf32, #tpu.memory_space<vmem>>, vector<6x512xf32>,
    %c64_184 = arith.constant 64 : index
    %c0_185 = arith.constant 0 : index
    %171 = vector.load %arg30[%c64_184, %c0_185] : memref<216x512xf32, #tpu.memory_space<vmem>>, vector<6x512xf32>
    tpu.vector_store %arg30[%c64_184, %c0_185], %80 {strides = array<i32>} : memref<216x512xf32, #tpu.memory_space<vmem>>, vector<6x512xf32>,
    %c64_186 = arith.constant 64 : index
    %c0_187 = arith.constant 0 : index
    %172 = vector.load %arg31[%c64_186, %c0_187] : memref<216x512xf32, #tpu.memory_space<vmem>>, vector<6x512xf32>
    tpu.vector_store %arg31[%c64_186, %c0_187], %82 {strides = array<i32>} : memref<216x512xf32, #tpu.memory_space<vmem>>, vector<6x512xf32>,
    %c72 = arith.constant 72 : index
    %c0_188 = arith.constant 0 : index
    %173 = vector.load %arg30[%c72, %c0_188] : memref<216x512xf32, #tpu.memory_space<vmem>>, vector<6x512xf32>
    tpu.vector_store %arg30[%c72, %c0_188], %136 {strides = array<i32>} : memref<216x512xf32, #tpu.memory_space<vmem>>, vector<6x512xf32>,
    %c72_189 = arith.constant 72 : index
    %c0_190 = arith.constant 0 : index
    %174 = vector.load %arg31[%c72_189, %c0_190] : memref<216x512xf32, #tpu.memory_space<vmem>>, vector<6x512xf32>
    tpu.vector_store %arg31[%c72_189, %c0_190], %138 {strides = array<i32>} : memref<216x512xf32, #tpu.memory_space<vmem>>, vector<6x512xf32>,
    %c511_i32_191 = arith.constant 511 : i32
    %175 = tpu.dynamic_rotate %80 by %c511_i32_191 dim 1 : vector<6x512xf32>, i32 -> vector<6x512xf32>
    %c511_i32_192 = arith.constant 511 : i32
    %176 = tpu.dynamic_rotate %82 by %c511_i32_192 dim 1 : vector<6x512xf32>, i32 -> vector<6x512xf32>
    %c80 = arith.constant 80 : index
    %c0_193 = arith.constant 0 : index
    %177 = vector.load %arg30[%c80, %c0_193] : memref<216x512xf32, #tpu.memory_space<vmem>>, vector<6x512xf32>
    tpu.vector_store %arg30[%c80, %c0_193], %175 {strides = array<i32>} : memref<216x512xf32, #tpu.memory_space<vmem>>, vector<6x512xf32>,
    %c80_194 = arith.constant 80 : index
    %c0_195 = arith.constant 0 : index
    %178 = vector.load %arg31[%c80_194, %c0_195] : memref<216x512xf32, #tpu.memory_space<vmem>>, vector<6x512xf32>
    tpu.vector_store %arg31[%c80_194, %c0_195], %176 {strides = array<i32>} : memref<216x512xf32, #tpu.memory_space<vmem>>, vector<6x512xf32>,
    %c511_i32_196 = arith.constant 511 : i32
    %179 = tpu.dynamic_rotate %136 by %c511_i32_196 dim 1 : vector<6x512xf32>, i32 -> vector<6x512xf32>
    %c511_i32_197 = arith.constant 511 : i32
    %180 = tpu.dynamic_rotate %138 by %c511_i32_197 dim 1 : vector<6x512xf32>, i32 -> vector<6x512xf32>
    %c88 = arith.constant 88 : index
    %c0_198 = arith.constant 0 : index
    %181 = vector.load %arg30[%c88, %c0_198] : memref<216x512xf32, #tpu.memory_space<vmem>>, vector<6x512xf32>
    tpu.vector_store %arg30[%c88, %c0_198], %179 {strides = array<i32>} : memref<216x512xf32, #tpu.memory_space<vmem>>, vector<6x512xf32>,
    %c88_199 = arith.constant 88 : index
    %c0_200 = arith.constant 0 : index
    %182 = vector.load %arg31[%c88_199, %c0_200] : memref<216x512xf32, #tpu.memory_space<vmem>>, vector<6x512xf32>
    tpu.vector_store %arg31[%c88_199, %c0_200], %180 {strides = array<i32>} : memref<216x512xf32, #tpu.memory_space<vmem>>, vector<6x512xf32>,
    %c491_i32_201 = arith.constant 491 : i32
    %183 = tpu.dynamic_rotate %80 by %c491_i32_201 dim 1 : vector<6x512xf32>, i32 -> vector<6x512xf32>
    %c491_i32_202 = arith.constant 491 : i32
    %184 = tpu.dynamic_rotate %82 by %c491_i32_202 dim 1 : vector<6x512xf32>, i32 -> vector<6x512xf32>
    %c96 = arith.constant 96 : index
    %c0_203 = arith.constant 0 : index
    %185 = vector.load %arg30[%c96, %c0_203] : memref<216x512xf32, #tpu.memory_space<vmem>>, vector<6x512xf32>
    tpu.vector_store %arg30[%c96, %c0_203], %183 {strides = array<i32>} : memref<216x512xf32, #tpu.memory_space<vmem>>, vector<6x512xf32>,
    %c96_204 = arith.constant 96 : index
    %c0_205 = arith.constant 0 : index
    %186 = vector.load %arg31[%c96_204, %c0_205] : memref<216x512xf32, #tpu.memory_space<vmem>>, vector<6x512xf32>
    tpu.vector_store %arg31[%c96_204, %c0_205], %184 {strides = array<i32>} : memref<216x512xf32, #tpu.memory_space<vmem>>, vector<6x512xf32>,
    %c491_i32_206 = arith.constant 491 : i32
    %187 = tpu.dynamic_rotate %136 by %c491_i32_206 dim 1 : vector<6x512xf32>, i32 -> vector<6x512xf32>
    %c491_i32_207 = arith.constant 491 : i32
    %188 = tpu.dynamic_rotate %138 by %c491_i32_207 dim 1 : vector<6x512xf32>, i32 -> vector<6x512xf32>
    %c104 = arith.constant 104 : index
    %c0_208 = arith.constant 0 : index
    %189 = vector.load %arg30[%c104, %c0_208] : memref<216x512xf32, #tpu.memory_space<vmem>>, vector<6x512xf32>
    tpu.vector_store %arg30[%c104, %c0_208], %187 {strides = array<i32>} : memref<216x512xf32, #tpu.memory_space<vmem>>, vector<6x512xf32>,
    %c104_209 = arith.constant 104 : index
    %c0_210 = arith.constant 0 : index
    %190 = vector.load %arg31[%c104_209, %c0_210] : memref<216x512xf32, #tpu.memory_space<vmem>>, vector<6x512xf32>
    tpu.vector_store %arg31[%c104_209, %c0_210], %188 {strides = array<i32>} : memref<216x512xf32, #tpu.memory_space<vmem>>, vector<6x512xf32>,
    %c490_i32_211 = arith.constant 490 : i32
    %191 = tpu.dynamic_rotate %80 by %c490_i32_211 dim 1 : vector<6x512xf32>, i32 -> vector<6x512xf32>
    %c490_i32_212 = arith.constant 490 : i32
    %192 = tpu.dynamic_rotate %82 by %c490_i32_212 dim 1 : vector<6x512xf32>, i32 -> vector<6x512xf32>
    %c112 = arith.constant 112 : index
    %c0_213 = arith.constant 0 : index
    %193 = vector.load %arg30[%c112, %c0_213] : memref<216x512xf32, #tpu.memory_space<vmem>>, vector<6x512xf32>
    tpu.vector_store %arg30[%c112, %c0_213], %191 {strides = array<i32>} : memref<216x512xf32, #tpu.memory_space<vmem>>, vector<6x512xf32>,
    %c112_214 = arith.constant 112 : index
    %c0_215 = arith.constant 0 : index
    %194 = vector.load %arg31[%c112_214, %c0_215] : memref<216x512xf32, #tpu.memory_space<vmem>>, vector<6x512xf32>
    tpu.vector_store %arg31[%c112_214, %c0_215], %192 {strides = array<i32>} : memref<216x512xf32, #tpu.memory_space<vmem>>, vector<6x512xf32>,
    %c490_i32_216 = arith.constant 490 : i32
    %195 = tpu.dynamic_rotate %136 by %c490_i32_216 dim 1 : vector<6x512xf32>, i32 -> vector<6x512xf32>
    %c490_i32_217 = arith.constant 490 : i32
    %196 = tpu.dynamic_rotate %138 by %c490_i32_217 dim 1 : vector<6x512xf32>, i32 -> vector<6x512xf32>
    %c120 = arith.constant 120 : index
    %c0_218 = arith.constant 0 : index
    %197 = vector.load %arg30[%c120, %c0_218] : memref<216x512xf32, #tpu.memory_space<vmem>>, vector<6x512xf32>
    tpu.vector_store %arg30[%c120, %c0_218], %195 {strides = array<i32>} : memref<216x512xf32, #tpu.memory_space<vmem>>, vector<6x512xf32>,
    %c120_219 = arith.constant 120 : index
    %c0_220 = arith.constant 0 : index
    %198 = vector.load %arg31[%c120_219, %c0_220] : memref<216x512xf32, #tpu.memory_space<vmem>>, vector<6x512xf32>
    tpu.vector_store %arg31[%c120_219, %c0_220], %196 {strides = array<i32>} : memref<216x512xf32, #tpu.memory_space<vmem>>, vector<6x512xf32>,
    %c489_i32_221 = arith.constant 489 : i32
    %199 = tpu.dynamic_rotate %80 by %c489_i32_221 dim 1 : vector<6x512xf32>, i32 -> vector<6x512xf32>
    %c489_i32_222 = arith.constant 489 : i32
    %200 = tpu.dynamic_rotate %82 by %c489_i32_222 dim 1 : vector<6x512xf32>, i32 -> vector<6x512xf32>
    %c128 = arith.constant 128 : index
    %c0_223 = arith.constant 0 : index
    %201 = vector.load %arg30[%c128, %c0_223] : memref<216x512xf32, #tpu.memory_space<vmem>>, vector<6x512xf32>
    tpu.vector_store %arg30[%c128, %c0_223], %199 {strides = array<i32>} : memref<216x512xf32, #tpu.memory_space<vmem>>, vector<6x512xf32>,
    %c128_224 = arith.constant 128 : index
    %c0_225 = arith.constant 0 : index
    %202 = vector.load %arg31[%c128_224, %c0_225] : memref<216x512xf32, #tpu.memory_space<vmem>>, vector<6x512xf32>
    tpu.vector_store %arg31[%c128_224, %c0_225], %200 {strides = array<i32>} : memref<216x512xf32, #tpu.memory_space<vmem>>, vector<6x512xf32>,
    %c489_i32_226 = arith.constant 489 : i32
    %203 = tpu.dynamic_rotate %136 by %c489_i32_226 dim 1 : vector<6x512xf32>, i32 -> vector<6x512xf32>
    %c489_i32_227 = arith.constant 489 : i32
    %204 = tpu.dynamic_rotate %138 by %c489_i32_227 dim 1 : vector<6x512xf32>, i32 -> vector<6x512xf32>
    %c136 = arith.constant 136 : index
    %c0_228 = arith.constant 0 : index
    %205 = vector.load %arg30[%c136, %c0_228] : memref<216x512xf32, #tpu.memory_space<vmem>>, vector<6x512xf32>
    tpu.vector_store %arg30[%c136, %c0_228], %203 {strides = array<i32>} : memref<216x512xf32, #tpu.memory_space<vmem>>, vector<6x512xf32>,
    %c136_229 = arith.constant 136 : index
    %c0_230 = arith.constant 0 : index
    %206 = vector.load %arg31[%c136_229, %c0_230] : memref<216x512xf32, #tpu.memory_space<vmem>>, vector<6x512xf32>
    tpu.vector_store %arg31[%c136_229, %c0_230], %204 {strides = array<i32>} : memref<216x512xf32, #tpu.memory_space<vmem>>, vector<6x512xf32>,
    %c0_231 = arith.constant 0 : index
    %c0_232 = arith.constant 0 : index
    %207 = vector.load %arg30[%c0_231, %c0_232] : memref<216x512xf32, #tpu.memory_space<vmem>>, vector<144x512xf32>
    %208 = arith.truncf %207 : vector<144x512xf32> to vector<144x512xbf16>
    %c0_233 = arith.constant 0 : index
    %c0_234 = arith.constant 0 : index
    %209 = vector.load %arg31[%c0_233, %c0_234] : memref<216x512xf32, #tpu.memory_space<vmem>>, vector<144x512xf32>
    %210 = arith.truncf %209 : vector<144x512xf32> to vector<144x512xbf16>
    %c0_235 = arith.constant 0 : index
    %c0_236 = arith.constant 0 : index
    %211 = vector.load %arg16[%c0_235, %c0_236] : memref<4x144xbf16, #tpu.memory_space<vmem>>, vector<4x144xbf16>
    %c0_237 = arith.constant 0 : index
    %c0_238 = arith.constant 0 : index
    %212 = vector.load %arg17[%c0_237, %c0_238] : memref<4x144xbf16, #tpu.memory_space<vmem>>, vector<4x144xbf16>
    %cst_239 = arith.constant dense<0.000000e+00> : vector<4x512xf32>
    %213 = tpu.matmul %211, %208, %cst_239 {dimension_numbers = #tpu.dot_dimension_numbers<[1], [0], [0], [1], [0, 0, 1, 1], [], []>} : vector<4x144xbf16>, vector<144x512xbf16>, vector<4x512xf32> -> vector<4x512xf32>
    %cst_240 = arith.constant dense<0.000000e+00> : vector<4x512xf32>
    %214 = tpu.matmul %212, %210, %cst_240 {dimension_numbers = #tpu.dot_dimension_numbers<[1], [0], [0], [1], [0, 0, 1, 1], [], []>} : vector<4x144xbf16>, vector<144x512xbf16>, vector<4x512xf32> -> vector<4x512xf32>
    %cst_241 = arith.constant dense<0.000000e+00> : vector<4x512xf32>
    %215 = tpu.matmul %211, %210, %cst_241 {dimension_numbers = #tpu.dot_dimension_numbers<[1], [0], [0], [1], [0, 0, 1, 1], [], []>} : vector<4x144xbf16>, vector<144x512xbf16>, vector<4x512xf32> -> vector<4x512xf32>
    %cst_242 = arith.constant dense<0.000000e+00> : vector<4x512xf32>
    %216 = tpu.matmul %212, %208, %cst_242 {dimension_numbers = #tpu.dot_dimension_numbers<[1], [0], [0], [1], [0, 0, 1, 1], [], []>} : vector<4x144xbf16>, vector<144x512xbf16>, vector<4x512xf32> -> vector<4x512xf32>
    %217 = arith.subf %213, %214 : vector<4x512xf32>
    %c0_243 = arith.constant 0 : index
    %c0_244 = arith.constant 0 : index
    %218 = vector.load %arg18[%c0_243, %c0_244] : memref<4x1xf32, #tpu.memory_space<vmem>>, vector<4x1xf32>
    %219 = vector.broadcast %218 : vector<4x1xf32> to vector<4x512xf32>
    %220 = arith.addf %217, %219 : vector<4x512xf32>
    %221 = arith.addf %215, %216 : vector<4x512xf32>
    %c0_245 = arith.constant 0 : index
    %c0_246 = arith.constant 0 : index
    %222 = vector.load %arg19[%c0_245, %c0_246] : memref<4x1xf32, #tpu.memory_space<vmem>>, vector<4x1xf32>
    %223 = vector.broadcast %222 : vector<4x1xf32> to vector<4x512xf32>
    %224 = arith.addf %221, %223 : vector<4x512xf32>
    %225 = vector.broadcast %0 : vector<1x512xf32> to vector<4x512xf32>
    %226 = arith.mulf %220, %225 : vector<4x512xf32>
    %227 = vector.broadcast %0 : vector<1x512xf32> to vector<4x512xf32>
    %228 = arith.mulf %224, %227 : vector<4x512xf32>
    %c69_i32 = arith.constant 69 : i32
    %229 = tpu.dynamic_rotate %80 by %c69_i32 dim 1 : vector<6x512xf32>, i32 -> vector<6x512xf32>
    %c69_i32_247 = arith.constant 69 : i32
    %230 = tpu.dynamic_rotate %82 by %c69_i32_247 dim 1 : vector<6x512xf32>, i32 -> vector<6x512xf32>
    %c0_248 = arith.constant 0 : index
    %c0_249 = arith.constant 0 : index
    %231 = vector.load %arg30[%c0_248, %c0_249] : memref<216x512xf32, #tpu.memory_space<vmem>>, vector<6x512xf32>
    tpu.vector_store %arg30[%c0_248, %c0_249], %229 {strides = array<i32>} : memref<216x512xf32, #tpu.memory_space<vmem>>, vector<6x512xf32>,
    %c0_250 = arith.constant 0 : index
    %c0_251 = arith.constant 0 : index
    %232 = vector.load %arg31[%c0_250, %c0_251] : memref<216x512xf32, #tpu.memory_space<vmem>>, vector<6x512xf32>
    tpu.vector_store %arg31[%c0_250, %c0_251], %230 {strides = array<i32>} : memref<216x512xf32, #tpu.memory_space<vmem>>, vector<6x512xf32>,
    %c69_i32_252 = arith.constant 69 : i32
    %233 = tpu.dynamic_rotate %136 by %c69_i32_252 dim 1 : vector<6x512xf32>, i32 -> vector<6x512xf32>
    %c69_i32_253 = arith.constant 69 : i32
    %234 = tpu.dynamic_rotate %138 by %c69_i32_253 dim 1 : vector<6x512xf32>, i32 -> vector<6x512xf32>
    %c8_254 = arith.constant 8 : index
    %c0_255 = arith.constant 0 : index
    %235 = vector.load %arg30[%c8_254, %c0_255] : memref<216x512xf32, #tpu.memory_space<vmem>>, vector<6x512xf32>
    tpu.vector_store %arg30[%c8_254, %c0_255], %233 {strides = array<i32>} : memref<216x512xf32, #tpu.memory_space<vmem>>, vector<6x512xf32>,
    %c8_256 = arith.constant 8 : index
    %c0_257 = arith.constant 0 : index
    %236 = vector.load %arg31[%c8_256, %c0_257] : memref<216x512xf32, #tpu.memory_space<vmem>>, vector<6x512xf32>
    tpu.vector_store %arg31[%c8_256, %c0_257], %234 {strides = array<i32>} : memref<216x512xf32, #tpu.memory_space<vmem>>, vector<6x512xf32>,
    %c66_i32 = arith.constant 66 : i32
    %237 = tpu.dynamic_rotate %80 by %c66_i32 dim 1 : vector<6x512xf32>, i32 -> vector<6x512xf32>
    %c66_i32_258 = arith.constant 66 : i32
    %238 = tpu.dynamic_rotate %82 by %c66_i32_258 dim 1 : vector<6x512xf32>, i32 -> vector<6x512xf32>
    %c16_259 = arith.constant 16 : index
    %c0_260 = arith.constant 0 : index
    %239 = vector.load %arg30[%c16_259, %c0_260] : memref<216x512xf32, #tpu.memory_space<vmem>>, vector<6x512xf32>
    tpu.vector_store %arg30[%c16_259, %c0_260], %237 {strides = array<i32>} : memref<216x512xf32, #tpu.memory_space<vmem>>, vector<6x512xf32>,
    %c16_261 = arith.constant 16 : index
    %c0_262 = arith.constant 0 : index
    %240 = vector.load %arg31[%c16_261, %c0_262] : memref<216x512xf32, #tpu.memory_space<vmem>>, vector<6x512xf32>
    tpu.vector_store %arg31[%c16_261, %c0_262], %238 {strides = array<i32>} : memref<216x512xf32, #tpu.memory_space<vmem>>, vector<6x512xf32>,
    %c66_i32_263 = arith.constant 66 : i32
    %241 = tpu.dynamic_rotate %136 by %c66_i32_263 dim 1 : vector<6x512xf32>, i32 -> vector<6x512xf32>
    %c66_i32_264 = arith.constant 66 : i32
    %242 = tpu.dynamic_rotate %138 by %c66_i32_264 dim 1 : vector<6x512xf32>, i32 -> vector<6x512xf32>
    %c24_265 = arith.constant 24 : index
    %c0_266 = arith.constant 0 : index
    %243 = vector.load %arg30[%c24_265, %c0_266] : memref<216x512xf32, #tpu.memory_space<vmem>>, vector<6x512xf32>
    tpu.vector_store %arg30[%c24_265, %c0_266], %241 {strides = array<i32>} : memref<216x512xf32, #tpu.memory_space<vmem>>, vector<6x512xf32>,
    %c24_267 = arith.constant 24 : index
    %c0_268 = arith.constant 0 : index
    %244 = vector.load %arg31[%c24_267, %c0_268] : memref<216x512xf32, #tpu.memory_space<vmem>>, vector<6x512xf32>
    tpu.vector_store %arg31[%c24_267, %c0_268], %242 {strides = array<i32>} : memref<216x512xf32, #tpu.memory_space<vmem>>, vector<6x512xf32>,
    %c63_i32 = arith.constant 63 : i32
    %245 = tpu.dynamic_rotate %80 by %c63_i32 dim 1 : vector<6x512xf32>, i32 -> vector<6x512xf32>
    %c63_i32_269 = arith.constant 63 : i32
    %246 = tpu.dynamic_rotate %82 by %c63_i32_269 dim 1 : vector<6x512xf32>, i32 -> vector<6x512xf32>
    %c32_270 = arith.constant 32 : index
    %c0_271 = arith.constant 0 : index
    %247 = vector.load %arg30[%c32_270, %c0_271] : memref<216x512xf32, #tpu.memory_space<vmem>>, vector<6x512xf32>
    tpu.vector_store %arg30[%c32_270, %c0_271], %245 {strides = array<i32>} : memref<216x512xf32, #tpu.memory_space<vmem>>, vector<6x512xf32>,
    %c32_272 = arith.constant 32 : index
    %c0_273 = arith.constant 0 : index
    %248 = vector.load %arg31[%c32_272, %c0_273] : memref<216x512xf32, #tpu.memory_space<vmem>>, vector<6x512xf32>
    tpu.vector_store %arg31[%c32_272, %c0_273], %246 {strides = array<i32>} : memref<216x512xf32, #tpu.memory_space<vmem>>, vector<6x512xf32>,
    %c63_i32_274 = arith.constant 63 : i32
    %249 = tpu.dynamic_rotate %136 by %c63_i32_274 dim 1 : vector<6x512xf32>, i32 -> vector<6x512xf32>
    %c63_i32_275 = arith.constant 63 : i32
    %250 = tpu.dynamic_rotate %138 by %c63_i32_275 dim 1 : vector<6x512xf32>, i32 -> vector<6x512xf32>
    %c40_276 = arith.constant 40 : index
    %c0_277 = arith.constant 0 : index
    %251 = vector.load %arg30[%c40_276, %c0_277] : memref<216x512xf32, #tpu.memory_space<vmem>>, vector<6x512xf32>
    tpu.vector_store %arg30[%c40_276, %c0_277], %249 {strides = array<i32>} : memref<216x512xf32, #tpu.memory_space<vmem>>, vector<6x512xf32>,
    %c40_278 = arith.constant 40 : index
    %c0_279 = arith.constant 0 : index
    %252 = vector.load %arg31[%c40_278, %c0_279] : memref<216x512xf32, #tpu.memory_space<vmem>>, vector<6x512xf32>
    tpu.vector_store %arg31[%c40_278, %c0_279], %250 {strides = array<i32>} : memref<216x512xf32, #tpu.memory_space<vmem>>, vector<6x512xf32>,
    %c3_i32 = arith.constant 3 : i32
    %253 = tpu.dynamic_rotate %80 by %c3_i32 dim 1 : vector<6x512xf32>, i32 -> vector<6x512xf32>
    %c3_i32_280 = arith.constant 3 : i32
    %254 = tpu.dynamic_rotate %82 by %c3_i32_280 dim 1 : vector<6x512xf32>, i32 -> vector<6x512xf32>
    %c48_281 = arith.constant 48 : index
    %c0_282 = arith.constant 0 : index
    %255 = vector.load %arg30[%c48_281, %c0_282] : memref<216x512xf32, #tpu.memory_space<vmem>>, vector<6x512xf32>
    tpu.vector_store %arg30[%c48_281, %c0_282], %253 {strides = array<i32>} : memref<216x512xf32, #tpu.memory_space<vmem>>, vector<6x512xf32>,
    %c48_283 = arith.constant 48 : index
    %c0_284 = arith.constant 0 : index
    %256 = vector.load %arg31[%c48_283, %c0_284] : memref<216x512xf32, #tpu.memory_space<vmem>>, vector<6x512xf32>
    tpu.vector_store %arg31[%c48_283, %c0_284], %254 {strides = array<i32>} : memref<216x512xf32, #tpu.memory_space<vmem>>, vector<6x512xf32>,
    %c3_i32_285 = arith.constant 3 : i32
    %257 = tpu.dynamic_rotate %136 by %c3_i32_285 dim 1 : vector<6x512xf32>, i32 -> vector<6x512xf32>
    %c3_i32_286 = arith.constant 3 : i32
    %258 = tpu.dynamic_rotate %138 by %c3_i32_286 dim 1 : vector<6x512xf32>, i32 -> vector<6x512xf32>
    %c56_287 = arith.constant 56 : index
    %c0_288 = arith.constant 0 : index
    %259 = vector.load %arg30[%c56_287, %c0_288] : memref<216x512xf32, #tpu.memory_space<vmem>>, vector<6x512xf32>
    tpu.vector_store %arg30[%c56_287, %c0_288], %257 {strides = array<i32>} : memref<216x512xf32, #tpu.memory_space<vmem>>, vector<6x512xf32>,
    %c56_289 = arith.constant 56 : index
    %c0_290 = arith.constant 0 : index
    %260 = vector.load %arg31[%c56_289, %c0_290] : memref<216x512xf32, #tpu.memory_space<vmem>>, vector<6x512xf32>
    tpu.vector_store %arg31[%c56_289, %c0_290], %258 {strides = array<i32>} : memref<216x512xf32, #tpu.memory_space<vmem>>, vector<6x512xf32>,
    %c64_291 = arith.constant 64 : index
    %c0_292 = arith.constant 0 : index
    %261 = vector.load %arg30[%c64_291, %c0_292] : memref<216x512xf32, #tpu.memory_space<vmem>>, vector<6x512xf32>
    tpu.vector_store %arg30[%c64_291, %c0_292], %80 {strides = array<i32>} : memref<216x512xf32, #tpu.memory_space<vmem>>, vector<6x512xf32>,
    %c64_293 = arith.constant 64 : index
    %c0_294 = arith.constant 0 : index
    %262 = vector.load %arg31[%c64_293, %c0_294] : memref<216x512xf32, #tpu.memory_space<vmem>>, vector<6x512xf32>
    tpu.vector_store %arg31[%c64_293, %c0_294], %82 {strides = array<i32>} : memref<216x512xf32, #tpu.memory_space<vmem>>, vector<6x512xf32>,
    %c72_295 = arith.constant 72 : index
    %c0_296 = arith.constant 0 : index
    %263 = vector.load %arg30[%c72_295, %c0_296] : memref<216x512xf32, #tpu.memory_space<vmem>>, vector<6x512xf32>
    tpu.vector_store %arg30[%c72_295, %c0_296], %136 {strides = array<i32>} : memref<216x512xf32, #tpu.memory_space<vmem>>, vector<6x512xf32>,
    %c72_297 = arith.constant 72 : index
    %c0_298 = arith.constant 0 : index
    %264 = vector.load %arg31[%c72_297, %c0_298] : memref<216x512xf32, #tpu.memory_space<vmem>>, vector<6x512xf32>
    tpu.vector_store %arg31[%c72_297, %c0_298], %138 {strides = array<i32>} : memref<216x512xf32, #tpu.memory_space<vmem>>, vector<6x512xf32>,
    %c509_i32 = arith.constant 509 : i32
    %265 = tpu.dynamic_rotate %80 by %c509_i32 dim 1 : vector<6x512xf32>, i32 -> vector<6x512xf32>
    %c509_i32_299 = arith.constant 509 : i32
    %266 = tpu.dynamic_rotate %82 by %c509_i32_299 dim 1 : vector<6x512xf32>, i32 -> vector<6x512xf32>
    %c80_300 = arith.constant 80 : index
    %c0_301 = arith.constant 0 : index
    %267 = vector.load %arg30[%c80_300, %c0_301] : memref<216x512xf32, #tpu.memory_space<vmem>>, vector<6x512xf32>
    tpu.vector_store %arg30[%c80_300, %c0_301], %265 {strides = array<i32>} : memref<216x512xf32, #tpu.memory_space<vmem>>, vector<6x512xf32>,
    %c80_302 = arith.constant 80 : index
    %c0_303 = arith.constant 0 : index
    %268 = vector.load %arg31[%c80_302, %c0_303] : memref<216x512xf32, #tpu.memory_space<vmem>>, vector<6x512xf32>
    tpu.vector_store %arg31[%c80_302, %c0_303], %266 {strides = array<i32>} : memref<216x512xf32, #tpu.memory_space<vmem>>, vector<6x512xf32>,
    %c509_i32_304 = arith.constant 509 : i32
    %269 = tpu.dynamic_rotate %136 by %c509_i32_304 dim 1 : vector<6x512xf32>, i32 -> vector<6x512xf32>
    %c509_i32_305 = arith.constant 509 : i32
    %270 = tpu.dynamic_rotate %138 by %c509_i32_305 dim 1 : vector<6x512xf32>, i32 -> vector<6x512xf32>
    %c88_306 = arith.constant 88 : index
    %c0_307 = arith.constant 0 : index
    %271 = vector.load %arg30[%c88_306, %c0_307] : memref<216x512xf32, #tpu.memory_space<vmem>>, vector<6x512xf32>
    tpu.vector_store %arg30[%c88_306, %c0_307], %269 {strides = array<i32>} : memref<216x512xf32, #tpu.memory_space<vmem>>, vector<6x512xf32>,
    %c88_308 = arith.constant 88 : index
    %c0_309 = arith.constant 0 : index
    %272 = vector.load %arg31[%c88_308, %c0_309] : memref<216x512xf32, #tpu.memory_space<vmem>>, vector<6x512xf32>
    tpu.vector_store %arg31[%c88_308, %c0_309], %270 {strides = array<i32>} : memref<216x512xf32, #tpu.memory_space<vmem>>, vector<6x512xf32>,
    %c449_i32 = arith.constant 449 : i32
    %273 = tpu.dynamic_rotate %80 by %c449_i32 dim 1 : vector<6x512xf32>, i32 -> vector<6x512xf32>
    %c449_i32_310 = arith.constant 449 : i32
    %274 = tpu.dynamic_rotate %82 by %c449_i32_310 dim 1 : vector<6x512xf32>, i32 -> vector<6x512xf32>
    %c96_311 = arith.constant 96 : index
    %c0_312 = arith.constant 0 : index
    %275 = vector.load %arg30[%c96_311, %c0_312] : memref<216x512xf32, #tpu.memory_space<vmem>>, vector<6x512xf32>
    tpu.vector_store %arg30[%c96_311, %c0_312], %273 {strides = array<i32>} : memref<216x512xf32, #tpu.memory_space<vmem>>, vector<6x512xf32>,
    %c96_313 = arith.constant 96 : index
    %c0_314 = arith.constant 0 : index
    %276 = vector.load %arg31[%c96_313, %c0_314] : memref<216x512xf32, #tpu.memory_space<vmem>>, vector<6x512xf32>
    tpu.vector_store %arg31[%c96_313, %c0_314], %274 {strides = array<i32>} : memref<216x512xf32, #tpu.memory_space<vmem>>, vector<6x512xf32>,
    %c449_i32_315 = arith.constant 449 : i32
    %277 = tpu.dynamic_rotate %136 by %c449_i32_315 dim 1 : vector<6x512xf32>, i32 -> vector<6x512xf32>
    %c449_i32_316 = arith.constant 449 : i32
    %278 = tpu.dynamic_rotate %138 by %c449_i32_316 dim 1 : vector<6x512xf32>, i32 -> vector<6x512xf32>
    %c104_317 = arith.constant 104 : index
    %c0_318 = arith.constant 0 : index
    %279 = vector.load %arg30[%c104_317, %c0_318] : memref<216x512xf32, #tpu.memory_space<vmem>>, vector<6x512xf32>
    tpu.vector_store %arg30[%c104_317, %c0_318], %277 {strides = array<i32>} : memref<216x512xf32, #tpu.memory_space<vmem>>, vector<6x512xf32>,
    %c104_319 = arith.constant 104 : index
    %c0_320 = arith.constant 0 : index
    %280 = vector.load %arg31[%c104_319, %c0_320] : memref<216x512xf32, #tpu.memory_space<vmem>>, vector<6x512xf32>
    tpu.vector_store %arg31[%c104_319, %c0_320], %278 {strides = array<i32>} : memref<216x512xf32, #tpu.memory_space<vmem>>, vector<6x512xf32>,
    %c446_i32 = arith.constant 446 : i32
    %281 = tpu.dynamic_rotate %80 by %c446_i32 dim 1 : vector<6x512xf32>, i32 -> vector<6x512xf32>
    %c446_i32_321 = arith.constant 446 : i32
    %282 = tpu.dynamic_rotate %82 by %c446_i32_321 dim 1 : vector<6x512xf32>, i32 -> vector<6x512xf32>
    %c112_322 = arith.constant 112 : index
    %c0_323 = arith.constant 0 : index
    %283 = vector.load %arg30[%c112_322, %c0_323] : memref<216x512xf32, #tpu.memory_space<vmem>>, vector<6x512xf32>
    tpu.vector_store %arg30[%c112_322, %c0_323], %281 {strides = array<i32>} : memref<216x512xf32, #tpu.memory_space<vmem>>, vector<6x512xf32>,
    %c112_324 = arith.constant 112 : index
    %c0_325 = arith.constant 0 : index
    %284 = vector.load %arg31[%c112_324, %c0_325] : memref<216x512xf32, #tpu.memory_space<vmem>>, vector<6x512xf32>
    tpu.vector_store %arg31[%c112_324, %c0_325], %282 {strides = array<i32>} : memref<216x512xf32, #tpu.memory_space<vmem>>, vector<6x512xf32>,
    %c446_i32_326 = arith.constant 446 : i32
    %285 = tpu.dynamic_rotate %136 by %c446_i32_326 dim 1 : vector<6x512xf32>, i32 -> vector<6x512xf32>
    %c446_i32_327 = arith.constant 446 : i32
    %286 = tpu.dynamic_rotate %138 by %c446_i32_327 dim 1 : vector<6x512xf32>, i32 -> vector<6x512xf32>
    %c120_328 = arith.constant 120 : index
    %c0_329 = arith.constant 0 : index
    %287 = vector.load %arg30[%c120_328, %c0_329] : memref<216x512xf32, #tpu.memory_space<vmem>>, vector<6x512xf32>
    tpu.vector_store %arg30[%c120_328, %c0_329], %285 {strides = array<i32>} : memref<216x512xf32, #tpu.memory_space<vmem>>, vector<6x512xf32>,
    %c120_330 = arith.constant 120 : index
    %c0_331 = arith.constant 0 : index
    %288 = vector.load %arg31[%c120_330, %c0_331] : memref<216x512xf32, #tpu.memory_space<vmem>>, vector<6x512xf32>
    tpu.vector_store %arg31[%c120_330, %c0_331], %286 {strides = array<i32>} : memref<216x512xf32, #tpu.memory_space<vmem>>, vector<6x512xf32>,
    %c443_i32 = arith.constant 443 : i32
    %289 = tpu.dynamic_rotate %80 by %c443_i32 dim 1 : vector<6x512xf32>, i32 -> vector<6x512xf32>
    %c443_i32_332 = arith.constant 443 : i32
    %290 = tpu.dynamic_rotate %82 by %c443_i32_332 dim 1 : vector<6x512xf32>, i32 -> vector<6x512xf32>
    %c128_333 = arith.constant 128 : index
    %c0_334 = arith.constant 0 : index
    %291 = vector.load %arg30[%c128_333, %c0_334] : memref<216x512xf32, #tpu.memory_space<vmem>>, vector<6x512xf32>
    tpu.vector_store %arg30[%c128_333, %c0_334], %289 {strides = array<i32>} : memref<216x512xf32, #tpu.memory_space<vmem>>, vector<6x512xf32>,
    %c128_335 = arith.constant 128 : index
    %c0_336 = arith.constant 0 : index
    %292 = vector.load %arg31[%c128_335, %c0_336] : memref<216x512xf32, #tpu.memory_space<vmem>>, vector<6x512xf32>
    tpu.vector_store %arg31[%c128_335, %c0_336], %290 {strides = array<i32>} : memref<216x512xf32, #tpu.memory_space<vmem>>, vector<6x512xf32>,
    %c443_i32_337 = arith.constant 443 : i32
    %293 = tpu.dynamic_rotate %136 by %c443_i32_337 dim 1 : vector<6x512xf32>, i32 -> vector<6x512xf32>
    %c443_i32_338 = arith.constant 443 : i32
    %294 = tpu.dynamic_rotate %138 by %c443_i32_338 dim 1 : vector<6x512xf32>, i32 -> vector<6x512xf32>
    %c136_339 = arith.constant 136 : index
    %c0_340 = arith.constant 0 : index
    %295 = vector.load %arg30[%c136_339, %c0_340] : memref<216x512xf32, #tpu.memory_space<vmem>>, vector<6x512xf32>
    tpu.vector_store %arg30[%c136_339, %c0_340], %293 {strides = array<i32>} : memref<216x512xf32, #tpu.memory_space<vmem>>, vector<6x512xf32>,
    %c136_341 = arith.constant 136 : index
    %c0_342 = arith.constant 0 : index
    %296 = vector.load %arg31[%c136_341, %c0_342] : memref<216x512xf32, #tpu.memory_space<vmem>>, vector<6x512xf32>
    tpu.vector_store %arg31[%c136_341, %c0_342], %294 {strides = array<i32>} : memref<216x512xf32, #tpu.memory_space<vmem>>, vector<6x512xf32>,
    %c0_343 = arith.constant 0 : index
    %c0_344 = arith.constant 0 : index
    %297 = vector.load %arg30[%c0_343, %c0_344] : memref<216x512xf32, #tpu.memory_space<vmem>>, vector<144x512xf32>
    %298 = arith.truncf %297 : vector<144x512xf32> to vector<144x512xbf16>
    %c0_345 = arith.constant 0 : index
    %c0_346 = arith.constant 0 : index
    %299 = vector.load %arg31[%c0_345, %c0_346] : memref<216x512xf32, #tpu.memory_space<vmem>>, vector<144x512xf32>
    %300 = arith.truncf %299 : vector<144x512xf32> to vector<144x512xbf16>
    %c0_347 = arith.constant 0 : index
    %c0_348 = arith.constant 0 : index
    %301 = vector.load %arg20[%c0_347, %c0_348] : memref<4x144xbf16, #tpu.memory_space<vmem>>, vector<4x144xbf16>
    %c0_349 = arith.constant 0 : index
    %c0_350 = arith.constant 0 : index
    %302 = vector.load %arg21[%c0_349, %c0_350] : memref<4x144xbf16, #tpu.memory_space<vmem>>, vector<4x144xbf16>
    %cst_351 = arith.constant dense<0.000000e+00> : vector<4x512xf32>
    %303 = tpu.matmul %301, %298, %cst_351 {dimension_numbers = #tpu.dot_dimension_numbers<[1], [0], [0], [1], [0, 0, 1, 1], [], []>} : vector<4x144xbf16>, vector<144x512xbf16>, vector<4x512xf32> -> vector<4x512xf32>
    %cst_352 = arith.constant dense<0.000000e+00> : vector<4x512xf32>
    %304 = tpu.matmul %302, %300, %cst_352 {dimension_numbers = #tpu.dot_dimension_numbers<[1], [0], [0], [1], [0, 0, 1, 1], [], []>} : vector<4x144xbf16>, vector<144x512xbf16>, vector<4x512xf32> -> vector<4x512xf32>
    %cst_353 = arith.constant dense<0.000000e+00> : vector<4x512xf32>
    %305 = tpu.matmul %301, %300, %cst_353 {dimension_numbers = #tpu.dot_dimension_numbers<[1], [0], [0], [1], [0, 0, 1, 1], [], []>} : vector<4x144xbf16>, vector<144x512xbf16>, vector<4x512xf32> -> vector<4x512xf32>
    %cst_354 = arith.constant dense<0.000000e+00> : vector<4x512xf32>
    %306 = tpu.matmul %302, %298, %cst_354 {dimension_numbers = #tpu.dot_dimension_numbers<[1], [0], [0], [1], [0, 0, 1, 1], [], []>} : vector<4x144xbf16>, vector<144x512xbf16>, vector<4x512xf32> -> vector<4x512xf32>
    %307 = arith.subf %303, %304 : vector<4x512xf32>
    %c0_355 = arith.constant 0 : index
    %c0_356 = arith.constant 0 : index
    %308 = vector.load %arg22[%c0_355, %c0_356] : memref<4x1xf32, #tpu.memory_space<vmem>>, vector<4x1xf32>
    %309 = vector.broadcast %308 : vector<4x1xf32> to vector<4x512xf32>
    %310 = arith.addf %307, %309 : vector<4x512xf32>
    %311 = arith.addf %305, %306 : vector<4x512xf32>
    %c0_357 = arith.constant 0 : index
    %c0_358 = arith.constant 0 : index
    %312 = vector.load %arg23[%c0_357, %c0_358] : memref<4x1xf32, #tpu.memory_space<vmem>>, vector<4x1xf32>
    %313 = vector.broadcast %312 : vector<4x1xf32> to vector<4x512xf32>
    %314 = arith.addf %311, %313 : vector<4x512xf32>
    %315 = vector.broadcast %0 : vector<1x512xf32> to vector<4x512xf32>
    %316 = arith.mulf %310, %315 : vector<4x512xf32>
    %317 = vector.broadcast %0 : vector<1x512xf32> to vector<4x512xf32>
    %318 = arith.mulf %314, %317 : vector<4x512xf32>
    %c23_i32_359 = arith.constant 23 : i32
    %319 = tpu.dynamic_rotate %62 by %c23_i32_359 dim 1 : vector<4x512xf32>, i32 -> vector<4x512xf32>
    %c23_i32_360 = arith.constant 23 : i32
    %320 = tpu.dynamic_rotate %64 by %c23_i32_360 dim 1 : vector<4x512xf32>, i32 -> vector<4x512xf32>
    %c0_361 = arith.constant 0 : index
    %c0_362 = arith.constant 0 : index
    %321 = vector.load %arg30[%c0_361, %c0_362] : memref<216x512xf32, #tpu.memory_space<vmem>>, vector<4x512xf32>
    tpu.vector_store %arg30[%c0_361, %c0_362], %319 {strides = array<i32>} : memref<216x512xf32, #tpu.memory_space<vmem>>, vector<4x512xf32>,
    %c0_363 = arith.constant 0 : index
    %c0_364 = arith.constant 0 : index
    %322 = vector.load %arg31[%c0_363, %c0_364] : memref<216x512xf32, #tpu.memory_space<vmem>>, vector<4x512xf32>
    tpu.vector_store %arg31[%c0_363, %c0_364], %320 {strides = array<i32>} : memref<216x512xf32, #tpu.memory_space<vmem>>, vector<4x512xf32>,
    %c23_i32_365 = arith.constant 23 : i32
    %323 = tpu.dynamic_rotate %226 by %c23_i32_365 dim 1 : vector<4x512xf32>, i32 -> vector<4x512xf32>
    %c23_i32_366 = arith.constant 23 : i32
    %324 = tpu.dynamic_rotate %228 by %c23_i32_366 dim 1 : vector<4x512xf32>, i32 -> vector<4x512xf32>
    %c8_367 = arith.constant 8 : index
    %c0_368 = arith.constant 0 : index
    %325 = vector.load %arg30[%c8_367, %c0_368] : memref<216x512xf32, #tpu.memory_space<vmem>>, vector<4x512xf32>
    tpu.vector_store %arg30[%c8_367, %c0_368], %323 {strides = array<i32>} : memref<216x512xf32, #tpu.memory_space<vmem>>, vector<4x512xf32>,
    %c8_369 = arith.constant 8 : index
    %c0_370 = arith.constant 0 : index
    %326 = vector.load %arg31[%c8_369, %c0_370] : memref<216x512xf32, #tpu.memory_space<vmem>>, vector<4x512xf32>
    tpu.vector_store %arg31[%c8_369, %c0_370], %324 {strides = array<i32>} : memref<216x512xf32, #tpu.memory_space<vmem>>, vector<4x512xf32>,
    %c23_i32_371 = arith.constant 23 : i32
    %327 = tpu.dynamic_rotate %316 by %c23_i32_371 dim 1 : vector<4x512xf32>, i32 -> vector<4x512xf32>
    %c23_i32_372 = arith.constant 23 : i32
    %328 = tpu.dynamic_rotate %318 by %c23_i32_372 dim 1 : vector<4x512xf32>, i32 -> vector<4x512xf32>
    %c16_373 = arith.constant 16 : index
    %c0_374 = arith.constant 0 : index
    %329 = vector.load %arg30[%c16_373, %c0_374] : memref<216x512xf32, #tpu.memory_space<vmem>>, vector<4x512xf32>
    tpu.vector_store %arg30[%c16_373, %c0_374], %327 {strides = array<i32>} : memref<216x512xf32, #tpu.memory_space<vmem>>, vector<4x512xf32>,
    %c16_375 = arith.constant 16 : index
    %c0_376 = arith.constant 0 : index
    %330 = vector.load %arg31[%c16_375, %c0_376] : memref<216x512xf32, #tpu.memory_space<vmem>>, vector<4x512xf32>
    tpu.vector_store %arg31[%c16_375, %c0_376], %328 {strides = array<i32>} : memref<216x512xf32, #tpu.memory_space<vmem>>, vector<4x512xf32>,
    %c22_i32_377 = arith.constant 22 : i32
    %331 = tpu.dynamic_rotate %62 by %c22_i32_377 dim 1 : vector<4x512xf32>, i32 -> vector<4x512xf32>
    %c22_i32_378 = arith.constant 22 : i32
    %332 = tpu.dynamic_rotate %64 by %c22_i32_378 dim 1 : vector<4x512xf32>, i32 -> vector<4x512xf32>
    %c24_379 = arith.constant 24 : index
    %c0_380 = arith.constant 0 : index
    %333 = vector.load %arg30[%c24_379, %c0_380] : memref<216x512xf32, #tpu.memory_space<vmem>>, vector<4x512xf32>
    tpu.vector_store %arg30[%c24_379, %c0_380], %331 {strides = array<i32>} : memref<216x512xf32, #tpu.memory_space<vmem>>, vector<4x512xf32>,
    %c24_381 = arith.constant 24 : index
    %c0_382 = arith.constant 0 : index
    %334 = vector.load %arg31[%c24_381, %c0_382] : memref<216x512xf32, #tpu.memory_space<vmem>>, vector<4x512xf32>
    tpu.vector_store %arg31[%c24_381, %c0_382], %332 {strides = array<i32>} : memref<216x512xf32, #tpu.memory_space<vmem>>, vector<4x512xf32>,
    %c22_i32_383 = arith.constant 22 : i32
    %335 = tpu.dynamic_rotate %226 by %c22_i32_383 dim 1 : vector<4x512xf32>, i32 -> vector<4x512xf32>
    %c22_i32_384 = arith.constant 22 : i32
    %336 = tpu.dynamic_rotate %228 by %c22_i32_384 dim 1 : vector<4x512xf32>, i32 -> vector<4x512xf32>
    %c32_385 = arith.constant 32 : index
    %c0_386 = arith.constant 0 : index
    %337 = vector.load %arg30[%c32_385, %c0_386] : memref<216x512xf32, #tpu.memory_space<vmem>>, vector<4x512xf32>
    tpu.vector_store %arg30[%c32_385, %c0_386], %335 {strides = array<i32>} : memref<216x512xf32, #tpu.memory_space<vmem>>, vector<4x512xf32>,
    %c32_387 = arith.constant 32 : index
    %c0_388 = arith.constant 0 : index
    %338 = vector.load %arg31[%c32_387, %c0_388] : memref<216x512xf32, #tpu.memory_space<vmem>>, vector<4x512xf32>
    tpu.vector_store %arg31[%c32_387, %c0_388], %336 {strides = array<i32>} : memref<216x512xf32, #tpu.memory_space<vmem>>, vector<4x512xf32>,
    %c22_i32_389 = arith.constant 22 : i32
    %339 = tpu.dynamic_rotate %316 by %c22_i32_389 dim 1 : vector<4x512xf32>, i32 -> vector<4x512xf32>
    %c22_i32_390 = arith.constant 22 : i32
    %340 = tpu.dynamic_rotate %318 by %c22_i32_390 dim 1 : vector<4x512xf32>, i32 -> vector<4x512xf32>
    %c40_391 = arith.constant 40 : index
    %c0_392 = arith.constant 0 : index
    %341 = vector.load %arg30[%c40_391, %c0_392] : memref<216x512xf32, #tpu.memory_space<vmem>>, vector<4x512xf32>
    tpu.vector_store %arg30[%c40_391, %c0_392], %339 {strides = array<i32>} : memref<216x512xf32, #tpu.memory_space<vmem>>, vector<4x512xf32>,
    %c40_393 = arith.constant 40 : index
    %c0_394 = arith.constant 0 : index
    %342 = vector.load %arg31[%c40_393, %c0_394] : memref<216x512xf32, #tpu.memory_space<vmem>>, vector<4x512xf32>
    tpu.vector_store %arg31[%c40_393, %c0_394], %340 {strides = array<i32>} : memref<216x512xf32, #tpu.memory_space<vmem>>, vector<4x512xf32>,
    %c21_i32_395 = arith.constant 21 : i32
    %343 = tpu.dynamic_rotate %62 by %c21_i32_395 dim 1 : vector<4x512xf32>, i32 -> vector<4x512xf32>
    %c21_i32_396 = arith.constant 21 : i32
    %344 = tpu.dynamic_rotate %64 by %c21_i32_396 dim 1 : vector<4x512xf32>, i32 -> vector<4x512xf32>
    %c48_397 = arith.constant 48 : index
    %c0_398 = arith.constant 0 : index
    %345 = vector.load %arg30[%c48_397, %c0_398] : memref<216x512xf32, #tpu.memory_space<vmem>>, vector<4x512xf32>
    tpu.vector_store %arg30[%c48_397, %c0_398], %343 {strides = array<i32>} : memref<216x512xf32, #tpu.memory_space<vmem>>, vector<4x512xf32>,
    %c48_399 = arith.constant 48 : index
    %c0_400 = arith.constant 0 : index
    %346 = vector.load %arg31[%c48_399, %c0_400] : memref<216x512xf32, #tpu.memory_space<vmem>>, vector<4x512xf32>
    tpu.vector_store %arg31[%c48_399, %c0_400], %344 {strides = array<i32>} : memref<216x512xf32, #tpu.memory_space<vmem>>, vector<4x512xf32>,
    %c21_i32_401 = arith.constant 21 : i32
    %347 = tpu.dynamic_rotate %226 by %c21_i32_401 dim 1 : vector<4x512xf32>, i32 -> vector<4x512xf32>
    %c21_i32_402 = arith.constant 21 : i32
    %348 = tpu.dynamic_rotate %228 by %c21_i32_402 dim 1 : vector<4x512xf32>, i32 -> vector<4x512xf32>
    %c56_403 = arith.constant 56 : index
    %c0_404 = arith.constant 0 : index
    %349 = vector.load %arg30[%c56_403, %c0_404] : memref<216x512xf32, #tpu.memory_space<vmem>>, vector<4x512xf32>
    tpu.vector_store %arg30[%c56_403, %c0_404], %347 {strides = array<i32>} : memref<216x512xf32, #tpu.memory_space<vmem>>, vector<4x512xf32>,
    %c56_405 = arith.constant 56 : index
    %c0_406 = arith.constant 0 : index
    %350 = vector.load %arg31[%c56_405, %c0_406] : memref<216x512xf32, #tpu.memory_space<vmem>>, vector<4x512xf32>
    tpu.vector_store %arg31[%c56_405, %c0_406], %348 {strides = array<i32>} : memref<216x512xf32, #tpu.memory_space<vmem>>, vector<4x512xf32>,
    %c21_i32_407 = arith.constant 21 : i32
    %351 = tpu.dynamic_rotate %316 by %c21_i32_407 dim 1 : vector<4x512xf32>, i32 -> vector<4x512xf32>
    %c21_i32_408 = arith.constant 21 : i32
    %352 = tpu.dynamic_rotate %318 by %c21_i32_408 dim 1 : vector<4x512xf32>, i32 -> vector<4x512xf32>
    %c64_409 = arith.constant 64 : index
    %c0_410 = arith.constant 0 : index
    %353 = vector.load %arg30[%c64_409, %c0_410] : memref<216x512xf32, #tpu.memory_space<vmem>>, vector<4x512xf32>
    tpu.vector_store %arg30[%c64_409, %c0_410], %351 {strides = array<i32>} : memref<216x512xf32, #tpu.memory_space<vmem>>, vector<4x512xf32>,
    %c64_411 = arith.constant 64 : index
    %c0_412 = arith.constant 0 : index
    %354 = vector.load %arg31[%c64_411, %c0_412] : memref<216x512xf32, #tpu.memory_space<vmem>>, vector<4x512xf32>
    tpu.vector_store %arg31[%c64_411, %c0_412], %352 {strides = array<i32>} : memref<216x512xf32, #tpu.memory_space<vmem>>, vector<4x512xf32>,
    %c1_i32_413 = arith.constant 1 : i32
    %355 = tpu.dynamic_rotate %62 by %c1_i32_413 dim 1 : vector<4x512xf32>, i32 -> vector<4x512xf32>
    %c1_i32_414 = arith.constant 1 : i32
    %356 = tpu.dynamic_rotate %64 by %c1_i32_414 dim 1 : vector<4x512xf32>, i32 -> vector<4x512xf32>
    %c72_415 = arith.constant 72 : index
    %c0_416 = arith.constant 0 : index
    %357 = vector.load %arg30[%c72_415, %c0_416] : memref<216x512xf32, #tpu.memory_space<vmem>>, vector<4x512xf32>
    tpu.vector_store %arg30[%c72_415, %c0_416], %355 {strides = array<i32>} : memref<216x512xf32, #tpu.memory_space<vmem>>, vector<4x512xf32>,
    %c72_417 = arith.constant 72 : index
    %c0_418 = arith.constant 0 : index
    %358 = vector.load %arg31[%c72_417, %c0_418] : memref<216x512xf32, #tpu.memory_space<vmem>>, vector<4x512xf32>
    tpu.vector_store %arg31[%c72_417, %c0_418], %356 {strides = array<i32>} : memref<216x512xf32, #tpu.memory_space<vmem>>, vector<4x512xf32>,
    %c1_i32_419 = arith.constant 1 : i32
    %359 = tpu.dynamic_rotate %226 by %c1_i32_419 dim 1 : vector<4x512xf32>, i32 -> vector<4x512xf32>
    %c1_i32_420 = arith.constant 1 : i32
    %360 = tpu.dynamic_rotate %228 by %c1_i32_420 dim 1 : vector<4x512xf32>, i32 -> vector<4x512xf32>
    %c80_421 = arith.constant 80 : index
    %c0_422 = arith.constant 0 : index
    %361 = vector.load %arg30[%c80_421, %c0_422] : memref<216x512xf32, #tpu.memory_space<vmem>>, vector<4x512xf32>
    tpu.vector_store %arg30[%c80_421, %c0_422], %359 {strides = array<i32>} : memref<216x512xf32, #tpu.memory_space<vmem>>, vector<4x512xf32>,
    %c80_423 = arith.constant 80 : index
    %c0_424 = arith.constant 0 : index
    %362 = vector.load %arg31[%c80_423, %c0_424] : memref<216x512xf32, #tpu.memory_space<vmem>>, vector<4x512xf32>
    tpu.vector_store %arg31[%c80_423, %c0_424], %360 {strides = array<i32>} : memref<216x512xf32, #tpu.memory_space<vmem>>, vector<4x512xf32>,
    %c1_i32_425 = arith.constant 1 : i32
    %363 = tpu.dynamic_rotate %316 by %c1_i32_425 dim 1 : vector<4x512xf32>, i32 -> vector<4x512xf32>
    %c1_i32_426 = arith.constant 1 : i32
    %364 = tpu.dynamic_rotate %318 by %c1_i32_426 dim 1 : vector<4x512xf32>, i32 -> vector<4x512xf32>
    %c88_427 = arith.constant 88 : index
    %c0_428 = arith.constant 0 : index
    %365 = vector.load %arg30[%c88_427, %c0_428] : memref<216x512xf32, #tpu.memory_space<vmem>>, vector<4x512xf32>
    tpu.vector_store %arg30[%c88_427, %c0_428], %363 {strides = array<i32>} : memref<216x512xf32, #tpu.memory_space<vmem>>, vector<4x512xf32>,
    %c88_429 = arith.constant 88 : index
    %c0_430 = arith.constant 0 : index
    %366 = vector.load %arg31[%c88_429, %c0_430] : memref<216x512xf32, #tpu.memory_space<vmem>>, vector<4x512xf32>
    tpu.vector_store %arg31[%c88_429, %c0_430], %364 {strides = array<i32>} : memref<216x512xf32, #tpu.memory_space<vmem>>, vector<4x512xf32>,
    %c96_431 = arith.constant 96 : index
    %c0_432 = arith.constant 0 : index
    %367 = vector.load %arg30[%c96_431, %c0_432] : memref<216x512xf32, #tpu.memory_space<vmem>>, vector<4x512xf32>
    tpu.vector_store %arg30[%c96_431, %c0_432], %62 {strides = array<i32>} : memref<216x512xf32, #tpu.memory_space<vmem>>, vector<4x512xf32>,
    %c96_433 = arith.constant 96 : index
    %c0_434 = arith.constant 0 : index
    %368 = vector.load %arg31[%c96_433, %c0_434] : memref<216x512xf32, #tpu.memory_space<vmem>>, vector<4x512xf32>
    tpu.vector_store %arg31[%c96_433, %c0_434], %64 {strides = array<i32>} : memref<216x512xf32, #tpu.memory_space<vmem>>, vector<4x512xf32>,
    %c104_435 = arith.constant 104 : index
    %c0_436 = arith.constant 0 : index
    %369 = vector.load %arg30[%c104_435, %c0_436] : memref<216x512xf32, #tpu.memory_space<vmem>>, vector<4x512xf32>
    tpu.vector_store %arg30[%c104_435, %c0_436], %226 {strides = array<i32>} : memref<216x512xf32, #tpu.memory_space<vmem>>, vector<4x512xf32>,
    %c104_437 = arith.constant 104 : index
    %c0_438 = arith.constant 0 : index
    %370 = vector.load %arg31[%c104_437, %c0_438] : memref<216x512xf32, #tpu.memory_space<vmem>>, vector<4x512xf32>
    tpu.vector_store %arg31[%c104_437, %c0_438], %228 {strides = array<i32>} : memref<216x512xf32, #tpu.memory_space<vmem>>, vector<4x512xf32>,
    %c112_439 = arith.constant 112 : index
    %c0_440 = arith.constant 0 : index
    %371 = vector.load %arg30[%c112_439, %c0_440] : memref<216x512xf32, #tpu.memory_space<vmem>>, vector<4x512xf32>
    tpu.vector_store %arg30[%c112_439, %c0_440], %316 {strides = array<i32>} : memref<216x512xf32, #tpu.memory_space<vmem>>, vector<4x512xf32>,
    %c112_441 = arith.constant 112 : index
    %c0_442 = arith.constant 0 : index
    %372 = vector.load %arg31[%c112_441, %c0_442] : memref<216x512xf32, #tpu.memory_space<vmem>>, vector<4x512xf32>
    tpu.vector_store %arg31[%c112_441, %c0_442], %318 {strides = array<i32>} : memref<216x512xf32, #tpu.memory_space<vmem>>, vector<4x512xf32>,
    %c511_i32_443 = arith.constant 511 : i32
    %373 = tpu.dynamic_rotate %62 by %c511_i32_443 dim 1 : vector<4x512xf32>, i32 -> vector<4x512xf32>
    %c511_i32_444 = arith.constant 511 : i32
    %374 = tpu.dynamic_rotate %64 by %c511_i32_444 dim 1 : vector<4x512xf32>, i32 -> vector<4x512xf32>
    %c120_445 = arith.constant 120 : index
    %c0_446 = arith.constant 0 : index
    %375 = vector.load %arg30[%c120_445, %c0_446] : memref<216x512xf32, #tpu.memory_space<vmem>>, vector<4x512xf32>
    tpu.vector_store %arg30[%c120_445, %c0_446], %373 {strides = array<i32>} : memref<216x512xf32, #tpu.memory_space<vmem>>, vector<4x512xf32>,
    %c120_447 = arith.constant 120 : index
    %c0_448 = arith.constant 0 : index
    %376 = vector.load %arg31[%c120_447, %c0_448] : memref<216x512xf32, #tpu.memory_space<vmem>>, vector<4x512xf32>
    tpu.vector_store %arg31[%c120_447, %c0_448], %374 {strides = array<i32>} : memref<216x512xf32, #tpu.memory_space<vmem>>, vector<4x512xf32>,
    %c511_i32_449 = arith.constant 511 : i32
    %377 = tpu.dynamic_rotate %226 by %c511_i32_449 dim 1 : vector<4x512xf32>, i32 -> vector<4x512xf32>
    %c511_i32_450 = arith.constant 511 : i32
    %378 = tpu.dynamic_rotate %228 by %c511_i32_450 dim 1 : vector<4x512xf32>, i32 -> vector<4x512xf32>
    %c128_451 = arith.constant 128 : index
    %c0_452 = arith.constant 0 : index
    %379 = vector.load %arg30[%c128_451, %c0_452] : memref<216x512xf32, #tpu.memory_space<vmem>>, vector<4x512xf32>
    tpu.vector_store %arg30[%c128_451, %c0_452], %377 {strides = array<i32>} : memref<216x512xf32, #tpu.memory_space<vmem>>, vector<4x512xf32>,
    %c128_453 = arith.constant 128 : index
    %c0_454 = arith.constant 0 : index
    %380 = vector.load %arg31[%c128_453, %c0_454] : memref<216x512xf32, #tpu.memory_space<vmem>>, vector<4x512xf32>
    tpu.vector_store %arg31[%c128_453, %c0_454], %378 {strides = array<i32>} : memref<216x512xf32, #tpu.memory_space<vmem>>, vector<4x512xf32>,
    %c511_i32_455 = arith.constant 511 : i32
    %381 = tpu.dynamic_rotate %316 by %c511_i32_455 dim 1 : vector<4x512xf32>, i32 -> vector<4x512xf32>
    %c511_i32_456 = arith.constant 511 : i32
    %382 = tpu.dynamic_rotate %318 by %c511_i32_456 dim 1 : vector<4x512xf32>, i32 -> vector<4x512xf32>
    %c136_457 = arith.constant 136 : index
    %c0_458 = arith.constant 0 : index
    %383 = vector.load %arg30[%c136_457, %c0_458] : memref<216x512xf32, #tpu.memory_space<vmem>>, vector<4x512xf32>
    tpu.vector_store %arg30[%c136_457, %c0_458], %381 {strides = array<i32>} : memref<216x512xf32, #tpu.memory_space<vmem>>, vector<4x512xf32>,
    %c136_459 = arith.constant 136 : index
    %c0_460 = arith.constant 0 : index
    %384 = vector.load %arg31[%c136_459, %c0_460] : memref<216x512xf32, #tpu.memory_space<vmem>>, vector<4x512xf32>
    tpu.vector_store %arg31[%c136_459, %c0_460], %382 {strides = array<i32>} : memref<216x512xf32, #tpu.memory_space<vmem>>, vector<4x512xf32>,
    %c491_i32_461 = arith.constant 491 : i32
    %385 = tpu.dynamic_rotate %62 by %c491_i32_461 dim 1 : vector<4x512xf32>, i32 -> vector<4x512xf32>
    %c491_i32_462 = arith.constant 491 : i32
    %386 = tpu.dynamic_rotate %64 by %c491_i32_462 dim 1 : vector<4x512xf32>, i32 -> vector<4x512xf32>
    %c144 = arith.constant 144 : index
    %c0_463 = arith.constant 0 : index
    %387 = vector.load %arg30[%c144, %c0_463] : memref<216x512xf32, #tpu.memory_space<vmem>>, vector<4x512xf32>
    tpu.vector_store %arg30[%c144, %c0_463], %385 {strides = array<i32>} : memref<216x512xf32, #tpu.memory_space<vmem>>, vector<4x512xf32>,
    %c144_464 = arith.constant 144 : index
    %c0_465 = arith.constant 0 : index
    %388 = vector.load %arg31[%c144_464, %c0_465] : memref<216x512xf32, #tpu.memory_space<vmem>>, vector<4x512xf32>
    tpu.vector_store %arg31[%c144_464, %c0_465], %386 {strides = array<i32>} : memref<216x512xf32, #tpu.memory_space<vmem>>, vector<4x512xf32>,
    %c491_i32_466 = arith.constant 491 : i32
    %389 = tpu.dynamic_rotate %226 by %c491_i32_466 dim 1 : vector<4x512xf32>, i32 -> vector<4x512xf32>
    %c491_i32_467 = arith.constant 491 : i32
    %390 = tpu.dynamic_rotate %228 by %c491_i32_467 dim 1 : vector<4x512xf32>, i32 -> vector<4x512xf32>
    %c152 = arith.constant 152 : index
    %c0_468 = arith.constant 0 : index
    %391 = vector.load %arg30[%c152, %c0_468] : memref<216x512xf32, #tpu.memory_space<vmem>>, vector<4x512xf32>
    tpu.vector_store %arg30[%c152, %c0_468], %389 {strides = array<i32>} : memref<216x512xf32, #tpu.memory_space<vmem>>, vector<4x512xf32>,
    %c152_469 = arith.constant 152 : index
    %c0_470 = arith.constant 0 : index
    %392 = vector.load %arg31[%c152_469, %c0_470] : memref<216x512xf32, #tpu.memory_space<vmem>>, vector<4x512xf32>
    tpu.vector_store %arg31[%c152_469, %c0_470], %390 {strides = array<i32>} : memref<216x512xf32, #tpu.memory_space<vmem>>, vector<4x512xf32>,
    %c491_i32_471 = arith.constant 491 : i32
    %393 = tpu.dynamic_rotate %316 by %c491_i32_471 dim 1 : vector<4x512xf32>, i32 -> vector<4x512xf32>
    %c491_i32_472 = arith.constant 491 : i32
    %394 = tpu.dynamic_rotate %318 by %c491_i32_472 dim 1 : vector<4x512xf32>, i32 -> vector<4x512xf32>
    %c160 = arith.constant 160 : index
    %c0_473 = arith.constant 0 : index
    %395 = vector.load %arg30[%c160, %c0_473] : memref<216x512xf32, #tpu.memory_space<vmem>>, vector<4x512xf32>
    tpu.vector_store %arg30[%c160, %c0_473], %393 {strides = array<i32>} : memref<216x512xf32, #tpu.memory_space<vmem>>, vector<4x512xf32>,
    %c160_474 = arith.constant 160 : index
    %c0_475 = arith.constant 0 : index
    %396 = vector.load %arg31[%c160_474, %c0_475] : memref<216x512xf32, #tpu.memory_space<vmem>>, vector<4x512xf32>
    tpu.vector_store %arg31[%c160_474, %c0_475], %394 {strides = array<i32>} : memref<216x512xf32, #tpu.memory_space<vmem>>, vector<4x512xf32>,
    %c490_i32_476 = arith.constant 490 : i32
    %397 = tpu.dynamic_rotate %62 by %c490_i32_476 dim 1 : vector<4x512xf32>, i32 -> vector<4x512xf32>
    %c490_i32_477 = arith.constant 490 : i32
    %398 = tpu.dynamic_rotate %64 by %c490_i32_477 dim 1 : vector<4x512xf32>, i32 -> vector<4x512xf32>
    %c168 = arith.constant 168 : index
    %c0_478 = arith.constant 0 : index
    %399 = vector.load %arg30[%c168, %c0_478] : memref<216x512xf32, #tpu.memory_space<vmem>>, vector<4x512xf32>
    tpu.vector_store %arg30[%c168, %c0_478], %397 {strides = array<i32>} : memref<216x512xf32, #tpu.memory_space<vmem>>, vector<4x512xf32>,
    %c168_479 = arith.constant 168 : index
    %c0_480 = arith.constant 0 : index
    %400 = vector.load %arg31[%c168_479, %c0_480] : memref<216x512xf32, #tpu.memory_space<vmem>>, vector<4x512xf32>
    tpu.vector_store %arg31[%c168_479, %c0_480], %398 {strides = array<i32>} : memref<216x512xf32, #tpu.memory_space<vmem>>, vector<4x512xf32>,
    %c490_i32_481 = arith.constant 490 : i32
    %401 = tpu.dynamic_rotate %226 by %c490_i32_481 dim 1 : vector<4x512xf32>, i32 -> vector<4x512xf32>
    %c490_i32_482 = arith.constant 490 : i32
    %402 = tpu.dynamic_rotate %228 by %c490_i32_482 dim 1 : vector<4x512xf32>, i32 -> vector<4x512xf32>
    %c176 = arith.constant 176 : index
    %c0_483 = arith.constant 0 : index
    %403 = vector.load %arg30[%c176, %c0_483] : memref<216x512xf32, #tpu.memory_space<vmem>>, vector<4x512xf32>
    tpu.vector_store %arg30[%c176, %c0_483], %401 {strides = array<i32>} : memref<216x512xf32, #tpu.memory_space<vmem>>, vector<4x512xf32>,
    %c176_484 = arith.constant 176 : index
    %c0_485 = arith.constant 0 : index
    %404 = vector.load %arg31[%c176_484, %c0_485] : memref<216x512xf32, #tpu.memory_space<vmem>>, vector<4x512xf32>
    tpu.vector_store %arg31[%c176_484, %c0_485], %402 {strides = array<i32>} : memref<216x512xf32, #tpu.memory_space<vmem>>, vector<4x512xf32>,
    %c490_i32_486 = arith.constant 490 : i32
    %405 = tpu.dynamic_rotate %316 by %c490_i32_486 dim 1 : vector<4x512xf32>, i32 -> vector<4x512xf32>
    %c490_i32_487 = arith.constant 490 : i32
    %406 = tpu.dynamic_rotate %318 by %c490_i32_487 dim 1 : vector<4x512xf32>, i32 -> vector<4x512xf32>
    %c184 = arith.constant 184 : index
    %c0_488 = arith.constant 0 : index
    %407 = vector.load %arg30[%c184, %c0_488] : memref<216x512xf32, #tpu.memory_space<vmem>>, vector<4x512xf32>
    tpu.vector_store %arg30[%c184, %c0_488], %405 {strides = array<i32>} : memref<216x512xf32, #tpu.memory_space<vmem>>, vector<4x512xf32>,
    %c184_489 = arith.constant 184 : index
    %c0_490 = arith.constant 0 : index
    %408 = vector.load %arg31[%c184_489, %c0_490] : memref<216x512xf32, #tpu.memory_space<vmem>>, vector<4x512xf32>
    tpu.vector_store %arg31[%c184_489, %c0_490], %406 {strides = array<i32>} : memref<216x512xf32, #tpu.memory_space<vmem>>, vector<4x512xf32>,
    %c489_i32_491 = arith.constant 489 : i32
    %409 = tpu.dynamic_rotate %62 by %c489_i32_491 dim 1 : vector<4x512xf32>, i32 -> vector<4x512xf32>
    %c489_i32_492 = arith.constant 489 : i32
    %410 = tpu.dynamic_rotate %64 by %c489_i32_492 dim 1 : vector<4x512xf32>, i32 -> vector<4x512xf32>
    %c192 = arith.constant 192 : index
    %c0_493 = arith.constant 0 : index
    %411 = vector.load %arg30[%c192, %c0_493] : memref<216x512xf32, #tpu.memory_space<vmem>>, vector<4x512xf32>
    tpu.vector_store %arg30[%c192, %c0_493], %409 {strides = array<i32>} : memref<216x512xf32, #tpu.memory_space<vmem>>, vector<4x512xf32>,
    %c192_494 = arith.constant 192 : index
    %c0_495 = arith.constant 0 : index
    %412 = vector.load %arg31[%c192_494, %c0_495] : memref<216x512xf32, #tpu.memory_space<vmem>>, vector<4x512xf32>
    tpu.vector_store %arg31[%c192_494, %c0_495], %410 {strides = array<i32>} : memref<216x512xf32, #tpu.memory_space<vmem>>, vector<4x512xf32>,
    %c489_i32_496 = arith.constant 489 : i32
    %413 = tpu.dynamic_rotate %226 by %c489_i32_496 dim 1 : vector<4x512xf32>, i32 -> vector<4x512xf32>
    %c489_i32_497 = arith.constant 489 : i32
    %414 = tpu.dynamic_rotate %228 by %c489_i32_497 dim 1 : vector<4x512xf32>, i32 -> vector<4x512xf32>
    %c200 = arith.constant 200 : index
    %c0_498 = arith.constant 0 : index
    %415 = vector.load %arg30[%c200, %c0_498] : memref<216x512xf32, #tpu.memory_space<vmem>>, vector<4x512xf32>
    tpu.vector_store %arg30[%c200, %c0_498], %413 {strides = array<i32>} : memref<216x512xf32, #tpu.memory_space<vmem>>, vector<4x512xf32>,
    %c200_499 = arith.constant 200 : index
    %c0_500 = arith.constant 0 : index
    %416 = vector.load %arg31[%c200_499, %c0_500] : memref<216x512xf32, #tpu.memory_space<vmem>>, vector<4x512xf32>
    tpu.vector_store %arg31[%c200_499, %c0_500], %414 {strides = array<i32>} : memref<216x512xf32, #tpu.memory_space<vmem>>, vector<4x512xf32>,
    %c489_i32_501 = arith.constant 489 : i32
    %417 = tpu.dynamic_rotate %316 by %c489_i32_501 dim 1 : vector<4x512xf32>, i32 -> vector<4x512xf32>
    %c489_i32_502 = arith.constant 489 : i32
    %418 = tpu.dynamic_rotate %318 by %c489_i32_502 dim 1 : vector<4x512xf32>, i32 -> vector<4x512xf32>
    %c208 = arith.constant 208 : index
    %c0_503 = arith.constant 0 : index
    %419 = vector.load %arg30[%c208, %c0_503] : memref<216x512xf32, #tpu.memory_space<vmem>>, vector<4x512xf32>
    tpu.vector_store %arg30[%c208, %c0_503], %417 {strides = array<i32>} : memref<216x512xf32, #tpu.memory_space<vmem>>, vector<4x512xf32>,
    %c208_504 = arith.constant 208 : index
    %c0_505 = arith.constant 0 : index
    %420 = vector.load %arg31[%c208_504, %c0_505] : memref<216x512xf32, #tpu.memory_space<vmem>>, vector<4x512xf32>
    tpu.vector_store %arg31[%c208_504, %c0_505], %418 {strides = array<i32>} : memref<216x512xf32, #tpu.memory_space<vmem>>, vector<4x512xf32>,
    %c0_506 = arith.constant 0 : index
    %c0_507 = arith.constant 0 : index
    %421 = vector.load %arg30[%c0_506, %c0_507] : memref<216x512xf32, #tpu.memory_space<vmem>>, vector<216x512xf32>
    %422 = arith.truncf %421 : vector<216x512xf32> to vector<216x512xbf16>
    %c0_508 = arith.constant 0 : index
    %c0_509 = arith.constant 0 : index
    %423 = vector.load %arg31[%c0_508, %c0_509] : memref<216x512xf32, #tpu.memory_space<vmem>>, vector<216x512xf32>
    %424 = arith.truncf %423 : vector<216x512xf32> to vector<216x512xbf16>
    %c0_510 = arith.constant 0 : index
    %c0_511 = arith.constant 0 : index
    %425 = vector.load %arg24[%c0_510, %c0_511] : memref<12x216xbf16, #tpu.memory_space<vmem>>, vector<12x216xbf16>
    %c0_512 = arith.constant 0 : index
    %c0_513 = arith.constant 0 : index
    %426 = vector.load %arg25[%c0_512, %c0_513] : memref<12x216xbf16, #tpu.memory_space<vmem>>, vector<12x216xbf16>
    %cst_514 = arith.constant dense<0.000000e+00> : vector<12x512xf32>
    %427 = tpu.matmul %425, %422, %cst_514 {dimension_numbers = #tpu.dot_dimension_numbers<[1], [0], [0], [1], [0, 0, 1, 1], [], []>} : vector<12x216xbf16>, vector<216x512xbf16>, vector<12x512xf32> -> vector<12x512xf32>
    %cst_515 = arith.constant dense<0.000000e+00> : vector<12x512xf32>
    %428 = tpu.matmul %426, %424, %cst_515 {dimension_numbers = #tpu.dot_dimension_numbers<[1], [0], [0], [1], [0, 0, 1, 1], [], []>} : vector<12x216xbf16>, vector<216x512xbf16>, vector<12x512xf32> -> vector<12x512xf32>
    %cst_516 = arith.constant dense<0.000000e+00> : vector<12x512xf32>
    %429 = tpu.matmul %425, %424, %cst_516 {dimension_numbers = #tpu.dot_dimension_numbers<[1], [0], [0], [1], [0, 0, 1, 1], [], []>} : vector<12x216xbf16>, vector<216x512xbf16>, vector<12x512xf32> -> vector<12x512xf32>
    %cst_517 = arith.constant dense<0.000000e+00> : vector<12x512xf32>
    %430 = tpu.matmul %426, %422, %cst_517 {dimension_numbers = #tpu.dot_dimension_numbers<[1], [0], [0], [1], [0, 0, 1, 1], [], []>} : vector<12x216xbf16>, vector<216x512xbf16>, vector<12x512xf32> -> vector<12x512xf32>
    %431 = arith.subf %427, %428 : vector<12x512xf32>
    %c0_518 = arith.constant 0 : index
    %c0_519 = arith.constant 0 : index
    %432 = vector.load %arg26[%c0_518, %c0_519] : memref<12x1xf32, #tpu.memory_space<vmem>>, vector<12x1xf32>
    %433 = vector.broadcast %432 : vector<12x1xf32> to vector<12x512xf32>
    %434 = arith.addf %431, %433 : vector<12x512xf32>
    %435 = arith.addf %429, %430 : vector<12x512xf32>
    %c0_520 = arith.constant 0 : index
    %c0_521 = arith.constant 0 : index
    %436 = vector.load %arg27[%c0_520, %c0_521] : memref<12x1xf32, #tpu.memory_space<vmem>>, vector<12x1xf32>
    %437 = vector.broadcast %436 : vector<12x1xf32> to vector<12x512xf32>
    %438 = arith.addf %435, %437 : vector<12x512xf32>
    %c0_522 = arith.constant 0 : index
    %c0_523 = arith.constant 0 : index
    %c0_524 = arith.constant 0 : index
    %439 = vector.load %arg28[%c0_522, %c0_523, %c0_524] : memref<1x12x512xf32, #tpu.memory_space<vmem>>, vector<1x12x512xf32>
    %440 = vector.shape_cast %439 : vector<1x12x512xf32> to vector<12x512xf32>
    %441 = vector.shape_cast %434 : vector<12x512xf32> to vector<1x12x512xf32>
    tpu.vector_store %arg28[%c0_522, %c0_523, %c0_524], %441 {strides = array<i32>} : memref<1x12x512xf32, #tpu.memory_space<vmem>>, vector<1x12x512xf32>,
    %c0_525 = arith.constant 0 : index
    %c0_526 = arith.constant 0 : index
    %c0_527 = arith.constant 0 : index
    %442 = vector.load %arg29[%c0_525, %c0_526, %c0_527] : memref<1x12x512xf32, #tpu.memory_space<vmem>>, vector<1x12x512xf32>
    %443 = vector.shape_cast %442 : vector<1x12x512xf32> to vector<12x512xf32>
    %444 = vector.shape_cast %438 : vector<12x512xf32> to vector<1x12x512xf32>
    tpu.vector_store %arg29[%c0_525, %c0_526, %c0_527], %444 {strides = array<i32>} : memref<1x12x512xf32, #tpu.memory_space<vmem>>, vector<1x12x512xf32>,
    return
  }
  func.func @transform_0(%arg0: i32) -> (i32, i32, i32) {
    %c0_i32 = arith.constant 0 : i32
    %c0_i32_0 = arith.constant 0 : i32
    %c0_i32_1 = arith.constant 0 : i32
    return %arg0, %c0_i32, %c0_i32_0 : i32, i32, i32
  }
  func.func @transform_1(%arg0: i32) -> (i32, i32, i32) {
    %c0_i32 = arith.constant 0 : i32
    %c0_i32_0 = arith.constant 0 : i32
    %c0_i32_1 = arith.constant 0 : i32
    return %arg0, %c0_i32, %c0_i32_0 : i32, i32, i32
  }
  func.func @transform_2(%arg0: i32) -> (i32, i32) {
    %c0_i32 = arith.constant 0 : i32
    %c0_i32_0 = arith.constant 0 : i32
    %c0_i32_1 = arith.constant 0 : i32
    return %c0_i32, %c0_i32_0 : i32, i32
  }
  func.func @transform_3(%arg0: i32) -> (i32, i32) {
    %c0_i32 = arith.constant 0 : i32
    %c0_i32_0 = arith.constant 0 : i32
    %c0_i32_1 = arith.constant 0 : i32
    return %c0_i32, %c0_i32_0 : i32, i32
  }
  func.func @transform_4(%arg0: i32) -> (i32, i32) {
    %c0_i32 = arith.constant 0 : i32
    %c0_i32_0 = arith.constant 0 : i32
    %c0_i32_1 = arith.constant 0 : i32
    return %c0_i32, %c0_i32_0 : i32, i32
  }
  func.func @transform_5(%arg0: i32) -> (i32, i32) {
    %c0_i32 = arith.constant 0 : i32
    %c0_i32_0 = arith.constant 0 : i32
    %c0_i32_1 = arith.constant 0 : i32
    return %c0_i32, %c0_i32_0 : i32, i32
  }
  func.func @transform_6(%arg0: i32) -> (i32, i32) {
    %c0_i32 = arith.constant 0 : i32
    %c0_i32_0 = arith.constant 0 : i32
    %c0_i32_1 = arith.constant 0 : i32
    return %c0_i32, %c0_i32_0 : i32, i32
  }
  func.func @transform_7(%arg0: i32) -> (i32, i32) {
    %c0_i32 = arith.constant 0 : i32
    %c0_i32_0 = arith.constant 0 : i32
    %c0_i32_1 = arith.constant 0 : i32
    return %c0_i32, %c0_i32_0 : i32, i32
  }
  func.func @transform_8(%arg0: i32) -> (i32, i32) {
    %c0_i32 = arith.constant 0 : i32
    %c0_i32_0 = arith.constant 0 : i32
    %c0_i32_1 = arith.constant 0 : i32
    return %c0_i32, %c0_i32_0 : i32, i32
  }
  func.func @transform_9(%arg0: i32) -> (i32, i32) {
    %c0_i32 = arith.constant 0 : i32
    %c0_i32_0 = arith.constant 0 : i32
    %c0_i32_1 = arith.constant 0 : i32
    return %c0_i32, %c0_i32_0 : i32, i32
  }
  func.func @transform_10(%arg0: i32) -> (i32, i32) {
    %c0_i32 = arith.constant 0 : i32
    %c0_i32_0 = arith.constant 0 : i32
    %c0_i32_1 = arith.constant 0 : i32
    return %c0_i32, %c0_i32_0 : i32, i32
  }
  func.func @transform_11(%arg0: i32) -> (i32, i32) {
    %c0_i32 = arith.constant 0 : i32
    %c0_i32_0 = arith.constant 0 : i32
    %c0_i32_1 = arith.constant 0 : i32
    return %c0_i32, %c0_i32_0 : i32, i32
  }
  func.func @transform_12(%arg0: i32) -> (i32, i32) {
    %c0_i32 = arith.constant 0 : i32
    %c0_i32_0 = arith.constant 0 : i32
    %c0_i32_1 = arith.constant 0 : i32
    return %c0_i32, %c0_i32_0 : i32, i32
  }
  func.func @transform_13(%arg0: i32) -> (i32, i32) {
    %c0_i32 = arith.constant 0 : i32
    %c0_i32_0 = arith.constant 0 : i32
    %c0_i32_1 = arith.constant 0 : i32
    return %c0_i32, %c0_i32_0 : i32, i32
  }
  func.func @transform_14(%arg0: i32) -> (i32, i32) {
    %c0_i32 = arith.constant 0 : i32
    %c0_i32_0 = arith.constant 0 : i32
    %c0_i32_1 = arith.constant 0 : i32
    return %c0_i32, %c0_i32_0 : i32, i32
  }
  func.func @transform_15(%arg0: i32) -> (i32, i32) {
    %c0_i32 = arith.constant 0 : i32
    %c0_i32_0 = arith.constant 0 : i32
    %c0_i32_1 = arith.constant 0 : i32
    return %c0_i32, %c0_i32_0 : i32, i32
  }
  func.func @transform_16(%arg0: i32) -> (i32, i32) {
    %c0_i32 = arith.constant 0 : i32
    %c0_i32_0 = arith.constant 0 : i32
    %c0_i32_1 = arith.constant 0 : i32
    return %c0_i32, %c0_i32_0 : i32, i32
  }
  func.func @transform_17(%arg0: i32) -> (i32, i32) {
    %c0_i32 = arith.constant 0 : i32
    %c0_i32_0 = arith.constant 0 : i32
    %c0_i32_1 = arith.constant 0 : i32
    return %c0_i32, %c0_i32_0 : i32, i32
  }
  func.func @transform_18(%arg0: i32) -> (i32, i32) {
    %c0_i32 = arith.constant 0 : i32
    %c0_i32_0 = arith.constant 0 : i32
    %c0_i32_1 = arith.constant 0 : i32
    return %c0_i32, %c0_i32_0 : i32, i32
  }
  func.func @transform_19(%arg0: i32) -> (i32, i32) {
    %c0_i32 = arith.constant 0 : i32
    %c0_i32_0 = arith.constant 0 : i32
    %c0_i32_1 = arith.constant 0 : i32
    return %c0_i32, %c0_i32_0 : i32, i32
  }
  func.func @transform_20(%arg0: i32) -> (i32, i32) {
    %c0_i32 = arith.constant 0 : i32
    %c0_i32_0 = arith.constant 0 : i32
    %c0_i32_1 = arith.constant 0 : i32
    return %c0_i32, %c0_i32_0 : i32, i32
  }
  func.func @transform_21(%arg0: i32) -> (i32, i32) {
    %c0_i32 = arith.constant 0 : i32
    %c0_i32_0 = arith.constant 0 : i32
    %c0_i32_1 = arith.constant 0 : i32
    return %c0_i32, %c0_i32_0 : i32, i32
  }
  func.func @transform_22(%arg0: i32) -> (i32, i32) {
    %c0_i32 = arith.constant 0 : i32
    %c0_i32_0 = arith.constant 0 : i32
    %c0_i32_1 = arith.constant 0 : i32
    return %c0_i32, %c0_i32_0 : i32, i32
  }
  func.func @transform_23(%arg0: i32) -> (i32, i32) {
    %c0_i32 = arith.constant 0 : i32
    %c0_i32_0 = arith.constant 0 : i32
    %c0_i32_1 = arith.constant 0 : i32
    return %c0_i32, %c0_i32_0 : i32, i32
  }
  func.func @transform_24(%arg0: i32) -> (i32, i32) {
    %c0_i32 = arith.constant 0 : i32
    %c0_i32_0 = arith.constant 0 : i32
    %c0_i32_1 = arith.constant 0 : i32
    return %c0_i32, %c0_i32_0 : i32, i32
  }
  func.func @transform_25(%arg0: i32) -> (i32, i32) {
    %c0_i32 = arith.constant 0 : i32
    %c0_i32_0 = arith.constant 0 : i32
    %c0_i32_1 = arith.constant 0 : i32
    return %c0_i32, %c0_i32_0 : i32, i32
  }
  func.func @transform_26(%arg0: i32) -> (i32, i32) {
    %c0_i32 = arith.constant 0 : i32
    %c0_i32_0 = arith.constant 0 : i32
    %c0_i32_1 = arith.constant 0 : i32
    return %c0_i32, %c0_i32_0 : i32, i32
  }
  func.func @transform_27(%arg0: i32) -> (i32, i32, i32) {
    %c0_i32 = arith.constant 0 : i32
    %c0_i32_0 = arith.constant 0 : i32
    %c0_i32_1 = arith.constant 0 : i32
    return %arg0, %c0_i32, %c0_i32_0 : i32, i32, i32
  }
  func.func @transform_28(%arg0: i32) -> (i32, i32, i32) {
    %c0_i32 = arith.constant 0 : i32
    %c0_i32_0 = arith.constant 0 : i32
    %c0_i32_1 = arith.constant 0 : i32
    return %arg0, %c0_i32, %c0_i32_0 : i32, i32, i32
  }
}

</mosaic_0001>

<llo_original>
// kernel: mixed_dilations_block_1_forward.1
$region0: #{mixed_dilations_block_1_forward.1}
  #allocation0 [shape = 'u32[]', space=smem, size = 0x4, offset = 0x4, fixed_abs, tag = 'smem constant byte address 0x4 - core index']
  #allocation1 [shape = 'u32[144,128]{1,0:T(1,128)}', space=vmem, size = 0x12000, scoped, tag = 'internal scratch']
  #allocation2 [shape = 'f32[216,512]{1,0:T(8,128)}', space=vmem, size = 0x6c000, scoped, tag = 'scratch operand']
  #allocation3 [shape = 'f32[216,512]{1,0:T(8,128)}', space=vmem, size = 0x6c000, scoped, tag = 'scratch operand']
  %s0 = inlined_call_operand.vmem [shape: f32[2,8,512], index: 0, kind: input, shape index: {}]
  %s1 = inlined_call_operand.vmem [shape: f32[2,8,512], index: 1, kind: input, shape index: {}]
  %s2 = inlined_call_operand.vmem [shape: f32[1,512], index: 2, kind: input, shape index: {}]
  %s3 = inlined_call_operand.vmem [shape: bf16[4,72], index: 3, kind: input, shape index: {}]
  %s4 = inlined_call_operand.vmem [shape: bf16[4,72], index: 4, kind: input, shape index: {}]
  %s5 = inlined_call_operand.vmem [shape: f32[4,1], index: 5, kind: input, shape index: {}]
  %s6 = inlined_call_operand.vmem [shape: f32[4,1], index: 6, kind: input, shape index: {}]
  %s7 = inlined_call_operand.vmem [shape: bf16[6,72], index: 7, kind: input, shape index: {}]
  %s8 = inlined_call_operand.vmem [shape: bf16[6,72], index: 8, kind: input, shape index: {}]
  %s9 = inlined_call_operand.vmem [shape: f32[6,1], index: 9, kind: input, shape index: {}]
  %s10 = inlined_call_operand.vmem [shape: f32[6,1], index: 10, kind: input, shape index: {}]
  %s11 = inlined_call_operand.vmem [shape: bf16[6,72], index: 11, kind: input, shape index: {}]
  %s12 = inlined_call_operand.vmem [shape: bf16[6,72], index: 12, kind: input, shape index: {}]
  %s13 = inlined_call_operand.vmem [shape: f32[6,1], index: 13, kind: input, shape index: {}]
  %s14 = inlined_call_operand.vmem [shape: f32[6,1], index: 14, kind: input, shape index: {}]
  %s15 = inlined_call_operand.vmem [shape: bf16[4,144], index: 15, kind: input, shape index: {}]
  %s16 = inlined_call_operand.vmem [shape: bf16[4,144], index: 16, kind: input, shape index: {}]
  %s17 = inlined_call_operand.vmem [shape: f32[4,1], index: 17, kind: input, shape index: {}]
  %s18 = inlined_call_operand.vmem [shape: f32[4,1], index: 18, kind: input, shape index: {}]
  %s19 = inlined_call_operand.vmem [shape: bf16[4,144], index: 19, kind: input, shape index: {}]
  %s20 = inlined_call_operand.vmem [shape: bf16[4,144], index: 20, kind: input, shape index: {}]
  %s21 = inlined_call_operand.vmem [shape: f32[4,1], index: 21, kind: input, shape index: {}]
  %s22 = inlined_call_operand.vmem [shape: f32[4,1], index: 22, kind: input, shape index: {}]
  %s23 = inlined_call_operand.vmem [shape: bf16[12,216], index: 23, kind: input, shape index: {}]
  %s24 = inlined_call_operand.vmem [shape: bf16[12,216], index: 24, kind: input, shape index: {}]
  %s25 = inlined_call_operand.vmem [shape: f32[12,1], index: 25, kind: input, shape index: {}]
  %s26 = inlined_call_operand.vmem [shape: f32[12,1], index: 26, kind: input, shape index: {}]
  %s27 = inlined_call_operand.vmem [shape: f32[2,12,512], index: 27, kind: output, shape index: {0}]
  %s28 = inlined_call_operand.vmem [shape: f32[2,12,512], index: 28, kind: output, shape index: {1}]
  %29 = xla_tuple %s27, %s28
  %s30 = sld [smem:[#allocation0]]
  $region149: #{mixed_dilations_block_1_forward.1} parent=0
    _
  %s32 = ssub.s32 1, %s30
  %s33 = scalar_select 0, %s32, %s30
  loop: start=0, step=1, limit=4
  $region2: #{mixed_dilations_block_1_forward.1} parent=0 // loop_pre_header
    _
  $region3: #{mixed_dilations_block_1_forward.1} parent=0 // loop_header
    %s35 = sphi 0, %s39
    %p36 = scmp.ge.s32.totalorder %s35, 4
    %s45 = sphi 0, %s47
    %s48 = sphi 0, %s45
    %s49 = sphi 0, %s48
    %s65 = sphi 0, %s49
    %s71 = sphi 0, %s73
    %s74 = sphi 0, %s71
    %s75 = sphi 0, %s74
    %s91 = sphi 0, %s75
    %s95 = sphi 0, %s95
    %s97 = sphi 0, %s95
    %s98 = sphi 0, %s97
    %s112 = sphi 0, %s98
    %s116 = sphi 0, %s116
    %s118 = sphi 0, %s116
    %s119 = sphi 0, %s118
    %s133 = sphi 0, %s119
    %s137 = sphi 0, %s137
    %s139 = sphi 0, %s137
    %s140 = sphi 0, %s139
    %s154 = sphi 0, %s140
    %s158 = sphi 0, %s158
    %s160 = sphi 0, %s158
    %s161 = sphi 0, %s160
    %s175 = sphi 0, %s161
    %s179 = sphi 0, %s179
    %s181 = sphi 0, %s179
    %s182 = sphi 0, %s181
    %s196 = sphi 0, %s182
    %s200 = sphi 0, %s200
    %s202 = sphi 0, %s200
    %s203 = sphi 0, %s202
    %s217 = sphi 0, %s203
    %s221 = sphi 0, %s221
    %s223 = sphi 0, %s221
    %s224 = sphi 0, %s223
    %s238 = sphi 0, %s224
    %s242 = sphi 0, %s242
    %s244 = sphi 0, %s242
    %s245 = sphi 0, %s244
    %s259 = sphi 0, %s245
    %s263 = sphi 0, %s263
    %s265 = sphi 0, %s263
    %s266 = sphi 0, %s265
    %s280 = sphi 0, %s266
    %s284 = sphi 0, %s284
    %s286 = sphi 0, %s284
    %s287 = sphi 0, %s286
    %s301 = sphi 0, %s287
    %s305 = sphi 0, %s305
    %s307 = sphi 0, %s305
    %s308 = sphi 0, %s307
    %s322 = sphi 0, %s308
    %s326 = sphi 0, %s326
    %s328 = sphi 0, %s326
    %s329 = sphi 0, %s328
    %s343 = sphi 0, %s329
    %s347 = sphi 0, %s347
    %s349 = sphi 0, %s347
    %s350 = sphi 0, %s349
    %s364 = sphi 0, %s350
    %s368 = sphi 0, %s368
    %s370 = sphi 0, %s368
    %s371 = sphi 0, %s370
    %s385 = sphi 0, %s371
    %s389 = sphi 0, %s389
    %s391 = sphi 0, %s389
    %s392 = sphi 0, %s391
    %s406 = sphi 0, %s392
    %s410 = sphi 0, %s410
    %s412 = sphi 0, %s410
    %s413 = sphi 0, %s412
    %s427 = sphi 0, %s413
    %s431 = sphi 0, %s431
    %s433 = sphi 0, %s431
    %s434 = sphi 0, %s433
    %s448 = sphi 0, %s434
    %s452 = sphi 0, %s452
    %s454 = sphi 0, %s452
    %s455 = sphi 0, %s454
    %s469 = sphi 0, %s455
    %s473 = sphi 0, %s473
    %s475 = sphi 0, %s473
    %s476 = sphi 0, %s475
    %s490 = sphi 0, %s476
    %s494 = sphi 0, %s494
    %s496 = sphi 0, %s494
    %s497 = sphi 0, %s496
    %s511 = sphi 0, %s497
    %s515 = sphi 0, %s515
    %s517 = sphi 0, %s515
    %s518 = sphi 0, %s517
    %s532 = sphi 0, %s518
    %s536 = sphi 0, %s536
    %s538 = sphi 0, %s536
    %s539 = sphi 0, %s538
    %s553 = sphi 0, %s539
    %s557 = sphi 0, %s557
    %s559 = sphi 0, %s557
    %s560 = sphi 0, %s559
    %s574 = sphi 0, %s560
    %s578 = sphi 0, %s578
    %s580 = sphi 0, %s578
    %s581 = sphi 0, %s580
    %s595 = sphi 0, %s581
    %s599 = sphi 0, %s599
    %s601 = sphi 0, %s599
    %s602 = sphi 0, %s601
    %s616 = sphi 0, %s602
    %s622 = sphi 0, %s624
    %s625 = sphi 0, %s622
    %s626 = sphi 0, %s625
    %s642 = sphi 0, %s626
    %s648 = sphi 0, %s650
    %s651 = sphi 0, %s648
    %s652 = sphi 0, %s651
    %s668 = sphi 0, %s652
  $region4: #{mixed_dilations_block_1_forward.1} parent=0 // loop_header_branch
    %38 = sbr.rel (%p36) target = $region8
  $region5: #{mixed_dilations_block_1_forward.1} parent=0 // loop_body
    %s40 = ssub.s32 %s35, 1
    %s41 = ssub.s32 %s35, 2
    %s42 = sadd.s32 %s35, 1
    %s43 = ssub.s32 %s35, %s42
    %p44 = scmp.eq.s32.totalorder %s43, 0
    %s46 = sadd.s32 %s45, 1
    %s47 = scalar_select %p44, %s45, %s46
    %p50 = pneg %p44
    %p51 = scmp.eq.s32.totalorder %s35, 1
    %p52 = por %p50, %p51
    %p53 = scmp.ne.s32.totalorder %s45, %s48
    %p54 = scmp.eq.s32.totalorder %s35, 0
    %p55 = por %p53, %p54
    %p56 = scmp.ne.s32.totalorder %s45, %s48
    %p57 = scmp.eq.s32.totalorder %s40, 1
    %p58 = por %p56, %p57
    %p59 = scmp.ne.s32.totalorder %s48, %s49
    %p60 = scmp.eq.s32.totalorder %s40, 0
    %p61 = por %p59, %p60
    %p62 = scmp.ne.s32.totalorder %s48, %s49
    %p63 = scmp.eq.s32.totalorder %s41, 1
    %p64 = por %p62, %p63
    %p66 = scmp.ne.s32.totalorder %s49, %s65
    %p67 = scmp.eq.s32.totalorder %s41, 0
    %p68 = por %p66, %p67
    %s69 = ssub.s32 %s35, %s42
    %p70 = scmp.eq.s32.totalorder %s69, 0
    %s72 = sadd.s32 %s71, 1
    %s73 = scalar_select %p70, %s71, %s72
    %p76 = pneg %p70
    %p77 = scmp.eq.s32.totalorder %s35, 1
    %p78 = por %p76, %p77
    %p79 = scmp.ne.s32.totalorder %s71, %s74
    %p80 = scmp.eq.s32.totalorder %s35, 0
    %p81 = por %p79, %p80
    %p82 = scmp.ne.s32.totalorder %s71, %s74
    %p83 = scmp.eq.s32.totalorder %s40, 1
    %p84 = por %p82, %p83
    %p85 = scmp.ne.s32.totalorder %s74, %s75
    %p86 = scmp.eq.s32.totalorder %s40, 0
    %p87 = por %p85, %p86
    %p88 = scmp.ne.s32.totalorder %s74, %s75
    %p89 = scmp.eq.s32.totalorder %s41, 1
    %p90 = por %p88, %p89
    %p92 = scmp.ne.s32.totalorder %s75, %s91
    %p93 = scmp.eq.s32.totalorder %s41, 0
    %p94 = por %p92, %p93
    %s96 = sadd.s32 %s95, 1
    %p99 = scmp.eq.s32.totalorder %s35, 1
    %p100 = scmp.ne.s32.totalorder %s95, %s97
    %p101 = scmp.eq.s32.totalorder %s35, 0
    %p102 = por %p100, %p101
    %p103 = scmp.ne.s32.totalorder %s95, %s97
    %p104 = scmp.eq.s32.totalorder %s40, 1
    %p105 = por %p103, %p104
    %p106 = scmp.ne.s32.totalorder %s97, %s98
    %p107 = scmp.eq.s32.totalorder %s40, 0
    %p108 = por %p106, %p107
    %p109 = scmp.ne.s32.totalorder %s97, %s98
    %p110 = scmp.eq.s32.totalorder %s41, 1
    %p111 = por %p109, %p110
    %p113 = scmp.ne.s32.totalorder %s98, %s112
    %p114 = scmp.eq.s32.totalorder %s41, 0
    %p115 = por %p113, %p114
    %s117 = sadd.s32 %s116, 1
    %p120 = scmp.eq.s32.totalorder %s35, 1
    %p121 = scmp.ne.s32.totalorder %s116, %s118
    %p122 = scmp.eq.s32.totalorder %s35, 0
    %p123 = por %p121, %p122
    %p124 = scmp.ne.s32.totalorder %s116, %s118
    %p125 = scmp.eq.s32.totalorder %s40, 1
    %p126 = por %p124, %p125
    %p127 = scmp.ne.s32.totalorder %s118, %s119
    %p128 = scmp.eq.s32.totalorder %s40, 0
    %p129 = por %p127, %p128
    %p130 = scmp.ne.s32.totalorder %s118, %s119
    %p131 = scmp.eq.s32.totalorder %s41, 1
    %p132 = por %p130, %p131
    %p134 = scmp.ne.s32.totalorder %s119, %s133
    %p135 = scmp.eq.s32.totalorder %s41, 0
    %p136 = por %p134, %p135
    %s138 = sadd.s32 %s137, 1
    %p141 = scmp.eq.s32.totalorder %s35, 1
    %p142 = scmp.ne.s32.totalorder %s137, %s139
    %p143 = scmp.eq.s32.totalorder %s35, 0
    %p144 = por %p142, %p143
    %p145 = scmp.ne.s32.totalorder %s137, %s139
    %p146 = scmp.eq.s32.totalorder %s40, 1
    %p147 = por %p145, %p146
    %p148 = scmp.ne.s32.totalorder %s139, %s140
    %p149 = scmp.eq.s32.totalorder %s40, 0
    %p150 = por %p148, %p149
    %p151 = scmp.ne.s32.totalorder %s139, %s140
    %p152 = scmp.eq.s32.totalorder %s41, 1
    %p153 = por %p151, %p152
    %p155 = scmp.ne.s32.totalorder %s140, %s154
    %p156 = scmp.eq.s32.totalorder %s41, 0
    %p157 = por %p155, %p156
    %s159 = sadd.s32 %s158, 1
    %p162 = scmp.eq.s32.totalorder %s35, 1
    %p163 = scmp.ne.s32.totalorder %s158, %s160
    %p164 = scmp.eq.s32.totalorder %s35, 0
    %p165 = por %p163, %p164
    %p166 = scmp.ne.s32.totalorder %s158, %s160
    %p167 = scmp.eq.s32.totalorder %s40, 1
    %p168 = por %p166, %p167
    %p169 = scmp.ne.s32.totalorder %s160, %s161
    %p170 = scmp.eq.s32.totalorder %s40, 0
    %p171 = por %p169, %p170
    %p172 = scmp.ne.s32.totalorder %s160, %s161
    %p173 = scmp.eq.s32.totalorder %s41, 1
    %p174 = por %p172, %p173
    %p176 = scmp.ne.s32.totalorder %s161, %s175
    %p177 = scmp.eq.s32.totalorder %s41, 0
    %p178 = por %p176, %p177
    %s180 = sadd.s32 %s179, 1
    %p183 = scmp.eq.s32.totalorder %s35, 1
    %p184 = scmp.ne.s32.totalorder %s179, %s181
    %p185 = scmp.eq.s32.totalorder %s35, 0
    %p186 = por %p184, %p185
    %p187 = scmp.ne.s32.totalorder %s179, %s181
    %p188 = scmp.eq.s32.totalorder %s40, 1
    %p189 = por %p187, %p188
    %p190 = scmp.ne.s32.totalorder %s181, %s182
    %p191 = scmp.eq.s32.totalorder %s40, 0
    %p192 = por %p190, %p191
    %p193 = scmp.ne.s32.totalorder %s181, %s182
    %p194 = scmp.eq.s32.totalorder %s41, 1
    %p195 = por %p193, %p194
    %p197 = scmp.ne.s32.totalorder %s182, %s196
    %p198 = scmp.eq.s32.totalorder %s41, 0
    %p199 = por %p197, %p198
    %s201 = sadd.s32 %s200, 1
    %p204 = scmp.eq.s32.totalorder %s35, 1
    %p205 = scmp.ne.s32.totalorder %s200, %s202
    %p206 = scmp.eq.s32.totalorder %s35, 0
    %p207 = por %p205, %p206
    %p208 = scmp.ne.s32.totalorder %s200, %s202
    %p209 = scmp.eq.s32.totalorder %s40, 1
    %p210 = por %p208, %p209
    %p211 = scmp.ne.s32.totalorder %s202, %s203
    %p212 = scmp.eq.s32.totalorder %s40, 0
    %p213 = por %p211, %p212
    %p214 = scmp.ne.s32.totalorder %s202, %s203
    %p215 = scmp.eq.s32.totalorder %s41, 1
    %p216 = por %p214, %p215
    %p218 = scmp.ne.s32.totalorder %s203, %s217
    %p219 = scmp.eq.s32.totalorder %s41, 0
    %p220 = por %p218, %p219
    %s222 = sadd.s32 %s221, 1
    %p225 = scmp.eq.s32.totalorder %s35, 1
    %p226 = scmp.ne.s32.totalorder %s221, %s223
    %p227 = scmp.eq.s32.totalorder %s35, 0
    %p228 = por %p226, %p227
    %p229 = scmp.ne.s32.totalorder %s221, %s223
    %p230 = scmp.eq.s32.totalorder %s40, 1
    %p231 = por %p229, %p230
    %p232 = scmp.ne.s32.totalorder %s223, %s224
    %p233 = scmp.eq.s32.totalorder %s40, 0
    %p234 = por %p232, %p233
    %p235 = scmp.ne.s32.totalorder %s223, %s224
    %p236 = scmp.eq.s32.totalorder %s41, 1
    %p237 = por %p235, %p236
    %p239 = scmp.ne.s32.totalorder %s224, %s238
    %p240 = scmp.eq.s32.totalorder %s41, 0
    %p241 = por %p239, %p240
    %s243 = sadd.s32 %s242, 1
    %p246 = scmp.eq.s32.totalorder %s35, 1
    %p247 = scmp.ne.s32.totalorder %s242, %s244
    %p248 = scmp.eq.s32.totalorder %s35, 0
    %p249 = por %p247, %p248
    %p250 = scmp.ne.s32.totalorder %s242, %s244
    %p251 = scmp.eq.s32.totalorder %s40, 1
    %p252 = por %p250, %p251
    %p253 = scmp.ne.s32.totalorder %s244, %s245
    %p254 = scmp.eq.s32.totalorder %s40, 0
    %p255 = por %p253, %p254
    %p256 = scmp.ne.s32.totalorder %s244, %s245
    %p257 = scmp.eq.s32.totalorder %s41, 1
    %p258 = por %p256, %p257
    %p260 = scmp.ne.s32.totalorder %s245, %s259
    %p261 = scmp.eq.s32.totalorder %s41, 0
    %p262 = por %p260, %p261
    %s264 = sadd.s32 %s263, 1
    %p267 = scmp.eq.s32.totalorder %s35, 1
    %p268 = scmp.ne.s32.totalorder %s263, %s265
    %p269 = scmp.eq.s32.totalorder %s35, 0
    %p270 = por %p268, %p269
    %p271 = scmp.ne.s32.totalorder %s263, %s265
    %p272 = scmp.eq.s32.totalorder %s40, 1
    %p273 = por %p271, %p272
    %p274 = scmp.ne.s32.totalorder %s265, %s266
    %p275 = scmp.eq.s32.totalorder %s40, 0
    %p276 = por %p274, %p275
    %p277 = scmp.ne.s32.totalorder %s265, %s266
    %p278 = scmp.eq.s32.totalorder %s41, 1
    %p279 = por %p277, %p278
    %p281 = scmp.ne.s32.totalorder %s266, %s280
    %p282 = scmp.eq.s32.totalorder %s41, 0
    %p283 = por %p281, %p282
    %s285 = sadd.s32 %s284, 1
    %p288 = scmp.eq.s32.totalorder %s35, 1
    %p289 = scmp.ne.s32.totalorder %s284, %s286
    %p290 = scmp.eq.s32.totalorder %s35, 0
    %p291 = por %p289, %p290
    %p292 = scmp.ne.s32.totalorder %s284, %s286
    %p293 = scmp.eq.s32.totalorder %s40, 1
    %p294 = por %p292, %p293
    %p295 = scmp.ne.s32.totalorder %s286, %s287
    %p296 = scmp.eq.s32.totalorder %s40, 0
    %p297 = por %p295, %p296
    %p298 = scmp.ne.s32.totalorder %s286, %s287
    %p299 = scmp.eq.s32.totalorder %s41, 1
    %p300 = por %p298, %p299
    %p302 = scmp.ne.s32.totalorder %s287, %s301
    %p303 = scmp.eq.s32.totalorder %s41, 0
    %p304 = por %p302, %p303
    %s306 = sadd.s32 %s305, 1
    %p309 = scmp.eq.s32.totalorder %s35, 1
    %p310 = scmp.ne.s32.totalorder %s305, %s307
    %p311 = scmp.eq.s32.totalorder %s35, 0
    %p312 = por %p310, %p311
    %p313 = scmp.ne.s32.totalorder %s305, %s307
    %p314 = scmp.eq.s32.totalorder %s40, 1
    %p315 = por %p313, %p314
    %p316 = scmp.ne.s32.totalorder %s307, %s308
    %p317 = scmp.eq.s32.totalorder %s40, 0
    %p318 = por %p316, %p317
    %p319 = scmp.ne.s32.totalorder %s307, %s308
    %p320 = scmp.eq.s32.totalorder %s41, 1
    %p321 = por %p319, %p320
    %p323 = scmp.ne.s32.totalorder %s308, %s322
    %p324 = scmp.eq.s32.totalorder %s41, 0
    %p325 = por %p323, %p324
    %s327 = sadd.s32 %s326, 1
    %p330 = scmp.eq.s32.totalorder %s35, 1
    %p331 = scmp.ne.s32.totalorder %s326, %s328
    %p332 = scmp.eq.s32.totalorder %s35, 0
    %p333 = por %p331, %p332
    %p334 = scmp.ne.s32.totalorder %s326, %s328
    %p335 = scmp.eq.s32.totalorder %s40, 1
    %p336 = por %p334, %p335
    %p337 = scmp.ne.s32.totalorder %s328, %s329
    %p338 = scmp.eq.s32.totalorder %s40, 0
    %p339 = por %p337, %p338
    %p340 = scmp.ne.s32.totalorder %s328, %s329
    %p341 = scmp.eq.s32.totalorder %s41, 1
    %p342 = por %p340, %p341
    %p344 = scmp.ne.s32.totalorder %s329, %s343
    %p345 = scmp.eq.s32.totalorder %s41, 0
    %p346 = por %p344, %p345
    %s348 = sadd.s32 %s347, 1
    %p351 = scmp.eq.s32.totalorder %s35, 1
    %p352 = scmp.ne.s32.totalorder %s347, %s349
    %p353 = scmp.eq.s32.totalorder %s35, 0
    %p354 = por %p352, %p353
    %p355 = scmp.ne.s32.totalorder %s347, %s349
    %p356 = scmp.eq.s32.totalorder %s40, 1
    %p357 = por %p355, %p356
    %p358 = scmp.ne.s32.totalorder %s349, %s350
    %p359 = scmp.eq.s32.totalorder %s40, 0
    %p360 = por %p358, %p359
    %p361 = scmp.ne.s32.totalorder %s349, %s350
    %p362 = scmp.eq.s32.totalorder %s41, 1
    %p363 = por %p361, %p362
    %p365 = scmp.ne.s32.totalorder %s350, %s364
    %p366 = scmp.eq.s32.totalorder %s41, 0
    %p367 = por %p365, %p366
    %s369 = sadd.s32 %s368, 1
    %p372 = scmp.eq.s32.totalorder %s35, 1
    %p373 = scmp.ne.s32.totalorder %s368, %s370
    %p374 = scmp.eq.s32.totalorder %s35, 0
    %p375 = por %p373, %p374
    %p376 = scmp.ne.s32.totalorder %s368, %s370
    %p377 = scmp.eq.s32.totalorder %s40, 1
    %p378 = por %p376, %p377
    %p379 = scmp.ne.s32.totalorder %s370, %s371
    %p380 = scmp.eq.s32.totalorder %s40, 0
    %p381 = por %p379, %p380
    %p382 = scmp.ne.s32.totalorder %s370, %s371
    %p383 = scmp.eq.s32.totalorder %s41, 1
    %p384 = por %p382, %p383
    %p386 = scmp.ne.s32.totalorder %s371, %s385
    %p387 = scmp.eq.s32.totalorder %s41, 0
    %p388 = por %p386, %p387
    %s390 = sadd.s32 %s389, 1
    %p393 = scmp.eq.s32.totalorder %s35, 1
    %p394 = scmp.ne.s32.totalorder %s389, %s391
    %p395 = scmp.eq.s32.totalorder %s35, 0
    %p396 = por %p394, %p395
    %p397 = scmp.ne.s32.totalorder %s389, %s391
    %p398 = scmp.eq.s32.totalorder %s40, 1
    %p399 = por %p397, %p398
    %p400 = scmp.ne.s32.totalorder %s391, %s392
    %p401 = scmp.eq.s32.totalorder %s40, 0
    %p402 = por %p400, %p401
    %p403 = scmp.ne.s32.totalorder %s391, %s392
    %p404 = scmp.eq.s32.totalorder %s41, 1
    %p405 = por %p403, %p404
    %p407 = scmp.ne.s32.totalorder %s392, %s406
    %p408 = scmp.eq.s32.totalorder %s41, 0
    %p409 = por %p407, %p408
    %s411 = sadd.s32 %s410, 1
    %p414 = scmp.eq.s32.totalorder %s35, 1
    %p415 = scmp.ne.s32.totalorder %s410, %s412
    %p416 = scmp.eq.s32.totalorder %s35, 0
    %p417 = por %p415, %p416
    %p418 = scmp.ne.s32.totalorder %s410, %s412
    %p419 = scmp.eq.s32.totalorder %s40, 1
    %p420 = por %p418, %p419
    %p421 = scmp.ne.s32.totalorder %s412, %s413
    %p422 = scmp.eq.s32.totalorder %s40, 0
    %p423 = por %p421, %p422
    %p424 = scmp.ne.s32.totalorder %s412, %s413
    %p425 = scmp.eq.s32.totalorder %s41, 1
    %p426 = por %p424, %p425
    %p428 = scmp.ne.s32.totalorder %s413, %s427
    %p429 = scmp.eq.s32.totalorder %s41, 0
    %p430 = por %p428, %p429
    %s432 = sadd.s32 %s431, 1
    %p435 = scmp.eq.s32.totalorder %s35, 1
    %p436 = scmp.ne.s32.totalorder %s431, %s433
    %p437 = scmp.eq.s32.totalorder %s35, 0
    %p438 = por %p436, %p437
    %p439 = scmp.ne.s32.totalorder %s431, %s433
    %p440 = scmp.eq.s32.totalorder %s40, 1
    %p441 = por %p439, %p440
    %p442 = scmp.ne.s32.totalorder %s433, %s434
    %p443 = scmp.eq.s32.totalorder %s40, 0
    %p444 = por %p442, %p443
    %p445 = scmp.ne.s32.totalorder %s433, %s434
    %p446 = scmp.eq.s32.totalorder %s41, 1
    %p447 = por %p445, %p446
    %p449 = scmp.ne.s32.totalorder %s434, %s448
    %p450 = scmp.eq.s32.totalorder %s41, 0
    %p451 = por %p449, %p450
    %s453 = sadd.s32 %s452, 1
    %p456 = scmp.eq.s32.totalorder %s35, 1
    %p457 = scmp.ne.s32.totalorder %s452, %s454
    %p458 = scmp.eq.s32.totalorder %s35, 0
    %p459 = por %p457, %p458
    %p460 = scmp.ne.s32.totalorder %s452, %s454
    %p461 = scmp.eq.s32.totalorder %s40, 1
    %p462 = por %p460, %p461
    %p463 = scmp.ne.s32.totalorder %s454, %s455
    %p464 = scmp.eq.s32.totalorder %s40, 0
    %p465 = por %p463, %p464
    %p466 = scmp.ne.s32.totalorder %s454, %s455
    %p467 = scmp.eq.s32.totalorder %s41, 1
    %p468 = por %p466, %p467
    %p470 = scmp.ne.s32.totalorder %s455, %s469
    %p471 = scmp.eq.s32.totalorder %s41, 0
    %p472 = por %p470, %p471
    %s474 = sadd.s32 %s473, 1
    %p477 = scmp.eq.s32.totalorder %s35, 1
    %p478 = scmp.ne.s32.totalorder %s473, %s475
    %p479 = scmp.eq.s32.totalorder %s35, 0
    %p480 = por %p478, %p479
    %p481 = scmp.ne.s32.totalorder %s473, %s475
    %p482 = scmp.eq.s32.totalorder %s40, 1
    %p483 = por %p481, %p482
    %p484 = scmp.ne.s32.totalorder %s475, %s476
    %p485 = scmp.eq.s32.totalorder %s40, 0
    %p486 = por %p484, %p485
    %p487 = scmp.ne.s32.totalorder %s475, %s476
    %p488 = scmp.eq.s32.totalorder %s41, 1
    %p489 = por %p487, %p488
    %p491 = scmp.ne.s32.totalorder %s476, %s490
    %p492 = scmp.eq.s32.totalorder %s41, 0
    %p493 = por %p491, %p492
    %s495 = sadd.s32 %s494, 1
    %p498 = scmp.eq.s32.totalorder %s35, 1
    %p499 = scmp.ne.s32.totalorder %s494, %s496
    %p500 = scmp.eq.s32.totalorder %s35, 0
    %p501 = por %p499, %p500
    %p502 = scmp.ne.s32.totalorder %s494, %s496
    %p503 = scmp.eq.s32.totalorder %s40, 1
    %p504 = por %p502, %p503
    %p505 = scmp.ne.s32.totalorder %s496, %s497
    %p506 = scmp.eq.s32.totalorder %s40, 0
    %p507 = por %p505, %p506
    %p508 = scmp.ne.s32.totalorder %s496, %s497
    %p509 = scmp.eq.s32.totalorder %s41, 1
    %p510 = por %p508, %p509
    %p512 = scmp.ne.s32.totalorder %s497, %s511
    %p513 = scmp.eq.s32.totalorder %s41, 0
    %p514 = por %p512, %p513
    %s516 = sadd.s32 %s515, 1
    %p519 = scmp.eq.s32.totalorder %s35, 1
    %p520 = scmp.ne.s32.totalorder %s515, %s517
    %p521 = scmp.eq.s32.totalorder %s35, 0
    %p522 = por %p520, %p521
    %p523 = scmp.ne.s32.totalorder %s515, %s517
    %p524 = scmp.eq.s32.totalorder %s40, 1
    %p525 = por %p523, %p524
    %p526 = scmp.ne.s32.totalorder %s517, %s518
    %p527 = scmp.eq.s32.totalorder %s40, 0
    %p528 = por %p526, %p527
    %p529 = scmp.ne.s32.totalorder %s517, %s518
    %p530 = scmp.eq.s32.totalorder %s41, 1
    %p531 = por %p529, %p530
    %p533 = scmp.ne.s32.totalorder %s518, %s532
    %p534 = scmp.eq.s32.totalorder %s41, 0
    %p535 = por %p533, %p534
    %s537 = sadd.s32 %s536, 1
    %p540 = scmp.eq.s32.totalorder %s35, 1
    %p541 = scmp.ne.s32.totalorder %s536, %s538
    %p542 = scmp.eq.s32.totalorder %s35, 0
    %p543 = por %p541, %p542
    %p544 = scmp.ne.s32.totalorder %s536, %s538
    %p545 = scmp.eq.s32.totalorder %s40, 1
    %p546 = por %p544, %p545
    %p547 = scmp.ne.s32.totalorder %s538, %s539
    %p548 = scmp.eq.s32.totalorder %s40, 0
    %p549 = por %p547, %p548
    %p550 = scmp.ne.s32.totalorder %s538, %s539
    %p551 = scmp.eq.s32.totalorder %s41, 1
    %p552 = por %p550, %p551
    %p554 = scmp.ne.s32.totalorder %s539, %s553
    %p555 = scmp.eq.s32.totalorder %s41, 0
    %p556 = por %p554, %p555
    %s558 = sadd.s32 %s557, 1
    %p561 = scmp.eq.s32.totalorder %s35, 1
    %p562 = scmp.ne.s32.totalorder %s557, %s559
    %p563 = scmp.eq.s32.totalorder %s35, 0
    %p564 = por %p562, %p563
    %p565 = scmp.ne.s32.totalorder %s557, %s559
    %p566 = scmp.eq.s32.totalorder %s40, 1
    %p567 = por %p565, %p566
    %p568 = scmp.ne.s32.totalorder %s559, %s560
    %p569 = scmp.eq.s32.totalorder %s40, 0
    %p570 = por %p568, %p569
    %p571 = scmp.ne.s32.totalorder %s559, %s560
    %p572 = scmp.eq.s32.totalorder %s41, 1
    %p573 = por %p571, %p572
    %p575 = scmp.ne.s32.totalorder %s560, %s574
    %p576 = scmp.eq.s32.totalorder %s41, 0
    %p577 = por %p575, %p576
    %s579 = sadd.s32 %s578, 1
    %p582 = scmp.eq.s32.totalorder %s35, 1
    %p583 = scmp.ne.s32.totalorder %s578, %s580
    %p584 = scmp.eq.s32.totalorder %s35, 0
    %p585 = por %p583, %p584
    %p586 = scmp.ne.s32.totalorder %s578, %s580
    %p587 = scmp.eq.s32.totalorder %s40, 1
    %p588 = por %p586, %p587
    %p589 = scmp.ne.s32.totalorder %s580, %s581
    %p590 = scmp.eq.s32.totalorder %s40, 0
    %p591 = por %p589, %p590
    %p592 = scmp.ne.s32.totalorder %s580, %s581
    %p593 = scmp.eq.s32.totalorder %s41, 1
    %p594 = por %p592, %p593
    %p596 = scmp.ne.s32.totalorder %s581, %s595
    %p597 = scmp.eq.s32.totalorder %s41, 0
    %p598 = por %p596, %p597
    %s600 = sadd.s32 %s599, 1
    %p603 = scmp.eq.s32.totalorder %s35, 1
    %p604 = scmp.ne.s32.totalorder %s599, %s601
    %p605 = scmp.eq.s32.totalorder %s35, 0
    %p606 = por %p604, %p605
    %p607 = scmp.ne.s32.totalorder %s599, %s601
    %p608 = scmp.eq.s32.totalorder %s40, 1
    %p609 = por %p607, %p608
    %p610 = scmp.ne.s32.totalorder %s601, %s602
    %p611 = scmp.eq.s32.totalorder %s40, 0
    %p612 = por %p610, %p611
    %p613 = scmp.ne.s32.totalorder %s601, %s602
    %p614 = scmp.eq.s32.totalorder %s41, 1
    %p615 = por %p613, %p614
    %p617 = scmp.ne.s32.totalorder %s602, %s616
    %p618 = scmp.eq.s32.totalorder %s41, 0
    %p619 = por %p617, %p618
    %s620 = ssub.s32 %s35, %s42
    %p621 = scmp.eq.s32.totalorder %s620, 0
    %s623 = sadd.s32 %s622, 1
    %s624 = scalar_select %p621, %s622, %s623
    %p627 = pneg %p621
    %p628 = scmp.eq.s32.totalorder %s35, 1
    %p629 = por %p627, %p628
    %p630 = scmp.ne.s32.totalorder %s622, %s625
    %p631 = scmp.eq.s32.totalorder %s35, 0
    %p632 = por %p630, %p631
    %p633 = scmp.ne.s32.totalorder %s622, %s625
    %p634 = scmp.eq.s32.totalorder %s40, 1
    %p635 = por %p633, %p634
    %p636 = scmp.ne.s32.totalorder %s625, %s626
    %p637 = scmp.eq.s32.totalorder %s40, 0
    %p638 = por %p636, %p637
    %p639 = scmp.ne.s32.totalorder %s625, %s626
    %p640 = scmp.eq.s32.totalorder %s41, 1
    %p641 = por %p639, %p640
    %p643 = scmp.ne.s32.totalorder %s626, %s642
    %p644 = scmp.eq.s32.totalorder %s41, 0
    %p645 = por %p643, %p644
    %s646 = ssub.s32 %s35, %s42
    %p647 = scmp.eq.s32.totalorder %s646, 0
    %s649 = sadd.s32 %s648, 1
    %s650 = scalar_select %p647, %s648, %s649
    %p653 = pneg %p647
    %p654 = scmp.eq.s32.totalorder %s35, 1
    %p655 = por %p653, %p654
    %p656 = scmp.ne.s32.totalorder %s648, %s651
    %p657 = scmp.eq.s32.totalorder %s35, 0
    %p658 = por %p656, %p657
    %p659 = scmp.ne.s32.totalorder %s648, %s651
    %p660 = scmp.eq.s32.totalorder %s40, 1
    %p661 = por %p659, %p660
    %p662 = scmp.ne.s32.totalorder %s651, %s652
    %p663 = scmp.eq.s32.totalorder %s40, 0
    %p664 = por %p662, %p663
    %p665 = scmp.ne.s32.totalorder %s651, %s652
    %p666 = scmp.eq.s32.totalorder %s41, 1
    %p667 = por %p665, %p666
    %p669 = scmp.ne.s32.totalorder %s652, %s668
    %p670 = scmp.eq.s32.totalorder %s41, 0
    %p671 = por %p669, %p670
    %p672 = scmp.le.s32.totalorder 1, %s35
    %p673 = scmp.lt.s32.totalorder %s35, 3
    %p674 = pnand %p672, %p673
    %p675 = pneg %p674
    // Predicated region
    $region9: #{mixed_dilations_block_1_forward.1} parent=5 // pred_check
      _
    $region10: #{mixed_dilations_block_1_forward.1} parent=5 // pred_check_branch
      %677 = sbr.rel (%p674) target = $region12
    $region11: #{mixed_dilations_block_1_forward.1} parent=5 // pred_region
      %s678 = ssub.s32 %s35, 1
      // Predicated region
      $region13: #{mixed_dilations_block_1_forward.1} parent=11 // pred_check
        %p679 = pneg %p108
      $region14: #{mixed_dilations_block_1_forward.1} parent=11 // pred_check_branch
        %681 = sbr.rel (%p679) target = $region16
      $region15: #{mixed_dilations_block_1_forward.1} parent=11 // pred_region
        _
      $region16: #{mixed_dilations_block_1_forward.1} parent=11 // pred_fallthru
        _
      // Predicated region
      $region17: #{mixed_dilations_block_1_forward.1} parent=11 // pred_check
        %p682 = pneg %p129
      $region18: #{mixed_dilations_block_1_forward.1} parent=11 // pred_check_branch
        %684 = sbr.rel (%p682) target = $region20
      $region19: #{mixed_dilations_block_1_forward.1} parent=11 // pred_region
        _
      $region20: #{mixed_dilations_block_1_forward.1} parent=11 // pred_fallthru
        _
      // Predicated region
      $region21: #{mixed_dilations_block_1_forward.1} parent=11 // pred_check
        %p685 = pneg %p150
      $region22: #{mixed_dilations_block_1_forward.1} parent=11 // pred_check_branch
        %687 = sbr.rel (%p685) target = $region24
      $region23: #{mixed_dilations_block_1_forward.1} parent=11 // pred_region
        _
      $region24: #{mixed_dilations_block_1_forward.1} parent=11 // pred_fallthru
        _
      // Predicated region
      $region25: #{mixed_dilations_block_1_forward.1} parent=11 // pred_check
        %p688 = pneg %p171
      $region26: #{mixed_dilations_block_1_forward.1} parent=11 // pred_check_branch
        %690 = sbr.rel (%p688) target = $region28
      $region27: #{mixed_dilations_block_1_forward.1} parent=11 // pred_region
        _
      $region28: #{mixed_dilations_block_1_forward.1} parent=11 // pred_fallthru
        _
      // Predicated region
      $region29: #{mixed_dilations_block_1_forward.1} parent=11 // pred_check
        %p691 = pneg %p192
      $region30: #{mixed_dilations_block_1_forward.1} parent=11 // pred_check_branch
        %693 = sbr.rel (%p691) target = $region32
      $region31: #{mixed_dilations_block_1_forward.1} parent=11 // pred_region
        _
      $region32: #{mixed_dilations_block_1_forward.1} parent=11 // pred_fallthru
        _
      // Predicated region
      $region33: #{mixed_dilations_block_1_forward.1} parent=11 // pred_check
        %p694 = pneg %p213
      $region34: #{mixed_dilations_block_1_forward.1} parent=11 // pred_check_branch
        %696 = sbr.rel (%p694) target = $region36
      $region35: #{mixed_dilations_block_1_forward.1} parent=11 // pred_region
        _
      $region36: #{mixed_dilations_block_1_forward.1} parent=11 // pred_fallthru
        _
      // Predicated region
      $region37: #{mixed_dilations_block_1_forward.1} parent=11 // pred_check
        %p697 = pneg %p234
      $region38: #{mixed_dilations_block_1_forward.1} parent=11 // pred_check_branch
        %699 = sbr.rel (%p697) target = $region40
      $region39: #{mixed_dilations_block_1_forward.1} parent=11 // pred_region
        _
      $region40: #{mixed_dilations_block_1_forward.1} parent=11 // pred_fallthru
        _
      // Predicated region
      $region41: #{mixed_dilations_block_1_forward.1} parent=11 // pred_check
        %p700 = pneg %p255
      $region42: #{mixed_dilations_block_1_forward.1} parent=11 // pred_check_branch
        %702 = sbr.rel (%p700) target = $region44
      $region43: #{mixed_dilations_block_1_forward.1} parent=11 // pred_region
        _
      $region44: #{mixed_dilations_block_1_forward.1} parent=11 // pred_fallthru
        _
      // Predicated region
      $region45: #{mixed_dilations_block_1_forward.1} parent=11 // pred_check
        %p703 = pneg %p276
      $region46: #{mixed_dilations_block_1_forward.1} parent=11 // pred_check_branch
        %705 = sbr.rel (%p703) target = $region48
      $region47: #{mixed_dilations_block_1_forward.1} parent=11 // pred_region
        _
      $region48: #{mixed_dilations_block_1_forward.1} parent=11 // pred_fallthru
        _
      // Predicated region
      $region49: #{mixed_dilations_block_1_forward.1} parent=11 // pred_check
        %p706 = pneg %p297
      $region50: #{mixed_dilations_block_1_forward.1} parent=11 // pred_check_branch
        %708 = sbr.rel (%p706) target = $region52
      $region51: #{mixed_dilations_block_1_forward.1} parent=11 // pred_region
        _
      $region52: #{mixed_dilations_block_1_forward.1} parent=11 // pred_fallthru
        _
      // Predicated region
      $region53: #{mixed_dilations_block_1_forward.1} parent=11 // pred_check
        %p709 = pneg %p318
      $region54: #{mixed_dilations_block_1_forward.1} parent=11 // pred_check_branch
        %711 = sbr.rel (%p709) target = $region56
      $region55: #{mixed_dilations_block_1_forward.1} parent=11 // pred_region
        _
      $region56: #{mixed_dilations_block_1_forward.1} parent=11 // pred_fallthru
        _
      // Predicated region
      $region57: #{mixed_dilations_block_1_forward.1} parent=11 // pred_check
        %p712 = pneg %p339
      $region58: #{mixed_dilations_block_1_forward.1} parent=11 // pred_check_branch
        %714 = sbr.rel (%p712) target = $region60
      $region59: #{mixed_dilations_block_1_forward.1} parent=11 // pred_region
        _
      $region60: #{mixed_dilations_block_1_forward.1} parent=11 // pred_fallthru
        _
      // Predicated region
      $region61: #{mixed_dilations_block_1_forward.1} parent=11 // pred_check
        %p715 = pneg %p360
      $region62: #{mixed_dilations_block_1_forward.1} parent=11 // pred_check_branch
        %717 = sbr.rel (%p715) target = $region64
      $region63: #{mixed_dilations_block_1_forward.1} parent=11 // pred_region
        _
      $region64: #{mixed_dilations_block_1_forward.1} parent=11 // pred_fallthru
        _
      // Predicated region
      $region65: #{mixed_dilations_block_1_forward.1} parent=11 // pred_check
        %p718 = pneg %p381
      $region66: #{mixed_dilations_block_1_forward.1} parent=11 // pred_check_branch
        %720 = sbr.rel (%p718) target = $region68
      $region67: #{mixed_dilations_block_1_forward.1} parent=11 // pred_region
        _
      $region68: #{mixed_dilations_block_1_forward.1} parent=11 // pred_fallthru
        _
      // Predicated region
      $region69: #{mixed_dilations_block_1_forward.1} parent=11 // pred_check
        %p721 = pneg %p402
      $region70: #{mixed_dilations_block_1_forward.1} parent=11 // pred_check_branch
        %723 = sbr.rel (%p721) target = $region72
      $region71: #{mixed_dilations_block_1_forward.1} parent=11 // pred_region
        _
      $region72: #{mixed_dilations_block_1_forward.1} parent=11 // pred_fallthru
        _
      // Predicated region
      $region73: #{mixed_dilations_block_1_forward.1} parent=11 // pred_check
        %p724 = pneg %p423
      $region74: #{mixed_dilations_block_1_forward.1} parent=11 // pred_check_branch
        %726 = sbr.rel (%p724) target = $region76
      $region75: #{mixed_dilations_block_1_forward.1} parent=11 // pred_region
        _
      $region76: #{mixed_dilations_block_1_forward.1} parent=11 // pred_fallthru
        _
      // Predicated region
      $region77: #{mixed_dilations_block_1_forward.1} parent=11 // pred_check
        %p727 = pneg %p444
      $region78: #{mixed_dilations_block_1_forward.1} parent=11 // pred_check_branch
        %729 = sbr.rel (%p727) target = $region80
      $region79: #{mixed_dilations_block_1_forward.1} parent=11 // pred_region
        _
      $region80: #{mixed_dilations_block_1_forward.1} parent=11 // pred_fallthru
        _
      // Predicated region
      $region81: #{mixed_dilations_block_1_forward.1} parent=11 // pred_check
        %p730 = pneg %p465
      $region82: #{mixed_dilations_block_1_forward.1} parent=11 // pred_check_branch
        %732 = sbr.rel (%p730) target = $region84
      $region83: #{mixed_dilations_block_1_forward.1} parent=11 // pred_region
        _
      $region84: #{mixed_dilations_block_1_forward.1} parent=11 // pred_fallthru
        _
      // Predicated region
      $region85: #{mixed_dilations_block_1_forward.1} parent=11 // pred_check
        %p733 = pneg %p486
      $region86: #{mixed_dilations_block_1_forward.1} parent=11 // pred_check_branch
        %735 = sbr.rel (%p733) target = $region88
      $region87: #{mixed_dilations_block_1_forward.1} parent=11 // pred_region
        _
      $region88: #{mixed_dilations_block_1_forward.1} parent=11 // pred_fallthru
        _
      // Predicated region
      $region89: #{mixed_dilations_block_1_forward.1} parent=11 // pred_check
        %p736 = pneg %p507
      $region90: #{mixed_dilations_block_1_forward.1} parent=11 // pred_check_branch
        %738 = sbr.rel (%p736) target = $region92
      $region91: #{mixed_dilations_block_1_forward.1} parent=11 // pred_region
        _
      $region92: #{mixed_dilations_block_1_forward.1} parent=11 // pred_fallthru
        _
      // Predicated region
      $region93: #{mixed_dilations_block_1_forward.1} parent=11 // pred_check
        %p739 = pneg %p528
      $region94: #{mixed_dilations_block_1_forward.1} parent=11 // pred_check_branch
        %741 = sbr.rel (%p739) target = $region96
      $region95: #{mixed_dilations_block_1_forward.1} parent=11 // pred_region
        _
      $region96: #{mixed_dilations_block_1_forward.1} parent=11 // pred_fallthru
        _
      // Predicated region
      $region97: #{mixed_dilations_block_1_forward.1} parent=11 // pred_check
        %p742 = pneg %p549
      $region98: #{mixed_dilations_block_1_forward.1} parent=11 // pred_check_branch
        %744 = sbr.rel (%p742) target = $region100
      $region99: #{mixed_dilations_block_1_forward.1} parent=11 // pred_region
        _
      $region100: #{mixed_dilations_block_1_forward.1} parent=11 // pred_fallthru
        _
      // Predicated region
      $region101: #{mixed_dilations_block_1_forward.1} parent=11 // pred_check
        %p745 = pneg %p570
      $region102: #{mixed_dilations_block_1_forward.1} parent=11 // pred_check_branch
        %747 = sbr.rel (%p745) target = $region104
      $region103: #{mixed_dilations_block_1_forward.1} parent=11 // pred_region
        _
      $region104: #{mixed_dilations_block_1_forward.1} parent=11 // pred_fallthru
        _
      // Predicated region
      $region105: #{mixed_dilations_block_1_forward.1} parent=11 // pred_check
        %p748 = pneg %p591
      $region106: #{mixed_dilations_block_1_forward.1} parent=11 // pred_check_branch
        %750 = sbr.rel (%p748) target = $region108
      $region107: #{mixed_dilations_block_1_forward.1} parent=11 // pred_region
        _
      $region108: #{mixed_dilations_block_1_forward.1} parent=11 // pred_fallthru
        _
      // Predicated region
      $region109: #{mixed_dilations_block_1_forward.1} parent=11 // pred_check
        %p751 = pneg %p612
      $region110: #{mixed_dilations_block_1_forward.1} parent=11 // pred_check_branch
        %753 = sbr.rel (%p751) target = $region112
      $region111: #{mixed_dilations_block_1_forward.1} parent=11 // pred_region
        _
      $region112: #{mixed_dilations_block_1_forward.1} parent=11 // pred_fallthru
        _
    $region12: #{mixed_dilations_block_1_forward.1} parent=5 // pred_fallthru
      _
    %p754 = scmp.lt.s32.totalorder %s35, 2
    // Predicated region
    $region113: #{mixed_dilations_block_1_forward.1} parent=5 // pred_check
      %p755 = pneg %p754
    $region114: #{mixed_dilations_block_1_forward.1} parent=5 // pred_check_branch
      %757 = sbr.rel (%p755) target = $region116
    $region115: #{mixed_dilations_block_1_forward.1} parent=5 // pred_region
      // Predicated region
      $region117: #{mixed_dilations_block_1_forward.1} parent=115 // pred_check
        %p758 = pneg %p55
      $region118: #{mixed_dilations_block_1_forward.1} parent=115 // pred_check_branch
        %760 = sbr.rel (%p758) target = $region120
      $region119: #{mixed_dilations_block_1_forward.1} parent=115 // pred_region
        %p761 = scmp.lt.s32.totalorder %s35, 1
        %s762 = scalar_select %p761, %s35, 1
        %s763 = smul.addr %s762, 4
        %s764 = smul.addr %s763, 8
        %s765 = scalar_lea.vmem %s0, %s764
      $region120: #{mixed_dilations_block_1_forward.1} parent=115 // pred_fallthru
        _
      // Predicated region
      $region121: #{mixed_dilations_block_1_forward.1} parent=115 // pred_check
        %p766 = pneg %p81
      $region122: #{mixed_dilations_block_1_forward.1} parent=115 // pred_check_branch
        %768 = sbr.rel (%p766) target = $region124
      $region123: #{mixed_dilations_block_1_forward.1} parent=115 // pred_region
        %p769 = scmp.lt.s32.totalorder %s35, 1
        %s770 = scalar_select %p769, %s35, 1
        %s771 = smul.addr %s770, 4
        %s772 = smul.addr %s771, 8
        %s773 = scalar_lea.vmem %s1, %s772
      $region124: #{mixed_dilations_block_1_forward.1} parent=115 // pred_fallthru
        _
    $region116: #{mixed_dilations_block_1_forward.1} parent=5 // pred_fallthru
      _
    %p774 = scmp.le.s32.totalorder 1, %s35
    %p775 = scmp.lt.s32.totalorder %s35, 3
    %p776 = pnand %p774, %p775
    %p777 = pneg %p776
    // Predicated region
    $region125: #{mixed_dilations_block_1_forward.1} parent=5 // pred_check
      _
    $region126: #{mixed_dilations_block_1_forward.1} parent=5 // pred_check_branch
      %779 = sbr.rel (%p776) target = $region128
    $region127: #{mixed_dilations_block_1_forward.1} parent=5 // pred_region
      %s780 = ssub.s32 %s35, 1
      %p781 = scmp.lt.s32.totalorder %s40, 1
      %s782 = scalar_select %p781, %s40, 1
      %s783 = smul.addr %s782, 4
      %s784 = smul.addr %s783, 8
      %s785 = scalar_lea.vmem %s0, %s784
      %p786 = pneg %p61
      %p787 = pneg %p58
      %p788 = scmp.lt.s32.totalorder %s40, 1
      %s789 = scalar_select %p788, %s40, 1
      %s790 = smul.addr %s789, 4
      %s791 = smul.addr %s790, 8
      %s792 = scalar_lea.vmem %s1, %s791
      %p793 = pneg %p87
      %p794 = pneg %p84
      %p795 = pneg %p108
      %p796 = pneg %p105
      %p797 = pneg %p129
      %p798 = pneg %p126
      %p799 = pneg %p150
      %p800 = pneg %p147
      %p801 = pneg %p171
      %p802 = pneg %p168
      %p803 = pneg %p192
      %p804 = pneg %p189
      %p805 = pneg %p213
      %p806 = pneg %p210
      %p807 = pneg %p234
      %p808 = pneg %p231
      %p809 = pneg %p255
      %p810 = pneg %p252
      %p811 = pneg %p276
      %p812 = pneg %p273
      %p813 = pneg %p297
      %p814 = pneg %p294
      %p815 = pneg %p318
      %p816 = pneg %p315
      %p817 = pneg %p339
      %p818 = pneg %p336
      %p819 = pneg %p360
      %p820 = pneg %p357
      %p821 = pneg %p381
      %p822 = pneg %p378
      %p823 = pneg %p402
      %p824 = pneg %p399
      %p825 = pneg %p423
      %p826 = pneg %p420
      %p827 = pneg %p444
      %p828 = pneg %p441
      %p829 = pneg %p465
      %p830 = pneg %p462
      %p831 = pneg %p486
      %p832 = pneg %p483
      %p833 = pneg %p507
      %p834 = pneg %p504
      %p835 = pneg %p528
      %p836 = pneg %p525
      %p837 = pneg %p549
      %p838 = pneg %p546
      %p839 = pneg %p570
      %p840 = pneg %p567
      %p841 = pneg %p591
      %p842 = pneg %p588
      %p843 = pneg %p612
      %p844 = pneg %p609
      %p845 = pneg %p638
      %p846 = pneg %p635
      %p847 = scmp.lt.s32.totalorder %s40, 1
      %s848 = scalar_select %p847, %s40, 1
      %s849 = smul.addr %s848, 8
      %s850 = smul.addr %s849, 8
      %s851 = scalar_lea.vmem %s27, %s850
      %p852 = pneg %p664
      %p853 = pneg %p661
      %p854 = scmp.lt.s32.totalorder %s40, 1
      %s855 = scalar_select %p854, %s40, 1
      %s856 = smul.addr %s855, 8
      %s857 = smul.addr %s856, 8
      %s858 = scalar_lea.vmem %s28, %s857
      %p859 = scmp.lt.s32.totalorder %s40, 1
      %s860 = scalar_select %p859, %s40, 1
      %s861 = smul.addr %s860, 4
      %s862 = smul.addr %s861, 8
      %s863 = scalar_lea.vmem %s0, %s862
      %p864 = scmp.lt.s32.totalorder %s40, 1
      %s865 = scalar_select %p864, %s40, 1
      %s866 = smul.addr %s865, 4
      %s867 = smul.addr %s866, 8
      %s868 = scalar_lea.vmem %s1, %s867
      %p869 = scmp.lt.s32.totalorder %s40, 1
      %s870 = scalar_select %p869, %s40, 1
      %s871 = smul.addr %s870, 8
      %s872 = smul.addr %s871, 8
      %s873 = scalar_lea.vmem %s27, %s872
      %p874 = scmp.lt.s32.totalorder %s40, 1
      %s875 = scalar_select %p874, %s40, 1
      %s876 = smul.addr %s875, 8
      %s877 = smul.addr %s876, 8
      %s878 = scalar_lea.vmem %s28, %s877
      %v880 = vld [vmem:[%s2] sm:$0xf]
      %v881 = vld [vmem:[%s863] sm:$0xff]
      %v882 = vld [vmem:[%s863 + $0x8] sm:$0xff]
      %v883 = vld [vmem:[%s863 + $0x10] sm:$0xff]
      %v884 = vld [vmem:[%s863 + $0x18] sm:$0xff]
      %v885 = vld [vmem:[%s868] sm:$0xff]
      %v886 = vld [vmem:[%s868 + $0x8] sm:$0xff]
      %v887 = vld [vmem:[%s868 + $0x10] sm:$0xff]
      %v888 = vld [vmem:[%s868 + $0x18] sm:$0xff]
      %889 = vst [vmem:[#allocation2] sm:$0xff] 0.0
      %890 = vst [vmem:[#allocation2 + $0x8] sm:$0xff] 0.0
      %891 = vst [vmem:[#allocation2 + $0x10] sm:$0xff] 0.0
      %892 = vst [vmem:[#allocation2 + $0x18] sm:$0xff] 0.0
      %893 = vst [vmem:[#allocation2 + $0x20] sm:$0xff] 0.0
      %894 = vst [vmem:[#allocation2 + $0x28] sm:$0xff] 0.0
      %895 = vst [vmem:[#allocation2 + $0x30] sm:$0xff] 0.0
      %896 = vst [vmem:[#allocation2 + $0x38] sm:$0xff] 0.0
      %897 = vst [vmem:[#allocation2 + $0x40] sm:$0xff] 0.0
      %898 = vst [vmem:[#allocation2 + $0x48] sm:$0xff] 0.0
      %899 = vst [vmem:[#allocation2 + $0x50] sm:$0xff] 0.0
      %900 = vst [vmem:[#allocation2 + $0x58] sm:$0xff] 0.0
      %901 = vst [vmem:[#allocation2 + $0x60] sm:$0xff] 0.0
      %902 = vst [vmem:[#allocation2 + $0x68] sm:$0xff] 0.0
      %903 = vst [vmem:[#allocation2 + $0x70] sm:$0xff] 0.0
      %904 = vst [vmem:[#allocation2 + $0x78] sm:$0xff] 0.0
      %905 = vst [vmem:[#allocation2 + $0x80] sm:$0xff] 0.0
      %906 = vst [vmem:[#allocation2 + $0x88] sm:$0xff] 0.0
      %907 = vst [vmem:[#allocation2 + $0x90] sm:$0xff] 0.0
      %908 = vst [vmem:[#allocation2 + $0x98] sm:$0xff] 0.0
      %909 = vst [vmem:[#allocation2 + $0xa0] sm:$0xff] 0.0
      %910 = vst [vmem:[#allocation2 + $0xa8] sm:$0xff] 0.0
      %911 = vst [vmem:[#allocation2 + $0xb0] sm:$0xff] 0.0
      %912 = vst [vmem:[#allocation2 + $0xb8] sm:$0xff] 0.0
      %913 = vst [vmem:[#allocation2 + $0xc0] sm:$0xff] 0.0
      %914 = vst [vmem:[#allocation2 + $0xc8] sm:$0xff] 0.0
      %915 = vst [vmem:[#allocation2 + $0xd0] sm:$0xff] 0.0
      %916 = vst [vmem:[#allocation2 + $0xd8] sm:$0xff] 0.0
      %917 = vst [vmem:[#allocation2 + $0xe0] sm:$0xff] 0.0
      %918 = vst [vmem:[#allocation2 + $0xe8] sm:$0xff] 0.0
      %919 = vst [vmem:[#allocation2 + $0xf0] sm:$0xff] 0.0
      %920 = vst [vmem:[#allocation2 + $0xf8] sm:$0xff] 0.0
      %921 = vst [vmem:[#allocation2 + $0x100] sm:$0xff] 0.0
      %922 = vst [vmem:[#allocation2 + $0x108] sm:$0xff] 0.0
      %923 = vst [vmem:[#allocation2 + $0x110] sm:$0xff] 0.0
      %924 = vst [vmem:[#allocation2 + $0x118] sm:$0xff] 0.0
      %925 = vst [vmem:[#allocation2 + $0x120] sm:$0xff] 0.0
      %926 = vst [vmem:[#allocation2 + $0x128] sm:$0xff] 0.0
      %927 = vst [vmem:[#allocation2 + $0x130] sm:$0xff] 0.0
      %928 = vst [vmem:[#allocation2 + $0x138] sm:$0xff] 0.0
      %929 = vst [vmem:[#allocation2 + $0x140] sm:$0xff] 0.0
      %930 = vst [vmem:[#allocation2 + $0x148] sm:$0xff] 0.0
      %931 = vst [vmem:[#allocation2 + $0x150] sm:$0xff] 0.0
      %932 = vst [vmem:[#allocation2 + $0x158] sm:$0xff] 0.0
      %933 = vst [vmem:[#allocation2 + $0x160] sm:$0xff] 0.0
      %934 = vst [vmem:[#allocation2 + $0x168] sm:$0xff] 0.0
      %935 = vst [vmem:[#allocation2 + $0x170] sm:$0xff] 0.0
      %936 = vst [vmem:[#allocation2 + $0x178] sm:$0xff] 0.0
      %937 = vst [vmem:[#allocation2 + $0x180] sm:$0xff] 0.0
      %938 = vst [vmem:[#allocation2 + $0x188] sm:$0xff] 0.0
      %939 = vst [vmem:[#allocation2 + $0x190] sm:$0xff] 0.0
      %940 = vst [vmem:[#allocation2 + $0x198] sm:$0xff] 0.0
      %941 = vst [vmem:[#allocation2 + $0x1a0] sm:$0xff] 0.0
      %942 = vst [vmem:[#allocation2 + $0x1a8] sm:$0xff] 0.0
      %943 = vst [vmem:[#allocation2 + $0x1b0] sm:$0xff] 0.0
      %944 = vst [vmem:[#allocation2 + $0x1b8] sm:$0xff] 0.0
      %945 = vst [vmem:[#allocation2 + $0x1c0] sm:$0xff] 0.0
      %946 = vst [vmem:[#allocation2 + $0x1c8] sm:$0xff] 0.0
      %947 = vst [vmem:[#allocation2 + $0x1d0] sm:$0xff] 0.0
      %948 = vst [vmem:[#allocation2 + $0x1d8] sm:$0xff] 0.0
      %949 = vst [vmem:[#allocation2 + $0x1e0] sm:$0xff] 0.0
      %950 = vst [vmem:[#allocation2 + $0x1e8] sm:$0xff] 0.0
      %951 = vst [vmem:[#allocation2 + $0x1f0] sm:$0xff] 0.0
      %952 = vst [vmem:[#allocation2 + $0x1f8] sm:$0xff] 0.0
      %953 = vst [vmem:[#allocation2 + $0x200] sm:$0xff] 0.0
      %954 = vst [vmem:[#allocation2 + $0x208] sm:$0xff] 0.0
      %955 = vst [vmem:[#allocation2 + $0x210] sm:$0xff] 0.0
      %956 = vst [vmem:[#allocation2 + $0x218] sm:$0xff] 0.0
      %957 = vst [vmem:[#allocation2 + $0x220] sm:$0xff] 0.0
      %958 = vst [vmem:[#allocation2 + $0x228] sm:$0xff] 0.0
      %959 = vst [vmem:[#allocation2 + $0x230] sm:$0xff] 0.0
      %960 = vst [vmem:[#allocation2 + $0x238] sm:$0xff] 0.0
      %961 = vst [vmem:[#allocation2 + $0x240] sm:$0xff] 0.0
      %962 = vst [vmem:[#allocation2 + $0x248] sm:$0xff] 0.0
      %963 = vst [vmem:[#allocation2 + $0x250] sm:$0xff] 0.0
      %964 = vst [vmem:[#allocation2 + $0x258] sm:$0xff] 0.0
      %965 = vst [vmem:[#allocation2 + $0x260] sm:$0xff] 0.0
      %966 = vst [vmem:[#allocation2 + $0x268] sm:$0xff] 0.0
      %967 = vst [vmem:[#allocation2 + $0x270] sm:$0xff] 0.0
      %968 = vst [vmem:[#allocation2 + $0x278] sm:$0xff] 0.0
      %969 = vst [vmem:[#allocation2 + $0x280] sm:$0xff] 0.0
      %970 = vst [vmem:[#allocation2 + $0x288] sm:$0xff] 0.0
      %971 = vst [vmem:[#allocation2 + $0x290] sm:$0xff] 0.0
      %972 = vst [vmem:[#allocation2 + $0x298] sm:$0xff] 0.0
      %973 = vst [vmem:[#allocation2 + $0x2a0] sm:$0xff] 0.0
      %974 = vst [vmem:[#allocation2 + $0x2a8] sm:$0xff] 0.0
      %975 = vst [vmem:[#allocation2 + $0x2b0] sm:$0xff] 0.0
      %976 = vst [vmem:[#allocation2 + $0x2b8] sm:$0xff] 0.0
      %977 = vst [vmem:[#allocation2 + $0x2c0] sm:$0xff] 0.0
      %978 = vst [vmem:[#allocation2 + $0x2c8] sm:$0xff] 0.0
      %979 = vst [vmem:[#allocation2 + $0x2d0] sm:$0xff] 0.0
      %980 = vst [vmem:[#allocation2 + $0x2d8] sm:$0xff] 0.0
      %981 = vst [vmem:[#allocation2 + $0x2e0] sm:$0xff] 0.0
      %982 = vst [vmem:[#allocation2 + $0x2e8] sm:$0xff] 0.0
      %983 = vst [vmem:[#allocation2 + $0x2f0] sm:$0xff] 0.0
      %984 = vst [vmem:[#allocation2 + $0x2f8] sm:$0xff] 0.0
      %985 = vst [vmem:[#allocation2 + $0x300] sm:$0xff] 0.0
      %986 = vst [vmem:[#allocation2 + $0x308] sm:$0xff] 0.0
      %987 = vst [vmem:[#allocation2 + $0x310] sm:$0xff] 0.0
      %988 = vst [vmem:[#allocation2 + $0x318] sm:$0xff] 0.0
      %989 = vst [vmem:[#allocation2 + $0x320] sm:$0xff] 0.0
      %990 = vst [vmem:[#allocation2 + $0x328] sm:$0xff] 0.0
      %991 = vst [vmem:[#allocation2 + $0x330] sm:$0xff] 0.0
      %992 = vst [vmem:[#allocation2 + $0x338] sm:$0xff] 0.0
      %993 = vst [vmem:[#allocation2 + $0x340] sm:$0xff] 0.0
      %994 = vst [vmem:[#allocation2 + $0x348] sm:$0xff] 0.0
      %995 = vst [vmem:[#allocation2 + $0x350] sm:$0xff] 0.0
      %996 = vst [vmem:[#allocation2 + $0x358] sm:$0xff] 0.0
      %997 = vst [vmem:[#allocation3] sm:$0xff] 0.0
      %998 = vst [vmem:[#allocation3 + $0x8] sm:$0xff] 0.0
      %999 = vst [vmem:[#allocation3 + $0x10] sm:$0xff] 0.0
      %1000 = vst [vmem:[#allocation3 + $0x18] sm:$0xff] 0.0
      %1001 = vst [vmem:[#allocation3 + $0x20] sm:$0xff] 0.0
      %1002 = vst [vmem:[#allocation3 + $0x28] sm:$0xff] 0.0
      %1003 = vst [vmem:[#allocation3 + $0x30] sm:$0xff] 0.0
      %1004 = vst [vmem:[#allocation3 + $0x38] sm:$0xff] 0.0
      %1005 = vst [vmem:[#allocation3 + $0x40] sm:$0xff] 0.0
      %1006 = vst [vmem:[#allocation3 + $0x48] sm:$0xff] 0.0
      %1007 = vst [vmem:[#allocation3 + $0x50] sm:$0xff] 0.0
      %1008 = vst [vmem:[#allocation3 + $0x58] sm:$0xff] 0.0
      %1009 = vst [vmem:[#allocation3 + $0x60] sm:$0xff] 0.0
      %1010 = vst [vmem:[#allocation3 + $0x68] sm:$0xff] 0.0
      %1011 = vst [vmem:[#allocation3 + $0x70] sm:$0xff] 0.0
      %1012 = vst [vmem:[#allocation3 + $0x78] sm:$0xff] 0.0
      %1013 = vst [vmem:[#allocation3 + $0x80] sm:$0xff] 0.0
      %1014 = vst [vmem:[#allocation3 + $0x88] sm:$0xff] 0.0
      %1015 = vst [vmem:[#allocation3 + $0x90] sm:$0xff] 0.0
      %1016 = vst [vmem:[#allocation3 + $0x98] sm:$0xff] 0.0
      %1017 = vst [vmem:[#allocation3 + $0xa0] sm:$0xff] 0.0
      %1018 = vst [vmem:[#allocation3 + $0xa8] sm:$0xff] 0.0
      %1019 = vst [vmem:[#allocation3 + $0xb0] sm:$0xff] 0.0
      %1020 = vst [vmem:[#allocation3 + $0xb8] sm:$0xff] 0.0
      %1021 = vst [vmem:[#allocation3 + $0xc0] sm:$0xff] 0.0
      %1022 = vst [vmem:[#allocation3 + $0xc8] sm:$0xff] 0.0
      %1023 = vst [vmem:[#allocation3 + $0xd0] sm:$0xff] 0.0
      %1024 = vst [vmem:[#allocation3 + $0xd8] sm:$0xff] 0.0
      %1025 = vst [vmem:[#allocation3 + $0xe0] sm:$0xff] 0.0
      %1026 = vst [vmem:[#allocation3 + $0xe8] sm:$0xff] 0.0
      %1027 = vst [vmem:[#allocation3 + $0xf0] sm:$0xff] 0.0
      %1028 = vst [vmem:[#allocation3 + $0xf8] sm:$0xff] 0.0
      %1029 = vst [vmem:[#allocation3 + $0x100] sm:$0xff] 0.0
      %1030 = vst [vmem:[#allocation3 + $0x108] sm:$0xff] 0.0
      %1031 = vst [vmem:[#allocation3 + $0x110] sm:$0xff] 0.0
      %1032 = vst [vmem:[#allocation3 + $0x118] sm:$0xff] 0.0
      %1033 = vst [vmem:[#allocation3 + $0x120] sm:$0xff] 0.0
      %1034 = vst [vmem:[#allocation3 + $0x128] sm:$0xff] 0.0
      %1035 = vst [vmem:[#allocation3 + $0x130] sm:$0xff] 0.0
      %1036 = vst [vmem:[#allocation3 + $0x138] sm:$0xff] 0.0
      %1037 = vst [vmem:[#allocation3 + $0x140] sm:$0xff] 0.0
      %1038 = vst [vmem:[#allocation3 + $0x148] sm:$0xff] 0.0
      %1039 = vst [vmem:[#allocation3 + $0x150] sm:$0xff] 0.0
      %1040 = vst [vmem:[#allocation3 + $0x158] sm:$0xff] 0.0
      %1041 = vst [vmem:[#allocation3 + $0x160] sm:$0xff] 0.0
      %1042 = vst [vmem:[#allocation3 + $0x168] sm:$0xff] 0.0
      %1043 = vst [vmem:[#allocation3 + $0x170] sm:$0xff] 0.0
      %1044 = vst [vmem:[#allocation3 + $0x178] sm:$0xff] 0.0
      %1045 = vst [vmem:[#allocation3 + $0x180] sm:$0xff] 0.0
      %1046 = vst [vmem:[#allocation3 + $0x188] sm:$0xff] 0.0
      %1047 = vst [vmem:[#allocation3 + $0x190] sm:$0xff] 0.0
      %1048 = vst [vmem:[#allocation3 + $0x198] sm:$0xff] 0.0
      %1049 = vst [vmem:[#allocation3 + $0x1a0] sm:$0xff] 0.0
      %1050 = vst [vmem:[#allocation3 + $0x1a8] sm:$0xff] 0.0
      %1051 = vst [vmem:[#allocation3 + $0x1b0] sm:$0xff] 0.0
      %1052 = vst [vmem:[#allocation3 + $0x1b8] sm:$0xff] 0.0
      %1053 = vst [vmem:[#allocation3 + $0x1c0] sm:$0xff] 0.0
      %1054 = vst [vmem:[#allocation3 + $0x1c8] sm:$0xff] 0.0
      %1055 = vst [vmem:[#allocation3 + $0x1d0] sm:$0xff] 0.0
      %1056 = vst [vmem:[#allocation3 + $0x1d8] sm:$0xff] 0.0
      %1057 = vst [vmem:[#allocation3 + $0x1e0] sm:$0xff] 0.0
      %1058 = vst [vmem:[#allocation3 + $0x1e8] sm:$0xff] 0.0
      %1059 = vst [vmem:[#allocation3 + $0x1f0] sm:$0xff] 0.0
      %1060 = vst [vmem:[#allocation3 + $0x1f8] sm:$0xff] 0.0
      %1061 = vst [vmem:[#allocation3 + $0x200] sm:$0xff] 0.0
      %1062 = vst [vmem:[#allocation3 + $0x208] sm:$0xff] 0.0
      %1063 = vst [vmem:[#allocation3 + $0x210] sm:$0xff] 0.0
      %1064 = vst [vmem:[#allocation3 + $0x218] sm:$0xff] 0.0
      %1065 = vst [vmem:[#allocation3 + $0x220] sm:$0xff] 0.0
      %1066 = vst [vmem:[#allocation3 + $0x228] sm:$0xff] 0.0
      %1067 = vst [vmem:[#allocation3 + $0x230] sm:$0xff] 0.0
      %1068 = vst [vmem:[#allocation3 + $0x238] sm:$0xff] 0.0
      %1069 = vst [vmem:[#allocation3 + $0x240] sm:$0xff] 0.0
      %1070 = vst [vmem:[#allocation3 + $0x248] sm:$0xff] 0.0
      %1071 = vst [vmem:[#allocation3 + $0x250] sm:$0xff] 0.0
      %1072 = vst [vmem:[#allocation3 + $0x258] sm:$0xff] 0.0
      %1073 = vst [vmem:[#allocation3 + $0x260] sm:$0xff] 0.0
      %1074 = vst [vmem:[#allocation3 + $0x268] sm:$0xff] 0.0
      %1075 = vst [vmem:[#allocation3 + $0x270] sm:$0xff] 0.0
      %1076 = vst [vmem:[#allocation3 + $0x278] sm:$0xff] 0.0
      %1077 = vst [vmem:[#allocation3 + $0x280] sm:$0xff] 0.0
      %1078 = vst [vmem:[#allocation3 + $0x288] sm:$0xff] 0.0
      %1079 = vst [vmem:[#allocation3 + $0x290] sm:$0xff] 0.0
      %1080 = vst [vmem:[#allocation3 + $0x298] sm:$0xff] 0.0
      %1081 = vst [vmem:[#allocation3 + $0x2a0] sm:$0xff] 0.0
      %1082 = vst [vmem:[#allocation3 + $0x2a8] sm:$0xff] 0.0
      %1083 = vst [vmem:[#allocation3 + $0x2b0] sm:$0xff] 0.0
      %1084 = vst [vmem:[#allocation3 + $0x2b8] sm:$0xff] 0.0
      %1085 = vst [vmem:[#allocation3 + $0x2c0] sm:$0xff] 0.0
      %1086 = vst [vmem:[#allocation3 + $0x2c8] sm:$0xff] 0.0
      %1087 = vst [vmem:[#allocation3 + $0x2d0] sm:$0xff] 0.0
      %1088 = vst [vmem:[#allocation3 + $0x2d8] sm:$0xff] 0.0
      %1089 = vst [vmem:[#allocation3 + $0x2e0] sm:$0xff] 0.0
      %1090 = vst [vmem:[#allocation3 + $0x2e8] sm:$0xff] 0.0
      %1091 = vst [vmem:[#allocation3 + $0x2f0] sm:$0xff] 0.0
      %1092 = vst [vmem:[#allocation3 + $0x2f8] sm:$0xff] 0.0
      %1093 = vst [vmem:[#allocation3 + $0x300] sm:$0xff] 0.0
      %1094 = vst [vmem:[#allocation3 + $0x308] sm:$0xff] 0.0
      %1095 = vst [vmem:[#allocation3 + $0x310] sm:$0xff] 0.0
      %1096 = vst [vmem:[#allocation3 + $0x318] sm:$0xff] 0.0
      %1097 = vst [vmem:[#allocation3 + $0x320] sm:$0xff] 0.0
      %1098 = vst [vmem:[#allocation3 + $0x328] sm:$0xff] 0.0
      %1099 = vst [vmem:[#allocation3 + $0x330] sm:$0xff] 0.0
      %1100 = vst [vmem:[#allocation3 + $0x338] sm:$0xff] 0.0
      %1101 = vst [vmem:[#allocation3 + $0x340] sm:$0xff] 0.0
      %1102 = vst [vmem:[#allocation3 + $0x348] sm:$0xff] 0.0
      %1103 = vst [vmem:[#allocation3 + $0x350] sm:$0xff] 0.0
      %1104 = vst [vmem:[#allocation3 + $0x358] sm:$0xff] 0.0
      %1105 = vrot.lane.b32.xlu0 %v881, 23
      %v1106 = vpop.permute.xlu0 %1105
      %1107 = vrot.lane.b32.xlu0 %v882, 23
      %v1108 = vpop.permute.xlu0 %1107
      %1109 = vrot.lane.b32.xlu0 %v883, 23
      %v1110 = vpop.permute.xlu0 %1109
      %1111 = vrot.lane.b32.xlu0 %v884, 23
      %v1112 = vpop.permute.xlu0 %1111
      %v1113 = vlaneseq
      %v1114 = vand.u32 %v1113, 127
      %vm1115 = vcmp.lt.s32.totalorder %v1114, 23
      %v1116 = vsel %vm1115, %v1110, %v1112
      %v1117 = vsel %vm1115, %v1108, %v1110
      %v1118 = vsel %vm1115, %v1106, %v1108
      %v1119 = vsel %vm1115, %v1112, %v1106
      %1120 = vrot.lane.b32.xlu0 %v885, 23
      %v1121 = vpop.permute.xlu0 %1120
      %1122 = vrot.lane.b32.xlu0 %v886, 23
      %v1123 = vpop.permute.xlu0 %1122
      %1124 = vrot.lane.b32.xlu0 %v887, 23
      %v1125 = vpop.permute.xlu0 %1124
      %1126 = vrot.lane.b32.xlu0 %v888, 23
      %v1127 = vpop.permute.xlu0 %1126
      %v1128 = vsel %vm1115, %v1125, %v1127
      %v1129 = vsel %vm1115, %v1123, %v1125
      %v1130 = vsel %vm1115, %v1121, %v1123
      %v1131 = vsel %vm1115, %v1127, %v1121
      %1132 = vst [vmem:[#allocation2] sm:$0xff] %v1119
      %1133 = vst [vmem:[#allocation2 + $0x8] sm:$0xff] %v1118
      %1134 = vst [vmem:[#allocation2 + $0x10] sm:$0xff] %v1117
      %1135 = vst [vmem:[#allocation2 + $0x18] sm:$0xff] %v1116
      %1136 = vst [vmem:[#allocation3] sm:$0xff] %v1131
      %1137 = vst [vmem:[#allocation3 + $0x8] sm:$0xff] %v1130
      %1138 = vst [vmem:[#allocation3 + $0x10] sm:$0xff] %v1129
      %1139 = vst [vmem:[#allocation3 + $0x18] sm:$0xff] %v1128
      %1140 = vrot.lane.b32.xlu0 %v881, 22
      %v1141 = vpop.permute.xlu0 %1140
      %1142 = vrot.lane.b32.xlu0 %v882, 22
      %v1143 = vpop.permute.xlu0 %1142
      %1144 = vrot.lane.b32.xlu0 %v883, 22
      %v1145 = vpop.permute.xlu0 %1144
      %1146 = vrot.lane.b32.xlu0 %v884, 22
      %v1147 = vpop.permute.xlu0 %1146
      %vm1148 = vcmp.lt.s32.totalorder %v1114, 22
      %v1149 = vsel %vm1148, %v1145, %v1147
      %v1150 = vsel %vm1148, %v1143, %v1145
      %v1151 = vsel %vm1148, %v1141, %v1143
      %v1152 = vsel %vm1148, %v1147, %v1141
      %1153 = vrot.lane.b32.xlu0 %v885, 22
      %v1154 = vpop.permute.xlu0 %1153
      %1155 = vrot.lane.b32.xlu0 %v886, 22
      %v1156 = vpop.permute.xlu0 %1155
      %1157 = vrot.lane.b32.xlu0 %v887, 22
      %v1158 = vpop.permute.xlu0 %1157
      %1159 = vrot.lane.b32.xlu0 %v888, 22
      %v1160 = vpop.permute.xlu0 %1159
      %v1161 = vsel %vm1148, %v1158, %v1160
      %v1162 = vsel %vm1148, %v1156, %v1158
      %v1163 = vsel %vm1148, %v1154, %v1156
      %v1164 = vsel %vm1148, %v1160, %v1154
      %1165 = vst [vmem:[#allocation2 + $0x20] sm:$0xff] %v1152
      %1166 = vst [vmem:[#allocation2 + $0x28] sm:$0xff] %v1151
      %1167 = vst [vmem:[#allocation2 + $0x30] sm:$0xff] %v1150
      %1168 = vst [vmem:[#allocation2 + $0x38] sm:$0xff] %v1149
      %1169 = vst [vmem:[#allocation3 + $0x20] sm:$0xff] %v1164
      %1170 = vst [vmem:[#allocation3 + $0x28] sm:$0xff] %v1163
      %1171 = vst [vmem:[#allocation3 + $0x30] sm:$0xff] %v1162
      %1172 = vst [vmem:[#allocation3 + $0x38] sm:$0xff] %v1161
      %1173 = vrot.lane.b32.xlu0 %v881, 21
      %v1174 = vpop.permute.xlu0 %1173
      %1175 = vrot.lane.b32.xlu0 %v882, 21
      %v1176 = vpop.permute.xlu0 %1175
      %1177 = vrot.lane.b32.xlu0 %v883, 21
      %v1178 = vpop.permute.xlu0 %1177
      %1179 = vrot.lane.b32.xlu0 %v884, 21
      %v1180 = vpop.permute.xlu0 %1179
      %vm1181 = vcmp.lt.s32.totalorder %v1114, 21
      %v1182 = vsel %vm1181, %v1178, %v1180
      %v1183 = vsel %vm1181, %v1176, %v1178
      %v1184 = vsel %vm1181, %v1174, %v1176
      %v1185 = vsel %vm1181, %v1180, %v1174
      %1186 = vrot.lane.b32.xlu0 %v885, 21
      %v1187 = vpop.permute.xlu0 %1186
      %1188 = vrot.lane.b32.xlu0 %v886, 21
      %v1189 = vpop.permute.xlu0 %1188
      %1190 = vrot.lane.b32.xlu0 %v887, 21
      %v1191 = vpop.permute.xlu0 %1190
      %1192 = vrot.lane.b32.xlu0 %v888, 21
      %v1193 = vpop.permute.xlu0 %1192
      %v1194 = vsel %vm1181, %v1191, %v1193
      %v1195 = vsel %vm1181, %v1189, %v1191
      %v1196 = vsel %vm1181, %v1187, %v1189
      %v1197 = vsel %vm1181, %v1193, %v1187
      %1198 = vst [vmem:[#allocation2 + $0x40] sm:$0xff] %v1185
      %1199 = vst [vmem:[#allocation2 + $0x48] sm:$0xff] %v1184
      %1200 = vst [vmem:[#allocation2 + $0x50] sm:$0xff] %v1183
      %1201 = vst [vmem:[#allocation2 + $0x58] sm:$0xff] %v1182
      %1202 = vst [vmem:[#allocation3 + $0x40] sm:$0xff] %v1197
      %1203 = vst [vmem:[#allocation3 + $0x48] sm:$0xff] %v1196
      %1204 = vst [vmem:[#allocation3 + $0x50] sm:$0xff] %v1195
      %1205 = vst [vmem:[#allocation3 + $0x58] sm:$0xff] %v1194
      %1206 = vrot.lane.b32.xlu0 %v881, 1
      %v1207 = vpop.permute.xlu0 %1206
      %1208 = vrot.lane.b32.xlu0 %v882, 1
      %v1209 = vpop.permute.xlu0 %1208
      %1210 = vrot.lane.b32.xlu0 %v883, 1
      %v1211 = vpop.permute.xlu0 %1210
      %1212 = vrot.lane.b32.xlu0 %v884, 1
      %v1213 = vpop.permute.xlu0 %1212
      %vm1214 = vcmp.lt.s32.totalorder %v1114, 1
      %v1215 = vsel %vm1214, %v1211, %v1213
      %v1216 = vsel %vm1214, %v1209, %v1211
      %v1217 = vsel %vm1214, %v1207, %v1209
      %v1218 = vsel %vm1214, %v1213, %v1207
      %1219 = vrot.lane.b32.xlu0 %v885, 1
      %v1220 = vpop.permute.xlu0 %1219
      %1221 = vrot.lane.b32.xlu0 %v886, 1
      %v1222 = vpop.permute.xlu0 %1221
      %1223 = vrot.lane.b32.xlu0 %v887, 1
      %v1224 = vpop.permute.xlu0 %1223
      %1225 = vrot.lane.b32.xlu0 %v888, 1
      %v1226 = vpop.permute.xlu0 %1225
      %v1227 = vsel %vm1214, %v1224, %v1226
      %v1228 = vsel %vm1214, %v1222, %v1224
      %v1229 = vsel %vm1214, %v1220, %v1222
      %v1230 = vsel %vm1214, %v1226, %v1220
      %1231 = vst [vmem:[#allocation2 + $0x60] sm:$0xff] %v1218
      %1232 = vst [vmem:[#allocation2 + $0x68] sm:$0xff] %v1217
      %1233 = vst [vmem:[#allocation2 + $0x70] sm:$0xff] %v1216
      %1234 = vst [vmem:[#allocation2 + $0x78] sm:$0xff] %v1215
      %1235 = vst [vmem:[#allocation3 + $0x60] sm:$0xff] %v1230
      %1236 = vst [vmem:[#allocation3 + $0x68] sm:$0xff] %v1229
      %1237 = vst [vmem:[#allocation3 + $0x70] sm:$0xff] %v1228
      %1238 = vst [vmem:[#allocation3 + $0x78] sm:$0xff] %v1227
      %1239 = vst [vmem:[#allocation2 + $0x80] sm:$0xff] %v881
      %1240 = vst [vmem:[#allocation2 + $0x88] sm:$0xff] %v882
      %1241 = vst [vmem:[#allocation2 + $0x90] sm:$0xff] %v883
      %1242 = vst [vmem:[#allocation2 + $0x98] sm:$0xff] %v884
      %1243 = vst [vmem:[#allocation3 + $0x80] sm:$0xff] %v885
      %1244 = vst [vmem:[#allocation3 + $0x88] sm:$0xff] %v886
      %1245 = vst [vmem:[#allocation3 + $0x90] sm:$0xff] %v887
      %1246 = vst [vmem:[#allocation3 + $0x98] sm:$0xff] %v888
      %1247 = vrot.lane.b32.xlu0 %v881, 127
      %v1248 = vpop.permute.xlu0 %1247
      %1249 = vrot.lane.b32.xlu0 %v882, 127
      %v1250 = vpop.permute.xlu0 %1249
      %1251 = vrot.lane.b32.xlu0 %v883, 127
      %v1252 = vpop.permute.xlu0 %1251
      %1253 = vrot.lane.b32.xlu0 %v884, 127
      %v1254 = vpop.permute.xlu0 %1253
      %vm1255 = vcmp.lt.s32.totalorder %v1114, 127
      %v1256 = vsel %vm1255, %v1252, %v1254
      %v1257 = vsel %vm1255, %v1250, %v1252
      %v1258 = vsel %vm1255, %v1248, %v1250
      %v1259 = vsel %vm1255, %v1254, %v1248
      %1260 = vrot.lane.b32.xlu0 %v885, 127
      %v1261 = vpop.permute.xlu0 %1260
      %1262 = vrot.lane.b32.xlu0 %v886, 127
      %v1263 = vpop.permute.xlu0 %1262
      %1264 = vrot.lane.b32.xlu0 %v887, 127
      %v1265 = vpop.permute.xlu0 %1264
      %1266 = vrot.lane.b32.xlu0 %v888, 127
      %v1267 = vpop.permute.xlu0 %1266
      %v1268 = vsel %vm1255, %v1265, %v1267
      %v1269 = vsel %vm1255, %v1263, %v1265
      %v1270 = vsel %vm1255, %v1261, %v1263
      %v1271 = vsel %vm1255, %v1267, %v1261
      %1272 = vst [vmem:[#allocation2 + $0xa0] sm:$0xff] %v1258
      %1273 = vst [vmem:[#allocation2 + $0xa8] sm:$0xff] %v1257
      %1274 = vst [vmem:[#allocation2 + $0xb0] sm:$0xff] %v1256
      %1275 = vst [vmem:[#allocation2 + $0xb8] sm:$0xff] %v1259
      %1276 = vst [vmem:[#allocation3 + $0xa0] sm:$0xff] %v1270
      %1277 = vst [vmem:[#allocation3 + $0xa8] sm:$0xff] %v1269
      %1278 = vst [vmem:[#allocation3 + $0xb0] sm:$0xff] %v1268
      %1279 = vst [vmem:[#allocation3 + $0xb8] sm:$0xff] %v1271
      %1280 = vrot.lane.b32.xlu0 %v881, 107
      %v1281 = vpop.permute.xlu0 %1280
      %1282 = vrot.lane.b32.xlu0 %v882, 107
      %v1283 = vpop.permute.xlu0 %1282
      %1284 = vrot.lane.b32.xlu0 %v883, 107
      %v1285 = vpop.permute.xlu0 %1284
      %1286 = vrot.lane.b32.xlu0 %v884, 107
      %v1287 = vpop.permute.xlu0 %1286
      %vm1288 = vcmp.lt.s32.totalorder %v1114, 107
      %v1289 = vsel %vm1288, %v1285, %v1287
      %v1290 = vsel %vm1288, %v1283, %v1285
      %v1291 = vsel %vm1288, %v1281, %v1283
      %v1292 = vsel %vm1288, %v1287, %v1281
      %1293 = vrot.lane.b32.xlu0 %v885, 107
      %v1294 = vpop.permute.xlu0 %1293
      %1295 = vrot.lane.b32.xlu0 %v886, 107
      %v1296 = vpop.permute.xlu0 %1295
      %1297 = vrot.lane.b32.xlu0 %v887, 107
      %v1298 = vpop.permute.xlu0 %1297
      %1299 = vrot.lane.b32.xlu0 %v888, 107
      %v1300 = vpop.permute.xlu0 %1299
      %v1301 = vsel %vm1288, %v1298, %v1300
      %v1302 = vsel %vm1288, %v1296, %v1298
      %v1303 = vsel %vm1288, %v1294, %v1296
      %v1304 = vsel %vm1288, %v1300, %v1294
      %1305 = vst [vmem:[#allocation2 + $0xc0] sm:$0xff] %v1291
      %1306 = vst [vmem:[#allocation2 + $0xc8] sm:$0xff] %v1290
      %1307 = vst [vmem:[#allocation2 + $0xd0] sm:$0xff] %v1289
      %1308 = vst [vmem:[#allocation2 + $0xd8] sm:$0xff] %v1292
      %1309 = vst [vmem:[#allocation3 + $0xc0] sm:$0xff] %v1303
      %1310 = vst [vmem:[#allocation3 + $0xc8] sm:$0xff] %v1302
      %1311 = vst [vmem:[#allocation3 + $0xd0] sm:$0xff] %v1301
      %1312 = vst [vmem:[#allocation3 + $0xd8] sm:$0xff] %v1304
      %1313 = vrot.lane.b32.xlu0 %v881, 106
      %v1314 = vpop.permute.xlu0 %1313
      %1315 = vrot.lane.b32.xlu0 %v882, 106
      %v1316 = vpop.permute.xlu0 %1315
      %1317 = vrot.lane.b32.xlu0 %v883, 106
      %v1318 = vpop.permute.xlu0 %1317
      %1319 = vrot.lane.b32.xlu0 %v884, 106
      %v1320 = vpop.permute.xlu0 %1319
      %vm1321 = vcmp.lt.s32.totalorder %v1114, 106
      %v1322 = vsel %vm1321, %v1318, %v1320
      %v1323 = vsel %vm1321, %v1316, %v1318
      %v1324 = vsel %vm1321, %v1314, %v1316
      %v1325 = vsel %vm1321, %v1320, %v1314
      %1326 = vrot.lane.b32.xlu0 %v885, 106
      %v1327 = vpop.permute.xlu0 %1326
      %1328 = vrot.lane.b32.xlu0 %v886, 106
      %v1329 = vpop.permute.xlu0 %1328
      %1330 = vrot.lane.b32.xlu0 %v887, 106
      %v1331 = vpop.permute.xlu0 %1330
      %1332 = vrot.lane.b32.xlu0 %v888, 106
      %v1333 = vpop.permute.xlu0 %1332
      %v1334 = vsel %vm1321, %v1331, %v1333
      %v1335 = vsel %vm1321, %v1329, %v1331
      %v1336 = vsel %vm1321, %v1327, %v1329
      %v1337 = vsel %vm1321, %v1333, %v1327
      %1338 = vst [vmem:[#allocation2 + $0xe0] sm:$0xff] %v1324
      %1339 = vst [vmem:[#allocation2 + $0xe8] sm:$0xff] %v1323
      %1340 = vst [vmem:[#allocation2 + $0xf0] sm:$0xff] %v1322
      %1341 = vst [vmem:[#allocation2 + $0xf8] sm:$0xff] %v1325
      %1342 = vst [vmem:[#allocation3 + $0xe0] sm:$0xff] %v1336
      %1343 = vst [vmem:[#allocation3 + $0xe8] sm:$0xff] %v1335
      %1344 = vst [vmem:[#allocation3 + $0xf0] sm:$0xff] %v1334
      %1345 = vst [vmem:[#allocation3 + $0xf8] sm:$0xff] %v1337
      %1346 = vrot.lane.b32.xlu0 %v881, 105
      %v1347 = vpop.permute.xlu0 %1346
      %1348 = vrot.lane.b32.xlu0 %v882, 105
      %v1349 = vpop.permute.xlu0 %1348
      %1350 = vrot.lane.b32.xlu0 %v883, 105
      %v1351 = vpop.permute.xlu0 %1350
      %1352 = vrot.lane.b32.xlu0 %v884, 105
      %v1353 = vpop.permute.xlu0 %1352
      %vm1354 = vcmp.lt.s32.totalorder %v1114, 105
      %v1355 = vsel %vm1354, %v1351, %v1353
      %v1356 = vsel %vm1354, %v1349, %v1351
      %v1357 = vsel %vm1354, %v1347, %v1349
      %v1358 = vsel %vm1354, %v1353, %v1347
      %1359 = vrot.lane.b32.xlu0 %v885, 105
      %v1360 = vpop.permute.xlu0 %1359
      %1361 = vrot.lane.b32.xlu0 %v886, 105
      %v1362 = vpop.permute.xlu0 %1361
      %1363 = vrot.lane.b32.xlu0 %v887, 105
      %v1364 = vpop.permute.xlu0 %1363
      %1365 = vrot.lane.b32.xlu0 %v888, 105
      %v1366 = vpop.permute.xlu0 %1365
      %v1367 = vsel %vm1354, %v1364, %v1366
      %v1368 = vsel %vm1354, %v1362, %v1364
      %v1369 = vsel %vm1354, %v1360, %v1362
      %v1370 = vsel %vm1354, %v1366, %v1360
      %1371 = vst [vmem:[#allocation2 + $0x100] sm:$0xff] %v1357
      %1372 = vst [vmem:[#allocation2 + $0x108] sm:$0xff] %v1356
      %1373 = vst [vmem:[#allocation2 + $0x110] sm:$0xff] %v1355
      %1374 = vst [vmem:[#allocation2 + $0x118] sm:$0xff] %v1358
      %1375 = vst [vmem:[#allocation3 + $0x100] sm:$0xff] %v1369
      %1376 = vst [vmem:[#allocation3 + $0x108] sm:$0xff] %v1368
      %1377 = vst [vmem:[#allocation3 + $0x110] sm:$0xff] %v1367
      %1378 = vst [vmem:[#allocation3 + $0x118] sm:$0xff] %v1370
      %v1379 = vld [vmem:[#allocation2] sm:$0xff]
      %v1380 = vld [vmem:[#allocation2 + $0x8] sm:$0xff]
      %v1381 = vld [vmem:[#allocation2 + $0x10] sm:$0xff]
      %v1382 = vld [vmem:[#allocation2 + $0x18] sm:$0xff]
      %v1383 = vld [vmem:[#allocation2 + $0x20] sm:$0xff]
      %v1384 = vld [vmem:[#allocation2 + $0x28] sm:$0xff]
      %v1385 = vld [vmem:[#allocation2 + $0x30] sm:$0xff]
      %v1386 = vld [vmem:[#allocation2 + $0x38] sm:$0xff]
      %v1387 = vld [vmem:[#allocation2 + $0x40] sm:$0xff]
      %v1388 = vld [vmem:[#allocation2 + $0x48] sm:$0xff]
      %v1389 = vld [vmem:[#allocation2 + $0x50] sm:$0xff]
      %v1390 = vld [vmem:[#allocation2 + $0x58] sm:$0xff]
      %v1391 = vld [vmem:[#allocation2 + $0x60] sm:$0xff]
      %v1392 = vld [vmem:[#allocation2 + $0x68] sm:$0xff]
      %v1393 = vld [vmem:[#allocation2 + $0x70] sm:$0xff]
      %v1394 = vld [vmem:[#allocation2 + $0x78] sm:$0xff]
      %v1395 = vld [vmem:[#allocation2 + $0x80] sm:$0xff]
      %v1396 = vld [vmem:[#allocation2 + $0x88] sm:$0xff]
      %v1397 = vld [vmem:[#allocation2 + $0x90] sm:$0xff]
      %v1398 = vld [vmem:[#allocation2 + $0x98] sm:$0xff]
      %v1399 = vld [vmem:[#allocation2 + $0xa0] sm:$0xff]
      %v1400 = vld [vmem:[#allocation2 + $0xa8] sm:$0xff]
      %v1401 = vld [vmem:[#allocation2 + $0xb0] sm:$0xff]
      %v1402 = vld [vmem:[#allocation2 + $0xb8] sm:$0xff]
      %v1403 = vld [vmem:[#allocation2 + $0xc0] sm:$0xff]
      %v1404 = vld [vmem:[#allocation2 + $0xc8] sm:$0xff]
      %v1405 = vld [vmem:[#allocation2 + $0xd0] sm:$0xff]
      %v1406 = vld [vmem:[#allocation2 + $0xd8] sm:$0xff]
      %v1407 = vld [vmem:[#allocation2 + $0xe0] sm:$0xff]
      %v1408 = vld [vmem:[#allocation2 + $0xe8] sm:$0xff]
      %v1409 = vld [vmem:[#allocation2 + $0xf0] sm:$0xff]
      %v1410 = vld [vmem:[#allocation2 + $0xf8] sm:$0xff]
      %v1411 = vld [vmem:[#allocation2 + $0x100] sm:$0xff]
      %v1412 = vld [vmem:[#allocation2 + $0x108] sm:$0xff]
      %v1413 = vld [vmem:[#allocation2 + $0x110] sm:$0xff]
      %v1414 = vld [vmem:[#allocation2 + $0x118] sm:$0xff]
      %v1415 = vpack.c.bf16 %v1383, %v1379
      %v1416 = vpack.c.bf16 %v1384, %v1380
      %v1417 = vpack.c.bf16 %v1385, %v1381
      %v1418 = vpack.c.bf16 %v1386, %v1382
      %v1419 = vpack.c.bf16 %v1391, %v1387
      %v1420 = vpack.c.bf16 %v1392, %v1388
      %v1421 = vpack.c.bf16 %v1393, %v1389
      %v1422 = vpack.c.bf16 %v1394, %v1390
      %v1423 = vpack.c.bf16 %v1399, %v1395
      %v1424 = vpack.c.bf16 %v1400, %v1396
      %v1425 = vpack.c.bf16 %v1401, %v1397
      %v1426 = vpack.c.bf16 %v1402, %v1398
      %v1427 = vpack.c.bf16 %v1407, %v1403
      %v1428 = vpack.c.bf16 %v1408, %v1404
      %v1429 = vpack.c.bf16 %v1409, %v1405
      %v1430 = vpack.c.bf16 %v1410, %v1406
      %v1431 = vpack.c.bf16 %v1411, %v1411
      %v1432 = vpack.c.bf16 %v1412, %v1412
      %v1433 = vpack.c.bf16 %v1413, %v1413
      %v1434 = vpack.c.bf16 %v1414, %v1414
      %v1435 = vld [vmem:[#allocation3] sm:$0xff]
      %v1436 = vld [vmem:[#allocation3 + $0x8] sm:$0xff]
      %v1437 = vld [vmem:[#allocation3 + $0x10] sm:$0xff]
      %v1438 = vld [vmem:[#allocation3 + $0x18] sm:$0xff]
      %v1439 = vld [vmem:[#allocation3 + $0x20] sm:$0xff]
      %v1440 = vld [vmem:[#allocation3 + $0x28] sm:$0xff]
      %v1441 = vld [vmem:[#allocation3 + $0x30] sm:$0xff]
      %v1442 = vld [vmem:[#allocation3 + $0x38] sm:$0xff]
      %v1443 = vld [vmem:[#allocation3 + $0x40] sm:$0xff]
      %v1444 = vld [vmem:[#allocation3 + $0x48] sm:$0xff]
      %v1445 = vld [vmem:[#allocation3 + $0x50] sm:$0xff]
      %v1446 = vld [vmem:[#allocation3 + $0x58] sm:$0xff]
      %v1447 = vld [vmem:[#allocation3 + $0x60] sm:$0xff]
      %v1448 = vld [vmem:[#allocation3 + $0x68] sm:$0xff]
      %v1449 = vld [vmem:[#allocation3 + $0x70] sm:$0xff]
      %v1450 = vld [vmem:[#allocation3 + $0x78] sm:$0xff]
      %v1451 = vld [vmem:[#allocation3 + $0x80] sm:$0xff]
      %v1452 = vld [vmem:[#allocation3 + $0x88] sm:$0xff]
      %v1453 = vld [vmem:[#allocation3 + $0x90] sm:$0xff]
      %v1454 = vld [vmem:[#allocation3 + $0x98] sm:$0xff]
      %v1455 = vld [vmem:[#allocation3 + $0xa0] sm:$0xff]
      %v1456 = vld [vmem:[#allocation3 + $0xa8] sm:$0xff]
      %v1457 = vld [vmem:[#allocation3 + $0xb0] sm:$0xff]
      %v1458 = vld [vmem:[#allocation3 + $0xb8] sm:$0xff]
      %v1459 = vld [vmem:[#allocation3 + $0xc0] sm:$0xff]
      %v1460 = vld [vmem:[#allocation3 + $0xc8] sm:$0xff]
      %v1461 = vld [vmem:[#allocation3 + $0xd0] sm:$0xff]
      %v1462 = vld [vmem:[#allocation3 + $0xd8] sm:$0xff]
      %v1463 = vld [vmem:[#allocation3 + $0xe0] sm:$0xff]
      %v1464 = vld [vmem:[#allocation3 + $0xe8] sm:$0xff]
      %v1465 = vld [vmem:[#allocation3 + $0xf0] sm:$0xff]
      %v1466 = vld [vmem:[#allocation3 + $0xf8] sm:$0xff]
      %v1467 = vld [vmem:[#allocation3 + $0x100] sm:$0xff]
      %v1468 = vld [vmem:[#allocation3 + $0x108] sm:$0xff]
      %v1469 = vld [vmem:[#allocation3 + $0x110] sm:$0xff]
      %v1470 = vld [vmem:[#allocation3 + $0x118] sm:$0xff]
      %v1471 = vpack.c.bf16 %v1439, %v1435
      %v1472 = vpack.c.bf16 %v1440, %v1436
      %v1473 = vpack.c.bf16 %v1441, %v1437
      %v1474 = vpack.c.bf16 %v1442, %v1438
      %v1475 = vpack.c.bf16 %v1447, %v1443
      %v1476 = vpack.c.bf16 %v1448, %v1444
      %v1477 = vpack.c.bf16 %v1449, %v1445
      %v1478 = vpack.c.bf16 %v1450, %v1446
      %v1479 = vpack.c.bf16 %v1455, %v1451
      %v1480 = vpack.c.bf16 %v1456, %v1452
      %v1481 = vpack.c.bf16 %v1457, %v1453
      %v1482 = vpack.c.bf16 %v1458, %v1454
      %v1483 = vpack.c.bf16 %v1463, %v1459
      %v1484 = vpack.c.bf16 %v1464, %v1460
      %v1485 = vpack.c.bf16 %v1465, %v1461
      %v1486 = vpack.c.bf16 %v1466, %v1462
      %v1487 = vpack.c.bf16 %v1467, %v1467
      %v1488 = vpack.c.bf16 %v1468, %v1468
      %v1489 = vpack.c.bf16 %v1469, %v1469
      %v1490 = vpack.c.bf16 %v1470, %v1470
      %v1491 = vld [vmem:[%s3] sm:$0x3]
      %v1492 = vld [vmem:[%s4] sm:$0x3]
      %vm1493 = vcmask 588800
      %v1495 = vsel %vm1493, %v1491, 0
      %vm1497 = vcmask 1043456
      %v1499 = vsel %vm1497, %v1431, 0
      %v1502 = vsel %vm1497, %v1432, 0
      %v1505 = vsel %vm1497, %v1433, 0
      %v1508 = vsel %vm1497, %v1434, 0
      %1510 = vmatprep.subr.bf16.mxu0 %v1416
      %1511 = vmatpush1.bf16.msra.mxu0 %v1415
      %1512 = vmatprep.subr.bf16.mxu0 %v1420
      %1513 = vmatpush1.bf16.msra.mxu0 %v1419
      %1514 = vmatprep.subr.bf16.mxu0 %v1424
      %1515 = vmatpush1.bf16.msra.mxu0 %v1423
      %1516 = vmatprep.subr.bf16.mxu0 %v1428
      %1517 = vmatpush1.bf16.msra.mxu0 %v1427
      %1518 = vmatprep.subr.bf16.mxu0 %v1502
      %1519 = vmatpush1.bf16.msra.mxu0 %v1499
      %1520 = vmatprep.subr.bf16.mxu0 0
      %1521 = vmatpush1.bf16.msra.mxu0 0
      %1522 = vmatprep.subr.bf16.mxu0 0
      %1523 = vmatpush1.bf16.msra.mxu0 0
      %1524 = vmatprep.subr.bf16.mxu0 0
      %1525 = vmatpush1.bf16.msra.mxu0 0
      %1526 = vmatprep.subr.bf16.mxu0 0
      %1527 = vmatpush1.bf16.msra.mxu0 0
      %1528 = vmatprep.subr.bf16.mxu0 0
      %1529 = vmatpush1.bf16.msra.mxu0 0
      %1530 = vmatprep.subr.bf16.mxu0 0
      %1531 = vmatpush1.bf16.msra.mxu0 0
      %1532 = vmatprep.subr.bf16.mxu0 0
      %1533 = vmatpush1.bf16.msra.mxu0 0
      %1534 = vmatprep.subr.bf16.mxu0 0
      %1535 = vmatpush1.bf16.msra.mxu0 0
      %1536 = vmatprep.subr.bf16.mxu0 0
      %1537 = vmatpush1.bf16.msra.mxu0 0
      %1538 = vmatprep.subr.bf16.mxu0 0
      %1539 = vmatpush1.bf16.msra.mxu0 0
      %1540 = vmatprep.subr.bf16.mxu0 0
      %1541 = vmatpush1.bf16.msra.mxu0 0
      %1542 = vmatprep.mubr.bf16.mxu0 0
      %1543 = vmatmul.mubr.bf16.gmra.mrb[0].mxu0 %v1495
      %v1544 = vpop.f32.mrb[0].mxu0
      %v1545 = vadd.f32 0.0, %v1544
      %v1546 = vpop.f32.mrb[0].mxu0
      %v1547 = vadd.f32 0.0, %v1546
      %v1548 = vpop.f32.mrb[0].mxu0
      %v1549 = vpop.f32.mrb[0].mxu0
      %1550 = vdwg.mxu0
      %1551 = vmatprep.subr.bf16.mxu0 %v1418
      %1552 = vmatpush1.bf16.msra.mxu0 %v1417
      %1553 = vmatprep.subr.bf16.mxu0 %v1422
      %1554 = vmatpush1.bf16.msra.mxu0 %v1421
      %1555 = vmatprep.subr.bf16.mxu0 %v1426
      %1556 = vmatpush1.bf16.msra.mxu0 %v1425
      %1557 = vmatprep.subr.bf16.mxu0 %v1430
      %1558 = vmatpush1.bf16.msra.mxu0 %v1429
      %1559 = vmatprep.subr.bf16.mxu0 %v1508
      %1560 = vmatpush1.bf16.msra.mxu0 %v1505
      %1561 = vmatprep.subr.bf16.mxu0 0
      %1562 = vmatpush1.bf16.msra.mxu0 0
      %1563 = vmatprep.subr.bf16.mxu0 0
      %1564 = vmatpush1.bf16.msra.mxu0 0
      %1565 = vmatprep.subr.bf16.mxu0 0
      %1566 = vmatpush1.bf16.msra.mxu0 0
      %1567 = vmatprep.subr.bf16.mxu0 0
      %1568 = vmatpush1.bf16.msra.mxu0 0
      %1569 = vmatprep.subr.bf16.mxu0 0
      %1570 = vmatpush1.bf16.msra.mxu0 0
      %1571 = vmatprep.subr.bf16.mxu0 0
      %1572 = vmatpush1.bf16.msra.mxu0 0
      %1573 = vmatprep.subr.bf16.mxu0 0
      %1574 = vmatpush1.bf16.msra.mxu0 0
      %1575 = vmatprep.subr.bf16.mxu0 0
      %1576 = vmatpush1.bf16.msra.mxu0 0
      %1577 = vmatprep.subr.bf16.mxu0 0
      %1578 = vmatpush1.bf16.msra.mxu0 0
      %1579 = vmatprep.subr.bf16.mxu0 0
      %1580 = vmatpush1.bf16.msra.mxu0 0
      %1581 = vmatprep.subr.bf16.mxu0 0
      %1582 = vmatpush1.bf16.msra.mxu0 0
      %1583 = vmatprep.mubr.bf16.mxu0 0
      %1584 = vmatmul.mubr.bf16.gmra.mrb[0].mxu0 %v1495
      %v1585 = vpop.f32.mrb[0].mxu0
      %v1586 = vadd.f32 0.0, %v1585
      %v1587 = vpop.f32.mrb[0].mxu0
      %v1588 = vadd.f32 0.0, %v1587
      %v1589 = vpop.f32.mrb[0].mxu0
      %v1590 = vpop.f32.mrb[0].mxu0
      %1591 = vdwg.mxu0
      %v1593 = vsel %vm1493, %v1492, 0
      %v1596 = vsel %vm1497, %v1487, 0
      %v1599 = vsel %vm1497, %v1488, 0
      %v1602 = vsel %vm1497, %v1489, 0
      %v1605 = vsel %vm1497, %v1490, 0
      %1607 = vmatprep.subr.bf16.mxu0 %v1472
      %1608 = vmatpush1.bf16.msra.mxu0 %v1471
      %1609 = vmatprep.subr.bf16.mxu0 %v1476
      %1610 = vmatpush1.bf16.msra.mxu0 %v1475
      %1611 = vmatprep.subr.bf16.mxu0 %v1480
      %1612 = vmatpush1.bf16.msra.mxu0 %v1479
      %1613 = vmatprep.subr.bf16.mxu0 %v1484
      %1614 = vmatpush1.bf16.msra.mxu0 %v1483
      %1615 = vmatprep.subr.bf16.mxu0 %v1599
      %1616 = vmatpush1.bf16.msra.mxu0 %v1596
      %1617 = vmatprep.subr.bf16.mxu0 0
      %1618 = vmatpush1.bf16.msra.mxu0 0
      %1619 = vmatprep.subr.bf16.mxu0 0
      %1620 = vmatpush1.bf16.msra.mxu0 0
      %1621 = vmatprep.subr.bf16.mxu0 0
      %1622 = vmatpush1.bf16.msra.mxu0 0
      %1623 = vmatprep.subr.bf16.mxu0 0
      %1624 = vmatpush1.bf16.msra.mxu0 0
      %1625 = vmatprep.subr.bf16.mxu0 0
      %1626 = vmatpush1.bf16.msra.mxu0 0
      %1627 = vmatprep.subr.bf16.mxu0 0
      %1628 = vmatpush1.bf16.msra.mxu0 0
      %1629 = vmatprep.subr.bf16.mxu0 0
      %1630 = vmatpush1.bf16.msra.mxu0 0
      %1631 = vmatprep.subr.bf16.mxu0 0
      %1632 = vmatpush1.bf16.msra.mxu0 0
      %1633 = vmatprep.subr.bf16.mxu0 0
      %1634 = vmatpush1.bf16.msra.mxu0 0
      %1635 = vmatprep.subr.bf16.mxu0 0
      %1636 = vmatpush1.bf16.msra.mxu0 0
      %1637 = vmatprep.subr.bf16.mxu0 0
      %1638 = vmatpush1.bf16.msra.mxu0 0
      %1639 = vmatprep.mubr.bf16.mxu0 0
      %1640 = vmatmul.mubr.bf16.gmra.mrb[0].mxu0 %v1593
      %v1641 = vpop.f32.mrb[0].mxu0
      %v1642 = vadd.f32 0.0, %v1641
      %v1643 = vpop.f32.mrb[0].mxu0
      %v1644 = vadd.f32 0.0, %v1643
      %v1645 = vpop.f32.mrb[0].mxu0
      %v1646 = vpop.f32.mrb[0].mxu0
      %1647 = vdwg.mxu0
      %1648 = vmatprep.subr.bf16.mxu0 %v1474
      %1649 = vmatpush1.bf16.msra.mxu0 %v1473
      %1650 = vmatprep.subr.bf16.mxu0 %v1478
      %1651 = vmatpush1.bf16.msra.mxu0 %v1477
      %1652 = vmatprep.subr.bf16.mxu0 %v1482
      %1653 = vmatpush1.bf16.msra.mxu0 %v1481
      %1654 = vmatprep.subr.bf16.mxu0 %v1486
      %1655 = vmatpush1.bf16.msra.mxu0 %v1485
      %1656 = vmatprep.subr.bf16.mxu0 %v1605
      %1657 = vmatpush1.bf16.msra.mxu0 %v1602
      %1658 = vmatprep.subr.bf16.mxu0 0
      %1659 = vmatpush1.bf16.msra.mxu0 0
      %1660 = vmatprep.subr.bf16.mxu0 0
      %1661 = vmatpush1.bf16.msra.mxu0 0
      %1662 = vmatprep.subr.bf16.mxu0 0
      %1663 = vmatpush1.bf16.msra.mxu0 0
      %1664 = vmatprep.subr.bf16.mxu0 0
      %1665 = vmatpush1.bf16.msra.mxu0 0
      %1666 = vmatprep.subr.bf16.mxu0 0
      %1667 = vmatpush1.bf16.msra.mxu0 0
      %1668 = vmatprep.subr.bf16.mxu0 0
      %1669 = vmatpush1.bf16.msra.mxu0 0
      %1670 = vmatprep.subr.bf16.mxu0 0
      %1671 = vmatpush1.bf16.msra.mxu0 0
      %1672 = vmatprep.subr.bf16.mxu0 0
      %1673 = vmatpush1.bf16.msra.mxu0 0
      %1674 = vmatprep.subr.bf16.mxu0 0
      %1675 = vmatpush1.bf16.msra.mxu0 0
      %1676 = vmatprep.subr.bf16.mxu0 0
      %1677 = vmatpush1.bf16.msra.mxu0 0
      %1678 = vmatprep.subr.bf16.mxu0 0
      %1679 = vmatpush1.bf16.msra.mxu0 0
      %1680 = vmatprep.mubr.bf16.mxu0 0
      %1681 = vmatmul.mubr.bf16.gmra.mrb[0].mxu0 %v1593
      %v1682 = vpop.f32.mrb[0].mxu0
      %v1683 = vadd.f32 0.0, %v1682
      %v1684 = vpop.f32.mrb[0].mxu0
      %v1685 = vadd.f32 0.0, %v1684
      %v1686 = vpop.f32.mrb[0].mxu0
      %v1687 = vpop.f32.mrb[0].mxu0
      %1688 = vdwg.mxu0
      %1689 = vmatprep.subr.bf16.mxu0 %v1416
      %1690 = vmatpush1.bf16.msra.mxu0 %v1415
      %1691 = vmatprep.subr.bf16.mxu0 %v1420
      %1692 = vmatpush1.bf16.msra.mxu0 %v1419
      %1693 = vmatprep.subr.bf16.mxu0 %v1424
      %1694 = vmatpush1.bf16.msra.mxu0 %v1423
      %1695 = vmatprep.subr.bf16.mxu0 %v1428
      %1696 = vmatpush1.bf16.msra.mxu0 %v1427
      %1697 = vmatprep.subr.bf16.mxu0 %v1502
      %1698 = vmatpush1.bf16.msra.mxu0 %v1499
      %1699 = vmatprep.subr.bf16.mxu0 0
      %1700 = vmatpush1.bf16.msra.mxu0 0
      %1701 = vmatprep.subr.bf16.mxu0 0
      %1702 = vmatpush1.bf16.msra.mxu0 0
      %1703 = vmatprep.subr.bf16.mxu0 0
      %1704 = vmatpush1.bf16.msra.mxu0 0
      %1705 = vmatprep.subr.bf16.mxu0 0
      %1706 = vmatpush1.bf16.msra.mxu0 0
      %1707 = vmatprep.subr.bf16.mxu0 0
      %1708 = vmatpush1.bf16.msra.mxu0 0
      %1709 = vmatprep.subr.bf16.mxu0 0
      %1710 = vmatpush1.bf16.msra.mxu0 0
      %1711 = vmatprep.subr.bf16.mxu0 0
      %1712 = vmatpush1.bf16.msra.mxu0 0
      %1713 = vmatprep.subr.bf16.mxu0 0
      %1714 = vmatpush1.bf16.msra.mxu0 0
      %1715 = vmatprep.subr.bf16.mxu0 0
      %1716 = vmatpush1.bf16.msra.mxu0 0
      %1717 = vmatprep.subr.bf16.mxu0 0
      %1718 = vmatpush1.bf16.msra.mxu0 0
      %1719 = vmatprep.subr.bf16.mxu0 0
      %1720 = vmatpush1.bf16.msra.mxu0 0
      %1721 = vmatprep.mubr.bf16.mxu0 0
      %1722 = vmatmul.mubr.bf16.gmra.mrb[0].mxu0 %v1593
      %v1723 = vpop.f32.mrb[0].mxu0
      %v1724 = vadd.f32 0.0, %v1723
      %v1725 = vpop.f32.mrb[0].mxu0
      %v1726 = vadd.f32 0.0, %v1725
      %v1727 = vpop.f32.mrb[0].mxu0
      %v1728 = vpop.f32.mrb[0].mxu0
      %1729 = vdwg.mxu0
      %1730 = vmatprep.subr.bf16.mxu0 %v1418
      %1731 = vmatpush1.bf16.msra.mxu0 %v1417
      %1732 = vmatprep.subr.bf16.mxu0 %v1422
      %1733 = vmatpush1.bf16.msra.mxu0 %v1421
      %1734 = vmatprep.subr.bf16.mxu0 %v1426
      %1735 = vmatpush1.bf16.msra.mxu0 %v1425
      %1736 = vmatprep.subr.bf16.mxu0 %v1430
      %1737 = vmatpush1.bf16.msra.mxu0 %v1429
      %1738 = vmatprep.subr.bf16.mxu0 %v1508
      %1739 = vmatpush1.bf16.msra.mxu0 %v1505
      %1740 = vmatprep.subr.bf16.mxu0 0
      %1741 = vmatpush1.bf16.msra.mxu0 0
      %1742 = vmatprep.subr.bf16.mxu0 0
      %1743 = vmatpush1.bf16.msra.mxu0 0
      %1744 = vmatprep.subr.bf16.mxu0 0
      %1745 = vmatpush1.bf16.msra.mxu0 0
      %1746 = vmatprep.subr.bf16.mxu0 0
      %1747 = vmatpush1.bf16.msra.mxu0 0
      %1748 = vmatprep.subr.bf16.mxu0 0
      %1749 = vmatpush1.bf16.msra.mxu0 0
      %1750 = vmatprep.subr.bf16.mxu0 0
      %1751 = vmatpush1.bf16.msra.mxu0 0
      %1752 = vmatprep.subr.bf16.mxu0 0
      %1753 = vmatpush1.bf16.msra.mxu0 0
      %1754 = vmatprep.subr.bf16.mxu0 0
      %1755 = vmatpush1.bf16.msra.mxu0 0
      %1756 = vmatprep.subr.bf16.mxu0 0
      %1757 = vmatpush1.bf16.msra.mxu0 0
      %1758 = vmatprep.subr.bf16.mxu0 0
      %1759 = vmatpush1.bf16.msra.mxu0 0
      %1760 = vmatprep.subr.bf16.mxu0 0
      %1761 = vmatpush1.bf16.msra.mxu0 0
      %1762 = vmatprep.mubr.bf16.mxu0 0
      %1763 = vmatmul.mubr.bf16.gmra.mrb[0].mxu0 %v1593
      %v1764 = vpop.f32.mrb[0].mxu0
      %v1765 = vadd.f32 0.0, %v1764
      %v1766 = vpop.f32.mrb[0].mxu0
      %v1767 = vadd.f32 0.0, %v1766
      %v1768 = vpop.f32.mrb[0].mxu0
      %v1769 = vpop.f32.mrb[0].mxu0
      %1770 = vdwg.mxu0
      %v1771 = vsub.f32 %v1545, %v1642
      %v1772 = vsub.f32 %v1547, %v1644
      %v1773 = vsub.f32 %v1586, %v1683
      %v1774 = vsub.f32 %v1588, %v1685
      %v1775 = vld [vmem:[%s5] sm:$0xf]
      %1777 = vset.pattern.permute.xlu0 0
      %1778 = vperm.xlu0 %1777, %v1775
      %v1779 = vpop.permute.xlu0 %1778
      %v1781 = vadd.f32 %v1771, %v1779
      %v1782 = vadd.f32 %v1772, %v1779
      %v1783 = vadd.f32 %v1773, %v1779
      %v1784 = vadd.f32 %v1774, %v1779
      %1785 = vmatprep.subr.bf16.mxu0 %v1472
      %1786 = vmatpush1.bf16.msra.mxu0 %v1471
      %1787 = vmatprep.subr.bf16.mxu0 %v1476
      %1788 = vmatpush1.bf16.msra.mxu0 %v1475
      %1789 = vmatprep.subr.bf16.mxu0 %v1480
      %1790 = vmatpush1.bf16.msra.mxu0 %v1479
      %1791 = vmatprep.subr.bf16.mxu0 %v1484
      %1792 = vmatpush1.bf16.msra.mxu0 %v1483
      %1793 = vmatprep.subr.bf16.mxu0 %v1599
      %1794 = vmatpush1.bf16.msra.mxu0 %v1596
      %1795 = vmatprep.subr.bf16.mxu0 0
      %1796 = vmatpush1.bf16.msra.mxu0 0
      %1797 = vmatprep.subr.bf16.mxu0 0
      %1798 = vmatpush1.bf16.msra.mxu0 0
      %1799 = vmatprep.subr.bf16.mxu0 0
      %1800 = vmatpush1.bf16.msra.mxu0 0
      %1801 = vmatprep.subr.bf16.mxu0 0
      %1802 = vmatpush1.bf16.msra.mxu0 0
      %1803 = vmatprep.subr.bf16.mxu0 0
      %1804 = vmatpush1.bf16.msra.mxu0 0
      %1805 = vmatprep.subr.bf16.mxu0 0
      %1806 = vmatpush1.bf16.msra.mxu0 0
      %1807 = vmatprep.subr.bf16.mxu0 0
      %1808 = vmatpush1.bf16.msra.mxu0 0
      %1809 = vmatprep.subr.bf16.mxu0 0
      %1810 = vmatpush1.bf16.msra.mxu0 0
      %1811 = vmatprep.subr.bf16.mxu0 0
      %1812 = vmatpush1.bf16.msra.mxu0 0
      %1813 = vmatprep.subr.bf16.mxu0 0
      %1814 = vmatpush1.bf16.msra.mxu0 0
      %1815 = vmatprep.subr.bf16.mxu0 0
      %1816 = vmatpush1.bf16.msra.mxu0 0
      %1817 = vmatprep.mubr.bf16.mxu0 0
      %1818 = vmatmul.mubr.bf16.gmra.mrb[0].mxu0 %v1495
      %v1819 = vpop.f32.mrb[0].mxu0
      %v1820 = vadd.f32 %v1724, %v1819
      %v1821 = vpop.f32.mrb[0].mxu0
      %v1822 = vadd.f32 %v1726, %v1821
      %v1823 = vpop.f32.mrb[0].mxu0
      %v1824 = vpop.f32.mrb[0].mxu0
      %1825 = vdwg.mxu0
      %1826 = vmatprep.subr.bf16.mxu0 %v1474
      %1827 = vmatpush1.bf16.msra.mxu0 %v1473
      %1828 = vmatprep.subr.bf16.mxu0 %v1478
      %1829 = vmatpush1.bf16.msra.mxu0 %v1477
      %1830 = vmatprep.subr.bf16.mxu0 %v1482
      %1831 = vmatpush1.bf16.msra.mxu0 %v1481
      %1832 = vmatprep.subr.bf16.mxu0 %v1486
      %1833 = vmatpush1.bf16.msra.mxu0 %v1485
      %1834 = vmatprep.subr.bf16.mxu0 %v1605
      %1835 = vmatpush1.bf16.msra.mxu0 %v1602
      %1836 = vmatprep.subr.bf16.mxu0 0
      %1837 = vmatpush1.bf16.msra.mxu0 0
      %1838 = vmatprep.subr.bf16.mxu0 0
      %1839 = vmatpush1.bf16.msra.mxu0 0
      %1840 = vmatprep.subr.bf16.mxu0 0
      %1841 = vmatpush1.bf16.msra.mxu0 0
      %1842 = vmatprep.subr.bf16.mxu0 0
      %1843 = vmatpush1.bf16.msra.mxu0 0
      %1844 = vmatprep.subr.bf16.mxu0 0
      %1845 = vmatpush1.bf16.msra.mxu0 0
      %1846 = vmatprep.subr.bf16.mxu0 0
      %1847 = vmatpush1.bf16.msra.mxu0 0
      %1848 = vmatprep.subr.bf16.mxu0 0
      %1849 = vmatpush1.bf16.msra.mxu0 0
      %1850 = vmatprep.subr.bf16.mxu0 0
      %1851 = vmatpush1.bf16.msra.mxu0 0
      %1852 = vmatprep.subr.bf16.mxu0 0
      %1853 = vmatpush1.bf16.msra.mxu0 0
      %1854 = vmatprep.subr.bf16.mxu0 0
      %1855 = vmatpush1.bf16.msra.mxu0 0
      %1856 = vmatprep.subr.bf16.mxu0 0
      %1857 = vmatpush1.bf16.msra.mxu0 0
      %1858 = vmatprep.mubr.bf16.mxu0 0
      %1859 = vmatmul.mubr.bf16.gmra.mrb[0].mxu0 %v1495
      %v1860 = vpop.f32.mrb[0].mxu0
      %v1861 = vadd.f32 %v1765, %v1860
      %v1862 = vpop.f32.mrb[0].mxu0
      %v1863 = vadd.f32 %v1767, %v1862
      %v1864 = vpop.f32.mrb[0].mxu0
      %v1865 = vpop.f32.mrb[0].mxu0
      %1866 = vdwg.mxu0
      %v1867 = vld [vmem:[%s6] sm:$0xf]
      %1869 = vset.pattern.permute.xlu0 0
      %1870 = vperm.xlu0 %1869, %v1867
      %v1871 = vpop.permute.xlu0 %1870
      %v1873 = vadd.f32 %v1820, %v1871
      %v1874 = vadd.f32 %v1822, %v1871
      %v1875 = vadd.f32 %v1861, %v1871
      %v1876 = vadd.f32 %v1863, %v1871
      %v1878 = vlaneseq
      %v1879 = vshrl.u32 %v1878, 7
      %v1880 = vsub.s32 0, %v1879
      %v1881 = vrot.slane %v880, %v1880
      %v1882 = vlaneseq
      %v1883 = vshrl.u32 %v1882, 7
      %v1884 = vsub.s32 1, %v1883
      %v1885 = vrot.slane %v880, %v1884
      %v1886 = vlaneseq
      %v1887 = vshrl.u32 %v1886, 7
      %v1888 = vsub.s32 2, %v1887
      %v1889 = vrot.slane %v880, %v1888
      %v1890 = vlaneseq
      %v1891 = vshrl.u32 %v1890, 7
      %v1892 = vsub.s32 3, %v1891
      %v1893 = vrot.slane %v880, %v1892
      %v1898 = vmul.f32 %v1781, %v1881
      %v1899 = vmul.f32 %v1782, %v1885
      %v1900 = vmul.f32 %v1783, %v1889
      %v1901 = vmul.f32 %v1784, %v1893
      %v1902 = vmul.f32 %v1873, %v1881
      %v1903 = vmul.f32 %v1874, %v1885
      %v1904 = vmul.f32 %v1875, %v1889
      %v1905 = vmul.f32 %v1876, %v1893
      %v1906 = vld [vmem:[%s7] sm:$0x7]
      %v1907 = vld [vmem:[%s8] sm:$0x7]
      %v1909 = vsel %vm1493, %v1906, 0
      %1911 = vmatprep.subr.bf16.mxu0 %v1416
      %1912 = vmatpush1.bf16.msra.mxu0 %v1415
      %1913 = vmatprep.subr.bf16.mxu0 %v1420
      %1914 = vmatpush1.bf16.msra.mxu0 %v1419
      %1915 = vmatprep.subr.bf16.mxu0 %v1424
      %1916 = vmatpush1.bf16.msra.mxu0 %v1423
      %1917 = vmatprep.subr.bf16.mxu0 %v1428
      %1918 = vmatpush1.bf16.msra.mxu0 %v1427
      %1919 = vmatprep.subr.bf16.mxu0 %v1502
      %1920 = vmatpush1.bf16.msra.mxu0 %v1499
      %1921 = vmatprep.subr.bf16.mxu0 0
      %1922 = vmatpush1.bf16.msra.mxu0 0
      %1923 = vmatprep.subr.bf16.mxu0 0
      %1924 = vmatpush1.bf16.msra.mxu0 0
      %1925 = vmatprep.subr.bf16.mxu0 0
      %1926 = vmatpush1.bf16.msra.mxu0 0
      %1927 = vmatprep.subr.bf16.mxu0 0
      %1928 = vmatpush1.bf16.msra.mxu0 0
      %1929 = vmatprep.subr.bf16.mxu0 0
      %1930 = vmatpush1.bf16.msra.mxu0 0
      %1931 = vmatprep.subr.bf16.mxu0 0
      %1932 = vmatpush1.bf16.msra.mxu0 0
      %1933 = vmatprep.subr.bf16.mxu0 0
      %1934 = vmatpush1.bf16.msra.mxu0 0
      %1935 = vmatprep.subr.bf16.mxu0 0
      %1936 = vmatpush1.bf16.msra.mxu0 0
      %1937 = vmatprep.subr.bf16.mxu0 0
      %1938 = vmatpush1.bf16.msra.mxu0 0
      %1939 = vmatprep.subr.bf16.mxu0 0
      %1940 = vmatpush1.bf16.msra.mxu0 0
      %1941 = vmatprep.subr.bf16.mxu0 0
      %1942 = vmatpush1.bf16.msra.mxu0 0
      %1943 = vmatprep.mubr.bf16.mxu0 0
      %1944 = vmatmul.mubr.bf16.gmra.mrb[0].mxu0 %v1909
      %v1945 = vpop.f32.mrb[0].mxu0
      %v1946 = vadd.f32 0.0, %v1945
      %v1947 = vpop.f32.mrb[0].mxu0
      %v1948 = vadd.f32 0.0, %v1947
      %v1949 = vpop.f32.mrb[0].mxu0
      %v1950 = vpop.f32.mrb[0].mxu0
      %1951 = vdwg.mxu0
      %1952 = vmatprep.subr.bf16.mxu0 %v1418
      %1953 = vmatpush1.bf16.msra.mxu0 %v1417
      %1954 = vmatprep.subr.bf16.mxu0 %v1422
      %1955 = vmatpush1.bf16.msra.mxu0 %v1421
      %1956 = vmatprep.subr.bf16.mxu0 %v1426
      %1957 = vmatpush1.bf16.msra.mxu0 %v1425
      %1958 = vmatprep.subr.bf16.mxu0 %v1430
      %1959 = vmatpush1.bf16.msra.mxu0 %v1429
      %1960 = vmatprep.subr.bf16.mxu0 %v1508
      %1961 = vmatpush1.bf16.msra.mxu0 %v1505
      %1962 = vmatprep.subr.bf16.mxu0 0
      %1963 = vmatpush1.bf16.msra.mxu0 0
      %1964 = vmatprep.subr.bf16.mxu0 0
      %1965 = vmatpush1.bf16.msra.mxu0 0
      %1966 = vmatprep.subr.bf16.mxu0 0
      %1967 = vmatpush1.bf16.msra.mxu0 0
      %1968 = vmatprep.subr.bf16.mxu0 0
      %1969 = vmatpush1.bf16.msra.mxu0 0
      %1970 = vmatprep.subr.bf16.mxu0 0
      %1971 = vmatpush1.bf16.msra.mxu0 0
      %1972 = vmatprep.subr.bf16.mxu0 0
      %1973 = vmatpush1.bf16.msra.mxu0 0
      %1974 = vmatprep.subr.bf16.mxu0 0
      %1975 = vmatpush1.bf16.msra.mxu0 0
      %1976 = vmatprep.subr.bf16.mxu0 0
      %1977 = vmatpush1.bf16.msra.mxu0 0
      %1978 = vmatprep.subr.bf16.mxu0 0
      %1979 = vmatpush1.bf16.msra.mxu0 0
      %1980 = vmatprep.subr.bf16.mxu0 0
      %1981 = vmatpush1.bf16.msra.mxu0 0
      %1982 = vmatprep.subr.bf16.mxu0 0
      %1983 = vmatpush1.bf16.msra.mxu0 0
      %1984 = vmatprep.mubr.bf16.mxu0 0
      %1985 = vmatmul.mubr.bf16.gmra.mrb[0].mxu0 %v1909
      %v1986 = vpop.f32.mrb[0].mxu0
      %v1987 = vadd.f32 0.0, %v1986
      %v1988 = vpop.f32.mrb[0].mxu0
      %v1989 = vadd.f32 0.0, %v1988
      %v1990 = vpop.f32.mrb[0].mxu0
      %v1991 = vpop.f32.mrb[0].mxu0
      %1992 = vdwg.mxu0
      %v1994 = vsel %vm1493, %v1907, 0
      %1996 = vmatprep.subr.bf16.mxu0 %v1472
      %1997 = vmatpush1.bf16.msra.mxu0 %v1471
      %1998 = vmatprep.subr.bf16.mxu0 %v1476
      %1999 = vmatpush1.bf16.msra.mxu0 %v1475
      %2000 = vmatprep.subr.bf16.mxu0 %v1480
      %2001 = vmatpush1.bf16.msra.mxu0 %v1479
      %2002 = vmatprep.subr.bf16.mxu0 %v1484
      %2003 = vmatpush1.bf16.msra.mxu0 %v1483
      %2004 = vmatprep.subr.bf16.mxu0 %v1599
      %2005 = vmatpush1.bf16.msra.mxu0 %v1596
      %2006 = vmatprep.subr.bf16.mxu0 0
      %2007 = vmatpush1.bf16.msra.mxu0 0
      %2008 = vmatprep.subr.bf16.mxu0 0
      %2009 = vmatpush1.bf16.msra.mxu0 0
      %2010 = vmatprep.subr.bf16.mxu0 0
      %2011 = vmatpush1.bf16.msra.mxu0 0
      %2012 = vmatprep.subr.bf16.mxu0 0
      %2013 = vmatpush1.bf16.msra.mxu0 0
      %2014 = vmatprep.subr.bf16.mxu0 0
      %2015 = vmatpush1.bf16.msra.mxu0 0
      %2016 = vmatprep.subr.bf16.mxu0 0
      %2017 = vmatpush1.bf16.msra.mxu0 0
      %2018 = vmatprep.subr.bf16.mxu0 0
      %2019 = vmatpush1.bf16.msra.mxu0 0
      %2020 = vmatprep.subr.bf16.mxu0 0
      %2021 = vmatpush1.bf16.msra.mxu0 0
      %2022 = vmatprep.subr.bf16.mxu0 0
      %2023 = vmatpush1.bf16.msra.mxu0 0
      %2024 = vmatprep.subr.bf16.mxu0 0
      %2025 = vmatpush1.bf16.msra.mxu0 0
      %2026 = vmatprep.subr.bf16.mxu0 0
      %2027 = vmatpush1.bf16.msra.mxu0 0
      %2028 = vmatprep.mubr.bf16.mxu0 0
      %2029 = vmatmul.mubr.bf16.gmra.mrb[0].mxu0 %v1994
      %v2030 = vpop.f32.mrb[0].mxu0
      %v2031 = vadd.f32 0.0, %v2030
      %v2032 = vpop.f32.mrb[0].mxu0
      %v2033 = vadd.f32 0.0, %v2032
      %v2034 = vpop.f32.mrb[0].mxu0
      %v2035 = vpop.f32.mrb[0].mxu0
      %2036 = vdwg.mxu0
      %2037 = vmatprep.subr.bf16.mxu0 %v1474
      %2038 = vmatpush1.bf16.msra.mxu0 %v1473
      %2039 = vmatprep.subr.bf16.mxu0 %v1478
      %2040 = vmatpush1.bf16.msra.mxu0 %v1477
      %2041 = vmatprep.subr.bf16.mxu0 %v1482
      %2042 = vmatpush1.bf16.msra.mxu0 %v1481
      %2043 = vmatprep.subr.bf16.mxu0 %v1486
      %2044 = vmatpush1.bf16.msra.mxu0 %v1485
      %2045 = vmatprep.subr.bf16.mxu0 %v1605
      %2046 = vmatpush1.bf16.msra.mxu0 %v1602
      %2047 = vmatprep.subr.bf16.mxu0 0
      %2048 = vmatpush1.bf16.msra.mxu0 0
      %2049 = vmatprep.subr.bf16.mxu0 0
      %2050 = vmatpush1.bf16.msra.mxu0 0
      %2051 = vmatprep.subr.bf16.mxu0 0
      %2052 = vmatpush1.bf16.msra.mxu0 0
      %2053 = vmatprep.subr.bf16.mxu0 0
      %2054 = vmatpush1.bf16.msra.mxu0 0
      %2055 = vmatprep.subr.bf16.mxu0 0
      %2056 = vmatpush1.bf16.msra.mxu0 0
      %2057 = vmatprep.subr.bf16.mxu0 0
      %2058 = vmatpush1.bf16.msra.mxu0 0
      %2059 = vmatprep.subr.bf16.mxu0 0
      %2060 = vmatpush1.bf16.msra.mxu0 0
      %2061 = vmatprep.subr.bf16.mxu0 0
      %2062 = vmatpush1.bf16.msra.mxu0 0
      %2063 = vmatprep.subr.bf16.mxu0 0
      %2064 = vmatpush1.bf16.msra.mxu0 0
      %2065 = vmatprep.subr.bf16.mxu0 0
      %2066 = vmatpush1.bf16.msra.mxu0 0
      %2067 = vmatprep.subr.bf16.mxu0 0
      %2068 = vmatpush1.bf16.msra.mxu0 0
      %2069 = vmatprep.mubr.bf16.mxu0 0
      %2070 = vmatmul.mubr.bf16.gmra.mrb[0].mxu0 %v1994
      %v2071 = vpop.f32.mrb[0].mxu0
      %v2072 = vadd.f32 0.0, %v2071
      %v2073 = vpop.f32.mrb[0].mxu0
      %v2074 = vadd.f32 0.0, %v2073
      %v2075 = vpop.f32.mrb[0].mxu0
      %v2076 = vpop.f32.mrb[0].mxu0
      %2077 = vdwg.mxu0
      %2078 = vmatprep.subr.bf16.mxu0 %v1416
      %2079 = vmatpush1.bf16.msra.mxu0 %v1415
      %2080 = vmatprep.subr.bf16.mxu0 %v1420
      %2081 = vmatpush1.bf16.msra.mxu0 %v1419
      %2082 = vmatprep.subr.bf16.mxu0 %v1424
      %2083 = vmatpush1.bf16.msra.mxu0 %v1423
      %2084 = vmatprep.subr.bf16.mxu0 %v1428
      %2085 = vmatpush1.bf16.msra.mxu0 %v1427
      %2086 = vmatprep.subr.bf16.mxu0 %v1502
      %2087 = vmatpush1.bf16.msra.mxu0 %v1499
      %2088 = vmatprep.subr.bf16.mxu0 0
      %2089 = vmatpush1.bf16.msra.mxu0 0
      %2090 = vmatprep.subr.bf16.mxu0 0
      %2091 = vmatpush1.bf16.msra.mxu0 0
      %2092 = vmatprep.subr.bf16.mxu0 0
      %2093 = vmatpush1.bf16.msra.mxu0 0
      %2094 = vmatprep.subr.bf16.mxu0 0
      %2095 = vmatpush1.bf16.msra.mxu0 0
      %2096 = vmatprep.subr.bf16.mxu0 0
      %2097 = vmatpush1.bf16.msra.mxu0 0
      %2098 = vmatprep.subr.bf16.mxu0 0
      %2099 = vmatpush1.bf16.msra.mxu0 0
      %2100 = vmatprep.subr.bf16.mxu0 0
      %2101 = vmatpush1.bf16.msra.mxu0 0
      %2102 = vmatprep.subr.bf16.mxu0 0
      %2103 = vmatpush1.bf16.msra.mxu0 0
      %2104 = vmatprep.subr.bf16.mxu0 0
      %2105 = vmatpush1.bf16.msra.mxu0 0
      %2106 = vmatprep.subr.bf16.mxu0 0
      %2107 = vmatpush1.bf16.msra.mxu0 0
      %2108 = vmatprep.subr.bf16.mxu0 0
      %2109 = vmatpush1.bf16.msra.mxu0 0
      %2110 = vmatprep.mubr.bf16.mxu0 0
      %2111 = vmatmul.mubr.bf16.gmra.mrb[0].mxu0 %v1994
      %v2112 = vpop.f32.mrb[0].mxu0
      %v2113 = vadd.f32 0.0, %v2112
      %v2114 = vpop.f32.mrb[0].mxu0
      %v2115 = vadd.f32 0.0, %v2114
      %v2116 = vpop.f32.mrb[0].mxu0
      %v2117 = vpop.f32.mrb[0].mxu0
      %2118 = vdwg.mxu0
      %2119 = vmatprep.subr.bf16.mxu0 %v1418
      %2120 = vmatpush1.bf16.msra.mxu0 %v1417
      %2121 = vmatprep.subr.bf16.mxu0 %v1422
      %2122 = vmatpush1.bf16.msra.mxu0 %v1421
      %2123 = vmatprep.subr.bf16.mxu0 %v1426
      %2124 = vmatpush1.bf16.msra.mxu0 %v1425
      %2125 = vmatprep.subr.bf16.mxu0 %v1430
      %2126 = vmatpush1.bf16.msra.mxu0 %v1429
      %2127 = vmatprep.subr.bf16.mxu0 %v1508
      %2128 = vmatpush1.bf16.msra.mxu0 %v1505
      %2129 = vmatprep.subr.bf16.mxu0 0
      %2130 = vmatpush1.bf16.msra.mxu0 0
      %2131 = vmatprep.subr.bf16.mxu0 0
      %2132 = vmatpush1.bf16.msra.mxu0 0
      %2133 = vmatprep.subr.bf16.mxu0 0
      %2134 = vmatpush1.bf16.msra.mxu0 0
      %2135 = vmatprep.subr.bf16.mxu0 0
      %2136 = vmatpush1.bf16.msra.mxu0 0
      %2137 = vmatprep.subr.bf16.mxu0 0
      %2138 = vmatpush1.bf16.msra.mxu0 0
      %2139 = vmatprep.subr.bf16.mxu0 0
      %2140 = vmatpush1.bf16.msra.mxu0 0
      %2141 = vmatprep.subr.bf16.mxu0 0
      %2142 = vmatpush1.bf16.msra.mxu0 0
      %2143 = vmatprep.subr.bf16.mxu0 0
      %2144 = vmatpush1.bf16.msra.mxu0 0
      %2145 = vmatprep.subr.bf16.mxu0 0
      %2146 = vmatpush1.bf16.msra.mxu0 0
      %2147 = vmatprep.subr.bf16.mxu0 0
      %2148 = vmatpush1.bf16.msra.mxu0 0
      %2149 = vmatprep.subr.bf16.mxu0 0
      %2150 = vmatpush1.bf16.msra.mxu0 0
      %2151 = vmatprep.mubr.bf16.mxu0 0
      %2152 = vmatmul.mubr.bf16.gmra.mrb[0].mxu0 %v1994
      %v2153 = vpop.f32.mrb[0].mxu0
      %v2154 = vadd.f32 0.0, %v2153
      %v2155 = vpop.f32.mrb[0].mxu0
      %v2156 = vadd.f32 0.0, %v2155
      %v2157 = vpop.f32.mrb[0].mxu0
      %v2158 = vpop.f32.mrb[0].mxu0
      %2159 = vdwg.mxu0
      %v2160 = vsub.f32 %v1946, %v2031
      %v2161 = vsub.f32 %v1948, %v2033
      %v2162 = vsub.f32 %v1987, %v2072
      %v2163 = vsub.f32 %v1989, %v2074
      %v2164 = vld [vmem:[%s9] sm:$0x3f]
      %2166 = vset.pattern.permute.xlu0 0
      %2167 = vperm.xlu0 %2166, %v2164
      %v2168 = vpop.permute.xlu0 %2167
      %v2170 = vadd.f32 %v2160, %v2168
      %v2171 = vadd.f32 %v2161, %v2168
      %v2172 = vadd.f32 %v2162, %v2168
      %v2173 = vadd.f32 %v2163, %v2168
      %2174 = vmatprep.subr.bf16.mxu0 %v1472
      %2175 = vmatpush1.bf16.msra.mxu0 %v1471
      %2176 = vmatprep.subr.bf16.mxu0 %v1476
      %2177 = vmatpush1.bf16.msra.mxu0 %v1475
      %2178 = vmatprep.subr.bf16.mxu0 %v1480
      %2179 = vmatpush1.bf16.msra.mxu0 %v1479
      %2180 = vmatprep.subr.bf16.mxu0 %v1484
      %2181 = vmatpush1.bf16.msra.mxu0 %v1483
      %2182 = vmatprep.subr.bf16.mxu0 %v1599
      %2183 = vmatpush1.bf16.msra.mxu0 %v1596
      %2184 = vmatprep.subr.bf16.mxu0 0
      %2185 = vmatpush1.bf16.msra.mxu0 0
      %2186 = vmatprep.subr.bf16.mxu0 0
      %2187 = vmatpush1.bf16.msra.mxu0 0
      %2188 = vmatprep.subr.bf16.mxu0 0
      %2189 = vmatpush1.bf16.msra.mxu0 0
      %2190 = vmatprep.subr.bf16.mxu0 0
      %2191 = vmatpush1.bf16.msra.mxu0 0
      %2192 = vmatprep.subr.bf16.mxu0 0
      %2193 = vmatpush1.bf16.msra.mxu0 0
      %2194 = vmatprep.subr.bf16.mxu0 0
      %2195 = vmatpush1.bf16.msra.mxu0 0
      %2196 = vmatprep.subr.bf16.mxu0 0
      %2197 = vmatpush1.bf16.msra.mxu0 0
      %2198 = vmatprep.subr.bf16.mxu0 0
      %2199 = vmatpush1.bf16.msra.mxu0 0
      %2200 = vmatprep.subr.bf16.mxu0 0
      %2201 = vmatpush1.bf16.msra.mxu0 0
      %2202 = vmatprep.subr.bf16.mxu0 0
      %2203 = vmatpush1.bf16.msra.mxu0 0
      %2204 = vmatprep.subr.bf16.mxu0 0
      %2205 = vmatpush1.bf16.msra.mxu0 0
      %2206 = vmatprep.mubr.bf16.mxu0 0
      %2207 = vmatmul.mubr.bf16.gmra.mrb[0].mxu0 %v1909
      %v2208 = vpop.f32.mrb[0].mxu0
      %v2209 = vadd.f32 %v2113, %v2208
      %v2210 = vpop.f32.mrb[0].mxu0
      %v2211 = vadd.f32 %v2115, %v2210
      %v2212 = vpop.f32.mrb[0].mxu0
      %v2213 = vpop.f32.mrb[0].mxu0
      %2214 = vdwg.mxu0
      %2215 = vmatprep.subr.bf16.mxu0 %v1474
      %2216 = vmatpush1.bf16.msra.mxu0 %v1473
      %2217 = vmatprep.subr.bf16.mxu0 %v1478
      %2218 = vmatpush1.bf16.msra.mxu0 %v1477
      %2219 = vmatprep.subr.bf16.mxu0 %v1482
      %2220 = vmatpush1.bf16.msra.mxu0 %v1481
      %2221 = vmatprep.subr.bf16.mxu0 %v1486
      %2222 = vmatpush1.bf16.msra.mxu0 %v1485
      %2223 = vmatprep.subr.bf16.mxu0 %v1605
      %2224 = vmatpush1.bf16.msra.mxu0 %v1602
      %2225 = vmatprep.subr.bf16.mxu0 0
      %2226 = vmatpush1.bf16.msra.mxu0 0
      %2227 = vmatprep.subr.bf16.mxu0 0
      %2228 = vmatpush1.bf16.msra.mxu0 0
      %2229 = vmatprep.subr.bf16.mxu0 0
      %2230 = vmatpush1.bf16.msra.mxu0 0
      %2231 = vmatprep.subr.bf16.mxu0 0
      %2232 = vmatpush1.bf16.msra.mxu0 0
      %2233 = vmatprep.subr.bf16.mxu0 0
      %2234 = vmatpush1.bf16.msra.mxu0 0
      %2235 = vmatprep.subr.bf16.mxu0 0
      %2236 = vmatpush1.bf16.msra.mxu0 0
      %2237 = vmatprep.subr.bf16.mxu0 0
      %2238 = vmatpush1.bf16.msra.mxu0 0
      %2239 = vmatprep.subr.bf16.mxu0 0
      %2240 = vmatpush1.bf16.msra.mxu0 0
      %2241 = vmatprep.subr.bf16.mxu0 0
      %2242 = vmatpush1.bf16.msra.mxu0 0
      %2243 = vmatprep.subr.bf16.mxu0 0
      %2244 = vmatpush1.bf16.msra.mxu0 0
      %2245 = vmatprep.subr.bf16.mxu0 0
      %2246 = vmatpush1.bf16.msra.mxu0 0
      %2247 = vmatprep.mubr.bf16.mxu0 0
      %2248 = vmatmul.mubr.bf16.gmra.mrb[0].mxu0 %v1909
      %v2249 = vpop.f32.mrb[0].mxu0
      %v2250 = vadd.f32 %v2154, %v2249
      %v2251 = vpop.f32.mrb[0].mxu0
      %v2252 = vadd.f32 %v2156, %v2251
      %v2253 = vpop.f32.mrb[0].mxu0
      %v2254 = vpop.f32.mrb[0].mxu0
      %2255 = vdwg.mxu0
      %v2256 = vld [vmem:[%s10] sm:$0x3f]
      %2258 = vset.pattern.permute.xlu0 0
      %2259 = vperm.xlu0 %2258, %v2256
      %v2260 = vpop.permute.xlu0 %2259
      %v2262 = vadd.f32 %v2209, %v2260
      %v2263 = vadd.f32 %v2211, %v2260
      %v2264 = vadd.f32 %v2250, %v2260
      %v2265 = vadd.f32 %v2252, %v2260
      %v2266 = vmul.f32 %v2170, %v1881
      %v2267 = vmul.f32 %v2171, %v1885
      %v2268 = vmul.f32 %v2172, %v1889
      %v2269 = vmul.f32 %v2173, %v1893
      %v2270 = vmul.f32 %v2262, %v1881
      %v2271 = vmul.f32 %v2263, %v1885
      %v2272 = vmul.f32 %v2264, %v1889
      %v2273 = vmul.f32 %v2265, %v1893
      %2274 = vrot.lane.b32.xlu0 %v881, 46
      %v2275 = vpop.permute.xlu0 %2274
      %2276 = vrot.lane.b32.xlu0 %v882, 46
      %v2277 = vpop.permute.xlu0 %2276
      %2278 = vrot.lane.b32.xlu0 %v883, 46
      %v2279 = vpop.permute.xlu0 %2278
      %2280 = vrot.lane.b32.xlu0 %v884, 46
      %v2281 = vpop.permute.xlu0 %2280
      %vm2282 = vcmp.lt.s32.totalorder %v1114, 46
      %v2283 = vsel %vm2282, %v2279, %v2281
      %v2284 = vsel %vm2282, %v2277, %v2279
      %v2285 = vsel %vm2282, %v2275, %v2277
      %v2286 = vsel %vm2282, %v2281, %v2275
      %2287 = vrot.lane.b32.xlu0 %v885, 46
      %v2288 = vpop.permute.xlu0 %2287
      %2289 = vrot.lane.b32.xlu0 %v886, 46
      %v2290 = vpop.permute.xlu0 %2289
      %2291 = vrot.lane.b32.xlu0 %v887, 46
      %v2292 = vpop.permute.xlu0 %2291
      %2293 = vrot.lane.b32.xlu0 %v888, 46
      %v2294 = vpop.permute.xlu0 %2293
      %v2295 = vsel %vm2282, %v2292, %v2294
      %v2296 = vsel %vm2282, %v2290, %v2292
      %v2297 = vsel %vm2282, %v2288, %v2290
      %v2298 = vsel %vm2282, %v2294, %v2288
      %2299 = vst [vmem:[#allocation2] sm:$0xff] %v2286
      %2300 = vst [vmem:[#allocation2 + $0x8] sm:$0xff] %v2285
      %2301 = vst [vmem:[#allocation2 + $0x10] sm:$0xff] %v2284
      %2302 = vst [vmem:[#allocation2 + $0x18] sm:$0xff] %v2283
      %2303 = vst [vmem:[#allocation3] sm:$0xff] %v2298
      %2304 = vst [vmem:[#allocation3 + $0x8] sm:$0xff] %v2297
      %2305 = vst [vmem:[#allocation3 + $0x10] sm:$0xff] %v2296
      %2306 = vst [vmem:[#allocation3 + $0x18] sm:$0xff] %v2295
      %2307 = vrot.lane.b32.xlu0 %v881, 44
      %v2308 = vpop.permute.xlu0 %2307
      %2309 = vrot.lane.b32.xlu0 %v882, 44
      %v2310 = vpop.permute.xlu0 %2309
      %2311 = vrot.lane.b32.xlu0 %v883, 44
      %v2312 = vpop.permute.xlu0 %2311
      %2313 = vrot.lane.b32.xlu0 %v884, 44
      %v2314 = vpop.permute.xlu0 %2313
      %vm2315 = vcmp.lt.s32.totalorder %v1114, 44
      %v2316 = vsel %vm2315, %v2312, %v2314
      %v2317 = vsel %vm2315, %v2310, %v2312
      %v2318 = vsel %vm2315, %v2308, %v2310
      %v2319 = vsel %vm2315, %v2314, %v2308
      %2320 = vrot.lane.b32.xlu0 %v885, 44
      %v2321 = vpop.permute.xlu0 %2320
      %2322 = vrot.lane.b32.xlu0 %v886, 44
      %v2323 = vpop.permute.xlu0 %2322
      %2324 = vrot.lane.b32.xlu0 %v887, 44
      %v2325 = vpop.permute.xlu0 %2324
      %2326 = vrot.lane.b32.xlu0 %v888, 44
      %v2327 = vpop.permute.xlu0 %2326
      %v2328 = vsel %vm2315, %v2325, %v2327
      %v2329 = vsel %vm2315, %v2323, %v2325
      %v2330 = vsel %vm2315, %v2321, %v2323
      %v2331 = vsel %vm2315, %v2327, %v2321
      %2332 = vst [vmem:[#allocation2 + $0x20] sm:$0xff] %v2319
      %2333 = vst [vmem:[#allocation2 + $0x28] sm:$0xff] %v2318
      %2334 = vst [vmem:[#allocation2 + $0x30] sm:$0xff] %v2317
      %2335 = vst [vmem:[#allocation2 + $0x38] sm:$0xff] %v2316
      %2336 = vst [vmem:[#allocation3 + $0x20] sm:$0xff] %v2331
      %2337 = vst [vmem:[#allocation3 + $0x28] sm:$0xff] %v2330
      %2338 = vst [vmem:[#allocation3 + $0x30] sm:$0xff] %v2329
      %2339 = vst [vmem:[#allocation3 + $0x38] sm:$0xff] %v2328
      %2340 = vrot.lane.b32.xlu0 %v881, 42
      %v2341 = vpop.permute.xlu0 %2340
      %2342 = vrot.lane.b32.xlu0 %v882, 42
      %v2343 = vpop.permute.xlu0 %2342
      %2344 = vrot.lane.b32.xlu0 %v883, 42
      %v2345 = vpop.permute.xlu0 %2344
      %2346 = vrot.lane.b32.xlu0 %v884, 42
      %v2347 = vpop.permute.xlu0 %2346
      %vm2348 = vcmp.lt.s32.totalorder %v1114, 42
      %v2349 = vsel %vm2348, %v2345, %v2347
      %v2350 = vsel %vm2348, %v2343, %v2345
      %v2351 = vsel %vm2348, %v2341, %v2343
      %v2352 = vsel %vm2348, %v2347, %v2341
      %2353 = vrot.lane.b32.xlu0 %v885, 42
      %v2354 = vpop.permute.xlu0 %2353
      %2355 = vrot.lane.b32.xlu0 %v886, 42
      %v2356 = vpop.permute.xlu0 %2355
      %2357 = vrot.lane.b32.xlu0 %v887, 42
      %v2358 = vpop.permute.xlu0 %2357
      %2359 = vrot.lane.b32.xlu0 %v888, 42
      %v2360 = vpop.permute.xlu0 %2359
      %v2361 = vsel %vm2348, %v2358, %v2360
      %v2362 = vsel %vm2348, %v2356, %v2358
      %v2363 = vsel %vm2348, %v2354, %v2356
      %v2364 = vsel %vm2348, %v2360, %v2354
      %2365 = vst [vmem:[#allocation2 + $0x40] sm:$0xff] %v2352
      %2366 = vst [vmem:[#allocation2 + $0x48] sm:$0xff] %v2351
      %2367 = vst [vmem:[#allocation2 + $0x50] sm:$0xff] %v2350
      %2368 = vst [vmem:[#allocation2 + $0x58] sm:$0xff] %v2349
      %2369 = vst [vmem:[#allocation3 + $0x40] sm:$0xff] %v2364
      %2370 = vst [vmem:[#allocation3 + $0x48] sm:$0xff] %v2363
      %2371 = vst [vmem:[#allocation3 + $0x50] sm:$0xff] %v2362
      %2372 = vst [vmem:[#allocation3 + $0x58] sm:$0xff] %v2361
      %2373 = vrot.lane.b32.xlu0 %v881, 2
      %v2374 = vpop.permute.xlu0 %2373
      %2375 = vrot.lane.b32.xlu0 %v882, 2
      %v2376 = vpop.permute.xlu0 %2375
      %2377 = vrot.lane.b32.xlu0 %v883, 2
      %v2378 = vpop.permute.xlu0 %2377
      %2379 = vrot.lane.b32.xlu0 %v884, 2
      %v2380 = vpop.permute.xlu0 %2379
      %vm2381 = vcmp.lt.s32.totalorder %v1114, 2
      %v2382 = vsel %vm2381, %v2378, %v2380
      %v2383 = vsel %vm2381, %v2376, %v2378
      %v2384 = vsel %vm2381, %v2374, %v2376
      %v2385 = vsel %vm2381, %v2380, %v2374
      %2386 = vrot.lane.b32.xlu0 %v885, 2
      %v2387 = vpop.permute.xlu0 %2386
      %2388 = vrot.lane.b32.xlu0 %v886, 2
      %v2389 = vpop.permute.xlu0 %2388
      %2390 = vrot.lane.b32.xlu0 %v887, 2
      %v2391 = vpop.permute.xlu0 %2390
      %2392 = vrot.lane.b32.xlu0 %v888, 2
      %v2393 = vpop.permute.xlu0 %2392
      %v2394 = vsel %vm2381, %v2391, %v2393
      %v2395 = vsel %vm2381, %v2389, %v2391
      %v2396 = vsel %vm2381, %v2387, %v2389
      %v2397 = vsel %vm2381, %v2393, %v2387
      %2398 = vst [vmem:[#allocation2 + $0x60] sm:$0xff] %v2385
      %2399 = vst [vmem:[#allocation2 + $0x68] sm:$0xff] %v2384
      %2400 = vst [vmem:[#allocation2 + $0x70] sm:$0xff] %v2383
      %2401 = vst [vmem:[#allocation2 + $0x78] sm:$0xff] %v2382
      %2402 = vst [vmem:[#allocation3 + $0x60] sm:$0xff] %v2397
      %2403 = vst [vmem:[#allocation3 + $0x68] sm:$0xff] %v2396
      %2404 = vst [vmem:[#allocation3 + $0x70] sm:$0xff] %v2395
      %2405 = vst [vmem:[#allocation3 + $0x78] sm:$0xff] %v2394
      %2406 = vst [vmem:[#allocation2 + $0x80] sm:$0xff] %v881
      %2407 = vst [vmem:[#allocation2 + $0x88] sm:$0xff] %v882
      %2408 = vst [vmem:[#allocation2 + $0x90] sm:$0xff] %v883
      %2409 = vst [vmem:[#allocation2 + $0x98] sm:$0xff] %v884
      %2410 = vst [vmem:[#allocation3 + $0x80] sm:$0xff] %v885
      %2411 = vst [vmem:[#allocation3 + $0x88] sm:$0xff] %v886
      %2412 = vst [vmem:[#allocation3 + $0x90] sm:$0xff] %v887
      %2413 = vst [vmem:[#allocation3 + $0x98] sm:$0xff] %v888
      %2414 = vrot.lane.b32.xlu0 %v881, 126
      %v2415 = vpop.permute.xlu0 %2414
      %2416 = vrot.lane.b32.xlu0 %v882, 126
      %v2417 = vpop.permute.xlu0 %2416
      %2418 = vrot.lane.b32.xlu0 %v883, 126
      %v2419 = vpop.permute.xlu0 %2418
      %2420 = vrot.lane.b32.xlu0 %v884, 126
      %v2421 = vpop.permute.xlu0 %2420
      %vm2422 = vcmp.lt.s32.totalorder %v1114, 126
      %v2423 = vsel %vm2422, %v2419, %v2421
      %v2424 = vsel %vm2422, %v2417, %v2419
      %v2425 = vsel %vm2422, %v2415, %v2417
      %v2426 = vsel %vm2422, %v2421, %v2415
      %2427 = vrot.lane.b32.xlu0 %v885, 126
      %v2428 = vpop.permute.xlu0 %2427
      %2429 = vrot.lane.b32.xlu0 %v886, 126
      %v2430 = vpop.permute.xlu0 %2429
      %2431 = vrot.lane.b32.xlu0 %v887, 126
      %v2432 = vpop.permute.xlu0 %2431
      %2433 = vrot.lane.b32.xlu0 %v888, 126
      %v2434 = vpop.permute.xlu0 %2433
      %v2435 = vsel %vm2422, %v2432, %v2434
      %v2436 = vsel %vm2422, %v2430, %v2432
      %v2437 = vsel %vm2422, %v2428, %v2430
      %v2438 = vsel %vm2422, %v2434, %v2428
      %2439 = vst [vmem:[#allocation2 + $0xa0] sm:$0xff] %v2425
      %2440 = vst [vmem:[#allocation2 + $0xa8] sm:$0xff] %v2424
      %2441 = vst [vmem:[#allocation2 + $0xb0] sm:$0xff] %v2423
      %2442 = vst [vmem:[#allocation2 + $0xb8] sm:$0xff] %v2426
      %2443 = vst [vmem:[#allocation3 + $0xa0] sm:$0xff] %v2437
      %2444 = vst [vmem:[#allocation3 + $0xa8] sm:$0xff] %v2436
      %2445 = vst [vmem:[#allocation3 + $0xb0] sm:$0xff] %v2435
      %2446 = vst [vmem:[#allocation3 + $0xb8] sm:$0xff] %v2438
      %2447 = vrot.lane.b32.xlu0 %v881, 86
      %v2448 = vpop.permute.xlu0 %2447
      %2449 = vrot.lane.b32.xlu0 %v882, 86
      %v2450 = vpop.permute.xlu0 %2449
      %2451 = vrot.lane.b32.xlu0 %v883, 86
      %v2452 = vpop.permute.xlu0 %2451
      %2453 = vrot.lane.b32.xlu0 %v884, 86
      %v2454 = vpop.permute.xlu0 %2453
      %vm2455 = vcmp.lt.s32.totalorder %v1114, 86
      %v2456 = vsel %vm2455, %v2452, %v2454
      %v2457 = vsel %vm2455, %v2450, %v2452
      %v2458 = vsel %vm2455, %v2448, %v2450
      %v2459 = vsel %vm2455, %v2454, %v2448
      %2460 = vrot.lane.b32.xlu0 %v885, 86
      %v2461 = vpop.permute.xlu0 %2460
      %2462 = vrot.lane.b32.xlu0 %v886, 86
      %v2463 = vpop.permute.xlu0 %2462
      %2464 = vrot.lane.b32.xlu0 %v887, 86
      %v2465 = vpop.permute.xlu0 %2464
      %2466 = vrot.lane.b32.xlu0 %v888, 86
      %v2467 = vpop.permute.xlu0 %2466
      %v2468 = vsel %vm2455, %v2465, %v2467
      %v2469 = vsel %vm2455, %v2463, %v2465
      %v2470 = vsel %vm2455, %v2461, %v2463
      %v2471 = vsel %vm2455, %v2467, %v2461
      %2472 = vst [vmem:[#allocation2 + $0xc0] sm:$0xff] %v2458
      %2473 = vst [vmem:[#allocation2 + $0xc8] sm:$0xff] %v2457
      %2474 = vst [vmem:[#allocation2 + $0xd0] sm:$0xff] %v2456
      %2475 = vst [vmem:[#allocation2 + $0xd8] sm:$0xff] %v2459
      %2476 = vst [vmem:[#allocation3 + $0xc0] sm:$0xff] %v2470
      %2477 = vst [vmem:[#allocation3 + $0xc8] sm:$0xff] %v2469
      %2478 = vst [vmem:[#allocation3 + $0xd0] sm:$0xff] %v2468
      %2479 = vst [vmem:[#allocation3 + $0xd8] sm:$0xff] %v2471
      %2480 = vrot.lane.b32.xlu0 %v881, 84
      %v2481 = vpop.permute.xlu0 %2480
      %2482 = vrot.lane.b32.xlu0 %v882, 84
      %v2483 = vpop.permute.xlu0 %2482
      %2484 = vrot.lane.b32.xlu0 %v883, 84
      %v2485 = vpop.permute.xlu0 %2484
      %2486 = vrot.lane.b32.xlu0 %v884, 84
      %v2487 = vpop.permute.xlu0 %2486
      %vm2488 = vcmp.lt.s32.totalorder %v1114, 84
      %v2489 = vsel %vm2488, %v2485, %v2487
      %v2490 = vsel %vm2488, %v2483, %v2485
      %v2491 = vsel %vm2488, %v2481, %v2483
      %v2492 = vsel %vm2488, %v2487, %v2481
      %2493 = vrot.lane.b32.xlu0 %v885, 84
      %v2494 = vpop.permute.xlu0 %2493
      %2495 = vrot.lane.b32.xlu0 %v886, 84
      %v2496 = vpop.permute.xlu0 %2495
      %2497 = vrot.lane.b32.xlu0 %v887, 84
      %v2498 = vpop.permute.xlu0 %2497
      %2499 = vrot.lane.b32.xlu0 %v888, 84
      %v2500 = vpop.permute.xlu0 %2499
      %v2501 = vsel %vm2488, %v2498, %v2500
      %v2502 = vsel %vm2488, %v2496, %v2498
      %v2503 = vsel %vm2488, %v2494, %v2496
      %v2504 = vsel %vm2488, %v2500, %v2494
      %2505 = vst [vmem:[#allocation2 + $0xe0] sm:$0xff] %v2491
      %2506 = vst [vmem:[#allocation2 + $0xe8] sm:$0xff] %v2490
      %2507 = vst [vmem:[#allocation2 + $0xf0] sm:$0xff] %v2489
      %2508 = vst [vmem:[#allocation2 + $0xf8] sm:$0xff] %v2492
      %2509 = vst [vmem:[#allocation3 + $0xe0] sm:$0xff] %v2503
      %2510 = vst [vmem:[#allocation3 + $0xe8] sm:$0xff] %v2502
      %2511 = vst [vmem:[#allocation3 + $0xf0] sm:$0xff] %v2501
      %2512 = vst [vmem:[#allocation3 + $0xf8] sm:$0xff] %v2504
      %2513 = vrot.lane.b32.xlu0 %v881, 82
      %v2514 = vpop.permute.xlu0 %2513
      %2515 = vrot.lane.b32.xlu0 %v882, 82
      %v2516 = vpop.permute.xlu0 %2515
      %2517 = vrot.lane.b32.xlu0 %v883, 82
      %v2518 = vpop.permute.xlu0 %2517
      %2519 = vrot.lane.b32.xlu0 %v884, 82
      %v2520 = vpop.permute.xlu0 %2519
      %vm2521 = vcmp.lt.s32.totalorder %v1114, 82
      %v2522 = vsel %vm2521, %v2518, %v2520
      %v2523 = vsel %vm2521, %v2516, %v2518
      %v2524 = vsel %vm2521, %v2514, %v2516
      %v2525 = vsel %vm2521, %v2520, %v2514
      %2526 = vrot.lane.b32.xlu0 %v885, 82
      %v2527 = vpop.permute.xlu0 %2526
      %2528 = vrot.lane.b32.xlu0 %v886, 82
      %v2529 = vpop.permute.xlu0 %2528
      %2530 = vrot.lane.b32.xlu0 %v887, 82
      %v2531 = vpop.permute.xlu0 %2530
      %2532 = vrot.lane.b32.xlu0 %v888, 82
      %v2533 = vpop.permute.xlu0 %2532
      %v2534 = vsel %vm2521, %v2531, %v2533
      %v2535 = vsel %vm2521, %v2529, %v2531
      %v2536 = vsel %vm2521, %v2527, %v2529
      %v2537 = vsel %vm2521, %v2533, %v2527
      %2538 = vst [vmem:[#allocation2 + $0x100] sm:$0xff] %v2524
      %2539 = vst [vmem:[#allocation2 + $0x108] sm:$0xff] %v2523
      %2540 = vst [vmem:[#allocation2 + $0x110] sm:$0xff] %v2522
      %2541 = vst [vmem:[#allocation2 + $0x118] sm:$0xff] %v2525
      %2542 = vst [vmem:[#allocation3 + $0x100] sm:$0xff] %v2536
      %2543 = vst [vmem:[#allocation3 + $0x108] sm:$0xff] %v2535
      %2544 = vst [vmem:[#allocation3 + $0x110] sm:$0xff] %v2534
      %2545 = vst [vmem:[#allocation3 + $0x118] sm:$0xff] %v2537
      %v2546 = vld [vmem:[#allocation2] sm:$0xff]
      %v2547 = vld [vmem:[#allocation2 + $0x8] sm:$0xff]
      %v2548 = vld [vmem:[#allocation2 + $0x10] sm:$0xff]
      %v2549 = vld [vmem:[#allocation2 + $0x18] sm:$0xff]
      %v2550 = vld [vmem:[#allocation2 + $0x20] sm:$0xff]
      %v2551 = vld [vmem:[#allocation2 + $0x28] sm:$0xff]
      %v2552 = vld [vmem:[#allocation2 + $0x30] sm:$0xff]
      %v2553 = vld [vmem:[#allocation2 + $0x38] sm:$0xff]
      %v2554 = vld [vmem:[#allocation2 + $0x40] sm:$0xff]
      %v2555 = vld [vmem:[#allocation2 + $0x48] sm:$0xff]
      %v2556 = vld [vmem:[#allocation2 + $0x50] sm:$0xff]
      %v2557 = vld [vmem:[#allocation2 + $0x58] sm:$0xff]
      %v2558 = vld [vmem:[#allocation2 + $0x60] sm:$0xff]
      %v2559 = vld [vmem:[#allocation2 + $0x68] sm:$0xff]
      %v2560 = vld [vmem:[#allocation2 + $0x70] sm:$0xff]
      %v2561 = vld [vmem:[#allocation2 + $0x78] sm:$0xff]
      %v2562 = vld [vmem:[#allocation2 + $0x80] sm:$0xff]
      %v2563 = vld [vmem:[#allocation2 + $0x88] sm:$0xff]
      %v2564 = vld [vmem:[#allocation2 + $0x90] sm:$0xff]
      %v2565 = vld [vmem:[#allocation2 + $0x98] sm:$0xff]
      %v2566 = vld [vmem:[#allocation2 + $0xa0] sm:$0xff]
      %v2567 = vld [vmem:[#allocation2 + $0xa8] sm:$0xff]
      %v2568 = vld [vmem:[#allocation2 + $0xb0] sm:$0xff]
      %v2569 = vld [vmem:[#allocation2 + $0xb8] sm:$0xff]
      %v2570 = vld [vmem:[#allocation2 + $0xc0] sm:$0xff]
      %v2571 = vld [vmem:[#allocation2 + $0xc8] sm:$0xff]
      %v2572 = vld [vmem:[#allocation2 + $0xd0] sm:$0xff]
      %v2573 = vld [vmem:[#allocation2 + $0xd8] sm:$0xff]
      %v2574 = vld [vmem:[#allocation2 + $0xe0] sm:$0xff]
      %v2575 = vld [vmem:[#allocation2 + $0xe8] sm:$0xff]
      %v2576 = vld [vmem:[#allocation2 + $0xf0] sm:$0xff]
      %v2577 = vld [vmem:[#allocation2 + $0xf8] sm:$0xff]
      %v2578 = vld [vmem:[#allocation2 + $0x100] sm:$0xff]
      %v2579 = vld [vmem:[#allocation2 + $0x108] sm:$0xff]
      %v2580 = vld [vmem:[#allocation2 + $0x110] sm:$0xff]
      %v2581 = vld [vmem:[#allocation2 + $0x118] sm:$0xff]
      %v2582 = vpack.c.bf16 %v2550, %v2546
      %v2583 = vpack.c.bf16 %v2551, %v2547
      %v2584 = vpack.c.bf16 %v2552, %v2548
      %v2585 = vpack.c.bf16 %v2553, %v2549
      %v2586 = vpack.c.bf16 %v2558, %v2554
      %v2587 = vpack.c.bf16 %v2559, %v2555
      %v2588 = vpack.c.bf16 %v2560, %v2556
      %v2589 = vpack.c.bf16 %v2561, %v2557
      %v2590 = vpack.c.bf16 %v2566, %v2562
      %v2591 = vpack.c.bf16 %v2567, %v2563
      %v2592 = vpack.c.bf16 %v2568, %v2564
      %v2593 = vpack.c.bf16 %v2569, %v2565
      %v2594 = vpack.c.bf16 %v2574, %v2570
      %v2595 = vpack.c.bf16 %v2575, %v2571
      %v2596 = vpack.c.bf16 %v2576, %v2572
      %v2597 = vpack.c.bf16 %v2577, %v2573
      %v2598 = vpack.c.bf16 %v2578, %v2578
      %v2599 = vpack.c.bf16 %v2579, %v2579
      %v2600 = vpack.c.bf16 %v2580, %v2580
      %v2601 = vpack.c.bf16 %v2581, %v2581
      %v2602 = vld [vmem:[#allocation3] sm:$0xff]
      %v2603 = vld [vmem:[#allocation3 + $0x8] sm:$0xff]
      %v2604 = vld [vmem:[#allocation3 + $0x10] sm:$0xff]
      %v2605 = vld [vmem:[#allocation3 + $0x18] sm:$0xff]
      %v2606 = vld [vmem:[#allocation3 + $0x20] sm:$0xff]
      %v2607 = vld [vmem:[#allocation3 + $0x28] sm:$0xff]
      %v2608 = vld [vmem:[#allocation3 + $0x30] sm:$0xff]
      %v2609 = vld [vmem:[#allocation3 + $0x38] sm:$0xff]
      %v2610 = vld [vmem:[#allocation3 + $0x40] sm:$0xff]
      %v2611 = vld [vmem:[#allocation3 + $0x48] sm:$0xff]
      %v2612 = vld [vmem:[#allocation3 + $0x50] sm:$0xff]
      %v2613 = vld [vmem:[#allocation3 + $0x58] sm:$0xff]
      %v2614 = vld [vmem:[#allocation3 + $0x60] sm:$0xff]
      %v2615 = vld [vmem:[#allocation3 + $0x68] sm:$0xff]
      %v2616 = vld [vmem:[#allocation3 + $0x70] sm:$0xff]
      %v2617 = vld [vmem:[#allocation3 + $0x78] sm:$0xff]
      %v2618 = vld [vmem:[#allocation3 + $0x80] sm:$0xff]
      %v2619 = vld [vmem:[#allocation3 + $0x88] sm:$0xff]
      %v2620 = vld [vmem:[#allocation3 + $0x90] sm:$0xff]
      %v2621 = vld [vmem:[#allocation3 + $0x98] sm:$0xff]
      %v2622 = vld [vmem:[#allocation3 + $0xa0] sm:$0xff]
      %v2623 = vld [vmem:[#allocation3 + $0xa8] sm:$0xff]
      %v2624 = vld [vmem:[#allocation3 + $0xb0] sm:$0xff]
      %v2625 = vld [vmem:[#allocation3 + $0xb8] sm:$0xff]
      %v2626 = vld [vmem:[#allocation3 + $0xc0] sm:$0xff]
      %v2627 = vld [vmem:[#allocation3 + $0xc8] sm:$0xff]
      %v2628 = vld [vmem:[#allocation3 + $0xd0] sm:$0xff]
      %v2629 = vld [vmem:[#allocation3 + $0xd8] sm:$0xff]
      %v2630 = vld [vmem:[#allocation3 + $0xe0] sm:$0xff]
      %v2631 = vld [vmem:[#allocation3 + $0xe8] sm:$0xff]
      %v2632 = vld [vmem:[#allocation3 + $0xf0] sm:$0xff]
      %v2633 = vld [vmem:[#allocation3 + $0xf8] sm:$0xff]
      %v2634 = vld [vmem:[#allocation3 + $0x100] sm:$0xff]
      %v2635 = vld [vmem:[#allocation3 + $0x108] sm:$0xff]
      %v2636 = vld [vmem:[#allocation3 + $0x110] sm:$0xff]
      %v2637 = vld [vmem:[#allocation3 + $0x118] sm:$0xff]
      %v2638 = vpack.c.bf16 %v2606, %v2602
      %v2639 = vpack.c.bf16 %v2607, %v2603
      %v2640 = vpack.c.bf16 %v2608, %v2604
      %v2641 = vpack.c.bf16 %v2609, %v2605
      %v2642 = vpack.c.bf16 %v2614, %v2610
      %v2643 = vpack.c.bf16 %v2615, %v2611
      %v2644 = vpack.c.bf16 %v2616, %v2612
      %v2645 = vpack.c.bf16 %v2617, %v2613
      %v2646 = vpack.c.bf16 %v2622, %v2618
      %v2647 = vpack.c.bf16 %v2623, %v2619
      %v2648 = vpack.c.bf16 %v2624, %v2620
      %v2649 = vpack.c.bf16 %v2625, %v2621
      %v2650 = vpack.c.bf16 %v2630, %v2626
      %v2651 = vpack.c.bf16 %v2631, %v2627
      %v2652 = vpack.c.bf16 %v2632, %v2628
      %v2653 = vpack.c.bf16 %v2633, %v2629
      %v2654 = vpack.c.bf16 %v2634, %v2634
      %v2655 = vpack.c.bf16 %v2635, %v2635
      %v2656 = vpack.c.bf16 %v2636, %v2636
      %v2657 = vpack.c.bf16 %v2637, %v2637
      %v2658 = vld [vmem:[%s11] sm:$0x7]
      %v2659 = vld [vmem:[%s12] sm:$0x7]
      %v2661 = vsel %vm1493, %v2658, 0
      %v2664 = vsel %vm1497, %v2598, 0
      %v2667 = vsel %vm1497, %v2599, 0
      %v2670 = vsel %vm1497, %v2600, 0
      %v2673 = vsel %vm1497, %v2601, 0
      %2675 = vmatprep.subr.bf16.mxu0 %v2583
      %2676 = vmatpush1.bf16.msra.mxu0 %v2582
      %2677 = vmatprep.subr.bf16.mxu0 %v2587
      %2678 = vmatpush1.bf16.msra.mxu0 %v2586
      %2679 = vmatprep.subr.bf16.mxu0 %v2591
      %2680 = vmatpush1.bf16.msra.mxu0 %v2590
      %2681 = vmatprep.subr.bf16.mxu0 %v2595
      %2682 = vmatpush1.bf16.msra.mxu0 %v2594
      %2683 = vmatprep.subr.bf16.mxu0 %v2667
      %2684 = vmatpush1.bf16.msra.mxu0 %v2664
      %2685 = vmatprep.subr.bf16.mxu0 0
      %2686 = vmatpush1.bf16.msra.mxu0 0
      %2687 = vmatprep.subr.bf16.mxu0 0
      %2688 = vmatpush1.bf16.msra.mxu0 0
      %2689 = vmatprep.subr.bf16.mxu0 0
      %2690 = vmatpush1.bf16.msra.mxu0 0
      %2691 = vmatprep.subr.bf16.mxu0 0
      %2692 = vmatpush1.bf16.msra.mxu0 0
      %2693 = vmatprep.subr.bf16.mxu0 0
      %2694 = vmatpush1.bf16.msra.mxu0 0
      %2695 = vmatprep.subr.bf16.mxu0 0
      %2696 = vmatpush1.bf16.msra.mxu0 0
      %2697 = vmatprep.subr.bf16.mxu0 0
      %2698 = vmatpush1.bf16.msra.mxu0 0
      %2699 = vmatprep.subr.bf16.mxu0 0
      %2700 = vmatpush1.bf16.msra.mxu0 0
      %2701 = vmatprep.subr.bf16.mxu0 0
      %2702 = vmatpush1.bf16.msra.mxu0 0
      %2703 = vmatprep.subr.bf16.mxu0 0
      %2704 = vmatpush1.bf16.msra.mxu0 0
      %2705 = vmatprep.subr.bf16.mxu0 0
      %2706 = vmatpush1.bf16.msra.mxu0 0
      %2707 = vmatprep.mubr.bf16.mxu0 0
      %2708 = vmatmul.mubr.bf16.gmra.mrb[0].mxu0 %v2661
      %v2709 = vpop.f32.mrb[0].mxu0
      %v2710 = vadd.f32 0.0, %v2709
      %v2711 = vpop.f32.mrb[0].mxu0
      %v2712 = vadd.f32 0.0, %v2711
      %v2713 = vpop.f32.mrb[0].mxu0
      %v2714 = vpop.f32.mrb[0].mxu0
      %2715 = vdwg.mxu0
      %2716 = vmatprep.subr.bf16.mxu0 %v2585
      %2717 = vmatpush1.bf16.msra.mxu0 %v2584
      %2718 = vmatprep.subr.bf16.mxu0 %v2589
      %2719 = vmatpush1.bf16.msra.mxu0 %v2588
      %2720 = vmatprep.subr.bf16.mxu0 %v2593
      %2721 = vmatpush1.bf16.msra.mxu0 %v2592
      %2722 = vmatprep.subr.bf16.mxu0 %v2597
      %2723 = vmatpush1.bf16.msra.mxu0 %v2596
      %2724 = vmatprep.subr.bf16.mxu0 %v2673
      %2725 = vmatpush1.bf16.msra.mxu0 %v2670
      %2726 = vmatprep.subr.bf16.mxu0 0
      %2727 = vmatpush1.bf16.msra.mxu0 0
      %2728 = vmatprep.subr.bf16.mxu0 0
      %2729 = vmatpush1.bf16.msra.mxu0 0
      %2730 = vmatprep.subr.bf16.mxu0 0
      %2731 = vmatpush1.bf16.msra.mxu0 0
      %2732 = vmatprep.subr.bf16.mxu0 0
      %2733 = vmatpush1.bf16.msra.mxu0 0
      %2734 = vmatprep.subr.bf16.mxu0 0
      %2735 = vmatpush1.bf16.msra.mxu0 0
      %2736 = vmatprep.subr.bf16.mxu0 0
      %2737 = vmatpush1.bf16.msra.mxu0 0
      %2738 = vmatprep.subr.bf16.mxu0 0
      %2739 = vmatpush1.bf16.msra.mxu0 0
      %2740 = vmatprep.subr.bf16.mxu0 0
      %2741 = vmatpush1.bf16.msra.mxu0 0
      %2742 = vmatprep.subr.bf16.mxu0 0
      %2743 = vmatpush1.bf16.msra.mxu0 0
      %2744 = vmatprep.subr.bf16.mxu0 0
      %2745 = vmatpush1.bf16.msra.mxu0 0
      %2746 = vmatprep.subr.bf16.mxu0 0
      %2747 = vmatpush1.bf16.msra.mxu0 0
      %2748 = vmatprep.mubr.bf16.mxu0 0
      %2749 = vmatmul.mubr.bf16.gmra.mrb[0].mxu0 %v2661
      %v2750 = vpop.f32.mrb[0].mxu0
      %v2751 = vadd.f32 0.0, %v2750
      %v2752 = vpop.f32.mrb[0].mxu0
      %v2753 = vadd.f32 0.0, %v2752
      %v2754 = vpop.f32.mrb[0].mxu0
      %v2755 = vpop.f32.mrb[0].mxu0
      %2756 = vdwg.mxu0
      %v2758 = vsel %vm1493, %v2659, 0
      %v2761 = vsel %vm1497, %v2654, 0
      %v2764 = vsel %vm1497, %v2655, 0
      %v2767 = vsel %vm1497, %v2656, 0
      %v2770 = vsel %vm1497, %v2657, 0
      %2772 = vmatprep.subr.bf16.mxu0 %v2639
      %2773 = vmatpush1.bf16.msra.mxu0 %v2638
      %2774 = vmatprep.subr.bf16.mxu0 %v2643
      %2775 = vmatpush1.bf16.msra.mxu0 %v2642
      %2776 = vmatprep.subr.bf16.mxu0 %v2647
      %2777 = vmatpush1.bf16.msra.mxu0 %v2646
      %2778 = vmatprep.subr.bf16.mxu0 %v2651
      %2779 = vmatpush1.bf16.msra.mxu0 %v2650
      %2780 = vmatprep.subr.bf16.mxu0 %v2764
      %2781 = vmatpush1.bf16.msra.mxu0 %v2761
      %2782 = vmatprep.subr.bf16.mxu0 0
      %2783 = vmatpush1.bf16.msra.mxu0 0
      %2784 = vmatprep.subr.bf16.mxu0 0
      %2785 = vmatpush1.bf16.msra.mxu0 0
      %2786 = vmatprep.subr.bf16.mxu0 0
      %2787 = vmatpush1.bf16.msra.mxu0 0
      %2788 = vmatprep.subr.bf16.mxu0 0
      %2789 = vmatpush1.bf16.msra.mxu0 0
      %2790 = vmatprep.subr.bf16.mxu0 0
      %2791 = vmatpush1.bf16.msra.mxu0 0
      %2792 = vmatprep.subr.bf16.mxu0 0
      %2793 = vmatpush1.bf16.msra.mxu0 0
      %2794 = vmatprep.subr.bf16.mxu0 0
      %2795 = vmatpush1.bf16.msra.mxu0 0
      %2796 = vmatprep.subr.bf16.mxu0 0
      %2797 = vmatpush1.bf16.msra.mxu0 0
      %2798 = vmatprep.subr.bf16.mxu0 0
      %2799 = vmatpush1.bf16.msra.mxu0 0
      %2800 = vmatprep.subr.bf16.mxu0 0
      %2801 = vmatpush1.bf16.msra.mxu0 0
      %2802 = vmatprep.subr.bf16.mxu0 0
      %2803 = vmatpush1.bf16.msra.mxu0 0
      %2804 = vmatprep.mubr.bf16.mxu0 0
      %2805 = vmatmul.mubr.bf16.gmra.mrb[0].mxu0 %v2758
      %v2806 = vpop.f32.mrb[0].mxu0
      %v2807 = vadd.f32 0.0, %v2806
      %v2808 = vpop.f32.mrb[0].mxu0
      %v2809 = vadd.f32 0.0, %v2808
      %v2810 = vpop.f32.mrb[0].mxu0
      %v2811 = vpop.f32.mrb[0].mxu0
      %2812 = vdwg.mxu0
      %2813 = vmatprep.subr.bf16.mxu0 %v2641
      %2814 = vmatpush1.bf16.msra.mxu0 %v2640
      %2815 = vmatprep.subr.bf16.mxu0 %v2645
      %2816 = vmatpush1.bf16.msra.mxu0 %v2644
      %2817 = vmatprep.subr.bf16.mxu0 %v2649
      %2818 = vmatpush1.bf16.msra.mxu0 %v2648
      %2819 = vmatprep.subr.bf16.mxu0 %v2653
      %2820 = vmatpush1.bf16.msra.mxu0 %v2652
      %2821 = vmatprep.subr.bf16.mxu0 %v2770
      %2822 = vmatpush1.bf16.msra.mxu0 %v2767
      %2823 = vmatprep.subr.bf16.mxu0 0
      %2824 = vmatpush1.bf16.msra.mxu0 0
      %2825 = vmatprep.subr.bf16.mxu0 0
      %2826 = vmatpush1.bf16.msra.mxu0 0
      %2827 = vmatprep.subr.bf16.mxu0 0
      %2828 = vmatpush1.bf16.msra.mxu0 0
      %2829 = vmatprep.subr.bf16.mxu0 0
      %2830 = vmatpush1.bf16.msra.mxu0 0
      %2831 = vmatprep.subr.bf16.mxu0 0
      %2832 = vmatpush1.bf16.msra.mxu0 0
      %2833 = vmatprep.subr.bf16.mxu0 0
      %2834 = vmatpush1.bf16.msra.mxu0 0
      %2835 = vmatprep.subr.bf16.mxu0 0
      %2836 = vmatpush1.bf16.msra.mxu0 0
      %2837 = vmatprep.subr.bf16.mxu0 0
      %2838 = vmatpush1.bf16.msra.mxu0 0
      %2839 = vmatprep.subr.bf16.mxu0 0
      %2840 = vmatpush1.bf16.msra.mxu0 0
      %2841 = vmatprep.subr.bf16.mxu0 0
      %2842 = vmatpush1.bf16.msra.mxu0 0
      %2843 = vmatprep.subr.bf16.mxu0 0
      %2844 = vmatpush1.bf16.msra.mxu0 0
      %2845 = vmatprep.mubr.bf16.mxu0 0
      %2846 = vmatmul.mubr.bf16.gmra.mrb[0].mxu0 %v2758
      %v2847 = vpop.f32.mrb[0].mxu0
      %v2848 = vadd.f32 0.0, %v2847
      %v2849 = vpop.f32.mrb[0].mxu0
      %v2850 = vadd.f32 0.0, %v2849
      %v2851 = vpop.f32.mrb[0].mxu0
      %v2852 = vpop.f32.mrb[0].mxu0
      %2853 = vdwg.mxu0
      %2854 = vmatprep.subr.bf16.mxu0 %v2583
      %2855 = vmatpush1.bf16.msra.mxu0 %v2582
      %2856 = vmatprep.subr.bf16.mxu0 %v2587
      %2857 = vmatpush1.bf16.msra.mxu0 %v2586
      %2858 = vmatprep.subr.bf16.mxu0 %v2591
      %2859 = vmatpush1.bf16.msra.mxu0 %v2590
      %2860 = vmatprep.subr.bf16.mxu0 %v2595
      %2861 = vmatpush1.bf16.msra.mxu0 %v2594
      %2862 = vmatprep.subr.bf16.mxu0 %v2667
      %2863 = vmatpush1.bf16.msra.mxu0 %v2664
      %2864 = vmatprep.subr.bf16.mxu0 0
      %2865 = vmatpush1.bf16.msra.mxu0 0
      %2866 = vmatprep.subr.bf16.mxu0 0
      %2867 = vmatpush1.bf16.msra.mxu0 0
      %2868 = vmatprep.subr.bf16.mxu0 0
      %2869 = vmatpush1.bf16.msra.mxu0 0
      %2870 = vmatprep.subr.bf16.mxu0 0
      %2871 = vmatpush1.bf16.msra.mxu0 0
      %2872 = vmatprep.subr.bf16.mxu0 0
      %2873 = vmatpush1.bf16.msra.mxu0 0
      %2874 = vmatprep.subr.bf16.mxu0 0
      %2875 = vmatpush1.bf16.msra.mxu0 0
      %2876 = vmatprep.subr.bf16.mxu0 0
      %2877 = vmatpush1.bf16.msra.mxu0 0
      %2878 = vmatprep.subr.bf16.mxu0 0
      %2879 = vmatpush1.bf16.msra.mxu0 0
      %2880 = vmatprep.subr.bf16.mxu0 0
      %2881 = vmatpush1.bf16.msra.mxu0 0
      %2882 = vmatprep.subr.bf16.mxu0 0
      %2883 = vmatpush1.bf16.msra.mxu0 0
      %2884 = vmatprep.subr.bf16.mxu0 0
      %2885 = vmatpush1.bf16.msra.mxu0 0
      %2886 = vmatprep.mubr.bf16.mxu0 0
      %2887 = vmatmul.mubr.bf16.gmra.mrb[0].mxu0 %v2758
      %v2888 = vpop.f32.mrb[0].mxu0
      %v2889 = vadd.f32 0.0, %v2888
      %v2890 = vpop.f32.mrb[0].mxu0
      %v2891 = vadd.f32 0.0, %v2890
      %v2892 = vpop.f32.mrb[0].mxu0
      %v2893 = vpop.f32.mrb[0].mxu0
      %2894 = vdwg.mxu0
      %2895 = vmatprep.subr.bf16.mxu0 %v2585
      %2896 = vmatpush1.bf16.msra.mxu0 %v2584
      %2897 = vmatprep.subr.bf16.mxu0 %v2589
      %2898 = vmatpush1.bf16.msra.mxu0 %v2588
      %2899 = vmatprep.subr.bf16.mxu0 %v2593
      %2900 = vmatpush1.bf16.msra.mxu0 %v2592
      %2901 = vmatprep.subr.bf16.mxu0 %v2597
      %2902 = vmatpush1.bf16.msra.mxu0 %v2596
      %2903 = vmatprep.subr.bf16.mxu0 %v2673
      %2904 = vmatpush1.bf16.msra.mxu0 %v2670
      %2905 = vmatprep.subr.bf16.mxu0 0
      %2906 = vmatpush1.bf16.msra.mxu0 0
      %2907 = vmatprep.subr.bf16.mxu0 0
      %2908 = vmatpush1.bf16.msra.mxu0 0
      %2909 = vmatprep.subr.bf16.mxu0 0
      %2910 = vmatpush1.bf16.msra.mxu0 0
      %2911 = vmatprep.subr.bf16.mxu0 0
      %2912 = vmatpush1.bf16.msra.mxu0 0
      %2913 = vmatprep.subr.bf16.mxu0 0
      %2914 = vmatpush1.bf16.msra.mxu0 0
      %2915 = vmatprep.subr.bf16.mxu0 0
      %2916 = vmatpush1.bf16.msra.mxu0 0
      %2917 = vmatprep.subr.bf16.mxu0 0
      %2918 = vmatpush1.bf16.msra.mxu0 0
      %2919 = vmatprep.subr.bf16.mxu0 0
      %2920 = vmatpush1.bf16.msra.mxu0 0
      %2921 = vmatprep.subr.bf16.mxu0 0
      %2922 = vmatpush1.bf16.msra.mxu0 0
      %2923 = vmatprep.subr.bf16.mxu0 0
      %2924 = vmatpush1.bf16.msra.mxu0 0
      %2925 = vmatprep.subr.bf16.mxu0 0
      %2926 = vmatpush1.bf16.msra.mxu0 0
      %2927 = vmatprep.mubr.bf16.mxu0 0
      %2928 = vmatmul.mubr.bf16.gmra.mrb[0].mxu0 %v2758
      %v2929 = vpop.f32.mrb[0].mxu0
      %v2930 = vadd.f32 0.0, %v2929
      %v2931 = vpop.f32.mrb[0].mxu0
      %v2932 = vadd.f32 0.0, %v2931
      %v2933 = vpop.f32.mrb[0].mxu0
      %v2934 = vpop.f32.mrb[0].mxu0
      %2935 = vdwg.mxu0
      %v2936 = vsub.f32 %v2710, %v2807
      %v2937 = vsub.f32 %v2712, %v2809
      %v2938 = vsub.f32 %v2751, %v2848
      %v2939 = vsub.f32 %v2753, %v2850
      %v2940 = vld [vmem:[%s13] sm:$0x3f]
      %2942 = vset.pattern.permute.xlu0 0
      %2943 = vperm.xlu0 %2942, %v2940
      %v2944 = vpop.permute.xlu0 %2943
      %v2946 = vadd.f32 %v2936, %v2944
      %v2947 = vadd.f32 %v2937, %v2944
      %v2948 = vadd.f32 %v2938, %v2944
      %v2949 = vadd.f32 %v2939, %v2944
      %2950 = vmatprep.subr.bf16.mxu0 %v2639
      %2951 = vmatpush1.bf16.msra.mxu0 %v2638
      %2952 = vmatprep.subr.bf16.mxu0 %v2643
      %2953 = vmatpush1.bf16.msra.mxu0 %v2642
      %2954 = vmatprep.subr.bf16.mxu0 %v2647
      %2955 = vmatpush1.bf16.msra.mxu0 %v2646
      %2956 = vmatprep.subr.bf16.mxu0 %v2651
      %2957 = vmatpush1.bf16.msra.mxu0 %v2650
      %2958 = vmatprep.subr.bf16.mxu0 %v2764
      %2959 = vmatpush1.bf16.msra.mxu0 %v2761
      %2960 = vmatprep.subr.bf16.mxu0 0
      %2961 = vmatpush1.bf16.msra.mxu0 0
      %2962 = vmatprep.subr.bf16.mxu0 0
      %2963 = vmatpush1.bf16.msra.mxu0 0
      %2964 = vmatprep.subr.bf16.mxu0 0
      %2965 = vmatpush1.bf16.msra.mxu0 0
      %2966 = vmatprep.subr.bf16.mxu0 0
      %2967 = vmatpush1.bf16.msra.mxu0 0
      %2968 = vmatprep.subr.bf16.mxu0 0
      %2969 = vmatpush1.bf16.msra.mxu0 0
      %2970 = vmatprep.subr.bf16.mxu0 0
      %2971 = vmatpush1.bf16.msra.mxu0 0
      %2972 = vmatprep.subr.bf16.mxu0 0
      %2973 = vmatpush1.bf16.msra.mxu0 0
      %2974 = vmatprep.subr.bf16.mxu0 0
      %2975 = vmatpush1.bf16.msra.mxu0 0
      %2976 = vmatprep.subr.bf16.mxu0 0
      %2977 = vmatpush1.bf16.msra.mxu0 0
      %2978 = vmatprep.subr.bf16.mxu0 0
      %2979 = vmatpush1.bf16.msra.mxu0 0
      %2980 = vmatprep.subr.bf16.mxu0 0
      %2981 = vmatpush1.bf16.msra.mxu0 0
      %2982 = vmatprep.mubr.bf16.mxu0 0
      %2983 = vmatmul.mubr.bf16.gmra.mrb[0].mxu0 %v2661
      %v2984 = vpop.f32.mrb[0].mxu0
      %v2985 = vadd.f32 %v2889, %v2984
      %v2986 = vpop.f32.mrb[0].mxu0
      %v2987 = vadd.f32 %v2891, %v2986
      %v2988 = vpop.f32.mrb[0].mxu0
      %v2989 = vpop.f32.mrb[0].mxu0
      %2990 = vdwg.mxu0
      %2991 = vmatprep.subr.bf16.mxu0 %v2641
      %2992 = vmatpush1.bf16.msra.mxu0 %v2640
      %2993 = vmatprep.subr.bf16.mxu0 %v2645
      %2994 = vmatpush1.bf16.msra.mxu0 %v2644
      %2995 = vmatprep.subr.bf16.mxu0 %v2649
      %2996 = vmatpush1.bf16.msra.mxu0 %v2648
      %2997 = vmatprep.subr.bf16.mxu0 %v2653
      %2998 = vmatpush1.bf16.msra.mxu0 %v2652
      %2999 = vmatprep.subr.bf16.mxu0 %v2770
      %3000 = vmatpush1.bf16.msra.mxu0 %v2767
      %3001 = vmatprep.subr.bf16.mxu0 0
      %3002 = vmatpush1.bf16.msra.mxu0 0
      %3003 = vmatprep.subr.bf16.mxu0 0
      %3004 = vmatpush1.bf16.msra.mxu0 0
      %3005 = vmatprep.subr.bf16.mxu0 0
      %3006 = vmatpush1.bf16.msra.mxu0 0
      %3007 = vmatprep.subr.bf16.mxu0 0
      %3008 = vmatpush1.bf16.msra.mxu0 0
      %3009 = vmatprep.subr.bf16.mxu0 0
      %3010 = vmatpush1.bf16.msra.mxu0 0
      %3011 = vmatprep.subr.bf16.mxu0 0
      %3012 = vmatpush1.bf16.msra.mxu0 0
      %3013 = vmatprep.subr.bf16.mxu0 0
      %3014 = vmatpush1.bf16.msra.mxu0 0
      %3015 = vmatprep.subr.bf16.mxu0 0
      %3016 = vmatpush1.bf16.msra.mxu0 0
      %3017 = vmatprep.subr.bf16.mxu0 0
      %3018 = vmatpush1.bf16.msra.mxu0 0
      %3019 = vmatprep.subr.bf16.mxu0 0
      %3020 = vmatpush1.bf16.msra.mxu0 0
      %3021 = vmatprep.subr.bf16.mxu0 0
      %3022 = vmatpush1.bf16.msra.mxu0 0
      %3023 = vmatprep.mubr.bf16.mxu0 0
      %3024 = vmatmul.mubr.bf16.gmra.mrb[0].mxu0 %v2661
      %v3025 = vpop.f32.mrb[0].mxu0
      %v3026 = vadd.f32 %v2930, %v3025
      %v3027 = vpop.f32.mrb[0].mxu0
      %v3028 = vadd.f32 %v2932, %v3027
      %v3029 = vpop.f32.mrb[0].mxu0
      %v3030 = vpop.f32.mrb[0].mxu0
      %3031 = vdwg.mxu0
      %v3032 = vld [vmem:[%s14] sm:$0x3f]
      %3034 = vset.pattern.permute.xlu0 0
      %3035 = vperm.xlu0 %3034, %v3032
      %v3036 = vpop.permute.xlu0 %3035
      %v3038 = vadd.f32 %v2985, %v3036
      %v3039 = vadd.f32 %v2987, %v3036
      %v3040 = vadd.f32 %v3026, %v3036
      %v3041 = vadd.f32 %v3028, %v3036
      %v3042 = vmul.f32 %v2946, %v1881
      %v3043 = vmul.f32 %v2947, %v1885
      %v3044 = vmul.f32 %v2948, %v1889
      %v3045 = vmul.f32 %v2949, %v1893
      %v3046 = vmul.f32 %v3038, %v1881
      %v3047 = vmul.f32 %v3039, %v1885
      %v3048 = vmul.f32 %v3040, %v1889
      %v3049 = vmul.f32 %v3041, %v1893
      %3050 = vrot.lane.b32.xlu0 %v2266, 23
      %v3051 = vpop.permute.xlu0 %3050
      %3052 = vrot.lane.b32.xlu0 %v2267, 23
      %v3053 = vpop.permute.xlu0 %3052
      %3054 = vrot.lane.b32.xlu0 %v2268, 23
      %v3055 = vpop.permute.xlu0 %3054
      %3056 = vrot.lane.b32.xlu0 %v2269, 23
      %v3057 = vpop.permute.xlu0 %3056
      %v3058 = vsel %vm1115, %v3055, %v3057
      %v3059 = vsel %vm1115, %v3053, %v3055
      %v3060 = vsel %vm1115, %v3051, %v3053
      %v3061 = vsel %vm1115, %v3057, %v3051
      %3062 = vrot.lane.b32.xlu0 %v2270, 23
      %v3063 = vpop.permute.xlu0 %3062
      %3064 = vrot.lane.b32.xlu0 %v2271, 23
      %v3065 = vpop.permute.xlu0 %3064
      %3066 = vrot.lane.b32.xlu0 %v2272, 23
      %v3067 = vpop.permute.xlu0 %3066
      %3068 = vrot.lane.b32.xlu0 %v2273, 23
      %v3069 = vpop.permute.xlu0 %3068
      %v3070 = vsel %vm1115, %v3067, %v3069
      %v3071 = vsel %vm1115, %v3065, %v3067
      %v3072 = vsel %vm1115, %v3063, %v3065
      %v3073 = vsel %vm1115, %v3069, %v3063
      %3074 = vst [vmem:[#allocation2] sm:$0x3f] %v3061
      %3075 = vst [vmem:[#allocation2 + $0x8] sm:$0x3f] %v3060
      %3076 = vst [vmem:[#allocation2 + $0x10] sm:$0x3f] %v3059
      %3077 = vst [vmem:[#allocation2 + $0x18] sm:$0x3f] %v3058
      %3078 = vst [vmem:[#allocation3] sm:$0x3f] %v3073
      %3079 = vst [vmem:[#allocation3 + $0x8] sm:$0x3f] %v3072
      %3080 = vst [vmem:[#allocation3 + $0x10] sm:$0x3f] %v3071
      %3081 = vst [vmem:[#allocation3 + $0x18] sm:$0x3f] %v3070
      %3082 = vrot.lane.b32.xlu0 %v3042, 23
      %v3083 = vpop.permute.xlu0 %3082
      %3084 = vrot.lane.b32.xlu0 %v3043, 23
      %v3085 = vpop.permute.xlu0 %3084
      %3086 = vrot.lane.b32.xlu0 %v3044, 23
      %v3087 = vpop.permute.xlu0 %3086
      %3088 = vrot.lane.b32.xlu0 %v3045, 23
      %v3089 = vpop.permute.xlu0 %3088
      %v3090 = vsel %vm1115, %v3087, %v3089
      %v3091 = vsel %vm1115, %v3085, %v3087
      %v3092 = vsel %vm1115, %v3083, %v3085
      %v3093 = vsel %vm1115, %v3089, %v3083
      %3094 = vrot.lane.b32.xlu0 %v3046, 23
      %v3095 = vpop.permute.xlu0 %3094
      %3096 = vrot.lane.b32.xlu0 %v3047, 23
      %v3097 = vpop.permute.xlu0 %3096
      %3098 = vrot.lane.b32.xlu0 %v3048, 23
      %v3099 = vpop.permute.xlu0 %3098
      %3100 = vrot.lane.b32.xlu0 %v3049, 23
      %v3101 = vpop.permute.xlu0 %3100
      %v3102 = vsel %vm1115, %v3099, %v3101
      %v3103 = vsel %vm1115, %v3097, %v3099
      %v3104 = vsel %vm1115, %v3095, %v3097
      %v3105 = vsel %vm1115, %v3101, %v3095
      %3106 = vst [vmem:[#allocation2 + $0x20] sm:$0x3f] %v3093
      %3107 = vst [vmem:[#allocation2 + $0x28] sm:$0x3f] %v3092
      %3108 = vst [vmem:[#allocation2 + $0x30] sm:$0x3f] %v3091
      %3109 = vst [vmem:[#allocation2 + $0x38] sm:$0x3f] %v3090
      %3110 = vst [vmem:[#allocation3 + $0x20] sm:$0x3f] %v3105
      %3111 = vst [vmem:[#allocation3 + $0x28] sm:$0x3f] %v3104
      %3112 = vst [vmem:[#allocation3 + $0x30] sm:$0x3f] %v3103
      %3113 = vst [vmem:[#allocation3 + $0x38] sm:$0x3f] %v3102
      %3114 = vrot.lane.b32.xlu0 %v2266, 22
      %v3115 = vpop.permute.xlu0 %3114
      %3116 = vrot.lane.b32.xlu0 %v2267, 22
      %v3117 = vpop.permute.xlu0 %3116
      %3118 = vrot.lane.b32.xlu0 %v2268, 22
      %v3119 = vpop.permute.xlu0 %3118
      %3120 = vrot.lane.b32.xlu0 %v2269, 22
      %v3121 = vpop.permute.xlu0 %3120
      %v3122 = vsel %vm1148, %v3119, %v3121
      %v3123 = vsel %vm1148, %v3117, %v3119
      %v3124 = vsel %vm1148, %v3115, %v3117
      %v3125 = vsel %vm1148, %v3121, %v3115
      %3126 = vrot.lane.b32.xlu0 %v2270, 22
      %v3127 = vpop.permute.xlu0 %3126
      %3128 = vrot.lane.b32.xlu0 %v2271, 22
      %v3129 = vpop.permute.xlu0 %3128
      %3130 = vrot.lane.b32.xlu0 %v2272, 22
      %v3131 = vpop.permute.xlu0 %3130
      %3132 = vrot.lane.b32.xlu0 %v2273, 22
      %v3133 = vpop.permute.xlu0 %3132
      %v3134 = vsel %vm1148, %v3131, %v3133
      %v3135 = vsel %vm1148, %v3129, %v3131
      %v3136 = vsel %vm1148, %v3127, %v3129
      %v3137 = vsel %vm1148, %v3133, %v3127
      %3138 = vst [vmem:[#allocation2 + $0x40] sm:$0x3f] %v3125
      %3139 = vst [vmem:[#allocation2 + $0x48] sm:$0x3f] %v3124
      %3140 = vst [vmem:[#allocation2 + $0x50] sm:$0x3f] %v3123
      %3141 = vst [vmem:[#allocation2 + $0x58] sm:$0x3f] %v3122
      %3142 = vst [vmem:[#allocation3 + $0x40] sm:$0x3f] %v3137
      %3143 = vst [vmem:[#allocation3 + $0x48] sm:$0x3f] %v3136
      %3144 = vst [vmem:[#allocation3 + $0x50] sm:$0x3f] %v3135
      %3145 = vst [vmem:[#allocation3 + $0x58] sm:$0x3f] %v3134
      %3146 = vrot.lane.b32.xlu0 %v3042, 22
      %v3147 = vpop.permute.xlu0 %3146
      %3148 = vrot.lane.b32.xlu0 %v3043, 22
      %v3149 = vpop.permute.xlu0 %3148
      %3150 = vrot.lane.b32.xlu0 %v3044, 22
      %v3151 = vpop.permute.xlu0 %3150
      %3152 = vrot.lane.b32.xlu0 %v3045, 22
      %v3153 = vpop.permute.xlu0 %3152
      %v3154 = vsel %vm1148, %v3151, %v3153
      %v3155 = vsel %vm1148, %v3149, %v3151
      %v3156 = vsel %vm1148, %v3147, %v3149
      %v3157 = vsel %vm1148, %v3153, %v3147
      %3158 = vrot.lane.b32.xlu0 %v3046, 22
      %v3159 = vpop.permute.xlu0 %3158
      %3160 = vrot.lane.b32.xlu0 %v3047, 22
      %v3161 = vpop.permute.xlu0 %3160
      %3162 = vrot.lane.b32.xlu0 %v3048, 22
      %v3163 = vpop.permute.xlu0 %3162
      %3164 = vrot.lane.b32.xlu0 %v3049, 22
      %v3165 = vpop.permute.xlu0 %3164
      %v3166 = vsel %vm1148, %v3163, %v3165
      %v3167 = vsel %vm1148, %v3161, %v3163
      %v3168 = vsel %vm1148, %v3159, %v3161
      %v3169 = vsel %vm1148, %v3165, %v3159
      %3170 = vst [vmem:[#allocation2 + $0x60] sm:$0x3f] %v3157
      %3171 = vst [vmem:[#allocation2 + $0x68] sm:$0x3f] %v3156
      %3172 = vst [vmem:[#allocation2 + $0x70] sm:$0x3f] %v3155
      %3173 = vst [vmem:[#allocation2 + $0x78] sm:$0x3f] %v3154
      %3174 = vst [vmem:[#allocation3 + $0x60] sm:$0x3f] %v3169
      %3175 = vst [vmem:[#allocation3 + $0x68] sm:$0x3f] %v3168
      %3176 = vst [vmem:[#allocation3 + $0x70] sm:$0x3f] %v3167
      %3177 = vst [vmem:[#allocation3 + $0x78] sm:$0x3f] %v3166
      %3178 = vrot.lane.b32.xlu0 %v2266, 21
      %v3179 = vpop.permute.xlu0 %3178
      %3180 = vrot.lane.b32.xlu0 %v2267, 21
      %v3181 = vpop.permute.xlu0 %3180
      %3182 = vrot.lane.b32.xlu0 %v2268, 21
      %v3183 = vpop.permute.xlu0 %3182
      %3184 = vrot.lane.b32.xlu0 %v2269, 21
      %v3185 = vpop.permute.xlu0 %3184
      %v3186 = vsel %vm1181, %v3183, %v3185
      %v3187 = vsel %vm1181, %v3181, %v3183
      %v3188 = vsel %vm1181, %v3179, %v3181
      %v3189 = vsel %vm1181, %v3185, %v3179
      %3190 = vrot.lane.b32.xlu0 %v2270, 21
      %v3191 = vpop.permute.xlu0 %3190
      %3192 = vrot.lane.b32.xlu0 %v2271, 21
      %v3193 = vpop.permute.xlu0 %3192
      %3194 = vrot.lane.b32.xlu0 %v2272, 21
      %v3195 = vpop.permute.xlu0 %3194
      %3196 = vrot.lane.b32.xlu0 %v2273, 21
      %v3197 = vpop.permute.xlu0 %3196
      %v3198 = vsel %vm1181, %v3195, %v3197
      %v3199 = vsel %vm1181, %v3193, %v3195
      %v3200 = vsel %vm1181, %v3191, %v3193
      %v3201 = vsel %vm1181, %v3197, %v3191
      %3202 = vst [vmem:[#allocation2 + $0x80] sm:$0x3f] %v3189
      %3203 = vst [vmem:[#allocation2 + $0x88] sm:$0x3f] %v3188
      %3204 = vst [vmem:[#allocation2 + $0x90] sm:$0x3f] %v3187
      %3205 = vst [vmem:[#allocation2 + $0x98] sm:$0x3f] %v3186
      %3206 = vst [vmem:[#allocation3 + $0x80] sm:$0x3f] %v3201
      %3207 = vst [vmem:[#allocation3 + $0x88] sm:$0x3f] %v3200
      %3208 = vst [vmem:[#allocation3 + $0x90] sm:$0x3f] %v3199
      %3209 = vst [vmem:[#allocation3 + $0x98] sm:$0x3f] %v3198
      %3210 = vrot.lane.b32.xlu0 %v3042, 21
      %v3211 = vpop.permute.xlu0 %3210
      %3212 = vrot.lane.b32.xlu0 %v3043, 21
      %v3213 = vpop.permute.xlu0 %3212
      %3214 = vrot.lane.b32.xlu0 %v3044, 21
      %v3215 = vpop.permute.xlu0 %3214
      %3216 = vrot.lane.b32.xlu0 %v3045, 21
      %v3217 = vpop.permute.xlu0 %3216
      %v3218 = vsel %vm1181, %v3215, %v3217
      %v3219 = vsel %vm1181, %v3213, %v3215
      %v3220 = vsel %vm1181, %v3211, %v3213
      %v3221 = vsel %vm1181, %v3217, %v3211
      %3222 = vrot.lane.b32.xlu0 %v3046, 21
      %v3223 = vpop.permute.xlu0 %3222
      %3224 = vrot.lane.b32.xlu0 %v3047, 21
      %v3225 = vpop.permute.xlu0 %3224
      %3226 = vrot.lane.b32.xlu0 %v3048, 21
      %v3227 = vpop.permute.xlu0 %3226
      %3228 = vrot.lane.b32.xlu0 %v3049, 21
      %v3229 = vpop.permute.xlu0 %3228
      %v3230 = vsel %vm1181, %v3227, %v3229
      %v3231 = vsel %vm1181, %v3225, %v3227
      %v3232 = vsel %vm1181, %v3223, %v3225
      %v3233 = vsel %vm1181, %v3229, %v3223
      %3234 = vst [vmem:[#allocation2 + $0xa0] sm:$0x3f] %v3221
      %3235 = vst [vmem:[#allocation2 + $0xa8] sm:$0x3f] %v3220
      %3236 = vst [vmem:[#allocation2 + $0xb0] sm:$0x3f] %v3219
      %3237 = vst [vmem:[#allocation2 + $0xb8] sm:$0x3f] %v3218
      %3238 = vst [vmem:[#allocation3 + $0xa0] sm:$0x3f] %v3233
      %3239 = vst [vmem:[#allocation3 + $0xa8] sm:$0x3f] %v3232
      %3240 = vst [vmem:[#allocation3 + $0xb0] sm:$0x3f] %v3231
      %3241 = vst [vmem:[#allocation3 + $0xb8] sm:$0x3f] %v3230
      %3242 = vrot.lane.b32.xlu0 %v2266, 1
      %v3243 = vpop.permute.xlu0 %3242
      %3244 = vrot.lane.b32.xlu0 %v2267, 1
      %v3245 = vpop.permute.xlu0 %3244
      %3246 = vrot.lane.b32.xlu0 %v2268, 1
      %v3247 = vpop.permute.xlu0 %3246
      %3248 = vrot.lane.b32.xlu0 %v2269, 1
      %v3249 = vpop.permute.xlu0 %3248
      %v3250 = vsel %vm1214, %v3247, %v3249
      %v3251 = vsel %vm1214, %v3245, %v3247
      %v3252 = vsel %vm1214, %v3243, %v3245
      %v3253 = vsel %vm1214, %v3249, %v3243
      %3254 = vrot.lane.b32.xlu0 %v2270, 1
      %v3255 = vpop.permute.xlu0 %3254
      %3256 = vrot.lane.b32.xlu0 %v2271, 1
      %v3257 = vpop.permute.xlu0 %3256
      %3258 = vrot.lane.b32.xlu0 %v2272, 1
      %v3259 = vpop.permute.xlu0 %3258
      %3260 = vrot.lane.b32.xlu0 %v2273, 1
      %v3261 = vpop.permute.xlu0 %3260
      %v3262 = vsel %vm1214, %v3259, %v3261
      %v3263 = vsel %vm1214, %v3257, %v3259
      %v3264 = vsel %vm1214, %v3255, %v3257
      %v3265 = vsel %vm1214, %v3261, %v3255
      %3266 = vst [vmem:[#allocation2 + $0xc0] sm:$0x3f] %v3253
      %3267 = vst [vmem:[#allocation2 + $0xc8] sm:$0x3f] %v3252
      %3268 = vst [vmem:[#allocation2 + $0xd0] sm:$0x3f] %v3251
      %3269 = vst [vmem:[#allocation2 + $0xd8] sm:$0x3f] %v3250
      %3270 = vst [vmem:[#allocation3 + $0xc0] sm:$0x3f] %v3265
      %3271 = vst [vmem:[#allocation3 + $0xc8] sm:$0x3f] %v3264
      %3272 = vst [vmem:[#allocation3 + $0xd0] sm:$0x3f] %v3263
      %3273 = vst [vmem:[#allocation3 + $0xd8] sm:$0x3f] %v3262
      %3274 = vrot.lane.b32.xlu0 %v3042, 1
      %v3275 = vpop.permute.xlu0 %3274
      %3276 = vrot.lane.b32.xlu0 %v3043, 1
      %v3277 = vpop.permute.xlu0 %3276
      %3278 = vrot.lane.b32.xlu0 %v3044, 1
      %v3279 = vpop.permute.xlu0 %3278
      %3280 = vrot.lane.b32.xlu0 %v3045, 1
      %v3281 = vpop.permute.xlu0 %3280
      %v3282 = vsel %vm1214, %v3279, %v3281
      %v3283 = vsel %vm1214, %v3277, %v3279
      %v3284 = vsel %vm1214, %v3275, %v3277
      %v3285 = vsel %vm1214, %v3281, %v3275
      %3286 = vrot.lane.b32.xlu0 %v3046, 1
      %v3287 = vpop.permute.xlu0 %3286
      %3288 = vrot.lane.b32.xlu0 %v3047, 1
      %v3289 = vpop.permute.xlu0 %3288
      %3290 = vrot.lane.b32.xlu0 %v3048, 1
      %v3291 = vpop.permute.xlu0 %3290
      %3292 = vrot.lane.b32.xlu0 %v3049, 1
      %v3293 = vpop.permute.xlu0 %3292
      %v3294 = vsel %vm1214, %v3291, %v3293
      %v3295 = vsel %vm1214, %v3289, %v3291
      %v3296 = vsel %vm1214, %v3287, %v3289
      %v3297 = vsel %vm1214, %v3293, %v3287
      %3298 = vst [vmem:[#allocation2 + $0xe0] sm:$0x3f] %v3285
      %3299 = vst [vmem:[#allocation2 + $0xe8] sm:$0x3f] %v3284
      %3300 = vst [vmem:[#allocation2 + $0xf0] sm:$0x3f] %v3283
      %3301 = vst [vmem:[#allocation2 + $0xf8] sm:$0x3f] %v3282
      %3302 = vst [vmem:[#allocation3 + $0xe0] sm:$0x3f] %v3297
      %3303 = vst [vmem:[#allocation3 + $0xe8] sm:$0x3f] %v3296
      %3304 = vst [vmem:[#allocation3 + $0xf0] sm:$0x3f] %v3295
      %3305 = vst [vmem:[#allocation3 + $0xf8] sm:$0x3f] %v3294
      %3306 = vst [vmem:[#allocation2 + $0x100] sm:$0x3f] %v2266
      %3307 = vst [vmem:[#allocation2 + $0x108] sm:$0x3f] %v2267
      %3308 = vst [vmem:[#allocation2 + $0x110] sm:$0x3f] %v2268
      %3309 = vst [vmem:[#allocation2 + $0x118] sm:$0x3f] %v2269
      %3310 = vst [vmem:[#allocation3 + $0x100] sm:$0x3f] %v2270
      %3311 = vst [vmem:[#allocation3 + $0x108] sm:$0x3f] %v2271
      %3312 = vst [vmem:[#allocation3 + $0x110] sm:$0x3f] %v2272
      %3313 = vst [vmem:[#allocation3 + $0x118] sm:$0x3f] %v2273
      %3314 = vst [vmem:[#allocation2 + $0x120] sm:$0x3f] %v3042
      %3315 = vst [vmem:[#allocation2 + $0x128] sm:$0x3f] %v3043
      %3316 = vst [vmem:[#allocation2 + $0x130] sm:$0x3f] %v3044
      %3317 = vst [vmem:[#allocation2 + $0x138] sm:$0x3f] %v3045
      %3318 = vst [vmem:[#allocation3 + $0x120] sm:$0x3f] %v3046
      %3319 = vst [vmem:[#allocation3 + $0x128] sm:$0x3f] %v3047
      %3320 = vst [vmem:[#allocation3 + $0x130] sm:$0x3f] %v3048
      %3321 = vst [vmem:[#allocation3 + $0x138] sm:$0x3f] %v3049
      %3322 = vrot.lane.b32.xlu0 %v2266, 127
      %v3323 = vpop.permute.xlu0 %3322
      %3324 = vrot.lane.b32.xlu0 %v2267, 127
      %v3325 = vpop.permute.xlu0 %3324
      %3326 = vrot.lane.b32.xlu0 %v2268, 127
      %v3327 = vpop.permute.xlu0 %3326
      %3328 = vrot.lane.b32.xlu0 %v2269, 127
      %v3329 = vpop.permute.xlu0 %3328
      %v3330 = vsel %vm1255, %v3327, %v3329
      %v3331 = vsel %vm1255, %v3325, %v3327
      %v3332 = vsel %vm1255, %v3323, %v3325
      %v3333 = vsel %vm1255, %v3329, %v3323
      %3334 = vrot.lane.b32.xlu0 %v2270, 127
      %v3335 = vpop.permute.xlu0 %3334
      %3336 = vrot.lane.b32.xlu0 %v2271, 127
      %v3337 = vpop.permute.xlu0 %3336
      %3338 = vrot.lane.b32.xlu0 %v2272, 127
      %v3339 = vpop.permute.xlu0 %3338
      %3340 = vrot.lane.b32.xlu0 %v2273, 127
      %v3341 = vpop.permute.xlu0 %3340
      %v3342 = vsel %vm1255, %v3339, %v3341
      %v3343 = vsel %vm1255, %v3337, %v3339
      %v3344 = vsel %vm1255, %v3335, %v3337
      %v3345 = vsel %vm1255, %v3341, %v3335
      %3346 = vst [vmem:[#allocation2 + $0x140] sm:$0x3f] %v3332
      %3347 = vst [vmem:[#allocation2 + $0x148] sm:$0x3f] %v3331
      %3348 = vst [vmem:[#allocation2 + $0x150] sm:$0x3f] %v3330
      %3349 = vst [vmem:[#allocation2 + $0x158] sm:$0x3f] %v3333
      %3350 = vst [vmem:[#allocation3 + $0x140] sm:$0x3f] %v3344
      %3351 = vst [vmem:[#allocation3 + $0x148] sm:$0x3f] %v3343
      %3352 = vst [vmem:[#allocation3 + $0x150] sm:$0x3f] %v3342
      %3353 = vst [vmem:[#allocation3 + $0x158] sm:$0x3f] %v3345
      %3354 = vrot.lane.b32.xlu0 %v3042, 127
      %v3355 = vpop.permute.xlu0 %3354
      %3356 = vrot.lane.b32.xlu0 %v3043, 127
      %v3357 = vpop.permute.xlu0 %3356
      %3358 = vrot.lane.b32.xlu0 %v3044, 127
      %v3359 = vpop.permute.xlu0 %3358
      %3360 = vrot.lane.b32.xlu0 %v3045, 127
      %v3361 = vpop.permute.xlu0 %3360
      %v3362 = vsel %vm1255, %v3359, %v3361
      %v3363 = vsel %vm1255, %v3357, %v3359
      %v3364 = vsel %vm1255, %v3355, %v3357
      %v3365 = vsel %vm1255, %v3361, %v3355
      %3366 = vrot.lane.b32.xlu0 %v3046, 127
      %v3367 = vpop.permute.xlu0 %3366
      %3368 = vrot.lane.b32.xlu0 %v3047, 127
      %v3369 = vpop.permute.xlu0 %3368
      %3370 = vrot.lane.b32.xlu0 %v3048, 127
      %v3371 = vpop.permute.xlu0 %3370
      %3372 = vrot.lane.b32.xlu0 %v3049, 127
      %v3373 = vpop.permute.xlu0 %3372
      %v3374 = vsel %vm1255, %v3371, %v3373
      %v3375 = vsel %vm1255, %v3369, %v3371
      %v3376 = vsel %vm1255, %v3367, %v3369
      %v3377 = vsel %vm1255, %v3373, %v3367
      %3378 = vst [vmem:[#allocation2 + $0x160] sm:$0x3f] %v3364
      %3379 = vst [vmem:[#allocation2 + $0x168] sm:$0x3f] %v3363
      %3380 = vst [vmem:[#allocation2 + $0x170] sm:$0x3f] %v3362
      %3381 = vst [vmem:[#allocation2 + $0x178] sm:$0x3f] %v3365
      %3382 = vst [vmem:[#allocation3 + $0x160] sm:$0x3f] %v3376
      %3383 = vst [vmem:[#allocation3 + $0x168] sm:$0x3f] %v3375
      %3384 = vst [vmem:[#allocation3 + $0x170] sm:$0x3f] %v3374
      %3385 = vst [vmem:[#allocation3 + $0x178] sm:$0x3f] %v3377
      %3386 = vrot.lane.b32.xlu0 %v2266, 107
      %v3387 = vpop.permute.xlu0 %3386
      %3388 = vrot.lane.b32.xlu0 %v2267, 107
      %v3389 = vpop.permute.xlu0 %3388
      %3390 = vrot.lane.b32.xlu0 %v2268, 107
      %v3391 = vpop.permute.xlu0 %3390
      %3392 = vrot.lane.b32.xlu0 %v2269, 107
      %v3393 = vpop.permute.xlu0 %3392
      %v3394 = vsel %vm1288, %v3391, %v3393
      %v3395 = vsel %vm1288, %v3389, %v3391
      %v3396 = vsel %vm1288, %v3387, %v3389
      %v3397 = vsel %vm1288, %v3393, %v3387
      %3398 = vrot.lane.b32.xlu0 %v2270, 107
      %v3399 = vpop.permute.xlu0 %3398
      %3400 = vrot.lane.b32.xlu0 %v2271, 107
      %v3401 = vpop.permute.xlu0 %3400
      %3402 = vrot.lane.b32.xlu0 %v2272, 107
      %v3403 = vpop.permute.xlu0 %3402
      %3404 = vrot.lane.b32.xlu0 %v2273, 107
      %v3405 = vpop.permute.xlu0 %3404
      %v3406 = vsel %vm1288, %v3403, %v3405
      %v3407 = vsel %vm1288, %v3401, %v3403
      %v3408 = vsel %vm1288, %v3399, %v3401
      %v3409 = vsel %vm1288, %v3405, %v3399
      %3410 = vst [vmem:[#allocation2 + $0x180] sm:$0x3f] %v3396
      %3411 = vst [vmem:[#allocation2 + $0x188] sm:$0x3f] %v3395
      %3412 = vst [vmem:[#allocation2 + $0x190] sm:$0x3f] %v3394
      %3413 = vst [vmem:[#allocation2 + $0x198] sm:$0x3f] %v3397
      %3414 = vst [vmem:[#allocation3 + $0x180] sm:$0x3f] %v3408
      %3415 = vst [vmem:[#allocation3 + $0x188] sm:$0x3f] %v3407
      %3416 = vst [vmem:[#allocation3 + $0x190] sm:$0x3f] %v3406
      %3417 = vst [vmem:[#allocation3 + $0x198] sm:$0x3f] %v3409
      %3418 = vrot.lane.b32.xlu0 %v3042, 107
      %v3419 = vpop.permute.xlu0 %3418
      %3420 = vrot.lane.b32.xlu0 %v3043, 107
      %v3421 = vpop.permute.xlu0 %3420
      %3422 = vrot.lane.b32.xlu0 %v3044, 107
      %v3423 = vpop.permute.xlu0 %3422
      %3424 = vrot.lane.b32.xlu0 %v3045, 107
      %v3425 = vpop.permute.xlu0 %3424
      %v3426 = vsel %vm1288, %v3423, %v3425
      %v3427 = vsel %vm1288, %v3421, %v3423
      %v3428 = vsel %vm1288, %v3419, %v3421
      %v3429 = vsel %vm1288, %v3425, %v3419
      %3430 = vrot.lane.b32.xlu0 %v3046, 107
      %v3431 = vpop.permute.xlu0 %3430
      %3432 = vrot.lane.b32.xlu0 %v3047, 107
      %v3433 = vpop.permute.xlu0 %3432
      %3434 = vrot.lane.b32.xlu0 %v3048, 107
      %v3435 = vpop.permute.xlu0 %3434
      %3436 = vrot.lane.b32.xlu0 %v3049, 107
      %v3437 = vpop.permute.xlu0 %3436
      %v3438 = vsel %vm1288, %v3435, %v3437
      %v3439 = vsel %vm1288, %v3433, %v3435
      %v3440 = vsel %vm1288, %v3431, %v3433
      %v3441 = vsel %vm1288, %v3437, %v3431
      %3442 = vst [vmem:[#allocation2 + $0x1a0] sm:$0x3f] %v3428
      %3443 = vst [vmem:[#allocation2 + $0x1a8] sm:$0x3f] %v3427
      %3444 = vst [vmem:[#allocation2 + $0x1b0] sm:$0x3f] %v3426
      %3445 = vst [vmem:[#allocation2 + $0x1b8] sm:$0x3f] %v3429
      %3446 = vst [vmem:[#allocation3 + $0x1a0] sm:$0x3f] %v3440
      %3447 = vst [vmem:[#allocation3 + $0x1a8] sm:$0x3f] %v3439
      %3448 = vst [vmem:[#allocation3 + $0x1b0] sm:$0x3f] %v3438
      %3449 = vst [vmem:[#allocation3 + $0x1b8] sm:$0x3f] %v3441
      %3450 = vrot.lane.b32.xlu0 %v2266, 106
      %v3451 = vpop.permute.xlu0 %3450
      %3452 = vrot.lane.b32.xlu0 %v2267, 106
      %v3453 = vpop.permute.xlu0 %3452
      %3454 = vrot.lane.b32.xlu0 %v2268, 106
      %v3455 = vpop.permute.xlu0 %3454
      %3456 = vrot.lane.b32.xlu0 %v2269, 106
      %v3457 = vpop.permute.xlu0 %3456
      %v3458 = vsel %vm1321, %v3455, %v3457
      %v3459 = vsel %vm1321, %v3453, %v3455
      %v3460 = vsel %vm1321, %v3451, %v3453
      %v3461 = vsel %vm1321, %v3457, %v3451
      %3462 = vrot.lane.b32.xlu0 %v2270, 106
      %v3463 = vpop.permute.xlu0 %3462
      %3464 = vrot.lane.b32.xlu0 %v2271, 106
      %v3465 = vpop.permute.xlu0 %3464
      %3466 = vrot.lane.b32.xlu0 %v2272, 106
      %v3467 = vpop.permute.xlu0 %3466
      %3468 = vrot.lane.b32.xlu0 %v2273, 106
      %v3469 = vpop.permute.xlu0 %3468
      %v3470 = vsel %vm1321, %v3467, %v3469
      %v3471 = vsel %vm1321, %v3465, %v3467
      %v3472 = vsel %vm1321, %v3463, %v3465
      %v3473 = vsel %vm1321, %v3469, %v3463
      %3474 = vst [vmem:[#allocation2 + $0x1c0] sm:$0x3f] %v3460
      %3475 = vst [vmem:[#allocation2 + $0x1c8] sm:$0x3f] %v3459
      %3476 = vst [vmem:[#allocation2 + $0x1d0] sm:$0x3f] %v3458
      %3477 = vst [vmem:[#allocation2 + $0x1d8] sm:$0x3f] %v3461
      %3478 = vst [vmem:[#allocation3 + $0x1c0] sm:$0x3f] %v3472
      %3479 = vst [vmem:[#allocation3 + $0x1c8] sm:$0x3f] %v3471
      %3480 = vst [vmem:[#allocation3 + $0x1d0] sm:$0x3f] %v3470
      %3481 = vst [vmem:[#allocation3 + $0x1d8] sm:$0x3f] %v3473
      %3482 = vrot.lane.b32.xlu0 %v3042, 106
      %v3483 = vpop.permute.xlu0 %3482
      %3484 = vrot.lane.b32.xlu0 %v3043, 106
      %v3485 = vpop.permute.xlu0 %3484
      %3486 = vrot.lane.b32.xlu0 %v3044, 106
      %v3487 = vpop.permute.xlu0 %3486
      %3488 = vrot.lane.b32.xlu0 %v3045, 106
      %v3489 = vpop.permute.xlu0 %3488
      %v3490 = vsel %vm1321, %v3487, %v3489
      %v3491 = vsel %vm1321, %v3485, %v3487
      %v3492 = vsel %vm1321, %v3483, %v3485
      %v3493 = vsel %vm1321, %v3489, %v3483
      %3494 = vrot.lane.b32.xlu0 %v3046, 106
      %v3495 = vpop.permute.xlu0 %3494
      %3496 = vrot.lane.b32.xlu0 %v3047, 106
      %v3497 = vpop.permute.xlu0 %3496
      %3498 = vrot.lane.b32.xlu0 %v3048, 106
      %v3499 = vpop.permute.xlu0 %3498
      %3500 = vrot.lane.b32.xlu0 %v3049, 106
      %v3501 = vpop.permute.xlu0 %3500
      %v3502 = vsel %vm1321, %v3499, %v3501
      %v3503 = vsel %vm1321, %v3497, %v3499
      %v3504 = vsel %vm1321, %v3495, %v3497
      %v3505 = vsel %vm1321, %v3501, %v3495
      %3506 = vst [vmem:[#allocation2 + $0x1e0] sm:$0x3f] %v3492
      %3507 = vst [vmem:[#allocation2 + $0x1e8] sm:$0x3f] %v3491
      %3508 = vst [vmem:[#allocation2 + $0x1f0] sm:$0x3f] %v3490
      %3509 = vst [vmem:[#allocation2 + $0x1f8] sm:$0x3f] %v3493
      %3510 = vst [vmem:[#allocation3 + $0x1e0] sm:$0x3f] %v3504
      %3511 = vst [vmem:[#allocation3 + $0x1e8] sm:$0x3f] %v3503
      %3512 = vst [vmem:[#allocation3 + $0x1f0] sm:$0x3f] %v3502
      %3513 = vst [vmem:[#allocation3 + $0x1f8] sm:$0x3f] %v3505
      %3514 = vrot.lane.b32.xlu0 %v2266, 105
      %v3515 = vpop.permute.xlu0 %3514
      %3516 = vrot.lane.b32.xlu0 %v2267, 105
      %v3517 = vpop.permute.xlu0 %3516
      %3518 = vrot.lane.b32.xlu0 %v2268, 105
      %v3519 = vpop.permute.xlu0 %3518
      %3520 = vrot.lane.b32.xlu0 %v2269, 105
      %v3521 = vpop.permute.xlu0 %3520
      %v3522 = vsel %vm1354, %v3519, %v3521
      %v3523 = vsel %vm1354, %v3517, %v3519
      %v3524 = vsel %vm1354, %v3515, %v3517
      %v3525 = vsel %vm1354, %v3521, %v3515
      %3526 = vrot.lane.b32.xlu0 %v2270, 105
      %v3527 = vpop.permute.xlu0 %3526
      %3528 = vrot.lane.b32.xlu0 %v2271, 105
      %v3529 = vpop.permute.xlu0 %3528
      %3530 = vrot.lane.b32.xlu0 %v2272, 105
      %v3531 = vpop.permute.xlu0 %3530
      %3532 = vrot.lane.b32.xlu0 %v2273, 105
      %v3533 = vpop.permute.xlu0 %3532
      %v3534 = vsel %vm1354, %v3531, %v3533
      %v3535 = vsel %vm1354, %v3529, %v3531
      %v3536 = vsel %vm1354, %v3527, %v3529
      %v3537 = vsel %vm1354, %v3533, %v3527
      %3538 = vst [vmem:[#allocation2 + $0x200] sm:$0x3f] %v3524
      %3539 = vst [vmem:[#allocation2 + $0x208] sm:$0x3f] %v3523
      %3540 = vst [vmem:[#allocation2 + $0x210] sm:$0x3f] %v3522
      %3541 = vst [vmem:[#allocation2 + $0x218] sm:$0x3f] %v3525
      %3542 = vst [vmem:[#allocation3 + $0x200] sm:$0x3f] %v3536
      %3543 = vst [vmem:[#allocation3 + $0x208] sm:$0x3f] %v3535
      %3544 = vst [vmem:[#allocation3 + $0x210] sm:$0x3f] %v3534
      %3545 = vst [vmem:[#allocation3 + $0x218] sm:$0x3f] %v3537
      %3546 = vrot.lane.b32.xlu0 %v3042, 105
      %v3547 = vpop.permute.xlu0 %3546
      %3548 = vrot.lane.b32.xlu0 %v3043, 105
      %v3549 = vpop.permute.xlu0 %3548
      %3550 = vrot.lane.b32.xlu0 %v3044, 105
      %v3551 = vpop.permute.xlu0 %3550
      %3552 = vrot.lane.b32.xlu0 %v3045, 105
      %v3553 = vpop.permute.xlu0 %3552
      %v3554 = vsel %vm1354, %v3551, %v3553
      %v3555 = vsel %vm1354, %v3549, %v3551
      %v3556 = vsel %vm1354, %v3547, %v3549
      %v3557 = vsel %vm1354, %v3553, %v3547
      %3558 = vrot.lane.b32.xlu0 %v3046, 105
      %v3559 = vpop.permute.xlu0 %3558
      %3560 = vrot.lane.b32.xlu0 %v3047, 105
      %v3561 = vpop.permute.xlu0 %3560
      %3562 = vrot.lane.b32.xlu0 %v3048, 105
      %v3563 = vpop.permute.xlu0 %3562
      %3564 = vrot.lane.b32.xlu0 %v3049, 105
      %v3565 = vpop.permute.xlu0 %3564
      %v3566 = vsel %vm1354, %v3563, %v3565
      %v3567 = vsel %vm1354, %v3561, %v3563
      %v3568 = vsel %vm1354, %v3559, %v3561
      %v3569 = vsel %vm1354, %v3565, %v3559
      %3570 = vst [vmem:[#allocation2 + $0x220] sm:$0x3f] %v3556
      %3571 = vst [vmem:[#allocation2 + $0x228] sm:$0x3f] %v3555
      %3572 = vst [vmem:[#allocation2 + $0x230] sm:$0x3f] %v3554
      %3573 = vst [vmem:[#allocation2 + $0x238] sm:$0x3f] %v3557
      %3574 = vst [vmem:[#allocation3 + $0x220] sm:$0x3f] %v3568
      %3575 = vst [vmem:[#allocation3 + $0x228] sm:$0x3f] %v3567
      %3576 = vst [vmem:[#allocation3 + $0x230] sm:$0x3f] %v3566
      %3577 = vst [vmem:[#allocation3 + $0x238] sm:$0x3f] %v3569
      %v3578 = vld [vmem:[#allocation2] sm:$0xff]
      %v3579 = vld [vmem:[#allocation2 + $0x8] sm:$0xff]
      %v3580 = vld [vmem:[#allocation2 + $0x10] sm:$0xff]
      %v3581 = vld [vmem:[#allocation2 + $0x18] sm:$0xff]
      %v3582 = vld [vmem:[#allocation2 + $0x20] sm:$0xff]
      %v3583 = vld [vmem:[#allocation2 + $0x28] sm:$0xff]
      %v3584 = vld [vmem:[#allocation2 + $0x30] sm:$0xff]
      %v3585 = vld [vmem:[#allocation2 + $0x38] sm:$0xff]
      %v3586 = vld [vmem:[#allocation2 + $0x40] sm:$0xff]
      %v3587 = vld [vmem:[#allocation2 + $0x48] sm:$0xff]
      %v3588 = vld [vmem:[#allocation2 + $0x50] sm:$0xff]
      %v3589 = vld [vmem:[#allocation2 + $0x58] sm:$0xff]
      %v3590 = vld [vmem:[#allocation2 + $0x60] sm:$0xff]
      %v3591 = vld [vmem:[#allocation2 + $0x68] sm:$0xff]
      %v3592 = vld [vmem:[#allocation2 + $0x70] sm:$0xff]
      %v3593 = vld [vmem:[#allocation2 + $0x78] sm:$0xff]
      %v3594 = vld [vmem:[#allocation2 + $0x80] sm:$0xff]
      %v3595 = vld [vmem:[#allocation2 + $0x88] sm:$0xff]
      %v3596 = vld [vmem:[#allocation2 + $0x90] sm:$0xff]
      %v3597 = vld [vmem:[#allocation2 + $0x98] sm:$0xff]
      %v3598 = vld [vmem:[#allocation2 + $0xa0] sm:$0xff]
      %v3599 = vld [vmem:[#allocation2 + $0xa8] sm:$0xff]
      %v3600 = vld [vmem:[#allocation2 + $0xb0] sm:$0xff]
      %v3601 = vld [vmem:[#allocation2 + $0xb8] sm:$0xff]
      %v3602 = vld [vmem:[#allocation2 + $0xc0] sm:$0xff]
      %v3603 = vld [vmem:[#allocation2 + $0xc8] sm:$0xff]
      %v3604 = vld [vmem:[#allocation2 + $0xd0] sm:$0xff]
      %v3605 = vld [vmem:[#allocation2 + $0xd8] sm:$0xff]
      %v3606 = vld [vmem:[#allocation2 + $0xe0] sm:$0xff]
      %v3607 = vld [vmem:[#allocation2 + $0xe8] sm:$0xff]
      %v3608 = vld [vmem:[#allocation2 + $0xf0] sm:$0xff]
      %v3609 = vld [vmem:[#allocation2 + $0xf8] sm:$0xff]
      %v3610 = vld [vmem:[#allocation2 + $0x100] sm:$0xff]
      %v3611 = vld [vmem:[#allocation2 + $0x108] sm:$0xff]
      %v3612 = vld [vmem:[#allocation2 + $0x110] sm:$0xff]
      %v3613 = vld [vmem:[#allocation2 + $0x118] sm:$0xff]
      %v3614 = vld [vmem:[#allocation2 + $0x120] sm:$0xff]
      %v3615 = vld [vmem:[#allocation2 + $0x128] sm:$0xff]
      %v3616 = vld [vmem:[#allocation2 + $0x130] sm:$0xff]
      %v3617 = vld [vmem:[#allocation2 + $0x138] sm:$0xff]
      %v3618 = vld [vmem:[#allocation2 + $0x140] sm:$0xff]
      %v3619 = vld [vmem:[#allocation2 + $0x148] sm:$0xff]
      %v3620 = vld [vmem:[#allocation2 + $0x150] sm:$0xff]
      %v3621 = vld [vmem:[#allocation2 + $0x158] sm:$0xff]
      %v3622 = vld [vmem:[#allocation2 + $0x160] sm:$0xff]
      %v3623 = vld [vmem:[#allocation2 + $0x168] sm:$0xff]
      %v3624 = vld [vmem:[#allocation2 + $0x170] sm:$0xff]
      %v3625 = vld [vmem:[#allocation2 + $0x178] sm:$0xff]
      %v3626 = vld [vmem:[#allocation2 + $0x180] sm:$0xff]
      %v3627 = vld [vmem:[#allocation2 + $0x188] sm:$0xff]
      %v3628 = vld [vmem:[#allocation2 + $0x190] sm:$0xff]
      %v3629 = vld [vmem:[#allocation2 + $0x198] sm:$0xff]
      %v3630 = vld [vmem:[#allocation2 + $0x1a0] sm:$0xff]
      %v3631 = vld [vmem:[#allocation2 + $0x1a8] sm:$0xff]
      %v3632 = vld [vmem:[#allocation2 + $0x1b0] sm:$0xff]
      %v3633 = vld [vmem:[#allocation2 + $0x1b8] sm:$0xff]
      %v3634 = vld [vmem:[#allocation2 + $0x1c0] sm:$0xff]
      %v3635 = vld [vmem:[#allocation2 + $0x1c8] sm:$0xff]
      %v3636 = vld [vmem:[#allocation2 + $0x1d0] sm:$0xff]
      %v3637 = vld [vmem:[#allocation2 + $0x1d8] sm:$0xff]
      %v3638 = vld [vmem:[#allocation2 + $0x1e0] sm:$0xff]
      %v3639 = vld [vmem:[#allocation2 + $0x1e8] sm:$0xff]
      %v3640 = vld [vmem:[#allocation2 + $0x1f0] sm:$0xff]
      %v3641 = vld [vmem:[#allocation2 + $0x1f8] sm:$0xff]
      %v3642 = vld [vmem:[#allocation2 + $0x200] sm:$0xff]
      %v3643 = vld [vmem:[#allocation2 + $0x208] sm:$0xff]
      %v3644 = vld [vmem:[#allocation2 + $0x210] sm:$0xff]
      %v3645 = vld [vmem:[#allocation2 + $0x218] sm:$0xff]
      %v3646 = vld [vmem:[#allocation2 + $0x220] sm:$0xff]
      %v3647 = vld [vmem:[#allocation2 + $0x228] sm:$0xff]
      %v3648 = vld [vmem:[#allocation2 + $0x230] sm:$0xff]
      %v3649 = vld [vmem:[#allocation2 + $0x238] sm:$0xff]
      %v3650 = vpack.c.bf16 %v3582, %v3578
      %v3651 = vpack.c.bf16 %v3583, %v3579
      %v3652 = vpack.c.bf16 %v3584, %v3580
      %v3653 = vpack.c.bf16 %v3585, %v3581
      %v3654 = vpack.c.bf16 %v3590, %v3586
      %v3655 = vpack.c.bf16 %v3591, %v3587
      %v3656 = vpack.c.bf16 %v3592, %v3588
      %v3657 = vpack.c.bf16 %v3593, %v3589
      %v3658 = vpack.c.bf16 %v3598, %v3594
      %v3659 = vpack.c.bf16 %v3599, %v3595
      %v3660 = vpack.c.bf16 %v3600, %v3596
      %v3661 = vpack.c.bf16 %v3601, %v3597
      %v3662 = vpack.c.bf16 %v3606, %v3602
      %v3663 = vpack.c.bf16 %v3607, %v3603
      %v3664 = vpack.c.bf16 %v3608, %v3604
      %v3665 = vpack.c.bf16 %v3609, %v3605
      %v3666 = vpack.c.bf16 %v3614, %v3610
      %v3667 = vpack.c.bf16 %v3615, %v3611
      %v3668 = vpack.c.bf16 %v3616, %v3612
      %v3669 = vpack.c.bf16 %v3617, %v3613
      %v3670 = vpack.c.bf16 %v3622, %v3618
      %v3671 = vpack.c.bf16 %v3623, %v3619
      %v3672 = vpack.c.bf16 %v3624, %v3620
      %v3673 = vpack.c.bf16 %v3625, %v3621
      %v3674 = vpack.c.bf16 %v3630, %v3626
      %v3675 = vpack.c.bf16 %v3631, %v3627
      %v3676 = vpack.c.bf16 %v3632, %v3628
      %v3677 = vpack.c.bf16 %v3633, %v3629
      %v3678 = vpack.c.bf16 %v3638, %v3634
      %v3679 = vpack.c.bf16 %v3639, %v3635
      %v3680 = vpack.c.bf16 %v3640, %v3636
      %v3681 = vpack.c.bf16 %v3641, %v3637
      %v3682 = vpack.c.bf16 %v3646, %v3642
      %v3683 = vpack.c.bf16 %v3647, %v3643
      %v3684 = vpack.c.bf16 %v3648, %v3644
      %v3685 = vpack.c.bf16 %v3649, %v3645
      %v3686 = vld [vmem:[#allocation3] sm:$0xff]
      %v3687 = vld [vmem:[#allocation3 + $0x8] sm:$0xff]
      %v3688 = vld [vmem:[#allocation3 + $0x10] sm:$0xff]
      %v3689 = vld [vmem:[#allocation3 + $0x18] sm:$0xff]
      %v3690 = vld [vmem:[#allocation3 + $0x20] sm:$0xff]
      %v3691 = vld [vmem:[#allocation3 + $0x28] sm:$0xff]
      %v3692 = vld [vmem:[#allocation3 + $0x30] sm:$0xff]
      %v3693 = vld [vmem:[#allocation3 + $0x38] sm:$0xff]
      %v3694 = vld [vmem:[#allocation3 + $0x40] sm:$0xff]
      %v3695 = vld [vmem:[#allocation3 + $0x48] sm:$0xff]
      %v3696 = vld [vmem:[#allocation3 + $0x50] sm:$0xff]
      %v3697 = vld [vmem:[#allocation3 + $0x58] sm:$0xff]
      %v3698 = vld [vmem:[#allocation3 + $0x60] sm:$0xff]
      %v3699 = vld [vmem:[#allocation3 + $0x68] sm:$0xff]
      %v3700 = vld [vmem:[#allocation3 + $0x70] sm:$0xff]
      %v3701 = vld [vmem:[#allocation3 + $0x78] sm:$0xff]
      %v3702 = vld [vmem:[#allocation3 + $0x80] sm:$0xff]
      %v3703 = vld [vmem:[#allocation3 + $0x88] sm:$0xff]
      %v3704 = vld [vmem:[#allocation3 + $0x90] sm:$0xff]
      %v3705 = vld [vmem:[#allocation3 + $0x98] sm:$0xff]
      %v3706 = vld [vmem:[#allocation3 + $0xa0] sm:$0xff]
      %v3707 = vld [vmem:[#allocation3 + $0xa8] sm:$0xff]
      %v3708 = vld [vmem:[#allocation3 + $0xb0] sm:$0xff]
      %v3709 = vld [vmem:[#allocation3 + $0xb8] sm:$0xff]
      %v3710 = vld [vmem:[#allocation3 + $0xc0] sm:$0xff]
      %v3711 = vld [vmem:[#allocation3 + $0xc8] sm:$0xff]
      %v3712 = vld [vmem:[#allocation3 + $0xd0] sm:$0xff]
      %v3713 = vld [vmem:[#allocation3 + $0xd8] sm:$0xff]
      %v3714 = vld [vmem:[#allocation3 + $0xe0] sm:$0xff]
      %v3715 = vld [vmem:[#allocation3 + $0xe8] sm:$0xff]
      %v3716 = vld [vmem:[#allocation3 + $0xf0] sm:$0xff]
      %v3717 = vld [vmem:[#allocation3 + $0xf8] sm:$0xff]
      %v3718 = vld [vmem:[#allocation3 + $0x100] sm:$0xff]
      %v3719 = vld [vmem:[#allocation3 + $0x108] sm:$0xff]
      %v3720 = vld [vmem:[#allocation3 + $0x110] sm:$0xff]
      %v3721 = vld [vmem:[#allocation3 + $0x118] sm:$0xff]
      %v3722 = vld [vmem:[#allocation3 + $0x120] sm:$0xff]
      %v3723 = vld [vmem:[#allocation3 + $0x128] sm:$0xff]
      %v3724 = vld [vmem:[#allocation3 + $0x130] sm:$0xff]
      %v3725 = vld [vmem:[#allocation3 + $0x138] sm:$0xff]
      %v3726 = vld [vmem:[#allocation3 + $0x140] sm:$0xff]
      %v3727 = vld [vmem:[#allocation3 + $0x148] sm:$0xff]
      %v3728 = vld [vmem:[#allocation3 + $0x150] sm:$0xff]
      %v3729 = vld [vmem:[#allocation3 + $0x158] sm:$0xff]
      %v3730 = vld [vmem:[#allocation3 + $0x160] sm:$0xff]
      %v3731 = vld [vmem:[#allocation3 + $0x168] sm:$0xff]
      %v3732 = vld [vmem:[#allocation3 + $0x170] sm:$0xff]
      %v3733 = vld [vmem:[#allocation3 + $0x178] sm:$0xff]
      %v3734 = vld [vmem:[#allocation3 + $0x180] sm:$0xff]
      %v3735 = vld [vmem:[#allocation3 + $0x188] sm:$0xff]
      %v3736 = vld [vmem:[#allocation3 + $0x190] sm:$0xff]
      %v3737 = vld [vmem:[#allocation3 + $0x198] sm:$0xff]
      %v3738 = vld [vmem:[#allocation3 + $0x1a0] sm:$0xff]
      %v3739 = vld [vmem:[#allocation3 + $0x1a8] sm:$0xff]
      %v3740 = vld [vmem:[#allocation3 + $0x1b0] sm:$0xff]
      %v3741 = vld [vmem:[#allocation3 + $0x1b8] sm:$0xff]
      %v3742 = vld [vmem:[#allocation3 + $0x1c0] sm:$0xff]
      %v3743 = vld [vmem:[#allocation3 + $0x1c8] sm:$0xff]
      %v3744 = vld [vmem:[#allocation3 + $0x1d0] sm:$0xff]
      %v3745 = vld [vmem:[#allocation3 + $0x1d8] sm:$0xff]
      %v3746 = vld [vmem:[#allocation3 + $0x1e0] sm:$0xff]
      %v3747 = vld [vmem:[#allocation3 + $0x1e8] sm:$0xff]
      %v3748 = vld [vmem:[#allocation3 + $0x1f0] sm:$0xff]
      %v3749 = vld [vmem:[#allocation3 + $0x1f8] sm:$0xff]
      %v3750 = vld [vmem:[#allocation3 + $0x200] sm:$0xff]
      %v3751 = vld [vmem:[#allocation3 + $0x208] sm:$0xff]
      %v3752 = vld [vmem:[#allocation3 + $0x210] sm:$0xff]
      %v3753 = vld [vmem:[#allocation3 + $0x218] sm:$0xff]
      %v3754 = vld [vmem:[#allocation3 + $0x220] sm:$0xff]
      %v3755 = vld [vmem:[#allocation3 + $0x228] sm:$0xff]
      %v3756 = vld [vmem:[#allocation3 + $0x230] sm:$0xff]
      %v3757 = vld [vmem:[#allocation3 + $0x238] sm:$0xff]
      %v3758 = vpack.c.bf16 %v3690, %v3686
      %v3759 = vpack.c.bf16 %v3691, %v3687
      %v3760 = vpack.c.bf16 %v3692, %v3688
      %v3761 = vpack.c.bf16 %v3693, %v3689
      %v3762 = vpack.c.bf16 %v3698, %v3694
      %v3763 = vpack.c.bf16 %v3699, %v3695
      %v3764 = vpack.c.bf16 %v3700, %v3696
      %v3765 = vpack.c.bf16 %v3701, %v3697
      %v3766 = vpack.c.bf16 %v3706, %v3702
      %v3767 = vpack.c.bf16 %v3707, %v3703
      %v3768 = vpack.c.bf16 %v3708, %v3704
      %v3769 = vpack.c.bf16 %v3709, %v3705
      %v3770 = vpack.c.bf16 %v3714, %v3710
      %v3771 = vpack.c.bf16 %v3715, %v3711
      %v3772 = vpack.c.bf16 %v3716, %v3712
      %v3773 = vpack.c.bf16 %v3717, %v3713
      %v3774 = vpack.c.bf16 %v3722, %v3718
      %v3775 = vpack.c.bf16 %v3723, %v3719
      %v3776 = vpack.c.bf16 %v3724, %v3720
      %v3777 = vpack.c.bf16 %v3725, %v3721
      %v3778 = vpack.c.bf16 %v3730, %v3726
      %v3779 = vpack.c.bf16 %v3731, %v3727
      %v3780 = vpack.c.bf16 %v3732, %v3728
      %v3781 = vpack.c.bf16 %v3733, %v3729
      %v3782 = vpack.c.bf16 %v3738, %v3734
      %v3783 = vpack.c.bf16 %v3739, %v3735
      %v3784 = vpack.c.bf16 %v3740, %v3736
      %v3785 = vpack.c.bf16 %v3741, %v3737
      %v3786 = vpack.c.bf16 %v3746, %v3742
      %v3787 = vpack.c.bf16 %v3747, %v3743
      %v3788 = vpack.c.bf16 %v3748, %v3744
      %v3789 = vpack.c.bf16 %v3749, %v3745
      %v3790 = vpack.c.bf16 %v3754, %v3750
      %v3791 = vpack.c.bf16 %v3755, %v3751
      %v3792 = vpack.c.bf16 %v3756, %v3752
      %v3793 = vpack.c.bf16 %v3757, %v3753
      %v3794 = vld [vmem:[%s15] sm:$0xf]
      %v3795 = vld [vmem:[%s16] sm:$0xf]
      %v3798 = vunpack.c.l.s4 1983009808
      %v3799 = vunpack.c.0.s8 %v3798
      %v3800 = vlaneseq
      %v3801 = vshrl.u32 %v3800, 7
      %v3802 = vsub.s32 %v3799, %v3801
      %v3803 = vrot.slane %v3794, %v3802
      %v3804 = vcombine.high %v3803, %v3803
      %vm3806 = vcmask 130048
      %v3808 = vsel %vm3806, %v3804, 0
      %3810 = vmatprep.subr.bf16.mxu0 %v3651
      %3811 = vmatpush1.bf16.msra.mxu0 %v3650
      %3812 = vmatprep.subr.bf16.mxu0 %v3655
      %3813 = vmatpush1.bf16.msra.mxu0 %v3654
      %3814 = vmatprep.subr.bf16.mxu0 %v3659
      %3815 = vmatpush1.bf16.msra.mxu0 %v3658
      %3816 = vmatprep.subr.bf16.mxu0 %v3663
      %3817 = vmatpush1.bf16.msra.mxu0 %v3662
      %3818 = vmatprep.subr.bf16.mxu0 %v3667
      %3819 = vmatpush1.bf16.msra.mxu0 %v3666
      %3820 = vmatprep.subr.bf16.mxu0 %v3671
      %3821 = vmatpush1.bf16.msra.mxu0 %v3670
      %3822 = vmatprep.subr.bf16.mxu0 %v3675
      %3823 = vmatpush1.bf16.msra.mxu0 %v3674
      %3824 = vmatprep.subr.bf16.mxu0 %v3679
      %3825 = vmatpush1.bf16.msra.mxu0 %v3678
      %3826 = vmatprep.subr.bf16.mxu0 %v3683
      %3827 = vmatpush1.bf16.msra.mxu0 %v3682
      %3828 = vmatprep.subr.bf16.mxu0 0
      %3829 = vmatpush1.bf16.msra.mxu0 0
      %3830 = vmatprep.subr.bf16.mxu0 0
      %3831 = vmatpush1.bf16.msra.mxu0 0
      %3832 = vmatprep.subr.bf16.mxu0 0
      %3833 = vmatpush1.bf16.msra.mxu0 0
      %3834 = vmatprep.subr.bf16.mxu0 0
      %3835 = vmatpush1.bf16.msra.mxu0 0
      %3836 = vmatprep.subr.bf16.mxu0 0
      %3837 = vmatpush1.bf16.msra.mxu0 0
      %3838 = vmatprep.subr.bf16.mxu0 0
      %3839 = vmatpush1.bf16.msra.mxu0 0
      %3840 = vmatprep.subr.bf16.mxu0 0
      %3841 = vmatpush1.bf16.msra.mxu0 0
      %3842 = vmatprep.mubr.bf16.mxu0 %v3808
      %3843 = vmatmul.mubr.bf16.gmra.mrb[0].mxu0 %v3803
      %v3844 = vpop.f32.mrb[0].mxu0
      %v3845 = vadd.f32 0.0, %v3844
      %v3846 = vpop.f32.mrb[0].mxu0
      %v3847 = vadd.f32 0.0, %v3846
      %v3848 = vpop.f32.mrb[0].mxu0
      %v3849 = vpop.f32.mrb[0].mxu0
      %3850 = vdwg.mxu0
      %3851 = vmatprep.subr.bf16.mxu0 %v3653
      %3852 = vmatpush1.bf16.msra.mxu0 %v3652
      %3853 = vmatprep.subr.bf16.mxu0 %v3657
      %3854 = vmatpush1.bf16.msra.mxu0 %v3656
      %3855 = vmatprep.subr.bf16.mxu0 %v3661
      %3856 = vmatpush1.bf16.msra.mxu0 %v3660
      %3857 = vmatprep.subr.bf16.mxu0 %v3665
      %3858 = vmatpush1.bf16.msra.mxu0 %v3664
      %3859 = vmatprep.subr.bf16.mxu0 %v3669
      %3860 = vmatpush1.bf16.msra.mxu0 %v3668
      %3861 = vmatprep.subr.bf16.mxu0 %v3673
      %3862 = vmatpush1.bf16.msra.mxu0 %v3672
      %3863 = vmatprep.subr.bf16.mxu0 %v3677
      %3864 = vmatpush1.bf16.msra.mxu0 %v3676
      %3865 = vmatprep.subr.bf16.mxu0 %v3681
      %3866 = vmatpush1.bf16.msra.mxu0 %v3680
      %3867 = vmatprep.subr.bf16.mxu0 %v3685
      %3868 = vmatpush1.bf16.msra.mxu0 %v3684
      %3869 = vmatprep.subr.bf16.mxu0 0
      %3870 = vmatpush1.bf16.msra.mxu0 0
      %3871 = vmatprep.subr.bf16.mxu0 0
      %3872 = vmatpush1.bf16.msra.mxu0 0
      %3873 = vmatprep.subr.bf16.mxu0 0
      %3874 = vmatpush1.bf16.msra.mxu0 0
      %3875 = vmatprep.subr.bf16.mxu0 0
      %3876 = vmatpush1.bf16.msra.mxu0 0
      %3877 = vmatprep.subr.bf16.mxu0 0
      %3878 = vmatpush1.bf16.msra.mxu0 0
      %3879 = vmatprep.subr.bf16.mxu0 0
      %3880 = vmatpush1.bf16.msra.mxu0 0
      %3881 = vmatprep.subr.bf16.mxu0 0
      %3882 = vmatpush1.bf16.msra.mxu0 0
      %3883 = vmatprep.mubr.bf16.mxu0 %v3808
      %3884 = vmatmul.mubr.bf16.gmra.mrb[0].mxu0 %v3803
      %v3885 = vpop.f32.mrb[0].mxu0
      %v3886 = vadd.f32 0.0, %v3885
      %v3887 = vpop.f32.mrb[0].mxu0
      %v3888 = vadd.f32 0.0, %v3887
      %v3889 = vpop.f32.mrb[0].mxu0
      %v3890 = vpop.f32.mrb[0].mxu0
      %3891 = vdwg.mxu0
      %v3894 = vunpack.c.l.s4 1983009808
      %v3895 = vunpack.c.0.s8 %v3894
      %v3896 = vlaneseq
      %v3897 = vshrl.u32 %v3896, 7
      %v3898 = vsub.s32 %v3895, %v3897
      %v3899 = vrot.slane %v3795, %v3898
      %v3900 = vcombine.high %v3899, %v3899
      %v3903 = vsel %vm3806, %v3900, 0
      %3905 = vmatprep.subr.bf16.mxu0 %v3759
      %3906 = vmatpush1.bf16.msra.mxu0 %v3758
      %3907 = vmatprep.subr.bf16.mxu0 %v3763
      %3908 = vmatpush1.bf16.msra.mxu0 %v3762
      %3909 = vmatprep.subr.bf16.mxu0 %v3767
      %3910 = vmatpush1.bf16.msra.mxu0 %v3766
      %3911 = vmatprep.subr.bf16.mxu0 %v3771
      %3912 = vmatpush1.bf16.msra.mxu0 %v3770
      %3913 = vmatprep.subr.bf16.mxu0 %v3775
      %3914 = vmatpush1.bf16.msra.mxu0 %v3774
      %3915 = vmatprep.subr.bf16.mxu0 %v3779
      %3916 = vmatpush1.bf16.msra.mxu0 %v3778
      %3917 = vmatprep.subr.bf16.mxu0 %v3783
      %3918 = vmatpush1.bf16.msra.mxu0 %v3782
      %3919 = vmatprep.subr.bf16.mxu0 %v3787
      %3920 = vmatpush1.bf16.msra.mxu0 %v3786
      %3921 = vmatprep.subr.bf16.mxu0 %v3791
      %3922 = vmatpush1.bf16.msra.mxu0 %v3790
      %3923 = vmatprep.subr.bf16.mxu0 0
      %3924 = vmatpush1.bf16.msra.mxu0 0
      %3925 = vmatprep.subr.bf16.mxu0 0
      %3926 = vmatpush1.bf16.msra.mxu0 0
      %3927 = vmatprep.subr.bf16.mxu0 0
      %3928 = vmatpush1.bf16.msra.mxu0 0
      %3929 = vmatprep.subr.bf16.mxu0 0
      %3930 = vmatpush1.bf16.msra.mxu0 0
      %3931 = vmatprep.subr.bf16.mxu0 0
      %3932 = vmatpush1.bf16.msra.mxu0 0
      %3933 = vmatprep.subr.bf16.mxu0 0
      %3934 = vmatpush1.bf16.msra.mxu0 0
      %3935 = vmatprep.subr.bf16.mxu0 0
      %3936 = vmatpush1.bf16.msra.mxu0 0
      %3937 = vmatprep.mubr.bf16.mxu0 %v3903
      %3938 = vmatmul.mubr.bf16.gmra.mrb[0].mxu0 %v3899
      %v3939 = vpop.f32.mrb[0].mxu0
      %v3940 = vadd.f32 0.0, %v3939
      %v3941 = vpop.f32.mrb[0].mxu0
      %v3942 = vadd.f32 0.0, %v3941
      %v3943 = vpop.f32.mrb[0].mxu0
      %v3944 = vpop.f32.mrb[0].mxu0
      %3945 = vdwg.mxu0
      %3946 = vmatprep.subr.bf16.mxu0 %v3761
      %3947 = vmatpush1.bf16.msra.mxu0 %v3760
      %3948 = vmatprep.subr.bf16.mxu0 %v3765
      %3949 = vmatpush1.bf16.msra.mxu0 %v3764
      %3950 = vmatprep.subr.bf16.mxu0 %v3769
      %3951 = vmatpush1.bf16.msra.mxu0 %v3768
      %3952 = vmatprep.subr.bf16.mxu0 %v3773
      %3953 = vmatpush1.bf16.msra.mxu0 %v3772
      %3954 = vmatprep.subr.bf16.mxu0 %v3777
      %3955 = vmatpush1.bf16.msra.mxu0 %v3776
      %3956 = vmatprep.subr.bf16.mxu0 %v3781
      %3957 = vmatpush1.bf16.msra.mxu0 %v3780
      %3958 = vmatprep.subr.bf16.mxu0 %v3785
      %3959 = vmatpush1.bf16.msra.mxu0 %v3784
      %3960 = vmatprep.subr.bf16.mxu0 %v3789
      %3961 = vmatpush1.bf16.msra.mxu0 %v3788
      %3962 = vmatprep.subr.bf16.mxu0 %v3793
      %3963 = vmatpush1.bf16.msra.mxu0 %v3792
      %3964 = vmatprep.subr.bf16.mxu0 0
      %3965 = vmatpush1.bf16.msra.mxu0 0
      %3966 = vmatprep.subr.bf16.mxu0 0
      %3967 = vmatpush1.bf16.msra.mxu0 0
      %3968 = vmatprep.subr.bf16.mxu0 0
      %3969 = vmatpush1.bf16.msra.mxu0 0
      %3970 = vmatprep.subr.bf16.mxu0 0
      %3971 = vmatpush1.bf16.msra.mxu0 0
      %3972 = vmatprep.subr.bf16.mxu0 0
      %3973 = vmatpush1.bf16.msra.mxu0 0
      %3974 = vmatprep.subr.bf16.mxu0 0
      %3975 = vmatpush1.bf16.msra.mxu0 0
      %3976 = vmatprep.subr.bf16.mxu0 0
      %3977 = vmatpush1.bf16.msra.mxu0 0
      %3978 = vmatprep.mubr.bf16.mxu0 %v3903
      %3979 = vmatmul.mubr.bf16.gmra.mrb[0].mxu0 %v3899
      %v3980 = vpop.f32.mrb[0].mxu0
      %v3981 = vadd.f32 0.0, %v3980
      %v3982 = vpop.f32.mrb[0].mxu0
      %v3983 = vadd.f32 0.0, %v3982
      %v3984 = vpop.f32.mrb[0].mxu0
      %v3985 = vpop.f32.mrb[0].mxu0
      %3986 = vdwg.mxu0
      %3987 = vmatprep.subr.bf16.mxu0 %v3651
      %3988 = vmatpush1.bf16.msra.mxu0 %v3650
      %3989 = vmatprep.subr.bf16.mxu0 %v3655
      %3990 = vmatpush1.bf16.msra.mxu0 %v3654
      %3991 = vmatprep.subr.bf16.mxu0 %v3659
      %3992 = vmatpush1.bf16.msra.mxu0 %v3658
      %3993 = vmatprep.subr.bf16.mxu0 %v3663
      %3994 = vmatpush1.bf16.msra.mxu0 %v3662
      %3995 = vmatprep.subr.bf16.mxu0 %v3667
      %3996 = vmatpush1.bf16.msra.mxu0 %v3666
      %3997 = vmatprep.subr.bf16.mxu0 %v3671
      %3998 = vmatpush1.bf16.msra.mxu0 %v3670
      %3999 = vmatprep.subr.bf16.mxu0 %v3675
      %4000 = vmatpush1.bf16.msra.mxu0 %v3674
      %4001 = vmatprep.subr.bf16.mxu0 %v3679
      %4002 = vmatpush1.bf16.msra.mxu0 %v3678
      %4003 = vmatprep.subr.bf16.mxu0 %v3683
      %4004 = vmatpush1.bf16.msra.mxu0 %v3682
      %4005 = vmatprep.subr.bf16.mxu0 0
      %4006 = vmatpush1.bf16.msra.mxu0 0
      %4007 = vmatprep.subr.bf16.mxu0 0
      %4008 = vmatpush1.bf16.msra.mxu0 0
      %4009 = vmatprep.subr.bf16.mxu0 0
      %4010 = vmatpush1.bf16.msra.mxu0 0
      %4011 = vmatprep.subr.bf16.mxu0 0
      %4012 = vmatpush1.bf16.msra.mxu0 0
      %4013 = vmatprep.subr.bf16.mxu0 0
      %4014 = vmatpush1.bf16.msra.mxu0 0
      %4015 = vmatprep.subr.bf16.mxu0 0
      %4016 = vmatpush1.bf16.msra.mxu0 0
      %4017 = vmatprep.subr.bf16.mxu0 0
      %4018 = vmatpush1.bf16.msra.mxu0 0
      %4019 = vmatprep.mubr.bf16.mxu0 %v3903
      %4020 = vmatmul.mubr.bf16.gmra.mrb[0].mxu0 %v3899
      %v4021 = vpop.f32.mrb[0].mxu0
      %v4022 = vadd.f32 0.0, %v4021
      %v4023 = vpop.f32.mrb[0].mxu0
      %v4024 = vadd.f32 0.0, %v4023
      %v4025 = vpop.f32.mrb[0].mxu0
      %v4026 = vpop.f32.mrb[0].mxu0
      %4027 = vdwg.mxu0
      %4028 = vmatprep.subr.bf16.mxu0 %v3653
      %4029 = vmatpush1.bf16.msra.mxu0 %v3652
      %4030 = vmatprep.subr.bf16.mxu0 %v3657
      %4031 = vmatpush1.bf16.msra.mxu0 %v3656
      %4032 = vmatprep.subr.bf16.mxu0 %v3661
      %4033 = vmatpush1.bf16.msra.mxu0 %v3660
      %4034 = vmatprep.subr.bf16.mxu0 %v3665
      %4035 = vmatpush1.bf16.msra.mxu0 %v3664
      %4036 = vmatprep.subr.bf16.mxu0 %v3669
      %4037 = vmatpush1.bf16.msra.mxu0 %v3668
      %4038 = vmatprep.subr.bf16.mxu0 %v3673
      %4039 = vmatpush1.bf16.msra.mxu0 %v3672
      %4040 = vmatprep.subr.bf16.mxu0 %v3677
      %4041 = vmatpush1.bf16.msra.mxu0 %v3676
      %4042 = vmatprep.subr.bf16.mxu0 %v3681
      %4043 = vmatpush1.bf16.msra.mxu0 %v3680
      %4044 = vmatprep.subr.bf16.mxu0 %v3685
      %4045 = vmatpush1.bf16.msra.mxu0 %v3684
      %4046 = vmatprep.subr.bf16.mxu0 0
      %4047 = vmatpush1.bf16.msra.mxu0 0
      %4048 = vmatprep.subr.bf16.mxu0 0
      %4049 = vmatpush1.bf16.msra.mxu0 0
      %4050 = vmatprep.subr.bf16.mxu0 0
      %4051 = vmatpush1.bf16.msra.mxu0 0
      %4052 = vmatprep.subr.bf16.mxu0 0
      %4053 = vmatpush1.bf16.msra.mxu0 0
      %4054 = vmatprep.subr.bf16.mxu0 0
      %4055 = vmatpush1.bf16.msra.mxu0 0
      %4056 = vmatprep.subr.bf16.mxu0 0
      %4057 = vmatpush1.bf16.msra.mxu0 0
      %4058 = vmatprep.subr.bf16.mxu0 0
      %4059 = vmatpush1.bf16.msra.mxu0 0
      %4060 = vmatprep.mubr.bf16.mxu0 %v3903
      %4061 = vmatmul.mubr.bf16.gmra.mrb[0].mxu0 %v3899
      %v4062 = vpop.f32.mrb[0].mxu0
      %v4063 = vadd.f32 0.0, %v4062
      %v4064 = vpop.f32.mrb[0].mxu0
      %v4065 = vadd.f32 0.0, %v4064
      %v4066 = vpop.f32.mrb[0].mxu0
      %v4067 = vpop.f32.mrb[0].mxu0
      %4068 = vdwg.mxu0
      %v4069 = vsub.f32 %v3845, %v3940
      %v4070 = vsub.f32 %v3847, %v3942
      %v4071 = vsub.f32 %v3886, %v3981
      %v4072 = vsub.f32 %v3888, %v3983
      %v4073 = vld [vmem:[%s17] sm:$0xf]
      %4075 = vset.pattern.permute.xlu0 0
      %4076 = vperm.xlu0 %4075, %v4073
      %v4077 = vpop.permute.xlu0 %4076
      %v4079 = vadd.f32 %v4069, %v4077
      %v4080 = vadd.f32 %v4070, %v4077
      %v4081 = vadd.f32 %v4071, %v4077
      %v4082 = vadd.f32 %v4072, %v4077
      %4083 = vmatprep.subr.bf16.mxu0 %v3759
      %4084 = vmatpush1.bf16.msra.mxu0 %v3758
      %4085 = vmatprep.subr.bf16.mxu0 %v3763
      %4086 = vmatpush1.bf16.msra.mxu0 %v3762
      %4087 = vmatprep.subr.bf16.mxu0 %v3767
      %4088 = vmatpush1.bf16.msra.mxu0 %v3766
      %4089 = vmatprep.subr.bf16.mxu0 %v3771
      %4090 = vmatpush1.bf16.msra.mxu0 %v3770
      %4091 = vmatprep.subr.bf16.mxu0 %v3775
      %4092 = vmatpush1.bf16.msra.mxu0 %v3774
      %4093 = vmatprep.subr.bf16.mxu0 %v3779
      %4094 = vmatpush1.bf16.msra.mxu0 %v3778
      %4095 = vmatprep.subr.bf16.mxu0 %v3783
      %4096 = vmatpush1.bf16.msra.mxu0 %v3782
      %4097 = vmatprep.subr.bf16.mxu0 %v3787
      %4098 = vmatpush1.bf16.msra.mxu0 %v3786
      %4099 = vmatprep.subr.bf16.mxu0 %v3791
      %4100 = vmatpush1.bf16.msra.mxu0 %v3790
      %4101 = vmatprep.subr.bf16.mxu0 0
      %4102 = vmatpush1.bf16.msra.mxu0 0
      %4103 = vmatprep.subr.bf16.mxu0 0
      %4104 = vmatpush1.bf16.msra.mxu0 0
      %4105 = vmatprep.subr.bf16.mxu0 0
      %4106 = vmatpush1.bf16.msra.mxu0 0
      %4107 = vmatprep.subr.bf16.mxu0 0
      %4108 = vmatpush1.bf16.msra.mxu0 0
      %4109 = vmatprep.subr.bf16.mxu0 0
      %4110 = vmatpush1.bf16.msra.mxu0 0
      %4111 = vmatprep.subr.bf16.mxu0 0
      %4112 = vmatpush1.bf16.msra.mxu0 0
      %4113 = vmatprep.subr.bf16.mxu0 0
      %4114 = vmatpush1.bf16.msra.mxu0 0
      %4115 = vmatprep.mubr.bf16.mxu0 %v3808
      %4116 = vmatmul.mubr.bf16.gmra.mrb[0].mxu0 %v3803
      %v4117 = vpop.f32.mrb[0].mxu0
      %v4118 = vadd.f32 %v4022, %v4117
      %v4119 = vpop.f32.mrb[0].mxu0
      %v4120 = vadd.f32 %v4024, %v4119
      %v4121 = vpop.f32.mrb[0].mxu0
      %v4122 = vpop.f32.mrb[0].mxu0
      %4123 = vdwg.mxu0
      %4124 = vmatprep.subr.bf16.mxu0 %v3761
      %4125 = vmatpush1.bf16.msra.mxu0 %v3760
      %4126 = vmatprep.subr.bf16.mxu0 %v3765
      %4127 = vmatpush1.bf16.msra.mxu0 %v3764
      %4128 = vmatprep.subr.bf16.mxu0 %v3769
      %4129 = vmatpush1.bf16.msra.mxu0 %v3768
      %4130 = vmatprep.subr.bf16.mxu0 %v3773
      %4131 = vmatpush1.bf16.msra.mxu0 %v3772
      %4132 = vmatprep.subr.bf16.mxu0 %v3777
      %4133 = vmatpush1.bf16.msra.mxu0 %v3776
      %4134 = vmatprep.subr.bf16.mxu0 %v3781
      %4135 = vmatpush1.bf16.msra.mxu0 %v3780
      %4136 = vmatprep.subr.bf16.mxu0 %v3785
      %4137 = vmatpush1.bf16.msra.mxu0 %v3784
      %4138 = vmatprep.subr.bf16.mxu0 %v3789
      %4139 = vmatpush1.bf16.msra.mxu0 %v3788
      %4140 = vmatprep.subr.bf16.mxu0 %v3793
      %4141 = vmatpush1.bf16.msra.mxu0 %v3792
      %4142 = vmatprep.subr.bf16.mxu0 0
      %4143 = vmatpush1.bf16.msra.mxu0 0
      %4144 = vmatprep.subr.bf16.mxu0 0
      %4145 = vmatpush1.bf16.msra.mxu0 0
      %4146 = vmatprep.subr.bf16.mxu0 0
      %4147 = vmatpush1.bf16.msra.mxu0 0
      %4148 = vmatprep.subr.bf16.mxu0 0
      %4149 = vmatpush1.bf16.msra.mxu0 0
      %4150 = vmatprep.subr.bf16.mxu0 0
      %4151 = vmatpush1.bf16.msra.mxu0 0
      %4152 = vmatprep.subr.bf16.mxu0 0
      %4153 = vmatpush1.bf16.msra.mxu0 0
      %4154 = vmatprep.subr.bf16.mxu0 0
      %4155 = vmatpush1.bf16.msra.mxu0 0
      %4156 = vmatprep.mubr.bf16.mxu0 %v3808
      %4157 = vmatmul.mubr.bf16.gmra.mrb[0].mxu0 %v3803
      %v4158 = vpop.f32.mrb[0].mxu0
      %v4159 = vadd.f32 %v4063, %v4158
      %v4160 = vpop.f32.mrb[0].mxu0
      %v4161 = vadd.f32 %v4065, %v4160
      %v4162 = vpop.f32.mrb[0].mxu0
      %v4163 = vpop.f32.mrb[0].mxu0
      %4164 = vdwg.mxu0
      %v4165 = vld [vmem:[%s18] sm:$0xf]
      %4167 = vset.pattern.permute.xlu0 0
      %4168 = vperm.xlu0 %4167, %v4165
      %v4169 = vpop.permute.xlu0 %4168
      %v4171 = vadd.f32 %v4118, %v4169
      %v4172 = vadd.f32 %v4120, %v4169
      %v4173 = vadd.f32 %v4159, %v4169
      %v4174 = vadd.f32 %v4161, %v4169
      %v4175 = vmul.f32 %v4079, %v1881
      %v4176 = vmul.f32 %v4080, %v1885
      %v4177 = vmul.f32 %v4081, %v1889
      %v4178 = vmul.f32 %v4082, %v1893
      %v4179 = vmul.f32 %v4171, %v1881
      %v4180 = vmul.f32 %v4172, %v1885
      %v4181 = vmul.f32 %v4173, %v1889
      %v4182 = vmul.f32 %v4174, %v1893
      %4183 = vrot.lane.b32.xlu0 %v2266, 69
      %v4184 = vpop.permute.xlu0 %4183
      %4185 = vrot.lane.b32.xlu0 %v2267, 69
      %v4186 = vpop.permute.xlu0 %4185
      %4187 = vrot.lane.b32.xlu0 %v2268, 69
      %v4188 = vpop.permute.xlu0 %4187
      %4189 = vrot.lane.b32.xlu0 %v2269, 69
      %v4190 = vpop.permute.xlu0 %4189
      %vm4191 = vcmp.lt.s32.totalorder %v1114, 69
      %v4192 = vsel %vm4191, %v4188, %v4190
      %v4193 = vsel %vm4191, %v4186, %v4188
      %v4194 = vsel %vm4191, %v4184, %v4186
      %v4195 = vsel %vm4191, %v4190, %v4184
      %4196 = vrot.lane.b32.xlu0 %v2270, 69
      %v4197 = vpop.permute.xlu0 %4196
      %4198 = vrot.lane.b32.xlu0 %v2271, 69
      %v4199 = vpop.permute.xlu0 %4198
      %4200 = vrot.lane.b32.xlu0 %v2272, 69
      %v4201 = vpop.permute.xlu0 %4200
      %4202 = vrot.lane.b32.xlu0 %v2273, 69
      %v4203 = vpop.permute.xlu0 %4202
      %v4204 = vsel %vm4191, %v4201, %v4203
      %v4205 = vsel %vm4191, %v4199, %v4201
      %v4206 = vsel %vm4191, %v4197, %v4199
      %v4207 = vsel %vm4191, %v4203, %v4197
      %4208 = vst [vmem:[#allocation2] sm:$0x3f] %v4195
      %4209 = vst [vmem:[#allocation2 + $0x8] sm:$0x3f] %v4194
      %4210 = vst [vmem:[#allocation2 + $0x10] sm:$0x3f] %v4193
      %4211 = vst [vmem:[#allocation2 + $0x18] sm:$0x3f] %v4192
      %4212 = vst [vmem:[#allocation3] sm:$0x3f] %v4207
      %4213 = vst [vmem:[#allocation3 + $0x8] sm:$0x3f] %v4206
      %4214 = vst [vmem:[#allocation3 + $0x10] sm:$0x3f] %v4205
      %4215 = vst [vmem:[#allocation3 + $0x18] sm:$0x3f] %v4204
      %4216 = vrot.lane.b32.xlu0 %v3042, 69
      %v4217 = vpop.permute.xlu0 %4216
      %4218 = vrot.lane.b32.xlu0 %v3043, 69
      %v4219 = vpop.permute.xlu0 %4218
      %4220 = vrot.lane.b32.xlu0 %v3044, 69
      %v4221 = vpop.permute.xlu0 %4220
      %4222 = vrot.lane.b32.xlu0 %v3045, 69
      %v4223 = vpop.permute.xlu0 %4222
      %v4224 = vsel %vm4191, %v4221, %v4223
      %v4225 = vsel %vm4191, %v4219, %v4221
      %v4226 = vsel %vm4191, %v4217, %v4219
      %v4227 = vsel %vm4191, %v4223, %v4217
      %4228 = vrot.lane.b32.xlu0 %v3046, 69
      %v4229 = vpop.permute.xlu0 %4228
      %4230 = vrot.lane.b32.xlu0 %v3047, 69
      %v4231 = vpop.permute.xlu0 %4230
      %4232 = vrot.lane.b32.xlu0 %v3048, 69
      %v4233 = vpop.permute.xlu0 %4232
      %4234 = vrot.lane.b32.xlu0 %v3049, 69
      %v4235 = vpop.permute.xlu0 %4234
      %v4236 = vsel %vm4191, %v4233, %v4235
      %v4237 = vsel %vm4191, %v4231, %v4233
      %v4238 = vsel %vm4191, %v4229, %v4231
      %v4239 = vsel %vm4191, %v4235, %v4229
      %4240 = vst [vmem:[#allocation2 + $0x20] sm:$0x3f] %v4227
      %4241 = vst [vmem:[#allocation2 + $0x28] sm:$0x3f] %v4226
      %4242 = vst [vmem:[#allocation2 + $0x30] sm:$0x3f] %v4225
      %4243 = vst [vmem:[#allocation2 + $0x38] sm:$0x3f] %v4224
      %4244 = vst [vmem:[#allocation3 + $0x20] sm:$0x3f] %v4239
      %4245 = vst [vmem:[#allocation3 + $0x28] sm:$0x3f] %v4238
      %4246 = vst [vmem:[#allocation3 + $0x30] sm:$0x3f] %v4237
      %4247 = vst [vmem:[#allocation3 + $0x38] sm:$0x3f] %v4236
      %4248 = vrot.lane.b32.xlu0 %v2266, 66
      %v4249 = vpop.permute.xlu0 %4248
      %4250 = vrot.lane.b32.xlu0 %v2267, 66
      %v4251 = vpop.permute.xlu0 %4250
      %4252 = vrot.lane.b32.xlu0 %v2268, 66
      %v4253 = vpop.permute.xlu0 %4252
      %4254 = vrot.lane.b32.xlu0 %v2269, 66
      %v4255 = vpop.permute.xlu0 %4254
      %vm4256 = vcmp.lt.s32.totalorder %v1114, 66
      %v4257 = vsel %vm4256, %v4253, %v4255
      %v4258 = vsel %vm4256, %v4251, %v4253
      %v4259 = vsel %vm4256, %v4249, %v4251
      %v4260 = vsel %vm4256, %v4255, %v4249
      %4261 = vrot.lane.b32.xlu0 %v2270, 66
      %v4262 = vpop.permute.xlu0 %4261
      %4263 = vrot.lane.b32.xlu0 %v2271, 66
      %v4264 = vpop.permute.xlu0 %4263
      %4265 = vrot.lane.b32.xlu0 %v2272, 66
      %v4266 = vpop.permute.xlu0 %4265
      %4267 = vrot.lane.b32.xlu0 %v2273, 66
      %v4268 = vpop.permute.xlu0 %4267
      %v4269 = vsel %vm4256, %v4266, %v4268
      %v4270 = vsel %vm4256, %v4264, %v4266
      %v4271 = vsel %vm4256, %v4262, %v4264
      %v4272 = vsel %vm4256, %v4268, %v4262
      %4273 = vst [vmem:[#allocation2 + $0x40] sm:$0x3f] %v4260
      %4274 = vst [vmem:[#allocation2 + $0x48] sm:$0x3f] %v4259
      %4275 = vst [vmem:[#allocation2 + $0x50] sm:$0x3f] %v4258
      %4276 = vst [vmem:[#allocation2 + $0x58] sm:$0x3f] %v4257
      %4277 = vst [vmem:[#allocation3 + $0x40] sm:$0x3f] %v4272
      %4278 = vst [vmem:[#allocation3 + $0x48] sm:$0x3f] %v4271
      %4279 = vst [vmem:[#allocation3 + $0x50] sm:$0x3f] %v4270
      %4280 = vst [vmem:[#allocation3 + $0x58] sm:$0x3f] %v4269
      %4281 = vrot.lane.b32.xlu0 %v3042, 66
      %v4282 = vpop.permute.xlu0 %4281
      %4283 = vrot.lane.b32.xlu0 %v3043, 66
      %v4284 = vpop.permute.xlu0 %4283
      %4285 = vrot.lane.b32.xlu0 %v3044, 66
      %v4286 = vpop.permute.xlu0 %4285
      %4287 = vrot.lane.b32.xlu0 %v3045, 66
      %v4288 = vpop.permute.xlu0 %4287
      %v4289 = vsel %vm4256, %v4286, %v4288
      %v4290 = vsel %vm4256, %v4284, %v4286
      %v4291 = vsel %vm4256, %v4282, %v4284
      %v4292 = vsel %vm4256, %v4288, %v4282
      %4293 = vrot.lane.b32.xlu0 %v3046, 66
      %v4294 = vpop.permute.xlu0 %4293
      %4295 = vrot.lane.b32.xlu0 %v3047, 66
      %v4296 = vpop.permute.xlu0 %4295
      %4297 = vrot.lane.b32.xlu0 %v3048, 66
      %v4298 = vpop.permute.xlu0 %4297
      %4299 = vrot.lane.b32.xlu0 %v3049, 66
      %v4300 = vpop.permute.xlu0 %4299
      %v4301 = vsel %vm4256, %v4298, %v4300
      %v4302 = vsel %vm4256, %v4296, %v4298
      %v4303 = vsel %vm4256, %v4294, %v4296
      %v4304 = vsel %vm4256, %v4300, %v4294
      %4305 = vst [vmem:[#allocation2 + $0x60] sm:$0x3f] %v4292
      %4306 = vst [vmem:[#allocation2 + $0x68] sm:$0x3f] %v4291
      %4307 = vst [vmem:[#allocation2 + $0x70] sm:$0x3f] %v4290
      %4308 = vst [vmem:[#allocation2 + $0x78] sm:$0x3f] %v4289
      %4309 = vst [vmem:[#allocation3 + $0x60] sm:$0x3f] %v4304
      %4310 = vst [vmem:[#allocation3 + $0x68] sm:$0x3f] %v4303
      %4311 = vst [vmem:[#allocation3 + $0x70] sm:$0x3f] %v4302
      %4312 = vst [vmem:[#allocation3 + $0x78] sm:$0x3f] %v4301
      %4313 = vrot.lane.b32.xlu0 %v2266, 63
      %v4314 = vpop.permute.xlu0 %4313
      %4315 = vrot.lane.b32.xlu0 %v2267, 63
      %v4316 = vpop.permute.xlu0 %4315
      %4317 = vrot.lane.b32.xlu0 %v2268, 63
      %v4318 = vpop.permute.xlu0 %4317
      %4319 = vrot.lane.b32.xlu0 %v2269, 63
      %v4320 = vpop.permute.xlu0 %4319
      %vm4321 = vcmp.lt.s32.totalorder %v1114, 63
      %v4322 = vsel %vm4321, %v4318, %v4320
      %v4323 = vsel %vm4321, %v4316, %v4318
      %v4324 = vsel %vm4321, %v4314, %v4316
      %v4325 = vsel %vm4321, %v4320, %v4314
      %4326 = vrot.lane.b32.xlu0 %v2270, 63
      %v4327 = vpop.permute.xlu0 %4326
      %4328 = vrot.lane.b32.xlu0 %v2271, 63
      %v4329 = vpop.permute.xlu0 %4328
      %4330 = vrot.lane.b32.xlu0 %v2272, 63
      %v4331 = vpop.permute.xlu0 %4330
      %4332 = vrot.lane.b32.xlu0 %v2273, 63
      %v4333 = vpop.permute.xlu0 %4332
      %v4334 = vsel %vm4321, %v4331, %v4333
      %v4335 = vsel %vm4321, %v4329, %v4331
      %v4336 = vsel %vm4321, %v4327, %v4329
      %v4337 = vsel %vm4321, %v4333, %v4327
      %4338 = vst [vmem:[#allocation2 + $0x80] sm:$0x3f] %v4325
      %4339 = vst [vmem:[#allocation2 + $0x88] sm:$0x3f] %v4324
      %4340 = vst [vmem:[#allocation2 + $0x90] sm:$0x3f] %v4323
      %4341 = vst [vmem:[#allocation2 + $0x98] sm:$0x3f] %v4322
      %4342 = vst [vmem:[#allocation3 + $0x80] sm:$0x3f] %v4337
      %4343 = vst [vmem:[#allocation3 + $0x88] sm:$0x3f] %v4336
      %4344 = vst [vmem:[#allocation3 + $0x90] sm:$0x3f] %v4335
      %4345 = vst [vmem:[#allocation3 + $0x98] sm:$0x3f] %v4334
      %4346 = vrot.lane.b32.xlu0 %v3042, 63
      %v4347 = vpop.permute.xlu0 %4346
      %4348 = vrot.lane.b32.xlu0 %v3043, 63
      %v4349 = vpop.permute.xlu0 %4348
      %4350 = vrot.lane.b32.xlu0 %v3044, 63
      %v4351 = vpop.permute.xlu0 %4350
      %4352 = vrot.lane.b32.xlu0 %v3045, 63
      %v4353 = vpop.permute.xlu0 %4352
      %v4354 = vsel %vm4321, %v4351, %v4353
      %v4355 = vsel %vm4321, %v4349, %v4351
      %v4356 = vsel %vm4321, %v4347, %v4349
      %v4357 = vsel %vm4321, %v4353, %v4347
      %4358 = vrot.lane.b32.xlu0 %v3046, 63
      %v4359 = vpop.permute.xlu0 %4358
      %4360 = vrot.lane.b32.xlu0 %v3047, 63
      %v4361 = vpop.permute.xlu0 %4360
      %4362 = vrot.lane.b32.xlu0 %v3048, 63
      %v4363 = vpop.permute.xlu0 %4362
      %4364 = vrot.lane.b32.xlu0 %v3049, 63
      %v4365 = vpop.permute.xlu0 %4364
      %v4366 = vsel %vm4321, %v4363, %v4365
      %v4367 = vsel %vm4321, %v4361, %v4363
      %v4368 = vsel %vm4321, %v4359, %v4361
      %v4369 = vsel %vm4321, %v4365, %v4359
      %4370 = vst [vmem:[#allocation2 + $0xa0] sm:$0x3f] %v4357
      %4371 = vst [vmem:[#allocation2 + $0xa8] sm:$0x3f] %v4356
      %4372 = vst [vmem:[#allocation2 + $0xb0] sm:$0x3f] %v4355
      %4373 = vst [vmem:[#allocation2 + $0xb8] sm:$0x3f] %v4354
      %4374 = vst [vmem:[#allocation3 + $0xa0] sm:$0x3f] %v4369
      %4375 = vst [vmem:[#allocation3 + $0xa8] sm:$0x3f] %v4368
      %4376 = vst [vmem:[#allocation3 + $0xb0] sm:$0x3f] %v4367
      %4377 = vst [vmem:[#allocation3 + $0xb8] sm:$0x3f] %v4366
      %4378 = vrot.lane.b32.xlu0 %v2266, 3
      %v4379 = vpop.permute.xlu0 %4378
      %4380 = vrot.lane.b32.xlu0 %v2267, 3
      %v4381 = vpop.permute.xlu0 %4380
      %4382 = vrot.lane.b32.xlu0 %v2268, 3
      %v4383 = vpop.permute.xlu0 %4382
      %4384 = vrot.lane.b32.xlu0 %v2269, 3
      %v4385 = vpop.permute.xlu0 %4384
      %vm4386 = vcmp.lt.s32.totalorder %v1114, 3
      %v4387 = vsel %vm4386, %v4383, %v4385
      %v4388 = vsel %vm4386, %v4381, %v4383
      %v4389 = vsel %vm4386, %v4379, %v4381
      %v4390 = vsel %vm4386, %v4385, %v4379
      %4391 = vrot.lane.b32.xlu0 %v2270, 3
      %v4392 = vpop.permute.xlu0 %4391
      %4393 = vrot.lane.b32.xlu0 %v2271, 3
      %v4394 = vpop.permute.xlu0 %4393
      %4395 = vrot.lane.b32.xlu0 %v2272, 3
      %v4396 = vpop.permute.xlu0 %4395
      %4397 = vrot.lane.b32.xlu0 %v2273, 3
      %v4398 = vpop.permute.xlu0 %4397
      %v4399 = vsel %vm4386, %v4396, %v4398
      %v4400 = vsel %vm4386, %v4394, %v4396
      %v4401 = vsel %vm4386, %v4392, %v4394
      %v4402 = vsel %vm4386, %v4398, %v4392
      %4403 = vst [vmem:[#allocation2 + $0xc0] sm:$0x3f] %v4390
      %4404 = vst [vmem:[#allocation2 + $0xc8] sm:$0x3f] %v4389
      %4405 = vst [vmem:[#allocation2 + $0xd0] sm:$0x3f] %v4388
      %4406 = vst [vmem:[#allocation2 + $0xd8] sm:$0x3f] %v4387
      %4407 = vst [vmem:[#allocation3 + $0xc0] sm:$0x3f] %v4402
      %4408 = vst [vmem:[#allocation3 + $0xc8] sm:$0x3f] %v4401
      %4409 = vst [vmem:[#allocation3 + $0xd0] sm:$0x3f] %v4400
      %4410 = vst [vmem:[#allocation3 + $0xd8] sm:$0x3f] %v4399
      %4411 = vrot.lane.b32.xlu0 %v3042, 3
      %v4412 = vpop.permute.xlu0 %4411
      %4413 = vrot.lane.b32.xlu0 %v3043, 3
      %v4414 = vpop.permute.xlu0 %4413
      %4415 = vrot.lane.b32.xlu0 %v3044, 3
      %v4416 = vpop.permute.xlu0 %4415
      %4417 = vrot.lane.b32.xlu0 %v3045, 3
      %v4418 = vpop.permute.xlu0 %4417
      %v4419 = vsel %vm4386, %v4416, %v4418
      %v4420 = vsel %vm4386, %v4414, %v4416
      %v4421 = vsel %vm4386, %v4412, %v4414
      %v4422 = vsel %vm4386, %v4418, %v4412
      %4423 = vrot.lane.b32.xlu0 %v3046, 3
      %v4424 = vpop.permute.xlu0 %4423
      %4425 = vrot.lane.b32.xlu0 %v3047, 3
      %v4426 = vpop.permute.xlu0 %4425
      %4427 = vrot.lane.b32.xlu0 %v3048, 3
      %v4428 = vpop.permute.xlu0 %4427
      %4429 = vrot.lane.b32.xlu0 %v3049, 3
      %v4430 = vpop.permute.xlu0 %4429
      %v4431 = vsel %vm4386, %v4428, %v4430
      %v4432 = vsel %vm4386, %v4426, %v4428
      %v4433 = vsel %vm4386, %v4424, %v4426
      %v4434 = vsel %vm4386, %v4430, %v4424
      %4435 = vst [vmem:[#allocation2 + $0xe0] sm:$0x3f] %v4422
      %4436 = vst [vmem:[#allocation2 + $0xe8] sm:$0x3f] %v4421
      %4437 = vst [vmem:[#allocation2 + $0xf0] sm:$0x3f] %v4420
      %4438 = vst [vmem:[#allocation2 + $0xf8] sm:$0x3f] %v4419
      %4439 = vst [vmem:[#allocation3 + $0xe0] sm:$0x3f] %v4434
      %4440 = vst [vmem:[#allocation3 + $0xe8] sm:$0x3f] %v4433
      %4441 = vst [vmem:[#allocation3 + $0xf0] sm:$0x3f] %v4432
      %4442 = vst [vmem:[#allocation3 + $0xf8] sm:$0x3f] %v4431
      %4443 = vst [vmem:[#allocation2 + $0x100] sm:$0x3f] %v2266
      %4444 = vst [vmem:[#allocation2 + $0x108] sm:$0x3f] %v2267
      %4445 = vst [vmem:[#allocation2 + $0x110] sm:$0x3f] %v2268
      %4446 = vst [vmem:[#allocation2 + $0x118] sm:$0x3f] %v2269
      %4447 = vst [vmem:[#allocation3 + $0x100] sm:$0x3f] %v2270
      %4448 = vst [vmem:[#allocation3 + $0x108] sm:$0x3f] %v2271
      %4449 = vst [vmem:[#allocation3 + $0x110] sm:$0x3f] %v2272
      %4450 = vst [vmem:[#allocation3 + $0x118] sm:$0x3f] %v2273
      %4451 = vst [vmem:[#allocation2 + $0x120] sm:$0x3f] %v3042
      %4452 = vst [vmem:[#allocation2 + $0x128] sm:$0x3f] %v3043
      %4453 = vst [vmem:[#allocation2 + $0x130] sm:$0x3f] %v3044
      %4454 = vst [vmem:[#allocation2 + $0x138] sm:$0x3f] %v3045
      %4455 = vst [vmem:[#allocation3 + $0x120] sm:$0x3f] %v3046
      %4456 = vst [vmem:[#allocation3 + $0x128] sm:$0x3f] %v3047
      %4457 = vst [vmem:[#allocation3 + $0x130] sm:$0x3f] %v3048
      %4458 = vst [vmem:[#allocation3 + $0x138] sm:$0x3f] %v3049
      %4459 = vrot.lane.b32.xlu0 %v2266, 125
      %v4460 = vpop.permute.xlu0 %4459
      %4461 = vrot.lane.b32.xlu0 %v2267, 125
      %v4462 = vpop.permute.xlu0 %4461
      %4463 = vrot.lane.b32.xlu0 %v2268, 125
      %v4464 = vpop.permute.xlu0 %4463
      %4465 = vrot.lane.b32.xlu0 %v2269, 125
      %v4466 = vpop.permute.xlu0 %4465
      %vm4467 = vcmp.lt.s32.totalorder %v1114, 125
      %v4468 = vsel %vm4467, %v4464, %v4466
      %v4469 = vsel %vm4467, %v4462, %v4464
      %v4470 = vsel %vm4467, %v4460, %v4462
      %v4471 = vsel %vm4467, %v4466, %v4460
      %4472 = vrot.lane.b32.xlu0 %v2270, 125
      %v4473 = vpop.permute.xlu0 %4472
      %4474 = vrot.lane.b32.xlu0 %v2271, 125
      %v4475 = vpop.permute.xlu0 %4474
      %4476 = vrot.lane.b32.xlu0 %v2272, 125
      %v4477 = vpop.permute.xlu0 %4476
      %4478 = vrot.lane.b32.xlu0 %v2273, 125
      %v4479 = vpop.permute.xlu0 %4478
      %v4480 = vsel %vm4467, %v4477, %v4479
      %v4481 = vsel %vm4467, %v4475, %v4477
      %v4482 = vsel %vm4467, %v4473, %v4475
      %v4483 = vsel %vm4467, %v4479, %v4473
      %4484 = vst [vmem:[#allocation2 + $0x140] sm:$0x3f] %v4470
      %4485 = vst [vmem:[#allocation2 + $0x148] sm:$0x3f] %v4469
      %4486 = vst [vmem:[#allocation2 + $0x150] sm:$0x3f] %v4468
      %4487 = vst [vmem:[#allocation2 + $0x158] sm:$0x3f] %v4471
      %4488 = vst [vmem:[#allocation3 + $0x140] sm:$0x3f] %v4482
      %4489 = vst [vmem:[#allocation3 + $0x148] sm:$0x3f] %v4481
      %4490 = vst [vmem:[#allocation3 + $0x150] sm:$0x3f] %v4480
      %4491 = vst [vmem:[#allocation3 + $0x158] sm:$0x3f] %v4483
      %4492 = vrot.lane.b32.xlu0 %v3042, 125
      %v4493 = vpop.permute.xlu0 %4492
      %4494 = vrot.lane.b32.xlu0 %v3043, 125
      %v4495 = vpop.permute.xlu0 %4494
      %4496 = vrot.lane.b32.xlu0 %v3044, 125
      %v4497 = vpop.permute.xlu0 %4496
      %4498 = vrot.lane.b32.xlu0 %v3045, 125
      %v4499 = vpop.permute.xlu0 %4498
      %v4500 = vsel %vm4467, %v4497, %v4499
      %v4501 = vsel %vm4467, %v4495, %v4497
      %v4502 = vsel %vm4467, %v4493, %v4495
      %v4503 = vsel %vm4467, %v4499, %v4493
      %4504 = vrot.lane.b32.xlu0 %v3046, 125
      %v4505 = vpop.permute.xlu0 %4504
      %4506 = vrot.lane.b32.xlu0 %v3047, 125
      %v4507 = vpop.permute.xlu0 %4506
      %4508 = vrot.lane.b32.xlu0 %v3048, 125
      %v4509 = vpop.permute.xlu0 %4508
      %4510 = vrot.lane.b32.xlu0 %v3049, 125
      %v4511 = vpop.permute.xlu0 %4510
      %v4512 = vsel %vm4467, %v4509, %v4511
      %v4513 = vsel %vm4467, %v4507, %v4509
      %v4514 = vsel %vm4467, %v4505, %v4507
      %v4515 = vsel %vm4467, %v4511, %v4505
      %4516 = vst [vmem:[#allocation2 + $0x160] sm:$0x3f] %v4502
      %4517 = vst [vmem:[#allocation2 + $0x168] sm:$0x3f] %v4501
      %4518 = vst [vmem:[#allocation2 + $0x170] sm:$0x3f] %v4500
      %4519 = vst [vmem:[#allocation2 + $0x178] sm:$0x3f] %v4503
      %4520 = vst [vmem:[#allocation3 + $0x160] sm:$0x3f] %v4514
      %4521 = vst [vmem:[#allocation3 + $0x168] sm:$0x3f] %v4513
      %4522 = vst [vmem:[#allocation3 + $0x170] sm:$0x3f] %v4512
      %4523 = vst [vmem:[#allocation3 + $0x178] sm:$0x3f] %v4515
      %4524 = vrot.lane.b32.xlu0 %v2266, 65
      %v4525 = vpop.permute.xlu0 %4524
      %4526 = vrot.lane.b32.xlu0 %v2267, 65
      %v4527 = vpop.permute.xlu0 %4526
      %4528 = vrot.lane.b32.xlu0 %v2268, 65
      %v4529 = vpop.permute.xlu0 %4528
      %4530 = vrot.lane.b32.xlu0 %v2269, 65
      %v4531 = vpop.permute.xlu0 %4530
      %vm4532 = vcmp.lt.s32.totalorder %v1114, 65
      %v4533 = vsel %vm4532, %v4529, %v4531
      %v4534 = vsel %vm4532, %v4527, %v4529
      %v4535 = vsel %vm4532, %v4525, %v4527
      %v4536 = vsel %vm4532, %v4531, %v4525
      %4537 = vrot.lane.b32.xlu0 %v2270, 65
      %v4538 = vpop.permute.xlu0 %4537
      %4539 = vrot.lane.b32.xlu0 %v2271, 65
      %v4540 = vpop.permute.xlu0 %4539
      %4541 = vrot.lane.b32.xlu0 %v2272, 65
      %v4542 = vpop.permute.xlu0 %4541
      %4543 = vrot.lane.b32.xlu0 %v2273, 65
      %v4544 = vpop.permute.xlu0 %4543
      %v4545 = vsel %vm4532, %v4542, %v4544
      %v4546 = vsel %vm4532, %v4540, %v4542
      %v4547 = vsel %vm4532, %v4538, %v4540
      %v4548 = vsel %vm4532, %v4544, %v4538
      %4549 = vst [vmem:[#allocation2 + $0x180] sm:$0x3f] %v4535
      %4550 = vst [vmem:[#allocation2 + $0x188] sm:$0x3f] %v4534
      %4551 = vst [vmem:[#allocation2 + $0x190] sm:$0x3f] %v4533
      %4552 = vst [vmem:[#allocation2 + $0x198] sm:$0x3f] %v4536
      %4553 = vst [vmem:[#allocation3 + $0x180] sm:$0x3f] %v4547
      %4554 = vst [vmem:[#allocation3 + $0x188] sm:$0x3f] %v4546
      %4555 = vst [vmem:[#allocation3 + $0x190] sm:$0x3f] %v4545
      %4556 = vst [vmem:[#allocation3 + $0x198] sm:$0x3f] %v4548
      %4557 = vrot.lane.b32.xlu0 %v3042, 65
      %v4558 = vpop.permute.xlu0 %4557
      %4559 = vrot.lane.b32.xlu0 %v3043, 65
      %v4560 = vpop.permute.xlu0 %4559
      %4561 = vrot.lane.b32.xlu0 %v3044, 65
      %v4562 = vpop.permute.xlu0 %4561
      %4563 = vrot.lane.b32.xlu0 %v3045, 65
      %v4564 = vpop.permute.xlu0 %4563
      %v4565 = vsel %vm4532, %v4562, %v4564
      %v4566 = vsel %vm4532, %v4560, %v4562
      %v4567 = vsel %vm4532, %v4558, %v4560
      %v4568 = vsel %vm4532, %v4564, %v4558
      %4569 = vrot.lane.b32.xlu0 %v3046, 65
      %v4570 = vpop.permute.xlu0 %4569
      %4571 = vrot.lane.b32.xlu0 %v3047, 65
      %v4572 = vpop.permute.xlu0 %4571
      %4573 = vrot.lane.b32.xlu0 %v3048, 65
      %v4574 = vpop.permute.xlu0 %4573
      %4575 = vrot.lane.b32.xlu0 %v3049, 65
      %v4576 = vpop.permute.xlu0 %4575
      %v4577 = vsel %vm4532, %v4574, %v4576
      %v4578 = vsel %vm4532, %v4572, %v4574
      %v4579 = vsel %vm4532, %v4570, %v4572
      %v4580 = vsel %vm4532, %v4576, %v4570
      %4581 = vst [vmem:[#allocation2 + $0x1a0] sm:$0x3f] %v4567
      %4582 = vst [vmem:[#allocation2 + $0x1a8] sm:$0x3f] %v4566
      %4583 = vst [vmem:[#allocation2 + $0x1b0] sm:$0x3f] %v4565
      %4584 = vst [vmem:[#allocation2 + $0x1b8] sm:$0x3f] %v4568
      %4585 = vst [vmem:[#allocation3 + $0x1a0] sm:$0x3f] %v4579
      %4586 = vst [vmem:[#allocation3 + $0x1a8] sm:$0x3f] %v4578
      %4587 = vst [vmem:[#allocation3 + $0x1b0] sm:$0x3f] %v4577
      %4588 = vst [vmem:[#allocation3 + $0x1b8] sm:$0x3f] %v4580
      %4589 = vrot.lane.b32.xlu0 %v2266, 62
      %v4590 = vpop.permute.xlu0 %4589
      %4591 = vrot.lane.b32.xlu0 %v2267, 62
      %v4592 = vpop.permute.xlu0 %4591
      %4593 = vrot.lane.b32.xlu0 %v2268, 62
      %v4594 = vpop.permute.xlu0 %4593
      %4595 = vrot.lane.b32.xlu0 %v2269, 62
      %v4596 = vpop.permute.xlu0 %4595
      %vm4597 = vcmp.lt.s32.totalorder %v1114, 62
      %v4598 = vsel %vm4597, %v4594, %v4596
      %v4599 = vsel %vm4597, %v4592, %v4594
      %v4600 = vsel %vm4597, %v4590, %v4592
      %v4601 = vsel %vm4597, %v4596, %v4590
      %4602 = vrot.lane.b32.xlu0 %v2270, 62
      %v4603 = vpop.permute.xlu0 %4602
      %4604 = vrot.lane.b32.xlu0 %v2271, 62
      %v4605 = vpop.permute.xlu0 %4604
      %4606 = vrot.lane.b32.xlu0 %v2272, 62
      %v4607 = vpop.permute.xlu0 %4606
      %4608 = vrot.lane.b32.xlu0 %v2273, 62
      %v4609 = vpop.permute.xlu0 %4608
      %v4610 = vsel %vm4597, %v4607, %v4609
      %v4611 = vsel %vm4597, %v4605, %v4607
      %v4612 = vsel %vm4597, %v4603, %v4605
      %v4613 = vsel %vm4597, %v4609, %v4603
      %4614 = vst [vmem:[#allocation2 + $0x1c0] sm:$0x3f] %v4600
      %4615 = vst [vmem:[#allocation2 + $0x1c8] sm:$0x3f] %v4599
      %4616 = vst [vmem:[#allocation2 + $0x1d0] sm:$0x3f] %v4598
      %4617 = vst [vmem:[#allocation2 + $0x1d8] sm:$0x3f] %v4601
      %4618 = vst [vmem:[#allocation3 + $0x1c0] sm:$0x3f] %v4612
      %4619 = vst [vmem:[#allocation3 + $0x1c8] sm:$0x3f] %v4611
      %4620 = vst [vmem:[#allocation3 + $0x1d0] sm:$0x3f] %v4610
      %4621 = vst [vmem:[#allocation3 + $0x1d8] sm:$0x3f] %v4613
      %4622 = vrot.lane.b32.xlu0 %v3042, 62
      %v4623 = vpop.permute.xlu0 %4622
      %4624 = vrot.lane.b32.xlu0 %v3043, 62
      %v4625 = vpop.permute.xlu0 %4624
      %4626 = vrot.lane.b32.xlu0 %v3044, 62
      %v4627 = vpop.permute.xlu0 %4626
      %4628 = vrot.lane.b32.xlu0 %v3045, 62
      %v4629 = vpop.permute.xlu0 %4628
      %v4630 = vsel %vm4597, %v4627, %v4629
      %v4631 = vsel %vm4597, %v4625, %v4627
      %v4632 = vsel %vm4597, %v4623, %v4625
      %v4633 = vsel %vm4597, %v4629, %v4623
      %4634 = vrot.lane.b32.xlu0 %v3046, 62
      %v4635 = vpop.permute.xlu0 %4634
      %4636 = vrot.lane.b32.xlu0 %v3047, 62
      %v4637 = vpop.permute.xlu0 %4636
      %4638 = vrot.lane.b32.xlu0 %v3048, 62
      %v4639 = vpop.permute.xlu0 %4638
      %4640 = vrot.lane.b32.xlu0 %v3049, 62
      %v4641 = vpop.permute.xlu0 %4640
      %v4642 = vsel %vm4597, %v4639, %v4641
      %v4643 = vsel %vm4597, %v4637, %v4639
      %v4644 = vsel %vm4597, %v4635, %v4637
      %v4645 = vsel %vm4597, %v4641, %v4635
      %4646 = vst [vmem:[#allocation2 + $0x1e0] sm:$0x3f] %v4632
      %4647 = vst [vmem:[#allocation2 + $0x1e8] sm:$0x3f] %v4631
      %4648 = vst [vmem:[#allocation2 + $0x1f0] sm:$0x3f] %v4630
      %4649 = vst [vmem:[#allocation2 + $0x1f8] sm:$0x3f] %v4633
      %4650 = vst [vmem:[#allocation3 + $0x1e0] sm:$0x3f] %v4644
      %4651 = vst [vmem:[#allocation3 + $0x1e8] sm:$0x3f] %v4643
      %4652 = vst [vmem:[#allocation3 + $0x1f0] sm:$0x3f] %v4642
      %4653 = vst [vmem:[#allocation3 + $0x1f8] sm:$0x3f] %v4645
      %4654 = vrot.lane.b32.xlu0 %v2266, 59
      %v4655 = vpop.permute.xlu0 %4654
      %4656 = vrot.lane.b32.xlu0 %v2267, 59
      %v4657 = vpop.permute.xlu0 %4656
      %4658 = vrot.lane.b32.xlu0 %v2268, 59
      %v4659 = vpop.permute.xlu0 %4658
      %4660 = vrot.lane.b32.xlu0 %v2269, 59
      %v4661 = vpop.permute.xlu0 %4660
      %vm4662 = vcmp.lt.s32.totalorder %v1114, 59
      %v4663 = vsel %vm4662, %v4659, %v4661
      %v4664 = vsel %vm4662, %v4657, %v4659
      %v4665 = vsel %vm4662, %v4655, %v4657
      %v4666 = vsel %vm4662, %v4661, %v4655
      %4667 = vrot.lane.b32.xlu0 %v2270, 59
      %v4668 = vpop.permute.xlu0 %4667
      %4669 = vrot.lane.b32.xlu0 %v2271, 59
      %v4670 = vpop.permute.xlu0 %4669
      %4671 = vrot.lane.b32.xlu0 %v2272, 59
      %v4672 = vpop.permute.xlu0 %4671
      %4673 = vrot.lane.b32.xlu0 %v2273, 59
      %v4674 = vpop.permute.xlu0 %4673
      %v4675 = vsel %vm4662, %v4672, %v4674
      %v4676 = vsel %vm4662, %v4670, %v4672
      %v4677 = vsel %vm4662, %v4668, %v4670
      %v4678 = vsel %vm4662, %v4674, %v4668
      %4679 = vst [vmem:[#allocation2 + $0x200] sm:$0x3f] %v4665
      %4680 = vst [vmem:[#allocation2 + $0x208] sm:$0x3f] %v4664
      %4681 = vst [vmem:[#allocation2 + $0x210] sm:$0x3f] %v4663
      %4682 = vst [vmem:[#allocation2 + $0x218] sm:$0x3f] %v4666
      %4683 = vst [vmem:[#allocation3 + $0x200] sm:$0x3f] %v4677
      %4684 = vst [vmem:[#allocation3 + $0x208] sm:$0x3f] %v4676
      %4685 = vst [vmem:[#allocation3 + $0x210] sm:$0x3f] %v4675
      %4686 = vst [vmem:[#allocation3 + $0x218] sm:$0x3f] %v4678
      %4687 = vrot.lane.b32.xlu0 %v3042, 59
      %v4688 = vpop.permute.xlu0 %4687
      %4689 = vrot.lane.b32.xlu0 %v3043, 59
      %v4690 = vpop.permute.xlu0 %4689
      %4691 = vrot.lane.b32.xlu0 %v3044, 59
      %v4692 = vpop.permute.xlu0 %4691
      %4693 = vrot.lane.b32.xlu0 %v3045, 59
      %v4694 = vpop.permute.xlu0 %4693
      %v4695 = vsel %vm4662, %v4692, %v4694
      %v4696 = vsel %vm4662, %v4690, %v4692
      %v4697 = vsel %vm4662, %v4688, %v4690
      %v4698 = vsel %vm4662, %v4694, %v4688
      %4699 = vrot.lane.b32.xlu0 %v3046, 59
      %v4700 = vpop.permute.xlu0 %4699
      %4701 = vrot.lane.b32.xlu0 %v3047, 59
      %v4702 = vpop.permute.xlu0 %4701
      %4703 = vrot.lane.b32.xlu0 %v3048, 59
      %v4704 = vpop.permute.xlu0 %4703
      %4705 = vrot.lane.b32.xlu0 %v3049, 59
      %v4706 = vpop.permute.xlu0 %4705
      %v4707 = vsel %vm4662, %v4704, %v4706
      %v4708 = vsel %vm4662, %v4702, %v4704
      %v4709 = vsel %vm4662, %v4700, %v4702
      %v4710 = vsel %vm4662, %v4706, %v4700
      %4711 = vst [vmem:[#allocation2 + $0x220] sm:$0x3f] %v4697
      %4712 = vst [vmem:[#allocation2 + $0x228] sm:$0x3f] %v4696
      %4713 = vst [vmem:[#allocation2 + $0x230] sm:$0x3f] %v4695
      %4714 = vst [vmem:[#allocation2 + $0x238] sm:$0x3f] %v4698
      %4715 = vst [vmem:[#allocation3 + $0x220] sm:$0x3f] %v4709
      %4716 = vst [vmem:[#allocation3 + $0x228] sm:$0x3f] %v4708
      %4717 = vst [vmem:[#allocation3 + $0x230] sm:$0x3f] %v4707
      %4718 = vst [vmem:[#allocation3 + $0x238] sm:$0x3f] %v4710
      %v4719 = vld [vmem:[#allocation2] sm:$0xff]
      %v4720 = vld [vmem:[#allocation2 + $0x8] sm:$0xff]
      %v4721 = vld [vmem:[#allocation2 + $0x10] sm:$0xff]
      %v4722 = vld [vmem:[#allocation2 + $0x18] sm:$0xff]
      %v4723 = vld [vmem:[#allocation2 + $0x20] sm:$0xff]
      %v4724 = vld [vmem:[#allocation2 + $0x28] sm:$0xff]
      %v4725 = vld [vmem:[#allocation2 + $0x30] sm:$0xff]
      %v4726 = vld [vmem:[#allocation2 + $0x38] sm:$0xff]
      %v4727 = vld [vmem:[#allocation2 + $0x40] sm:$0xff]
      %v4728 = vld [vmem:[#allocation2 + $0x48] sm:$0xff]
      %v4729 = vld [vmem:[#allocation2 + $0x50] sm:$0xff]
      %v4730 = vld [vmem:[#allocation2 + $0x58] sm:$0xff]
      %v4731 = vld [vmem:[#allocation2 + $0x60] sm:$0xff]
      %v4732 = vld [vmem:[#allocation2 + $0x68] sm:$0xff]
      %v4733 = vld [vmem:[#allocation2 + $0x70] sm:$0xff]
      %v4734 = vld [vmem:[#allocation2 + $0x78] sm:$0xff]
      %v4735 = vld [vmem:[#allocation2 + $0x80] sm:$0xff]
      %v4736 = vld [vmem:[#allocation2 + $0x88] sm:$0xff]
      %v4737 = vld [vmem:[#allocation2 + $0x90] sm:$0xff]
      %v4738 = vld [vmem:[#allocation2 + $0x98] sm:$0xff]
      %v4739 = vld [vmem:[#allocation2 + $0xa0] sm:$0xff]
      %v4740 = vld [vmem:[#allocation2 + $0xa8] sm:$0xff]
      %v4741 = vld [vmem:[#allocation2 + $0xb0] sm:$0xff]
      %v4742 = vld [vmem:[#allocation2 + $0xb8] sm:$0xff]
      %v4743 = vld [vmem:[#allocation2 + $0xc0] sm:$0xff]
      %v4744 = vld [vmem:[#allocation2 + $0xc8] sm:$0xff]
      %v4745 = vld [vmem:[#allocation2 + $0xd0] sm:$0xff]
      %v4746 = vld [vmem:[#allocation2 + $0xd8] sm:$0xff]
      %v4747 = vld [vmem:[#allocation2 + $0xe0] sm:$0xff]
      %v4748 = vld [vmem:[#allocation2 + $0xe8] sm:$0xff]
      %v4749 = vld [vmem:[#allocation2 + $0xf0] sm:$0xff]
      %v4750 = vld [vmem:[#allocation2 + $0xf8] sm:$0xff]
      %v4751 = vld [vmem:[#allocation2 + $0x100] sm:$0xff]
      %v4752 = vld [vmem:[#allocation2 + $0x108] sm:$0xff]
      %v4753 = vld [vmem:[#allocation2 + $0x110] sm:$0xff]
      %v4754 = vld [vmem:[#allocation2 + $0x118] sm:$0xff]
      %v4755 = vld [vmem:[#allocation2 + $0x120] sm:$0xff]
      %v4756 = vld [vmem:[#allocation2 + $0x128] sm:$0xff]
      %v4757 = vld [vmem:[#allocation2 + $0x130] sm:$0xff]
      %v4758 = vld [vmem:[#allocation2 + $0x138] sm:$0xff]
      %v4759 = vld [vmem:[#allocation2 + $0x140] sm:$0xff]
      %v4760 = vld [vmem:[#allocation2 + $0x148] sm:$0xff]
      %v4761 = vld [vmem:[#allocation2 + $0x150] sm:$0xff]
      %v4762 = vld [vmem:[#allocation2 + $0x158] sm:$0xff]
      %v4763 = vld [vmem:[#allocation2 + $0x160] sm:$0xff]
      %v4764 = vld [vmem:[#allocation2 + $0x168] sm:$0xff]
      %v4765 = vld [vmem:[#allocation2 + $0x170] sm:$0xff]
      %v4766 = vld [vmem:[#allocation2 + $0x178] sm:$0xff]
      %v4767 = vld [vmem:[#allocation2 + $0x180] sm:$0xff]
      %v4768 = vld [vmem:[#allocation2 + $0x188] sm:$0xff]
      %v4769 = vld [vmem:[#allocation2 + $0x190] sm:$0xff]
      %v4770 = vld [vmem:[#allocation2 + $0x198] sm:$0xff]
      %v4771 = vld [vmem:[#allocation2 + $0x1a0] sm:$0xff]
      %v4772 = vld [vmem:[#allocation2 + $0x1a8] sm:$0xff]
      %v4773 = vld [vmem:[#allocation2 + $0x1b0] sm:$0xff]
      %v4774 = vld [vmem:[#allocation2 + $0x1b8] sm:$0xff]
      %v4775 = vld [vmem:[#allocation2 + $0x1c0] sm:$0xff]
      %v4776 = vld [vmem:[#allocation2 + $0x1c8] sm:$0xff]
      %v4777 = vld [vmem:[#allocation2 + $0x1d0] sm:$0xff]
      %v4778 = vld [vmem:[#allocation2 + $0x1d8] sm:$0xff]
      %v4779 = vld [vmem:[#allocation2 + $0x1e0] sm:$0xff]
      %v4780 = vld [vmem:[#allocation2 + $0x1e8] sm:$0xff]
      %v4781 = vld [vmem:[#allocation2 + $0x1f0] sm:$0xff]
      %v4782 = vld [vmem:[#allocation2 + $0x1f8] sm:$0xff]
      %v4783 = vld [vmem:[#allocation2 + $0x200] sm:$0xff]
      %v4784 = vld [vmem:[#allocation2 + $0x208] sm:$0xff]
      %v4785 = vld [vmem:[#allocation2 + $0x210] sm:$0xff]
      %v4786 = vld [vmem:[#allocation2 + $0x218] sm:$0xff]
      %v4787 = vld [vmem:[#allocation2 + $0x220] sm:$0xff]
      %v4788 = vld [vmem:[#allocation2 + $0x228] sm:$0xff]
      %v4789 = vld [vmem:[#allocation2 + $0x230] sm:$0xff]
      %v4790 = vld [vmem:[#allocation2 + $0x238] sm:$0xff]
      %v4791 = vpack.c.bf16 %v4723, %v4719
      %v4792 = vpack.c.bf16 %v4724, %v4720
      %v4793 = vpack.c.bf16 %v4725, %v4721
      %v4794 = vpack.c.bf16 %v4726, %v4722
      %v4795 = vpack.c.bf16 %v4731, %v4727
      %v4796 = vpack.c.bf16 %v4732, %v4728
      %v4797 = vpack.c.bf16 %v4733, %v4729
      %v4798 = vpack.c.bf16 %v4734, %v4730
      %v4799 = vpack.c.bf16 %v4739, %v4735
      %v4800 = vpack.c.bf16 %v4740, %v4736
      %v4801 = vpack.c.bf16 %v4741, %v4737
      %v4802 = vpack.c.bf16 %v4742, %v4738
      %v4803 = vpack.c.bf16 %v4747, %v4743
      %v4804 = vpack.c.bf16 %v4748, %v4744
      %v4805 = vpack.c.bf16 %v4749, %v4745
      %v4806 = vpack.c.bf16 %v4750, %v4746
      %v4807 = vpack.c.bf16 %v4755, %v4751
      %v4808 = vpack.c.bf16 %v4756, %v4752
      %v4809 = vpack.c.bf16 %v4757, %v4753
      %v4810 = vpack.c.bf16 %v4758, %v4754
      %v4811 = vpack.c.bf16 %v4763, %v4759
      %v4812 = vpack.c.bf16 %v4764, %v4760
      %v4813 = vpack.c.bf16 %v4765, %v4761
      %v4814 = vpack.c.bf16 %v4766, %v4762
      %v4815 = vpack.c.bf16 %v4771, %v4767
      %v4816 = vpack.c.bf16 %v4772, %v4768
      %v4817 = vpack.c.bf16 %v4773, %v4769
      %v4818 = vpack.c.bf16 %v4774, %v4770
      %v4819 = vpack.c.bf16 %v4779, %v4775
      %v4820 = vpack.c.bf16 %v4780, %v4776
      %v4821 = vpack.c.bf16 %v4781, %v4777
      %v4822 = vpack.c.bf16 %v4782, %v4778
      %v4823 = vpack.c.bf16 %v4787, %v4783
      %v4824 = vpack.c.bf16 %v4788, %v4784
      %v4825 = vpack.c.bf16 %v4789, %v4785
      %v4826 = vpack.c.bf16 %v4790, %v4786
      %v4827 = vld [vmem:[#allocation3] sm:$0xff]
      %v4828 = vld [vmem:[#allocation3 + $0x8] sm:$0xff]
      %v4829 = vld [vmem:[#allocation3 + $0x10] sm:$0xff]
      %v4830 = vld [vmem:[#allocation3 + $0x18] sm:$0xff]
      %v4831 = vld [vmem:[#allocation3 + $0x20] sm:$0xff]
      %v4832 = vld [vmem:[#allocation3 + $0x28] sm:$0xff]
      %v4833 = vld [vmem:[#allocation3 + $0x30] sm:$0xff]
      %v4834 = vld [vmem:[#allocation3 + $0x38] sm:$0xff]
      %v4835 = vld [vmem:[#allocation3 + $0x40] sm:$0xff]
      %v4836 = vld [vmem:[#allocation3 + $0x48] sm:$0xff]
      %v4837 = vld [vmem:[#allocation3 + $0x50] sm:$0xff]
      %v4838 = vld [vmem:[#allocation3 + $0x58] sm:$0xff]
      %v4839 = vld [vmem:[#allocation3 + $0x60] sm:$0xff]
      %v4840 = vld [vmem:[#allocation3 + $0x68] sm:$0xff]
      %v4841 = vld [vmem:[#allocation3 + $0x70] sm:$0xff]
      %v4842 = vld [vmem:[#allocation3 + $0x78] sm:$0xff]
      %v4843 = vld [vmem:[#allocation3 + $0x80] sm:$0xff]
      %v4844 = vld [vmem:[#allocation3 + $0x88] sm:$0xff]
      %v4845 = vld [vmem:[#allocation3 + $0x90] sm:$0xff]
      %v4846 = vld [vmem:[#allocation3 + $0x98] sm:$0xff]
      %v4847 = vld [vmem:[#allocation3 + $0xa0] sm:$0xff]
      %v4848 = vld [vmem:[#allocation3 + $0xa8] sm:$0xff]
      %v4849 = vld [vmem:[#allocation3 + $0xb0] sm:$0xff]
      %v4850 = vld [vmem:[#allocation3 + $0xb8] sm:$0xff]
      %v4851 = vld [vmem:[#allocation3 + $0xc0] sm:$0xff]
      %v4852 = vld [vmem:[#allocation3 + $0xc8] sm:$0xff]
      %v4853 = vld [vmem:[#allocation3 + $0xd0] sm:$0xff]
      %v4854 = vld [vmem:[#allocation3 + $0xd8] sm:$0xff]
      %v4855 = vld [vmem:[#allocation3 + $0xe0] sm:$0xff]
      %v4856 = vld [vmem:[#allocation3 + $0xe8] sm:$0xff]
      %v4857 = vld [vmem:[#allocation3 + $0xf0] sm:$0xff]
      %v4858 = vld [vmem:[#allocation3 + $0xf8] sm:$0xff]
      %v4859 = vld [vmem:[#allocation3 + $0x100] sm:$0xff]
      %v4860 = vld [vmem:[#allocation3 + $0x108] sm:$0xff]
      %v4861 = vld [vmem:[#allocation3 + $0x110] sm:$0xff]
      %v4862 = vld [vmem:[#allocation3 + $0x118] sm:$0xff]
      %v4863 = vld [vmem:[#allocation3 + $0x120] sm:$0xff]
      %v4864 = vld [vmem:[#allocation3 + $0x128] sm:$0xff]
      %v4865 = vld [vmem:[#allocation3 + $0x130] sm:$0xff]
      %v4866 = vld [vmem:[#allocation3 + $0x138] sm:$0xff]
      %v4867 = vld [vmem:[#allocation3 + $0x140] sm:$0xff]
      %v4868 = vld [vmem:[#allocation3 + $0x148] sm:$0xff]
      %v4869 = vld [vmem:[#allocation3 + $0x150] sm:$0xff]
      %v4870 = vld [vmem:[#allocation3 + $0x158] sm:$0xff]
      %v4871 = vld [vmem:[#allocation3 + $0x160] sm:$0xff]
      %v4872 = vld [vmem:[#allocation3 + $0x168] sm:$0xff]
      %v4873 = vld [vmem:[#allocation3 + $0x170] sm:$0xff]
      %v4874 = vld [vmem:[#allocation3 + $0x178] sm:$0xff]
      %v4875 = vld [vmem:[#allocation3 + $0x180] sm:$0xff]
      %v4876 = vld [vmem:[#allocation3 + $0x188] sm:$0xff]
      %v4877 = vld [vmem:[#allocation3 + $0x190] sm:$0xff]
      %v4878 = vld [vmem:[#allocation3 + $0x198] sm:$0xff]
      %v4879 = vld [vmem:[#allocation3 + $0x1a0] sm:$0xff]
      %v4880 = vld [vmem:[#allocation3 + $0x1a8] sm:$0xff]
      %v4881 = vld [vmem:[#allocation3 + $0x1b0] sm:$0xff]
      %v4882 = vld [vmem:[#allocation3 + $0x1b8] sm:$0xff]
      %v4883 = vld [vmem:[#allocation3 + $0x1c0] sm:$0xff]
      %v4884 = vld [vmem:[#allocation3 + $0x1c8] sm:$0xff]
      %v4885 = vld [vmem:[#allocation3 + $0x1d0] sm:$0xff]
      %v4886 = vld [vmem:[#allocation3 + $0x1d8] sm:$0xff]
      %v4887 = vld [vmem:[#allocation3 + $0x1e0] sm:$0xff]
      %v4888 = vld [vmem:[#allocation3 + $0x1e8] sm:$0xff]
      %v4889 = vld [vmem:[#allocation3 + $0x1f0] sm:$0xff]
      %v4890 = vld [vmem:[#allocation3 + $0x1f8] sm:$0xff]
      %v4891 = vld [vmem:[#allocation3 + $0x200] sm:$0xff]
      %v4892 = vld [vmem:[#allocation3 + $0x208] sm:$0xff]
      %v4893 = vld [vmem:[#allocation3 + $0x210] sm:$0xff]
      %v4894 = vld [vmem:[#allocation3 + $0x218] sm:$0xff]
      %v4895 = vld [vmem:[#allocation3 + $0x220] sm:$0xff]
      %v4896 = vld [vmem:[#allocation3 + $0x228] sm:$0xff]
      %v4897 = vld [vmem:[#allocation3 + $0x230] sm:$0xff]
      %v4898 = vld [vmem:[#allocation3 + $0x238] sm:$0xff]
      %v4899 = vpack.c.bf16 %v4831, %v4827
      %v4900 = vpack.c.bf16 %v4832, %v4828
      %v4901 = vpack.c.bf16 %v4833, %v4829
      %v4902 = vpack.c.bf16 %v4834, %v4830
      %v4903 = vpack.c.bf16 %v4839, %v4835
      %v4904 = vpack.c.bf16 %v4840, %v4836
      %v4905 = vpack.c.bf16 %v4841, %v4837
      %v4906 = vpack.c.bf16 %v4842, %v4838
      %v4907 = vpack.c.bf16 %v4847, %v4843
      %v4908 = vpack.c.bf16 %v4848, %v4844
      %v4909 = vpack.c.bf16 %v4849, %v4845
      %v4910 = vpack.c.bf16 %v4850, %v4846
      %v4911 = vpack.c.bf16 %v4855, %v4851
      %v4912 = vpack.c.bf16 %v4856, %v4852
      %v4913 = vpack.c.bf16 %v4857, %v4853
      %v4914 = vpack.c.bf16 %v4858, %v4854
      %v4915 = vpack.c.bf16 %v4863, %v4859
      %v4916 = vpack.c.bf16 %v4864, %v4860
      %v4917 = vpack.c.bf16 %v4865, %v4861
      %v4918 = vpack.c.bf16 %v4866, %v4862
      %v4919 = vpack.c.bf16 %v4871, %v4867
      %v4920 = vpack.c.bf16 %v4872, %v4868
      %v4921 = vpack.c.bf16 %v4873, %v4869
      %v4922 = vpack.c.bf16 %v4874, %v4870
      %v4923 = vpack.c.bf16 %v4879, %v4875
      %v4924 = vpack.c.bf16 %v4880, %v4876
      %v4925 = vpack.c.bf16 %v4881, %v4877
      %v4926 = vpack.c.bf16 %v4882, %v4878
      %v4927 = vpack.c.bf16 %v4887, %v4883
      %v4928 = vpack.c.bf16 %v4888, %v4884
      %v4929 = vpack.c.bf16 %v4889, %v4885
      %v4930 = vpack.c.bf16 %v4890, %v4886
      %v4931 = vpack.c.bf16 %v4895, %v4891
      %v4932 = vpack.c.bf16 %v4896, %v4892
      %v4933 = vpack.c.bf16 %v4897, %v4893
      %v4934 = vpack.c.bf16 %v4898, %v4894
      %v4935 = vld [vmem:[%s19] sm:$0xf]
      %v4936 = vld [vmem:[%s20] sm:$0xf]
      %v4939 = vunpack.c.l.s4 1983009808
      %v4940 = vunpack.c.0.s8 %v4939
      %v4941 = vlaneseq
      %v4942 = vshrl.u32 %v4941, 7
      %v4943 = vsub.s32 %v4940, %v4942
      %v4944 = vrot.slane %v4935, %v4943
      %v4945 = vcombine.high %v4944, %v4944
      %v4948 = vsel %vm3806, %v4945, 0
      %4950 = vmatprep.subr.bf16.mxu0 %v4792
      %4951 = vmatpush1.bf16.msra.mxu0 %v4791
      %4952 = vmatprep.subr.bf16.mxu0 %v4796
      %4953 = vmatpush1.bf16.msra.mxu0 %v4795
      %4954 = vmatprep.subr.bf16.mxu0 %v4800
      %4955 = vmatpush1.bf16.msra.mxu0 %v4799
      %4956 = vmatprep.subr.bf16.mxu0 %v4804
      %4957 = vmatpush1.bf16.msra.mxu0 %v4803
      %4958 = vmatprep.subr.bf16.mxu0 %v4808
      %4959 = vmatpush1.bf16.msra.mxu0 %v4807
      %4960 = vmatprep.subr.bf16.mxu0 %v4812
      %4961 = vmatpush1.bf16.msra.mxu0 %v4811
      %4962 = vmatprep.subr.bf16.mxu0 %v4816
      %4963 = vmatpush1.bf16.msra.mxu0 %v4815
      %4964 = vmatprep.subr.bf16.mxu0 %v4820
      %4965 = vmatpush1.bf16.msra.mxu0 %v4819
      %4966 = vmatprep.subr.bf16.mxu0 %v4824
      %4967 = vmatpush1.bf16.msra.mxu0 %v4823
      %4968 = vmatprep.subr.bf16.mxu0 0
      %4969 = vmatpush1.bf16.msra.mxu0 0
      %4970 = vmatprep.subr.bf16.mxu0 0
      %4971 = vmatpush1.bf16.msra.mxu0 0
      %4972 = vmatprep.subr.bf16.mxu0 0
      %4973 = vmatpush1.bf16.msra.mxu0 0
      %4974 = vmatprep.subr.bf16.mxu0 0
      %4975 = vmatpush1.bf16.msra.mxu0 0
      %4976 = vmatprep.subr.bf16.mxu0 0
      %4977 = vmatpush1.bf16.msra.mxu0 0
      %4978 = vmatprep.subr.bf16.mxu0 0
      %4979 = vmatpush1.bf16.msra.mxu0 0
      %4980 = vmatprep.subr.bf16.mxu0 0
      %4981 = vmatpush1.bf16.msra.mxu0 0
      %4982 = vmatprep.mubr.bf16.mxu0 %v4948
      %4983 = vmatmul.mubr.bf16.gmra.mrb[0].mxu0 %v4944
      %v4984 = vpop.f32.mrb[0].mxu0
      %v4985 = vadd.f32 0.0, %v4984
      %v4986 = vpop.f32.mrb[0].mxu0
      %v4987 = vadd.f32 0.0, %v4986
      %v4988 = vpop.f32.mrb[0].mxu0
      %v4989 = vpop.f32.mrb[0].mxu0
      %4990 = vdwg.mxu0
      %4991 = vmatprep.subr.bf16.mxu0 %v4794
      %4992 = vmatpush1.bf16.msra.mxu0 %v4793
      %4993 = vmatprep.subr.bf16.mxu0 %v4798
      %4994 = vmatpush1.bf16.msra.mxu0 %v4797
      %4995 = vmatprep.subr.bf16.mxu0 %v4802
      %4996 = vmatpush1.bf16.msra.mxu0 %v4801
      %4997 = vmatprep.subr.bf16.mxu0 %v4806
      %4998 = vmatpush1.bf16.msra.mxu0 %v4805
      %4999 = vmatprep.subr.bf16.mxu0 %v4810
      %5000 = vmatpush1.bf16.msra.mxu0 %v4809
      %5001 = vmatprep.subr.bf16.mxu0 %v4814
      %5002 = vmatpush1.bf16.msra.mxu0 %v4813
      %5003 = vmatprep.subr.bf16.mxu0 %v4818
      %5004 = vmatpush1.bf16.msra.mxu0 %v4817
      %5005 = vmatprep.subr.bf16.mxu0 %v4822
      %5006 = vmatpush1.bf16.msra.mxu0 %v4821
      %5007 = vmatprep.subr.bf16.mxu0 %v4826
      %5008 = vmatpush1.bf16.msra.mxu0 %v4825
      %5009 = vmatprep.subr.bf16.mxu0 0
      %5010 = vmatpush1.bf16.msra.mxu0 0
      %5011 = vmatprep.subr.bf16.mxu0 0
      %5012 = vmatpush1.bf16.msra.mxu0 0
      %5013 = vmatprep.subr.bf16.mxu0 0
      %5014 = vmatpush1.bf16.msra.mxu0 0
      %5015 = vmatprep.subr.bf16.mxu0 0
      %5016 = vmatpush1.bf16.msra.mxu0 0
      %5017 = vmatprep.subr.bf16.mxu0 0
      %5018 = vmatpush1.bf16.msra.mxu0 0
      %5019 = vmatprep.subr.bf16.mxu0 0
      %5020 = vmatpush1.bf16.msra.mxu0 0
      %5021 = vmatprep.subr.bf16.mxu0 0
      %5022 = vmatpush1.bf16.msra.mxu0 0
      %5023 = vmatprep.mubr.bf16.mxu0 %v4948
      %5024 = vmatmul.mubr.bf16.gmra.mrb[0].mxu0 %v4944
      %v5025 = vpop.f32.mrb[0].mxu0
      %v5026 = vadd.f32 0.0, %v5025
      %v5027 = vpop.f32.mrb[0].mxu0
      %v5028 = vadd.f32 0.0, %v5027
      %v5029 = vpop.f32.mrb[0].mxu0
      %v5030 = vpop.f32.mrb[0].mxu0
      %5031 = vdwg.mxu0
      %v5034 = vunpack.c.l.s4 1983009808
      %v5035 = vunpack.c.0.s8 %v5034
      %v5036 = vlaneseq
      %v5037 = vshrl.u32 %v5036, 7
      %v5038 = vsub.s32 %v5035, %v5037
      %v5039 = vrot.slane %v4936, %v5038
      %v5040 = vcombine.high %v5039, %v5039
      %v5043 = vsel %vm3806, %v5040, 0
      %5045 = vmatprep.subr.bf16.mxu0 %v4900
      %5046 = vmatpush1.bf16.msra.mxu0 %v4899
      %5047 = vmatprep.subr.bf16.mxu0 %v4904
      %5048 = vmatpush1.bf16.msra.mxu0 %v4903
      %5049 = vmatprep.subr.bf16.mxu0 %v4908
      %5050 = vmatpush1.bf16.msra.mxu0 %v4907
      %5051 = vmatprep.subr.bf16.mxu0 %v4912
      %5052 = vmatpush1.bf16.msra.mxu0 %v4911
      %5053 = vmatprep.subr.bf16.mxu0 %v4916
      %5054 = vmatpush1.bf16.msra.mxu0 %v4915
      %5055 = vmatprep.subr.bf16.mxu0 %v4920
      %5056 = vmatpush1.bf16.msra.mxu0 %v4919
      %5057 = vmatprep.subr.bf16.mxu0 %v4924
      %5058 = vmatpush1.bf16.msra.mxu0 %v4923
      %5059 = vmatprep.subr.bf16.mxu0 %v4928
      %5060 = vmatpush1.bf16.msra.mxu0 %v4927
      %5061 = vmatprep.subr.bf16.mxu0 %v4932
      %5062 = vmatpush1.bf16.msra.mxu0 %v4931
      %5063 = vmatprep.subr.bf16.mxu0 0
      %5064 = vmatpush1.bf16.msra.mxu0 0
      %5065 = vmatprep.subr.bf16.mxu0 0
      %5066 = vmatpush1.bf16.msra.mxu0 0
      %5067 = vmatprep.subr.bf16.mxu0 0
      %5068 = vmatpush1.bf16.msra.mxu0 0
      %5069 = vmatprep.subr.bf16.mxu0 0
      %5070 = vmatpush1.bf16.msra.mxu0 0
      %5071 = vmatprep.subr.bf16.mxu0 0
      %5072 = vmatpush1.bf16.msra.mxu0 0
      %5073 = vmatprep.subr.bf16.mxu0 0
      %5074 = vmatpush1.bf16.msra.mxu0 0
      %5075 = vmatprep.subr.bf16.mxu0 0
      %5076 = vmatpush1.bf16.msra.mxu0 0
      %5077 = vmatprep.mubr.bf16.mxu0 %v5043
      %5078 = vmatmul.mubr.bf16.gmra.mrb[0].mxu0 %v5039
      %v5079 = vpop.f32.mrb[0].mxu0
      %v5080 = vadd.f32 0.0, %v5079
      %v5081 = vpop.f32.mrb[0].mxu0
      %v5082 = vadd.f32 0.0, %v5081
      %v5083 = vpop.f32.mrb[0].mxu0
      %v5084 = vpop.f32.mrb[0].mxu0
      %5085 = vdwg.mxu0
      %5086 = vmatprep.subr.bf16.mxu0 %v4902
      %5087 = vmatpush1.bf16.msra.mxu0 %v4901
      %5088 = vmatprep.subr.bf16.mxu0 %v4906
      %5089 = vmatpush1.bf16.msra.mxu0 %v4905
      %5090 = vmatprep.subr.bf16.mxu0 %v4910
      %5091 = vmatpush1.bf16.msra.mxu0 %v4909
      %5092 = vmatprep.subr.bf16.mxu0 %v4914
      %5093 = vmatpush1.bf16.msra.mxu0 %v4913
      %5094 = vmatprep.subr.bf16.mxu0 %v4918
      %5095 = vmatpush1.bf16.msra.mxu0 %v4917
      %5096 = vmatprep.subr.bf16.mxu0 %v4922
      %5097 = vmatpush1.bf16.msra.mxu0 %v4921
      %5098 = vmatprep.subr.bf16.mxu0 %v4926
      %5099 = vmatpush1.bf16.msra.mxu0 %v4925
      %5100 = vmatprep.subr.bf16.mxu0 %v4930
      %5101 = vmatpush1.bf16.msra.mxu0 %v4929
      %5102 = vmatprep.subr.bf16.mxu0 %v4934
      %5103 = vmatpush1.bf16.msra.mxu0 %v4933
      %5104 = vmatprep.subr.bf16.mxu0 0
      %5105 = vmatpush1.bf16.msra.mxu0 0
      %5106 = vmatprep.subr.bf16.mxu0 0
      %5107 = vmatpush1.bf16.msra.mxu0 0
      %5108 = vmatprep.subr.bf16.mxu0 0
      %5109 = vmatpush1.bf16.msra.mxu0 0
      %5110 = vmatprep.subr.bf16.mxu0 0
      %5111 = vmatpush1.bf16.msra.mxu0 0
      %5112 = vmatprep.subr.bf16.mxu0 0
      %5113 = vmatpush1.bf16.msra.mxu0 0
      %5114 = vmatprep.subr.bf16.mxu0 0
      %5115 = vmatpush1.bf16.msra.mxu0 0
      %5116 = vmatprep.subr.bf16.mxu0 0
      %5117 = vmatpush1.bf16.msra.mxu0 0
      %5118 = vmatprep.mubr.bf16.mxu0 %v5043
      %5119 = vmatmul.mubr.bf16.gmra.mrb[0].mxu0 %v5039
      %v5120 = vpop.f32.mrb[0].mxu0
      %v5121 = vadd.f32 0.0, %v5120
      %v5122 = vpop.f32.mrb[0].mxu0
      %v5123 = vadd.f32 0.0, %v5122
      %v5124 = vpop.f32.mrb[0].mxu0
      %v5125 = vpop.f32.mrb[0].mxu0
      %5126 = vdwg.mxu0
      %5127 = vmatprep.subr.bf16.mxu0 %v4792
      %5128 = vmatpush1.bf16.msra.mxu0 %v4791
      %5129 = vmatprep.subr.bf16.mxu0 %v4796
      %5130 = vmatpush1.bf16.msra.mxu0 %v4795
      %5131 = vmatprep.subr.bf16.mxu0 %v4800
      %5132 = vmatpush1.bf16.msra.mxu0 %v4799
      %5133 = vmatprep.subr.bf16.mxu0 %v4804
      %5134 = vmatpush1.bf16.msra.mxu0 %v4803
      %5135 = vmatprep.subr.bf16.mxu0 %v4808
      %5136 = vmatpush1.bf16.msra.mxu0 %v4807
      %5137 = vmatprep.subr.bf16.mxu0 %v4812
      %5138 = vmatpush1.bf16.msra.mxu0 %v4811
      %5139 = vmatprep.subr.bf16.mxu0 %v4816
      %5140 = vmatpush1.bf16.msra.mxu0 %v4815
      %5141 = vmatprep.subr.bf16.mxu0 %v4820
      %5142 = vmatpush1.bf16.msra.mxu0 %v4819
      %5143 = vmatprep.subr.bf16.mxu0 %v4824
      %5144 = vmatpush1.bf16.msra.mxu0 %v4823
      %5145 = vmatprep.subr.bf16.mxu0 0
      %5146 = vmatpush1.bf16.msra.mxu0 0
      %5147 = vmatprep.subr.bf16.mxu0 0
      %5148 = vmatpush1.bf16.msra.mxu0 0
      %5149 = vmatprep.subr.bf16.mxu0 0
      %5150 = vmatpush1.bf16.msra.mxu0 0
      %5151 = vmatprep.subr.bf16.mxu0 0
      %5152 = vmatpush1.bf16.msra.mxu0 0
      %5153 = vmatprep.subr.bf16.mxu0 0
      %5154 = vmatpush1.bf16.msra.mxu0 0
      %5155 = vmatprep.subr.bf16.mxu0 0
      %5156 = vmatpush1.bf16.msra.mxu0 0
      %5157 = vmatprep.subr.bf16.mxu0 0
      %5158 = vmatpush1.bf16.msra.mxu0 0
      %5159 = vmatprep.mubr.bf16.mxu0 %v5043
      %5160 = vmatmul.mubr.bf16.gmra.mrb[0].mxu0 %v5039
      %v5161 = vpop.f32.mrb[0].mxu0
      %v5162 = vadd.f32 0.0, %v5161
      %v5163 = vpop.f32.mrb[0].mxu0
      %v5164 = vadd.f32 0.0, %v5163
      %v5165 = vpop.f32.mrb[0].mxu0
      %v5166 = vpop.f32.mrb[0].mxu0
      %5167 = vdwg.mxu0
      %5168 = vmatprep.subr.bf16.mxu0 %v4794
      %5169 = vmatpush1.bf16.msra.mxu0 %v4793
      %5170 = vmatprep.subr.bf16.mxu0 %v4798
      %5171 = vmatpush1.bf16.msra.mxu0 %v4797
      %5172 = vmatprep.subr.bf16.mxu0 %v4802
      %5173 = vmatpush1.bf16.msra.mxu0 %v4801
      %5174 = vmatprep.subr.bf16.mxu0 %v4806
      %5175 = vmatpush1.bf16.msra.mxu0 %v4805
      %5176 = vmatprep.subr.bf16.mxu0 %v4810
      %5177 = vmatpush1.bf16.msra.mxu0 %v4809
      %5178 = vmatprep.subr.bf16.mxu0 %v4814
      %5179 = vmatpush1.bf16.msra.mxu0 %v4813
      %5180 = vmatprep.subr.bf16.mxu0 %v4818
      %5181 = vmatpush1.bf16.msra.mxu0 %v4817
      %5182 = vmatprep.subr.bf16.mxu0 %v4822
      %5183 = vmatpush1.bf16.msra.mxu0 %v4821
      %5184 = vmatprep.subr.bf16.mxu0 %v4826
      %5185 = vmatpush1.bf16.msra.mxu0 %v4825
      %5186 = vmatprep.subr.bf16.mxu0 0
      %5187 = vmatpush1.bf16.msra.mxu0 0
      %5188 = vmatprep.subr.bf16.mxu0 0
      %5189 = vmatpush1.bf16.msra.mxu0 0
      %5190 = vmatprep.subr.bf16.mxu0 0
      %5191 = vmatpush1.bf16.msra.mxu0 0
      %5192 = vmatprep.subr.bf16.mxu0 0
      %5193 = vmatpush1.bf16.msra.mxu0 0
      %5194 = vmatprep.subr.bf16.mxu0 0
      %5195 = vmatpush1.bf16.msra.mxu0 0
      %5196 = vmatprep.subr.bf16.mxu0 0
      %5197 = vmatpush1.bf16.msra.mxu0 0
      %5198 = vmatprep.subr.bf16.mxu0 0
      %5199 = vmatpush1.bf16.msra.mxu0 0
      %5200 = vmatprep.mubr.bf16.mxu0 %v5043
      %5201 = vmatmul.mubr.bf16.gmra.mrb[0].mxu0 %v5039
      %v5202 = vpop.f32.mrb[0].mxu0
      %v5203 = vadd.f32 0.0, %v5202
      %v5204 = vpop.f32.mrb[0].mxu0
      %v5205 = vadd.f32 0.0, %v5204
      %v5206 = vpop.f32.mrb[0].mxu0
      %v5207 = vpop.f32.mrb[0].mxu0
      %5208 = vdwg.mxu0
      %v5209 = vsub.f32 %v4985, %v5080
      %v5210 = vsub.f32 %v4987, %v5082
      %v5211 = vsub.f32 %v5026, %v5121
      %v5212 = vsub.f32 %v5028, %v5123
      %v5213 = vld [vmem:[%s21] sm:$0xf]
      %5215 = vset.pattern.permute.xlu0 0
      %5216 = vperm.xlu0 %5215, %v5213
      %v5217 = vpop.permute.xlu0 %5216
      %v5219 = vadd.f32 %v5209, %v5217
      %v5220 = vadd.f32 %v5210, %v5217
      %v5221 = vadd.f32 %v5211, %v5217
      %v5222 = vadd.f32 %v5212, %v5217
      %5223 = vmatprep.subr.bf16.mxu0 %v4900
      %5224 = vmatpush1.bf16.msra.mxu0 %v4899
      %5225 = vmatprep.subr.bf16.mxu0 %v4904
      %5226 = vmatpush1.bf16.msra.mxu0 %v4903
      %5227 = vmatprep.subr.bf16.mxu0 %v4908
      %5228 = vmatpush1.bf16.msra.mxu0 %v4907
      %5229 = vmatprep.subr.bf16.mxu0 %v4912
      %5230 = vmatpush1.bf16.msra.mxu0 %v4911
      %5231 = vmatprep.subr.bf16.mxu0 %v4916
      %5232 = vmatpush1.bf16.msra.mxu0 %v4915
      %5233 = vmatprep.subr.bf16.mxu0 %v4920
      %5234 = vmatpush1.bf16.msra.mxu0 %v4919
      %5235 = vmatprep.subr.bf16.mxu0 %v4924
      %5236 = vmatpush1.bf16.msra.mxu0 %v4923
      %5237 = vmatprep.subr.bf16.mxu0 %v4928
      %5238 = vmatpush1.bf16.msra.mxu0 %v4927
      %5239 = vmatprep.subr.bf16.mxu0 %v4932
      %5240 = vmatpush1.bf16.msra.mxu0 %v4931
      %5241 = vmatprep.subr.bf16.mxu0 0
      %5242 = vmatpush1.bf16.msra.mxu0 0
      %5243 = vmatprep.subr.bf16.mxu0 0
      %5244 = vmatpush1.bf16.msra.mxu0 0
      %5245 = vmatprep.subr.bf16.mxu0 0
      %5246 = vmatpush1.bf16.msra.mxu0 0
      %5247 = vmatprep.subr.bf16.mxu0 0
      %5248 = vmatpush1.bf16.msra.mxu0 0
      %5249 = vmatprep.subr.bf16.mxu0 0
      %5250 = vmatpush1.bf16.msra.mxu0 0
      %5251 = vmatprep.subr.bf16.mxu0 0
      %5252 = vmatpush1.bf16.msra.mxu0 0
      %5253 = vmatprep.subr.bf16.mxu0 0
      %5254 = vmatpush1.bf16.msra.mxu0 0
      %5255 = vmatprep.mubr.bf16.mxu0 %v4948
      %5256 = vmatmul.mubr.bf16.gmra.mrb[0].mxu0 %v4944
      %v5257 = vpop.f32.mrb[0].mxu0
      %v5258 = vadd.f32 %v5162, %v5257
      %v5259 = vpop.f32.mrb[0].mxu0
      %v5260 = vadd.f32 %v5164, %v5259
      %v5261 = vpop.f32.mrb[0].mxu0
      %v5262 = vpop.f32.mrb[0].mxu0
      %5263 = vdwg.mxu0
      %5264 = vmatprep.subr.bf16.mxu0 %v4902
      %5265 = vmatpush1.bf16.msra.mxu0 %v4901
      %5266 = vmatprep.subr.bf16.mxu0 %v4906
      %5267 = vmatpush1.bf16.msra.mxu0 %v4905
      %5268 = vmatprep.subr.bf16.mxu0 %v4910
      %5269 = vmatpush1.bf16.msra.mxu0 %v4909
      %5270 = vmatprep.subr.bf16.mxu0 %v4914
      %5271 = vmatpush1.bf16.msra.mxu0 %v4913
      %5272 = vmatprep.subr.bf16.mxu0 %v4918
      %5273 = vmatpush1.bf16.msra.mxu0 %v4917
      %5274 = vmatprep.subr.bf16.mxu0 %v4922
      %5275 = vmatpush1.bf16.msra.mxu0 %v4921
      %5276 = vmatprep.subr.bf16.mxu0 %v4926
      %5277 = vmatpush1.bf16.msra.mxu0 %v4925
      %5278 = vmatprep.subr.bf16.mxu0 %v4930
      %5279 = vmatpush1.bf16.msra.mxu0 %v4929
      %5280 = vmatprep.subr.bf16.mxu0 %v4934
      %5281 = vmatpush1.bf16.msra.mxu0 %v4933
      %5282 = vmatprep.subr.bf16.mxu0 0
      %5283 = vmatpush1.bf16.msra.mxu0 0
      %5284 = vmatprep.subr.bf16.mxu0 0
      %5285 = vmatpush1.bf16.msra.mxu0 0
      %5286 = vmatprep.subr.bf16.mxu0 0
      %5287 = vmatpush1.bf16.msra.mxu0 0
      %5288 = vmatprep.subr.bf16.mxu0 0
      %5289 = vmatpush1.bf16.msra.mxu0 0
      %5290 = vmatprep.subr.bf16.mxu0 0
      %5291 = vmatpush1.bf16.msra.mxu0 0
      %5292 = vmatprep.subr.bf16.mxu0 0
      %5293 = vmatpush1.bf16.msra.mxu0 0
      %5294 = vmatprep.subr.bf16.mxu0 0
      %5295 = vmatpush1.bf16.msra.mxu0 0
      %5296 = vmatprep.mubr.bf16.mxu0 %v4948
      %5297 = vmatmul.mubr.bf16.gmra.mrb[0].mxu0 %v4944
      %v5298 = vpop.f32.mrb[0].mxu0
      %v5299 = vadd.f32 %v5203, %v5298
      %v5300 = vpop.f32.mrb[0].mxu0
      %v5301 = vadd.f32 %v5205, %v5300
      %v5302 = vpop.f32.mrb[0].mxu0
      %v5303 = vpop.f32.mrb[0].mxu0
      %5304 = vdwg.mxu0
      %v5305 = vld [vmem:[%s22] sm:$0xf]
      %5307 = vset.pattern.permute.xlu0 0
      %5308 = vperm.xlu0 %5307, %v5305
      %v5309 = vpop.permute.xlu0 %5308
      %v5311 = vadd.f32 %v5258, %v5309
      %v5312 = vadd.f32 %v5260, %v5309
      %v5313 = vadd.f32 %v5299, %v5309
      %v5314 = vadd.f32 %v5301, %v5309
      %v5315 = vmul.f32 %v5219, %v1881
      %v5316 = vmul.f32 %v5220, %v1885
      %v5317 = vmul.f32 %v5221, %v1889
      %v5318 = vmul.f32 %v5222, %v1893
      %v5319 = vmul.f32 %v5311, %v1881
      %v5320 = vmul.f32 %v5312, %v1885
      %v5321 = vmul.f32 %v5313, %v1889
      %v5322 = vmul.f32 %v5314, %v1893
      %5323 = vrot.lane.b32.xlu0 %v1898, 23
      %v5324 = vpop.permute.xlu0 %5323
      %5325 = vrot.lane.b32.xlu0 %v1899, 23
      %v5326 = vpop.permute.xlu0 %5325
      %5327 = vrot.lane.b32.xlu0 %v1900, 23
      %v5328 = vpop.permute.xlu0 %5327
      %5329 = vrot.lane.b32.xlu0 %v1901, 23
      %v5330 = vpop.permute.xlu0 %5329
      %v5331 = vsel %vm1115, %v5328, %v5330
      %v5332 = vsel %vm1115, %v5326, %v5328
      %v5333 = vsel %vm1115, %v5324, %v5326
      %v5334 = vsel %vm1115, %v5330, %v5324
      %5335 = vrot.lane.b32.xlu0 %v1902, 23
      %v5336 = vpop.permute.xlu0 %5335
      %5337 = vrot.lane.b32.xlu0 %v1903, 23
      %v5338 = vpop.permute.xlu0 %5337
      %5339 = vrot.lane.b32.xlu0 %v1904, 23
      %v5340 = vpop.permute.xlu0 %5339
      %5341 = vrot.lane.b32.xlu0 %v1905, 23
      %v5342 = vpop.permute.xlu0 %5341
      %v5343 = vsel %vm1115, %v5340, %v5342
      %v5344 = vsel %vm1115, %v5338, %v5340
      %v5345 = vsel %vm1115, %v5336, %v5338
      %v5346 = vsel %vm1115, %v5342, %v5336
      %5347 = vst [vmem:[#allocation2] sm:$0xf] %v5334
      %5348 = vst [vmem:[#allocation2 + $0x8] sm:$0xf] %v5333
      %5349 = vst [vmem:[#allocation2 + $0x10] sm:$0xf] %v5332
      %5350 = vst [vmem:[#allocation2 + $0x18] sm:$0xf] %v5331
      %5351 = vst [vmem:[#allocation3] sm:$0xf] %v5346
      %5352 = vst [vmem:[#allocation3 + $0x8] sm:$0xf] %v5345
      %5353 = vst [vmem:[#allocation3 + $0x10] sm:$0xf] %v5344
      %5354 = vst [vmem:[#allocation3 + $0x18] sm:$0xf] %v5343
      %5355 = vrot.lane.b32.xlu0 %v4175, 23
      %v5356 = vpop.permute.xlu0 %5355
      %5357 = vrot.lane.b32.xlu0 %v4176, 23
      %v5358 = vpop.permute.xlu0 %5357
      %5359 = vrot.lane.b32.xlu0 %v4177, 23
      %v5360 = vpop.permute.xlu0 %5359
      %5361 = vrot.lane.b32.xlu0 %v4178, 23
      %v5362 = vpop.permute.xlu0 %5361
      %v5363 = vsel %vm1115, %v5360, %v5362
      %v5364 = vsel %vm1115, %v5358, %v5360
      %v5365 = vsel %vm1115, %v5356, %v5358
      %v5366 = vsel %vm1115, %v5362, %v5356
      %5367 = vrot.lane.b32.xlu0 %v4179, 23
      %v5368 = vpop.permute.xlu0 %5367
      %5369 = vrot.lane.b32.xlu0 %v4180, 23
      %v5370 = vpop.permute.xlu0 %5369
      %5371 = vrot.lane.b32.xlu0 %v4181, 23
      %v5372 = vpop.permute.xlu0 %5371
      %5373 = vrot.lane.b32.xlu0 %v4182, 23
      %v5374 = vpop.permute.xlu0 %5373
      %v5375 = vsel %vm1115, %v5372, %v5374
      %v5376 = vsel %vm1115, %v5370, %v5372
      %v5377 = vsel %vm1115, %v5368, %v5370
      %v5378 = vsel %vm1115, %v5374, %v5368
      %5379 = vst [vmem:[#allocation2 + $0x20] sm:$0xf] %v5366
      %5380 = vst [vmem:[#allocation2 + $0x28] sm:$0xf] %v5365
      %5381 = vst [vmem:[#allocation2 + $0x30] sm:$0xf] %v5364
      %5382 = vst [vmem:[#allocation2 + $0x38] sm:$0xf] %v5363
      %5383 = vst [vmem:[#allocation3 + $0x20] sm:$0xf] %v5378
      %5384 = vst [vmem:[#allocation3 + $0x28] sm:$0xf] %v5377
      %5385 = vst [vmem:[#allocation3 + $0x30] sm:$0xf] %v5376
      %5386 = vst [vmem:[#allocation3 + $0x38] sm:$0xf] %v5375
      %5387 = vrot.lane.b32.xlu0 %v5315, 23
      %v5388 = vpop.permute.xlu0 %5387
      %5389 = vrot.lane.b32.xlu0 %v5316, 23
      %v5390 = vpop.permute.xlu0 %5389
      %5391 = vrot.lane.b32.xlu0 %v5317, 23
      %v5392 = vpop.permute.xlu0 %5391
      %5393 = vrot.lane.b32.xlu0 %v5318, 23
      %v5394 = vpop.permute.xlu0 %5393
      %v5395 = vsel %vm1115, %v5392, %v5394
      %v5396 = vsel %vm1115, %v5390, %v5392
      %v5397 = vsel %vm1115, %v5388, %v5390
      %v5398 = vsel %vm1115, %v5394, %v5388
      %5399 = vrot.lane.b32.xlu0 %v5319, 23
      %v5400 = vpop.permute.xlu0 %5399
      %5401 = vrot.lane.b32.xlu0 %v5320, 23
      %v5402 = vpop.permute.xlu0 %5401
      %5403 = vrot.lane.b32.xlu0 %v5321, 23
      %v5404 = vpop.permute.xlu0 %5403
      %5405 = vrot.lane.b32.xlu0 %v5322, 23
      %v5406 = vpop.permute.xlu0 %5405
      %v5407 = vsel %vm1115, %v5404, %v5406
      %v5408 = vsel %vm1115, %v5402, %v5404
      %v5409 = vsel %vm1115, %v5400, %v5402
      %v5410 = vsel %vm1115, %v5406, %v5400
      %5411 = vst [vmem:[#allocation2 + $0x40] sm:$0xf] %v5398
      %5412 = vst [vmem:[#allocation2 + $0x48] sm:$0xf] %v5397
      %5413 = vst [vmem:[#allocation2 + $0x50] sm:$0xf] %v5396
      %5414 = vst [vmem:[#allocation2 + $0x58] sm:$0xf] %v5395
      %5415 = vst [vmem:[#allocation3 + $0x40] sm:$0xf] %v5410
      %5416 = vst [vmem:[#allocation3 + $0x48] sm:$0xf] %v5409
      %5417 = vst [vmem:[#allocation3 + $0x50] sm:$0xf] %v5408
      %5418 = vst [vmem:[#allocation3 + $0x58] sm:$0xf] %v5407
      %5419 = vrot.lane.b32.xlu0 %v1898, 22
      %v5420 = vpop.permute.xlu0 %5419
      %5421 = vrot.lane.b32.xlu0 %v1899, 22
      %v5422 = vpop.permute.xlu0 %5421
      %5423 = vrot.lane.b32.xlu0 %v1900, 22
      %v5424 = vpop.permute.xlu0 %5423
      %5425 = vrot.lane.b32.xlu0 %v1901, 22
      %v5426 = vpop.permute.xlu0 %5425
      %v5427 = vsel %vm1148, %v5424, %v5426
      %v5428 = vsel %vm1148, %v5422, %v5424
      %v5429 = vsel %vm1148, %v5420, %v5422
      %v5430 = vsel %vm1148, %v5426, %v5420
      %5431 = vrot.lane.b32.xlu0 %v1902, 22
      %v5432 = vpop.permute.xlu0 %5431
      %5433 = vrot.lane.b32.xlu0 %v1903, 22
      %v5434 = vpop.permute.xlu0 %5433
      %5435 = vrot.lane.b32.xlu0 %v1904, 22
      %v5436 = vpop.permute.xlu0 %5435
      %5437 = vrot.lane.b32.xlu0 %v1905, 22
      %v5438 = vpop.permute.xlu0 %5437
      %v5439 = vsel %vm1148, %v5436, %v5438
      %v5440 = vsel %vm1148, %v5434, %v5436
      %v5441 = vsel %vm1148, %v5432, %v5434
      %v5442 = vsel %vm1148, %v5438, %v5432
      %5443 = vst [vmem:[#allocation2 + $0x60] sm:$0xf] %v5430
      %5444 = vst [vmem:[#allocation2 + $0x68] sm:$0xf] %v5429
      %5445 = vst [vmem:[#allocation2 + $0x70] sm:$0xf] %v5428
      %5446 = vst [vmem:[#allocation2 + $0x78] sm:$0xf] %v5427
      %5447 = vst [vmem:[#allocation3 + $0x60] sm:$0xf] %v5442
      %5448 = vst [vmem:[#allocation3 + $0x68] sm:$0xf] %v5441
      %5449 = vst [vmem:[#allocation3 + $0x70] sm:$0xf] %v5440
      %5450 = vst [vmem:[#allocation3 + $0x78] sm:$0xf] %v5439
      %5451 = vrot.lane.b32.xlu0 %v4175, 22
      %v5452 = vpop.permute.xlu0 %5451
      %5453 = vrot.lane.b32.xlu0 %v4176, 22
      %v5454 = vpop.permute.xlu0 %5453
      %5455 = vrot.lane.b32.xlu0 %v4177, 22
      %v5456 = vpop.permute.xlu0 %5455
      %5457 = vrot.lane.b32.xlu0 %v4178, 22
      %v5458 = vpop.permute.xlu0 %5457
      %v5459 = vsel %vm1148, %v5456, %v5458
      %v5460 = vsel %vm1148, %v5454, %v5456
      %v5461 = vsel %vm1148, %v5452, %v5454
      %v5462 = vsel %vm1148, %v5458, %v5452
      %5463 = vrot.lane.b32.xlu0 %v4179, 22
      %v5464 = vpop.permute.xlu0 %5463
      %5465 = vrot.lane.b32.xlu0 %v4180, 22
      %v5466 = vpop.permute.xlu0 %5465
      %5467 = vrot.lane.b32.xlu0 %v4181, 22
      %v5468 = vpop.permute.xlu0 %5467
      %5469 = vrot.lane.b32.xlu0 %v4182, 22
      %v5470 = vpop.permute.xlu0 %5469
      %v5471 = vsel %vm1148, %v5468, %v5470
      %v5472 = vsel %vm1148, %v5466, %v5468
      %v5473 = vsel %vm1148, %v5464, %v5466
      %v5474 = vsel %vm1148, %v5470, %v5464
      %5475 = vst [vmem:[#allocation2 + $0x80] sm:$0xf] %v5462
      %5476 = vst [vmem:[#allocation2 + $0x88] sm:$0xf] %v5461
      %5477 = vst [vmem:[#allocation2 + $0x90] sm:$0xf] %v5460
      %5478 = vst [vmem:[#allocation2 + $0x98] sm:$0xf] %v5459
      %5479 = vst [vmem:[#allocation3 + $0x80] sm:$0xf] %v5474
      %5480 = vst [vmem:[#allocation3 + $0x88] sm:$0xf] %v5473
      %5481 = vst [vmem:[#allocation3 + $0x90] sm:$0xf] %v5472
      %5482 = vst [vmem:[#allocation3 + $0x98] sm:$0xf] %v5471
      %5483 = vrot.lane.b32.xlu0 %v5315, 22
      %v5484 = vpop.permute.xlu0 %5483
      %5485 = vrot.lane.b32.xlu0 %v5316, 22
      %v5486 = vpop.permute.xlu0 %5485
      %5487 = vrot.lane.b32.xlu0 %v5317, 22
      %v5488 = vpop.permute.xlu0 %5487
      %5489 = vrot.lane.b32.xlu0 %v5318, 22
      %v5490 = vpop.permute.xlu0 %5489
      %v5491 = vsel %vm1148, %v5488, %v5490
      %v5492 = vsel %vm1148, %v5486, %v5488
      %v5493 = vsel %vm1148, %v5484, %v5486
      %v5494 = vsel %vm1148, %v5490, %v5484
      %5495 = vrot.lane.b32.xlu0 %v5319, 22
      %v5496 = vpop.permute.xlu0 %5495
      %5497 = vrot.lane.b32.xlu0 %v5320, 22
      %v5498 = vpop.permute.xlu0 %5497
      %5499 = vrot.lane.b32.xlu0 %v5321, 22
      %v5500 = vpop.permute.xlu0 %5499
      %5501 = vrot.lane.b32.xlu0 %v5322, 22
      %v5502 = vpop.permute.xlu0 %5501
      %v5503 = vsel %vm1148, %v5500, %v5502
      %v5504 = vsel %vm1148, %v5498, %v5500
      %v5505 = vsel %vm1148, %v5496, %v5498
      %v5506 = vsel %vm1148, %v5502, %v5496
      %5507 = vst [vmem:[#allocation2 + $0xa0] sm:$0xf] %v5494
      %5508 = vst [vmem:[#allocation2 + $0xa8] sm:$0xf] %v5493
      %5509 = vst [vmem:[#allocation2 + $0xb0] sm:$0xf] %v5492
      %5510 = vst [vmem:[#allocation2 + $0xb8] sm:$0xf] %v5491
      %5511 = vst [vmem:[#allocation3 + $0xa0] sm:$0xf] %v5506
      %5512 = vst [vmem:[#allocation3 + $0xa8] sm:$0xf] %v5505
      %5513 = vst [vmem:[#allocation3 + $0xb0] sm:$0xf] %v5504
      %5514 = vst [vmem:[#allocation3 + $0xb8] sm:$0xf] %v5503
      %5515 = vrot.lane.b32.xlu0 %v1898, 21
      %v5516 = vpop.permute.xlu0 %5515
      %5517 = vrot.lane.b32.xlu0 %v1899, 21
      %v5518 = vpop.permute.xlu0 %5517
      %5519 = vrot.lane.b32.xlu0 %v1900, 21
      %v5520 = vpop.permute.xlu0 %5519
      %5521 = vrot.lane.b32.xlu0 %v1901, 21
      %v5522 = vpop.permute.xlu0 %5521
      %v5523 = vsel %vm1181, %v5520, %v5522
      %v5524 = vsel %vm1181, %v5518, %v5520
      %v5525 = vsel %vm1181, %v5516, %v5518
      %v5526 = vsel %vm1181, %v5522, %v5516
      %5527 = vrot.lane.b32.xlu0 %v1902, 21
      %v5528 = vpop.permute.xlu0 %5527
      %5529 = vrot.lane.b32.xlu0 %v1903, 21
      %v5530 = vpop.permute.xlu0 %5529
      %5531 = vrot.lane.b32.xlu0 %v1904, 21
      %v5532 = vpop.permute.xlu0 %5531
      %5533 = vrot.lane.b32.xlu0 %v1905, 21
      %v5534 = vpop.permute.xlu0 %5533
      %v5535 = vsel %vm1181, %v5532, %v5534
      %v5536 = vsel %vm1181, %v5530, %v5532
      %v5537 = vsel %vm1181, %v5528, %v5530
      %v5538 = vsel %vm1181, %v5534, %v5528
      %5539 = vst [vmem:[#allocation2 + $0xc0] sm:$0xf] %v5526
      %5540 = vst [vmem:[#allocation2 + $0xc8] sm:$0xf] %v5525
      %5541 = vst [vmem:[#allocation2 + $0xd0] sm:$0xf] %v5524
      %5542 = vst [vmem:[#allocation2 + $0xd8] sm:$0xf] %v5523
      %5543 = vst [vmem:[#allocation3 + $0xc0] sm:$0xf] %v5538
      %5544 = vst [vmem:[#allocation3 + $0xc8] sm:$0xf] %v5537
      %5545 = vst [vmem:[#allocation3 + $0xd0] sm:$0xf] %v5536
      %5546 = vst [vmem:[#allocation3 + $0xd8] sm:$0xf] %v5535
      %5547 = vrot.lane.b32.xlu0 %v4175, 21
      %v5548 = vpop.permute.xlu0 %5547
      %5549 = vrot.lane.b32.xlu0 %v4176, 21
      %v5550 = vpop.permute.xlu0 %5549
      %5551 = vrot.lane.b32.xlu0 %v4177, 21
      %v5552 = vpop.permute.xlu0 %5551
      %5553 = vrot.lane.b32.xlu0 %v4178, 21
      %v5554 = vpop.permute.xlu0 %5553
      %v5555 = vsel %vm1181, %v5552, %v5554
      %v5556 = vsel %vm1181, %v5550, %v5552
      %v5557 = vsel %vm1181, %v5548, %v5550
      %v5558 = vsel %vm1181, %v5554, %v5548
      %5559 = vrot.lane.b32.xlu0 %v4179, 21
      %v5560 = vpop.permute.xlu0 %5559
      %5561 = vrot.lane.b32.xlu0 %v4180, 21
      %v5562 = vpop.permute.xlu0 %5561
      %5563 = vrot.lane.b32.xlu0 %v4181, 21
      %v5564 = vpop.permute.xlu0 %5563
      %5565 = vrot.lane.b32.xlu0 %v4182, 21
      %v5566 = vpop.permute.xlu0 %5565
      %v5567 = vsel %vm1181, %v5564, %v5566
      %v5568 = vsel %vm1181, %v5562, %v5564
      %v5569 = vsel %vm1181, %v5560, %v5562
      %v5570 = vsel %vm1181, %v5566, %v5560
      %5571 = vst [vmem:[#allocation2 + $0xe0] sm:$0xf] %v5558
      %5572 = vst [vmem:[#allocation2 + $0xe8] sm:$0xf] %v5557
      %5573 = vst [vmem:[#allocation2 + $0xf0] sm:$0xf] %v5556
      %5574 = vst [vmem:[#allocation2 + $0xf8] sm:$0xf] %v5555
      %5575 = vst [vmem:[#allocation3 + $0xe0] sm:$0xf] %v5570
      %5576 = vst [vmem:[#allocation3 + $0xe8] sm:$0xf] %v5569
      %5577 = vst [vmem:[#allocation3 + $0xf0] sm:$0xf] %v5568
      %5578 = vst [vmem:[#allocation3 + $0xf8] sm:$0xf] %v5567
      %5579 = vrot.lane.b32.xlu0 %v5315, 21
      %v5580 = vpop.permute.xlu0 %5579
      %5581 = vrot.lane.b32.xlu0 %v5316, 21
      %v5582 = vpop.permute.xlu0 %5581
      %5583 = vrot.lane.b32.xlu0 %v5317, 21
      %v5584 = vpop.permute.xlu0 %5583
      %5585 = vrot.lane.b32.xlu0 %v5318, 21
      %v5586 = vpop.permute.xlu0 %5585
      %v5587 = vsel %vm1181, %v5584, %v5586
      %v5588 = vsel %vm1181, %v5582, %v5584
      %v5589 = vsel %vm1181, %v5580, %v5582
      %v5590 = vsel %vm1181, %v5586, %v5580
      %5591 = vrot.lane.b32.xlu0 %v5319, 21
      %v5592 = vpop.permute.xlu0 %5591
      %5593 = vrot.lane.b32.xlu0 %v5320, 21
      %v5594 = vpop.permute.xlu0 %5593
      %5595 = vrot.lane.b32.xlu0 %v5321, 21
      %v5596 = vpop.permute.xlu0 %5595
      %5597 = vrot.lane.b32.xlu0 %v5322, 21
      %v5598 = vpop.permute.xlu0 %5597
      %v5599 = vsel %vm1181, %v5596, %v5598
      %v5600 = vsel %vm1181, %v5594, %v5596
      %v5601 = vsel %vm1181, %v5592, %v5594
      %v5602 = vsel %vm1181, %v5598, %v5592
      %5603 = vst [vmem:[#allocation2 + $0x100] sm:$0xf] %v5590
      %5604 = vst [vmem:[#allocation2 + $0x108] sm:$0xf] %v5589
      %5605 = vst [vmem:[#allocation2 + $0x110] sm:$0xf] %v5588
      %5606 = vst [vmem:[#allocation2 + $0x118] sm:$0xf] %v5587
      %5607 = vst [vmem:[#allocation3 + $0x100] sm:$0xf] %v5602
      %5608 = vst [vmem:[#allocation3 + $0x108] sm:$0xf] %v5601
      %5609 = vst [vmem:[#allocation3 + $0x110] sm:$0xf] %v5600
      %5610 = vst [vmem:[#allocation3 + $0x118] sm:$0xf] %v5599
      %5611 = vrot.lane.b32.xlu0 %v1898, 1
      %v5612 = vpop.permute.xlu0 %5611
      %5613 = vrot.lane.b32.xlu0 %v1899, 1
      %v5614 = vpop.permute.xlu0 %5613
      %5615 = vrot.lane.b32.xlu0 %v1900, 1
      %v5616 = vpop.permute.xlu0 %5615
      %5617 = vrot.lane.b32.xlu0 %v1901, 1
      %v5618 = vpop.permute.xlu0 %5617
      %v5619 = vsel %vm1214, %v5616, %v5618
      %v5620 = vsel %vm1214, %v5614, %v5616
      %v5621 = vsel %vm1214, %v5612, %v5614
      %v5622 = vsel %vm1214, %v5618, %v5612
      %5623 = vrot.lane.b32.xlu0 %v1902, 1
      %v5624 = vpop.permute.xlu0 %5623
      %5625 = vrot.lane.b32.xlu0 %v1903, 1
      %v5626 = vpop.permute.xlu0 %5625
      %5627 = vrot.lane.b32.xlu0 %v1904, 1
      %v5628 = vpop.permute.xlu0 %5627
      %5629 = vrot.lane.b32.xlu0 %v1905, 1
      %v5630 = vpop.permute.xlu0 %5629
      %v5631 = vsel %vm1214, %v5628, %v5630
      %v5632 = vsel %vm1214, %v5626, %v5628
      %v5633 = vsel %vm1214, %v5624, %v5626
      %v5634 = vsel %vm1214, %v5630, %v5624
      %5635 = vst [vmem:[#allocation2 + $0x120] sm:$0xf] %v5622
      %5636 = vst [vmem:[#allocation2 + $0x128] sm:$0xf] %v5621
      %5637 = vst [vmem:[#allocation2 + $0x130] sm:$0xf] %v5620
      %5638 = vst [vmem:[#allocation2 + $0x138] sm:$0xf] %v5619
      %5639 = vst [vmem:[#allocation3 + $0x120] sm:$0xf] %v5634
      %5640 = vst [vmem:[#allocation3 + $0x128] sm:$0xf] %v5633
      %5641 = vst [vmem:[#allocation3 + $0x130] sm:$0xf] %v5632
      %5642 = vst [vmem:[#allocation3 + $0x138] sm:$0xf] %v5631
      %5643 = vrot.lane.b32.xlu0 %v4175, 1
      %v5644 = vpop.permute.xlu0 %5643
      %5645 = vrot.lane.b32.xlu0 %v4176, 1
      %v5646 = vpop.permute.xlu0 %5645
      %5647 = vrot.lane.b32.xlu0 %v4177, 1
      %v5648 = vpop.permute.xlu0 %5647
      %5649 = vrot.lane.b32.xlu0 %v4178, 1
      %v5650 = vpop.permute.xlu0 %5649
      %v5651 = vsel %vm1214, %v5648, %v5650
      %v5652 = vsel %vm1214, %v5646, %v5648
      %v5653 = vsel %vm1214, %v5644, %v5646
      %v5654 = vsel %vm1214, %v5650, %v5644
      %5655 = vrot.lane.b32.xlu0 %v4179, 1
      %v5656 = vpop.permute.xlu0 %5655
      %5657 = vrot.lane.b32.xlu0 %v4180, 1
      %v5658 = vpop.permute.xlu0 %5657
      %5659 = vrot.lane.b32.xlu0 %v4181, 1
      %v5660 = vpop.permute.xlu0 %5659
      %5661 = vrot.lane.b32.xlu0 %v4182, 1
      %v5662 = vpop.permute.xlu0 %5661
      %v5663 = vsel %vm1214, %v5660, %v5662
      %v5664 = vsel %vm1214, %v5658, %v5660
      %v5665 = vsel %vm1214, %v5656, %v5658
      %v5666 = vsel %vm1214, %v5662, %v5656
      %5667 = vst [vmem:[#allocation2 + $0x140] sm:$0xf] %v5654
      %5668 = vst [vmem:[#allocation2 + $0x148] sm:$0xf] %v5653
      %5669 = vst [vmem:[#allocation2 + $0x150] sm:$0xf] %v5652
      %5670 = vst [vmem:[#allocation2 + $0x158] sm:$0xf] %v5651
      %5671 = vst [vmem:[#allocation3 + $0x140] sm:$0xf] %v5666
      %5672 = vst [vmem:[#allocation3 + $0x148] sm:$0xf] %v5665
      %5673 = vst [vmem:[#allocation3 + $0x150] sm:$0xf] %v5664
      %5674 = vst [vmem:[#allocation3 + $0x158] sm:$0xf] %v5663
      %5675 = vrot.lane.b32.xlu0 %v5315, 1
      %v5676 = vpop.permute.xlu0 %5675
      %5677 = vrot.lane.b32.xlu0 %v5316, 1
      %v5678 = vpop.permute.xlu0 %5677
      %5679 = vrot.lane.b32.xlu0 %v5317, 1
      %v5680 = vpop.permute.xlu0 %5679
      %5681 = vrot.lane.b32.xlu0 %v5318, 1
      %v5682 = vpop.permute.xlu0 %5681
      %v5683 = vsel %vm1214, %v5680, %v5682
      %v5684 = vsel %vm1214, %v5678, %v5680
      %v5685 = vsel %vm1214, %v5676, %v5678
      %v5686 = vsel %vm1214, %v5682, %v5676
      %5687 = vrot.lane.b32.xlu0 %v5319, 1
      %v5688 = vpop.permute.xlu0 %5687
      %5689 = vrot.lane.b32.xlu0 %v5320, 1
      %v5690 = vpop.permute.xlu0 %5689
      %5691 = vrot.lane.b32.xlu0 %v5321, 1
      %v5692 = vpop.permute.xlu0 %5691
      %5693 = vrot.lane.b32.xlu0 %v5322, 1
      %v5694 = vpop.permute.xlu0 %5693
      %v5695 = vsel %vm1214, %v5692, %v5694
      %v5696 = vsel %vm1214, %v5690, %v5692
      %v5697 = vsel %vm1214, %v5688, %v5690
      %v5698 = vsel %vm1214, %v5694, %v5688
      %5699 = vst [vmem:[#allocation2 + $0x160] sm:$0xf] %v5686
      %5700 = vst [vmem:[#allocation2 + $0x168] sm:$0xf] %v5685
      %5701 = vst [vmem:[#allocation2 + $0x170] sm:$0xf] %v5684
      %5702 = vst [vmem:[#allocation2 + $0x178] sm:$0xf] %v5683
      %5703 = vst [vmem:[#allocation3 + $0x160] sm:$0xf] %v5698
      %5704 = vst [vmem:[#allocation3 + $0x168] sm:$0xf] %v5697
      %5705 = vst [vmem:[#allocation3 + $0x170] sm:$0xf] %v5696
      %5706 = vst [vmem:[#allocation3 + $0x178] sm:$0xf] %v5695
      %5707 = vst [vmem:[#allocation2 + $0x180] sm:$0xf] %v1898
      %5708 = vst [vmem:[#allocation2 + $0x188] sm:$0xf] %v1899
      %5709 = vst [vmem:[#allocation2 + $0x190] sm:$0xf] %v1900
      %5710 = vst [vmem:[#allocation2 + $0x198] sm:$0xf] %v1901
      %5711 = vst [vmem:[#allocation3 + $0x180] sm:$0xf] %v1902
      %5712 = vst [vmem:[#allocation3 + $0x188] sm:$0xf] %v1903
      %5713 = vst [vmem:[#allocation3 + $0x190] sm:$0xf] %v1904
      %5714 = vst [vmem:[#allocation3 + $0x198] sm:$0xf] %v1905
      %5715 = vst [vmem:[#allocation2 + $0x1a0] sm:$0xf] %v4175
      %5716 = vst [vmem:[#allocation2 + $0x1a8] sm:$0xf] %v4176
      %5717 = vst [vmem:[#allocation2 + $0x1b0] sm:$0xf] %v4177
      %5718 = vst [vmem:[#allocation2 + $0x1b8] sm:$0xf] %v4178
      %5719 = vst [vmem:[#allocation3 + $0x1a0] sm:$0xf] %v4179
      %5720 = vst [vmem:[#allocation3 + $0x1a8] sm:$0xf] %v4180
      %5721 = vst [vmem:[#allocation3 + $0x1b0] sm:$0xf] %v4181
      %5722 = vst [vmem:[#allocation3 + $0x1b8] sm:$0xf] %v4182
      %5723 = vst [vmem:[#allocation2 + $0x1c0] sm:$0xf] %v5315
      %5724 = vst [vmem:[#allocation2 + $0x1c8] sm:$0xf] %v5316
      %5725 = vst [vmem:[#allocation2 + $0x1d0] sm:$0xf] %v5317
      %5726 = vst [vmem:[#allocation2 + $0x1d8] sm:$0xf] %v5318
      %5727 = vst [vmem:[#allocation3 + $0x1c0] sm:$0xf] %v5319
      %5728 = vst [vmem:[#allocation3 + $0x1c8] sm:$0xf] %v5320
      %5729 = vst [vmem:[#allocation3 + $0x1d0] sm:$0xf] %v5321
      %5730 = vst [vmem:[#allocation3 + $0x1d8] sm:$0xf] %v5322
      %5731 = vrot.lane.b32.xlu0 %v1898, 127
      %v5732 = vpop.permute.xlu0 %5731
      %5733 = vrot.lane.b32.xlu0 %v1899, 127
      %v5734 = vpop.permute.xlu0 %5733
      %5735 = vrot.lane.b32.xlu0 %v1900, 127
      %v5736 = vpop.permute.xlu0 %5735
      %5737 = vrot.lane.b32.xlu0 %v1901, 127
      %v5738 = vpop.permute.xlu0 %5737
      %v5739 = vsel %vm1255, %v5736, %v5738
      %v5740 = vsel %vm1255, %v5734, %v5736
      %v5741 = vsel %vm1255, %v5732, %v5734
      %v5742 = vsel %vm1255, %v5738, %v5732
      %5743 = vrot.lane.b32.xlu0 %v1902, 127
      %v5744 = vpop.permute.xlu0 %5743
      %5745 = vrot.lane.b32.xlu0 %v1903, 127
      %v5746 = vpop.permute.xlu0 %5745
      %5747 = vrot.lane.b32.xlu0 %v1904, 127
      %v5748 = vpop.permute.xlu0 %5747
      %5749 = vrot.lane.b32.xlu0 %v1905, 127
      %v5750 = vpop.permute.xlu0 %5749
      %v5751 = vsel %vm1255, %v5748, %v5750
      %v5752 = vsel %vm1255, %v5746, %v5748
      %v5753 = vsel %vm1255, %v5744, %v5746
      %v5754 = vsel %vm1255, %v5750, %v5744
      %5755 = vst [vmem:[#allocation2 + $0x1e0] sm:$0xf] %v5741
      %5756 = vst [vmem:[#allocation2 + $0x1e8] sm:$0xf] %v5740
      %5757 = vst [vmem:[#allocation2 + $0x1f0] sm:$0xf] %v5739
      %5758 = vst [vmem:[#allocation2 + $0x1f8] sm:$0xf] %v5742
      %5759 = vst [vmem:[#allocation3 + $0x1e0] sm:$0xf] %v5753
      %5760 = vst [vmem:[#allocation3 + $0x1e8] sm:$0xf] %v5752
      %5761 = vst [vmem:[#allocation3 + $0x1f0] sm:$0xf] %v5751
      %5762 = vst [vmem:[#allocation3 + $0x1f8] sm:$0xf] %v5754
      %5763 = vrot.lane.b32.xlu0 %v4175, 127
      %v5764 = vpop.permute.xlu0 %5763
      %5765 = vrot.lane.b32.xlu0 %v4176, 127
      %v5766 = vpop.permute.xlu0 %5765
      %5767 = vrot.lane.b32.xlu0 %v4177, 127
      %v5768 = vpop.permute.xlu0 %5767
      %5769 = vrot.lane.b32.xlu0 %v4178, 127
      %v5770 = vpop.permute.xlu0 %5769
      %v5771 = vsel %vm1255, %v5768, %v5770
      %v5772 = vsel %vm1255, %v5766, %v5768
      %v5773 = vsel %vm1255, %v5764, %v5766
      %v5774 = vsel %vm1255, %v5770, %v5764
      %5775 = vrot.lane.b32.xlu0 %v4179, 127
      %v5776 = vpop.permute.xlu0 %5775
      %5777 = vrot.lane.b32.xlu0 %v4180, 127
      %v5778 = vpop.permute.xlu0 %5777
      %5779 = vrot.lane.b32.xlu0 %v4181, 127
      %v5780 = vpop.permute.xlu0 %5779
      %5781 = vrot.lane.b32.xlu0 %v4182, 127
      %v5782 = vpop.permute.xlu0 %5781
      %v5783 = vsel %vm1255, %v5780, %v5782
      %v5784 = vsel %vm1255, %v5778, %v5780
      %v5785 = vsel %vm1255, %v5776, %v5778
      %v5786 = vsel %vm1255, %v5782, %v5776
      %5787 = vst [vmem:[#allocation2 + $0x200] sm:$0xf] %v5773
      %5788 = vst [vmem:[#allocation2 + $0x208] sm:$0xf] %v5772
      %5789 = vst [vmem:[#allocation2 + $0x210] sm:$0xf] %v5771
      %5790 = vst [vmem:[#allocation2 + $0x218] sm:$0xf] %v5774
      %5791 = vst [vmem:[#allocation3 + $0x200] sm:$0xf] %v5785
      %5792 = vst [vmem:[#allocation3 + $0x208] sm:$0xf] %v5784
      %5793 = vst [vmem:[#allocation3 + $0x210] sm:$0xf] %v5783
      %5794 = vst [vmem:[#allocation3 + $0x218] sm:$0xf] %v5786
      %5795 = vrot.lane.b32.xlu0 %v5315, 127
      %v5796 = vpop.permute.xlu0 %5795
      %5797 = vrot.lane.b32.xlu0 %v5316, 127
      %v5798 = vpop.permute.xlu0 %5797
      %5799 = vrot.lane.b32.xlu0 %v5317, 127
      %v5800 = vpop.permute.xlu0 %5799
      %5801 = vrot.lane.b32.xlu0 %v5318, 127
      %v5802 = vpop.permute.xlu0 %5801
      %v5803 = vsel %vm1255, %v5800, %v5802
      %v5804 = vsel %vm1255, %v5798, %v5800
      %v5805 = vsel %vm1255, %v5796, %v5798
      %v5806 = vsel %vm1255, %v5802, %v5796
      %5807 = vrot.lane.b32.xlu0 %v5319, 127
      %v5808 = vpop.permute.xlu0 %5807
      %5809 = vrot.lane.b32.xlu0 %v5320, 127
      %v5810 = vpop.permute.xlu0 %5809
      %5811 = vrot.lane.b32.xlu0 %v5321, 127
      %v5812 = vpop.permute.xlu0 %5811
      %5813 = vrot.lane.b32.xlu0 %v5322, 127
      %v5814 = vpop.permute.xlu0 %5813
      %v5815 = vsel %vm1255, %v5812, %v5814
      %v5816 = vsel %vm1255, %v5810, %v5812
      %v5817 = vsel %vm1255, %v5808, %v5810
      %v5818 = vsel %vm1255, %v5814, %v5808
      %5819 = vst [vmem:[#allocation2 + $0x220] sm:$0xf] %v5805
      %5820 = vst [vmem:[#allocation2 + $0x228] sm:$0xf] %v5804
      %5821 = vst [vmem:[#allocation2 + $0x230] sm:$0xf] %v5803
      %5822 = vst [vmem:[#allocation2 + $0x238] sm:$0xf] %v5806
      %5823 = vst [vmem:[#allocation3 + $0x220] sm:$0xf] %v5817
      %5824 = vst [vmem:[#allocation3 + $0x228] sm:$0xf] %v5816
      %5825 = vst [vmem:[#allocation3 + $0x230] sm:$0xf] %v5815
      %5826 = vst [vmem:[#allocation3 + $0x238] sm:$0xf] %v5818
      %5827 = vrot.lane.b32.xlu0 %v1898, 107
      %v5828 = vpop.permute.xlu0 %5827
      %5829 = vrot.lane.b32.xlu0 %v1899, 107
      %v5830 = vpop.permute.xlu0 %5829
      %5831 = vrot.lane.b32.xlu0 %v1900, 107
      %v5832 = vpop.permute.xlu0 %5831
      %5833 = vrot.lane.b32.xlu0 %v1901, 107
      %v5834 = vpop.permute.xlu0 %5833
      %v5835 = vsel %vm1288, %v5832, %v5834
      %v5836 = vsel %vm1288, %v5830, %v5832
      %v5837 = vsel %vm1288, %v5828, %v5830
      %v5838 = vsel %vm1288, %v5834, %v5828
      %5839 = vrot.lane.b32.xlu0 %v1902, 107
      %v5840 = vpop.permute.xlu0 %5839
      %5841 = vrot.lane.b32.xlu0 %v1903, 107
      %v5842 = vpop.permute.xlu0 %5841
      %5843 = vrot.lane.b32.xlu0 %v1904, 107
      %v5844 = vpop.permute.xlu0 %5843
      %5845 = vrot.lane.b32.xlu0 %v1905, 107
      %v5846 = vpop.permute.xlu0 %5845
      %v5847 = vsel %vm1288, %v5844, %v5846
      %v5848 = vsel %vm1288, %v5842, %v5844
      %v5849 = vsel %vm1288, %v5840, %v5842
      %v5850 = vsel %vm1288, %v5846, %v5840
      %5851 = vst [vmem:[#allocation2 + $0x240] sm:$0xf] %v5837
      %5852 = vst [vmem:[#allocation2 + $0x248] sm:$0xf] %v5836
      %5853 = vst [vmem:[#allocation2 + $0x250] sm:$0xf] %v5835
      %5854 = vst [vmem:[#allocation2 + $0x258] sm:$0xf] %v5838
      %5855 = vst [vmem:[#allocation3 + $0x240] sm:$0xf] %v5849
      %5856 = vst [vmem:[#allocation3 + $0x248] sm:$0xf] %v5848
      %5857 = vst [vmem:[#allocation3 + $0x250] sm:$0xf] %v5847
      %5858 = vst [vmem:[#allocation3 + $0x258] sm:$0xf] %v5850
      %5859 = vrot.lane.b32.xlu0 %v4175, 107
      %v5860 = vpop.permute.xlu0 %5859
      %5861 = vrot.lane.b32.xlu0 %v4176, 107
      %v5862 = vpop.permute.xlu0 %5861
      %5863 = vrot.lane.b32.xlu0 %v4177, 107
      %v5864 = vpop.permute.xlu0 %5863
      %5865 = vrot.lane.b32.xlu0 %v4178, 107
      %v5866 = vpop.permute.xlu0 %5865
      %v5867 = vsel %vm1288, %v5864, %v5866
      %v5868 = vsel %vm1288, %v5862, %v5864
      %v5869 = vsel %vm1288, %v5860, %v5862
      %v5870 = vsel %vm1288, %v5866, %v5860
      %5871 = vrot.lane.b32.xlu0 %v4179, 107
      %v5872 = vpop.permute.xlu0 %5871
      %5873 = vrot.lane.b32.xlu0 %v4180, 107
      %v5874 = vpop.permute.xlu0 %5873
      %5875 = vrot.lane.b32.xlu0 %v4181, 107
      %v5876 = vpop.permute.xlu0 %5875
      %5877 = vrot.lane.b32.xlu0 %v4182, 107
      %v5878 = vpop.permute.xlu0 %5877
      %v5879 = vsel %vm1288, %v5876, %v5878
      %v5880 = vsel %vm1288, %v5874, %v5876
      %v5881 = vsel %vm1288, %v5872, %v5874
      %v5882 = vsel %vm1288, %v5878, %v5872
      %5883 = vst [vmem:[#allocation2 + $0x260] sm:$0xf] %v5869
      %5884 = vst [vmem:[#allocation2 + $0x268] sm:$0xf] %v5868
      %5885 = vst [vmem:[#allocation2 + $0x270] sm:$0xf] %v5867
      %5886 = vst [vmem:[#allocation2 + $0x278] sm:$0xf] %v5870
      %5887 = vst [vmem:[#allocation3 + $0x260] sm:$0xf] %v5881
      %5888 = vst [vmem:[#allocation3 + $0x268] sm:$0xf] %v5880
      %5889 = vst [vmem:[#allocation3 + $0x270] sm:$0xf] %v5879
      %5890 = vst [vmem:[#allocation3 + $0x278] sm:$0xf] %v5882
      %5891 = vrot.lane.b32.xlu0 %v5315, 107
      %v5892 = vpop.permute.xlu0 %5891
      %5893 = vrot.lane.b32.xlu0 %v5316, 107
      %v5894 = vpop.permute.xlu0 %5893
      %5895 = vrot.lane.b32.xlu0 %v5317, 107
      %v5896 = vpop.permute.xlu0 %5895
      %5897 = vrot.lane.b32.xlu0 %v5318, 107
      %v5898 = vpop.permute.xlu0 %5897
      %v5899 = vsel %vm1288, %v5896, %v5898
      %v5900 = vsel %vm1288, %v5894, %v5896
      %v5901 = vsel %vm1288, %v5892, %v5894
      %v5902 = vsel %vm1288, %v5898, %v5892
      %5903 = vrot.lane.b32.xlu0 %v5319, 107
      %v5904 = vpop.permute.xlu0 %5903
      %5905 = vrot.lane.b32.xlu0 %v5320, 107
      %v5906 = vpop.permute.xlu0 %5905
      %5907 = vrot.lane.b32.xlu0 %v5321, 107
      %v5908 = vpop.permute.xlu0 %5907
      %5909 = vrot.lane.b32.xlu0 %v5322, 107
      %v5910 = vpop.permute.xlu0 %5909
      %v5911 = vsel %vm1288, %v5908, %v5910
      %v5912 = vsel %vm1288, %v5906, %v5908
      %v5913 = vsel %vm1288, %v5904, %v5906
      %v5914 = vsel %vm1288, %v5910, %v5904
      %5915 = vst [vmem:[#allocation2 + $0x280] sm:$0xf] %v5901
      %5916 = vst [vmem:[#allocation2 + $0x288] sm:$0xf] %v5900
      %5917 = vst [vmem:[#allocation2 + $0x290] sm:$0xf] %v5899
      %5918 = vst [vmem:[#allocation2 + $0x298] sm:$0xf] %v5902
      %5919 = vst [vmem:[#allocation3 + $0x280] sm:$0xf] %v5913
      %5920 = vst [vmem:[#allocation3 + $0x288] sm:$0xf] %v5912
      %5921 = vst [vmem:[#allocation3 + $0x290] sm:$0xf] %v5911
      %5922 = vst [vmem:[#allocation3 + $0x298] sm:$0xf] %v5914
      %5923 = vrot.lane.b32.xlu0 %v1898, 106
      %v5924 = vpop.permute.xlu0 %5923
      %5925 = vrot.lane.b32.xlu0 %v1899, 106
      %v5926 = vpop.permute.xlu0 %5925
      %5927 = vrot.lane.b32.xlu0 %v1900, 106
      %v5928 = vpop.permute.xlu0 %5927
      %5929 = vrot.lane.b32.xlu0 %v1901, 106
      %v5930 = vpop.permute.xlu0 %5929
      %v5931 = vsel %vm1321, %v5928, %v5930
      %v5932 = vsel %vm1321, %v5926, %v5928
      %v5933 = vsel %vm1321, %v5924, %v5926
      %v5934 = vsel %vm1321, %v5930, %v5924
      %5935 = vrot.lane.b32.xlu0 %v1902, 106
      %v5936 = vpop.permute.xlu0 %5935
      %5937 = vrot.lane.b32.xlu0 %v1903, 106
      %v5938 = vpop.permute.xlu0 %5937
      %5939 = vrot.lane.b32.xlu0 %v1904, 106
      %v5940 = vpop.permute.xlu0 %5939
      %5941 = vrot.lane.b32.xlu0 %v1905, 106
      %v5942 = vpop.permute.xlu0 %5941
      %v5943 = vsel %vm1321, %v5940, %v5942
      %v5944 = vsel %vm1321, %v5938, %v5940
      %v5945 = vsel %vm1321, %v5936, %v5938
      %v5946 = vsel %vm1321, %v5942, %v5936
      %5947 = vst [vmem:[#allocation2 + $0x2a0] sm:$0xf] %v5933
      %5948 = vst [vmem:[#allocation2 + $0x2a8] sm:$0xf] %v5932
      %5949 = vst [vmem:[#allocation2 + $0x2b0] sm:$0xf] %v5931
      %5950 = vst [vmem:[#allocation2 + $0x2b8] sm:$0xf] %v5934
      %5951 = vst [vmem:[#allocation3 + $0x2a0] sm:$0xf] %v5945
      %5952 = vst [vmem:[#allocation3 + $0x2a8] sm:$0xf] %v5944
      %5953 = vst [vmem:[#allocation3 + $0x2b0] sm:$0xf] %v5943
      %5954 = vst [vmem:[#allocation3 + $0x2b8] sm:$0xf] %v5946
      %5955 = vrot.lane.b32.xlu0 %v4175, 106
      %v5956 = vpop.permute.xlu0 %5955
      %5957 = vrot.lane.b32.xlu0 %v4176, 106
      %v5958 = vpop.permute.xlu0 %5957
      %5959 = vrot.lane.b32.xlu0 %v4177, 106
      %v5960 = vpop.permute.xlu0 %5959
      %5961 = vrot.lane.b32.xlu0 %v4178, 106
      %v5962 = vpop.permute.xlu0 %5961
      %v5963 = vsel %vm1321, %v5960, %v5962
      %v5964 = vsel %vm1321, %v5958, %v5960
      %v5965 = vsel %vm1321, %v5956, %v5958
      %v5966 = vsel %vm1321, %v5962, %v5956
      %5967 = vrot.lane.b32.xlu0 %v4179, 106
      %v5968 = vpop.permute.xlu0 %5967
      %5969 = vrot.lane.b32.xlu0 %v4180, 106
      %v5970 = vpop.permute.xlu0 %5969
      %5971 = vrot.lane.b32.xlu0 %v4181, 106
      %v5972 = vpop.permute.xlu0 %5971
      %5973 = vrot.lane.b32.xlu0 %v4182, 106
      %v5974 = vpop.permute.xlu0 %5973
      %v5975 = vsel %vm1321, %v5972, %v5974
      %v5976 = vsel %vm1321, %v5970, %v5972
      %v5977 = vsel %vm1321, %v5968, %v5970
      %v5978 = vsel %vm1321, %v5974, %v5968
      %5979 = vst [vmem:[#allocation2 + $0x2c0] sm:$0xf] %v5965
      %5980 = vst [vmem:[#allocation2 + $0x2c8] sm:$0xf] %v5964
      %5981 = vst [vmem:[#allocation2 + $0x2d0] sm:$0xf] %v5963
      %5982 = vst [vmem:[#allocation2 + $0x2d8] sm:$0xf] %v5966
      %5983 = vst [vmem:[#allocation3 + $0x2c0] sm:$0xf] %v5977
      %5984 = vst [vmem:[#allocation3 + $0x2c8] sm:$0xf] %v5976
      %5985 = vst [vmem:[#allocation3 + $0x2d0] sm:$0xf] %v5975
      %5986 = vst [vmem:[#allocation3 + $0x2d8] sm:$0xf] %v5978
      %5987 = vrot.lane.b32.xlu0 %v5315, 106
      %v5988 = vpop.permute.xlu0 %5987
      %5989 = vrot.lane.b32.xlu0 %v5316, 106
      %v5990 = vpop.permute.xlu0 %5989
      %5991 = vrot.lane.b32.xlu0 %v5317, 106
      %v5992 = vpop.permute.xlu0 %5991
      %5993 = vrot.lane.b32.xlu0 %v5318, 106
      %v5994 = vpop.permute.xlu0 %5993
      %v5995 = vsel %vm1321, %v5992, %v5994
      %v5996 = vsel %vm1321, %v5990, %v5992
      %v5997 = vsel %vm1321, %v5988, %v5990
      %v5998 = vsel %vm1321, %v5994, %v5988
      %5999 = vrot.lane.b32.xlu0 %v5319, 106
      %v6000 = vpop.permute.xlu0 %5999
      %6001 = vrot.lane.b32.xlu0 %v5320, 106
      %v6002 = vpop.permute.xlu0 %6001
      %6003 = vrot.lane.b32.xlu0 %v5321, 106
      %v6004 = vpop.permute.xlu0 %6003
      %6005 = vrot.lane.b32.xlu0 %v5322, 106
      %v6006 = vpop.permute.xlu0 %6005
      %v6007 = vsel %vm1321, %v6004, %v6006
      %v6008 = vsel %vm1321, %v6002, %v6004
      %v6009 = vsel %vm1321, %v6000, %v6002
      %v6010 = vsel %vm1321, %v6006, %v6000
      %6011 = vst [vmem:[#allocation2 + $0x2e0] sm:$0xf] %v5997
      %6012 = vst [vmem:[#allocation2 + $0x2e8] sm:$0xf] %v5996
      %6013 = vst [vmem:[#allocation2 + $0x2f0] sm:$0xf] %v5995
      %6014 = vst [vmem:[#allocation2 + $0x2f8] sm:$0xf] %v5998
      %6015 = vst [vmem:[#allocation3 + $0x2e0] sm:$0xf] %v6009
      %6016 = vst [vmem:[#allocation3 + $0x2e8] sm:$0xf] %v6008
      %6017 = vst [vmem:[#allocation3 + $0x2f0] sm:$0xf] %v6007
      %6018 = vst [vmem:[#allocation3 + $0x2f8] sm:$0xf] %v6010
      %6019 = vrot.lane.b32.xlu0 %v1898, 105
      %v6020 = vpop.permute.xlu0 %6019
      %6021 = vrot.lane.b32.xlu0 %v1899, 105
      %v6022 = vpop.permute.xlu0 %6021
      %6023 = vrot.lane.b32.xlu0 %v1900, 105
      %v6024 = vpop.permute.xlu0 %6023
      %6025 = vrot.lane.b32.xlu0 %v1901, 105
      %v6026 = vpop.permute.xlu0 %6025
      %v6027 = vsel %vm1354, %v6024, %v6026
      %v6028 = vsel %vm1354, %v6022, %v6024
      %v6029 = vsel %vm1354, %v6020, %v6022
      %v6030 = vsel %vm1354, %v6026, %v6020
      %6031 = vrot.lane.b32.xlu0 %v1902, 105
      %v6032 = vpop.permute.xlu0 %6031
      %6033 = vrot.lane.b32.xlu0 %v1903, 105
      %v6034 = vpop.permute.xlu0 %6033
      %6035 = vrot.lane.b32.xlu0 %v1904, 105
      %v6036 = vpop.permute.xlu0 %6035
      %6037 = vrot.lane.b32.xlu0 %v1905, 105
      %v6038 = vpop.permute.xlu0 %6037
      %v6039 = vsel %vm1354, %v6036, %v6038
      %v6040 = vsel %vm1354, %v6034, %v6036
      %v6041 = vsel %vm1354, %v6032, %v6034
      %v6042 = vsel %vm1354, %v6038, %v6032
      %6043 = vst [vmem:[#allocation2 + $0x300] sm:$0xf] %v6029
      %6044 = vst [vmem:[#allocation2 + $0x308] sm:$0xf] %v6028
      %6045 = vst [vmem:[#allocation2 + $0x310] sm:$0xf] %v6027
      %6046 = vst [vmem:[#allocation2 + $0x318] sm:$0xf] %v6030
      %6047 = vst [vmem:[#allocation3 + $0x300] sm:$0xf] %v6041
      %6048 = vst [vmem:[#allocation3 + $0x308] sm:$0xf] %v6040
      %6049 = vst [vmem:[#allocation3 + $0x310] sm:$0xf] %v6039
      %6050 = vst [vmem:[#allocation3 + $0x318] sm:$0xf] %v6042
      %6051 = vrot.lane.b32.xlu0 %v4175, 105
      %v6052 = vpop.permute.xlu0 %6051
      %6053 = vrot.lane.b32.xlu0 %v4176, 105
      %v6054 = vpop.permute.xlu0 %6053
      %6055 = vrot.lane.b32.xlu0 %v4177, 105
      %v6056 = vpop.permute.xlu0 %6055
      %6057 = vrot.lane.b32.xlu0 %v4178, 105
      %v6058 = vpop.permute.xlu0 %6057
      %v6059 = vsel %vm1354, %v6056, %v6058
      %v6060 = vsel %vm1354, %v6054, %v6056
      %v6061 = vsel %vm1354, %v6052, %v6054
      %v6062 = vsel %vm1354, %v6058, %v6052
      %6063 = vrot.lane.b32.xlu0 %v4179, 105
      %v6064 = vpop.permute.xlu0 %6063
      %6065 = vrot.lane.b32.xlu0 %v4180, 105
      %v6066 = vpop.permute.xlu0 %6065
      %6067 = vrot.lane.b32.xlu0 %v4181, 105
      %v6068 = vpop.permute.xlu0 %6067
      %6069 = vrot.lane.b32.xlu0 %v4182, 105
      %v6070 = vpop.permute.xlu0 %6069
      %v6071 = vsel %vm1354, %v6068, %v6070
      %v6072 = vsel %vm1354, %v6066, %v6068
      %v6073 = vsel %vm1354, %v6064, %v6066
      %v6074 = vsel %vm1354, %v6070, %v6064
      %6075 = vst [vmem:[#allocation2 + $0x320] sm:$0xf] %v6061
      %6076 = vst [vmem:[#allocation2 + $0x328] sm:$0xf] %v6060
      %6077 = vst [vmem:[#allocation2 + $0x330] sm:$0xf] %v6059
      %6078 = vst [vmem:[#allocation2 + $0x338] sm:$0xf] %v6062
      %6079 = vst [vmem:[#allocation3 + $0x320] sm:$0xf] %v6073
      %6080 = vst [vmem:[#allocation3 + $0x328] sm:$0xf] %v6072
      %6081 = vst [vmem:[#allocation3 + $0x330] sm:$0xf] %v6071
      %6082 = vst [vmem:[#allocation3 + $0x338] sm:$0xf] %v6074
      %6083 = vrot.lane.b32.xlu0 %v5315, 105
      %v6084 = vpop.permute.xlu0 %6083
      %6085 = vrot.lane.b32.xlu0 %v5316, 105
      %v6086 = vpop.permute.xlu0 %6085
      %6087 = vrot.lane.b32.xlu0 %v5317, 105
      %v6088 = vpop.permute.xlu0 %6087
      %6089 = vrot.lane.b32.xlu0 %v5318, 105
      %v6090 = vpop.permute.xlu0 %6089
      %v6091 = vsel %vm1354, %v6088, %v6090
      %v6092 = vsel %vm1354, %v6086, %v6088
      %v6093 = vsel %vm1354, %v6084, %v6086
      %v6094 = vsel %vm1354, %v6090, %v6084
      %6095 = vrot.lane.b32.xlu0 %v5319, 105
      %v6096 = vpop.permute.xlu0 %6095
      %6097 = vrot.lane.b32.xlu0 %v5320, 105
      %v6098 = vpop.permute.xlu0 %6097
      %6099 = vrot.lane.b32.xlu0 %v5321, 105
      %v6100 = vpop.permute.xlu0 %6099
      %6101 = vrot.lane.b32.xlu0 %v5322, 105
      %v6102 = vpop.permute.xlu0 %6101
      %v6103 = vsel %vm1354, %v6100, %v6102
      %v6104 = vsel %vm1354, %v6098, %v6100
      %v6105 = vsel %vm1354, %v6096, %v6098
      %v6106 = vsel %vm1354, %v6102, %v6096
      %6107 = vst [vmem:[#allocation2 + $0x340] sm:$0xf] %v6093
      %6108 = vst [vmem:[#allocation2 + $0x348] sm:$0xf] %v6092
      %6109 = vst [vmem:[#allocation2 + $0x350] sm:$0xf] %v6091
      %6110 = vst [vmem:[#allocation2 + $0x358] sm:$0xf] %v6094
      %6111 = vst [vmem:[#allocation3 + $0x340] sm:$0xf] %v6105
      %6112 = vst [vmem:[#allocation3 + $0x348] sm:$0xf] %v6104
      %6113 = vst [vmem:[#allocation3 + $0x350] sm:$0xf] %v6103
      %6114 = vst [vmem:[#allocation3 + $0x358] sm:$0xf] %v6106
      %v6115 = vld [vmem:[#allocation2] sm:$0xff]
      %v6116 = vld [vmem:[#allocation2 + $0x8] sm:$0xff]
      %v6117 = vld [vmem:[#allocation2 + $0x10] sm:$0xff]
      %v6118 = vld [vmem:[#allocation2 + $0x18] sm:$0xff]
      %v6119 = vld [vmem:[#allocation2 + $0x20] sm:$0xff]
      %v6120 = vld [vmem:[#allocation2 + $0x28] sm:$0xff]
      %v6121 = vld [vmem:[#allocation2 + $0x30] sm:$0xff]
      %v6122 = vld [vmem:[#allocation2 + $0x38] sm:$0xff]
      %v6123 = vld [vmem:[#allocation2 + $0x40] sm:$0xff]
      %v6124 = vld [vmem:[#allocation2 + $0x48] sm:$0xff]
      %v6125 = vld [vmem:[#allocation2 + $0x50] sm:$0xff]
      %v6126 = vld [vmem:[#allocation2 + $0x58] sm:$0xff]
      %v6127 = vld [vmem:[#allocation2 + $0x60] sm:$0xff]
      %v6128 = vld [vmem:[#allocation2 + $0x68] sm:$0xff]
      %v6129 = vld [vmem:[#allocation2 + $0x70] sm:$0xff]
      %v6130 = vld [vmem:[#allocation2 + $0x78] sm:$0xff]
      %v6131 = vld [vmem:[#allocation2 + $0x80] sm:$0xff]
      %v6132 = vld [vmem:[#allocation2 + $0x88] sm:$0xff]
      %v6133 = vld [vmem:[#allocation2 + $0x90] sm:$0xff]
      %v6134 = vld [vmem:[#allocation2 + $0x98] sm:$0xff]
      %v6135 = vld [vmem:[#allocation2 + $0xa0] sm:$0xff]
      %v6136 = vld [vmem:[#allocation2 + $0xa8] sm:$0xff]
      %v6137 = vld [vmem:[#allocation2 + $0xb0] sm:$0xff]
      %v6138 = vld [vmem:[#allocation2 + $0xb8] sm:$0xff]
      %v6139 = vld [vmem:[#allocation2 + $0xc0] sm:$0xff]
      %v6140 = vld [vmem:[#allocation2 + $0xc8] sm:$0xff]
      %v6141 = vld [vmem:[#allocation2 + $0xd0] sm:$0xff]
      %v6142 = vld [vmem:[#allocation2 + $0xd8] sm:$0xff]
      %v6143 = vld [vmem:[#allocation2 + $0xe0] sm:$0xff]
      %v6144 = vld [vmem:[#allocation2 + $0xe8] sm:$0xff]
      %v6145 = vld [vmem:[#allocation2 + $0xf0] sm:$0xff]
      %v6146 = vld [vmem:[#allocation2 + $0xf8] sm:$0xff]
      %v6147 = vld [vmem:[#allocation2 + $0x100] sm:$0xff]
      %v6148 = vld [vmem:[#allocation2 + $0x108] sm:$0xff]
      %v6149 = vld [vmem:[#allocation2 + $0x110] sm:$0xff]
      %v6150 = vld [vmem:[#allocation2 + $0x118] sm:$0xff]
      %v6151 = vld [vmem:[#allocation2 + $0x120] sm:$0xff]
      %v6152 = vld [vmem:[#allocation2 + $0x128] sm:$0xff]
      %v6153 = vld [vmem:[#allocation2 + $0x130] sm:$0xff]
      %v6154 = vld [vmem:[#allocation2 + $0x138] sm:$0xff]
      %v6155 = vld [vmem:[#allocation2 + $0x140] sm:$0xff]
      %v6156 = vld [vmem:[#allocation2 + $0x148] sm:$0xff]
      %v6157 = vld [vmem:[#allocation2 + $0x150] sm:$0xff]
      %v6158 = vld [vmem:[#allocation2 + $0x158] sm:$0xff]
      %v6159 = vld [vmem:[#allocation2 + $0x160] sm:$0xff]
      %v6160 = vld [vmem:[#allocation2 + $0x168] sm:$0xff]
      %v6161 = vld [vmem:[#allocation2 + $0x170] sm:$0xff]
      %v6162 = vld [vmem:[#allocation2 + $0x178] sm:$0xff]
      %v6163 = vld [vmem:[#allocation2 + $0x180] sm:$0xff]
      %v6164 = vld [vmem:[#allocation2 + $0x188] sm:$0xff]
      %v6165 = vld [vmem:[#allocation2 + $0x190] sm:$0xff]
      %v6166 = vld [vmem:[#allocation2 + $0x198] sm:$0xff]
      %v6167 = vld [vmem:[#allocation2 + $0x1a0] sm:$0xff]
      %v6168 = vld [vmem:[#allocation2 + $0x1a8] sm:$0xff]
      %v6169 = vld [vmem:[#allocation2 + $0x1b0] sm:$0xff]
      %v6170 = vld [vmem:[#allocation2 + $0x1b8] sm:$0xff]
      %v6171 = vld [vmem:[#allocation2 + $0x1c0] sm:$0xff]
      %v6172 = vld [vmem:[#allocation2 + $0x1c8] sm:$0xff]
      %v6173 = vld [vmem:[#allocation2 + $0x1d0] sm:$0xff]
      %v6174 = vld [vmem:[#allocation2 + $0x1d8] sm:$0xff]
      %v6175 = vld [vmem:[#allocation2 + $0x1e0] sm:$0xff]
      %v6176 = vld [vmem:[#allocation2 + $0x1e8] sm:$0xff]
      %v6177 = vld [vmem:[#allocation2 + $0x1f0] sm:$0xff]
      %v6178 = vld [vmem:[#allocation2 + $0x1f8] sm:$0xff]
      %v6179 = vld [vmem:[#allocation2 + $0x200] sm:$0xff]
      %v6180 = vld [vmem:[#allocation2 + $0x208] sm:$0xff]
      %v6181 = vld [vmem:[#allocation2 + $0x210] sm:$0xff]
      %v6182 = vld [vmem:[#allocation2 + $0x218] sm:$0xff]
      %v6183 = vld [vmem:[#allocation2 + $0x220] sm:$0xff]
      %v6184 = vld [vmem:[#allocation2 + $0x228] sm:$0xff]
      %v6185 = vld [vmem:[#allocation2 + $0x230] sm:$0xff]
      %v6186 = vld [vmem:[#allocation2 + $0x238] sm:$0xff]
      %v6187 = vld [vmem:[#allocation2 + $0x240] sm:$0xff]
      %v6188 = vld [vmem:[#allocation2 + $0x248] sm:$0xff]
      %v6189 = vld [vmem:[#allocation2 + $0x250] sm:$0xff]
      %v6190 = vld [vmem:[#allocation2 + $0x258] sm:$0xff]
      %v6191 = vld [vmem:[#allocation2 + $0x260] sm:$0xff]
      %v6192 = vld [vmem:[#allocation2 + $0x268] sm:$0xff]
      %v6193 = vld [vmem:[#allocation2 + $0x270] sm:$0xff]
      %v6194 = vld [vmem:[#allocation2 + $0x278] sm:$0xff]
      %v6195 = vld [vmem:[#allocation2 + $0x280] sm:$0xff]
      %v6196 = vld [vmem:[#allocation2 + $0x288] sm:$0xff]
      %v6197 = vld [vmem:[#allocation2 + $0x290] sm:$0xff]
      %v6198 = vld [vmem:[#allocation2 + $0x298] sm:$0xff]
      %v6199 = vld [vmem:[#allocation2 + $0x2a0] sm:$0xff]
      %v6200 = vld [vmem:[#allocation2 + $0x2a8] sm:$0xff]
      %v6201 = vld [vmem:[#allocation2 + $0x2b0] sm:$0xff]
      %v6202 = vld [vmem:[#allocation2 + $0x2b8] sm:$0xff]
      %v6203 = vld [vmem:[#allocation2 + $0x2c0] sm:$0xff]
      %v6204 = vld [vmem:[#allocation2 + $0x2c8] sm:$0xff]
      %v6205 = vld [vmem:[#allocation2 + $0x2d0] sm:$0xff]
      %v6206 = vld [vmem:[#allocation2 + $0x2d8] sm:$0xff]
      %v6207 = vld [vmem:[#allocation2 + $0x2e0] sm:$0xff]
      %v6208 = vld [vmem:[#allocation2 + $0x2e8] sm:$0xff]
      %v6209 = vld [vmem:[#allocation2 + $0x2f0] sm:$0xff]
      %v6210 = vld [vmem:[#allocation2 + $0x2f8] sm:$0xff]
      %v6211 = vld [vmem:[#allocation2 + $0x300] sm:$0xff]
      %v6212 = vld [vmem:[#allocation2 + $0x308] sm:$0xff]
      %v6213 = vld [vmem:[#allocation2 + $0x310] sm:$0xff]
      %v6214 = vld [vmem:[#allocation2 + $0x318] sm:$0xff]
      %v6215 = vld [vmem:[#allocation2 + $0x320] sm:$0xff]
      %v6216 = vld [vmem:[#allocation2 + $0x328] sm:$0xff]
      %v6217 = vld [vmem:[#allocation2 + $0x330] sm:$0xff]
      %v6218 = vld [vmem:[#allocation2 + $0x338] sm:$0xff]
      %v6219 = vld [vmem:[#allocation2 + $0x340] sm:$0xff]
      %v6220 = vld [vmem:[#allocation2 + $0x348] sm:$0xff]
      %v6221 = vld [vmem:[#allocation2 + $0x350] sm:$0xff]
      %v6222 = vld [vmem:[#allocation2 + $0x358] sm:$0xff]
      %v6223 = vpack.c.bf16 %v6119, %v6115
      %v6224 = vpack.c.bf16 %v6120, %v6116
      %v6225 = vpack.c.bf16 %v6121, %v6117
      %v6226 = vpack.c.bf16 %v6122, %v6118
      %v6227 = vpack.c.bf16 %v6127, %v6123
      %v6228 = vpack.c.bf16 %v6128, %v6124
      %v6229 = vpack.c.bf16 %v6129, %v6125
      %v6230 = vpack.c.bf16 %v6130, %v6126
      %v6231 = vpack.c.bf16 %v6135, %v6131
      %v6232 = vpack.c.bf16 %v6136, %v6132
      %v6233 = vpack.c.bf16 %v6137, %v6133
      %v6234 = vpack.c.bf16 %v6138, %v6134
      %v6235 = vpack.c.bf16 %v6143, %v6139
      %v6236 = vpack.c.bf16 %v6144, %v6140
      %v6237 = vpack.c.bf16 %v6145, %v6141
      %v6238 = vpack.c.bf16 %v6146, %v6142
      %v6239 = vpack.c.bf16 %v6151, %v6147
      %v6240 = vpack.c.bf16 %v6152, %v6148
      %v6241 = vpack.c.bf16 %v6153, %v6149
      %v6242 = vpack.c.bf16 %v6154, %v6150
      %v6243 = vpack.c.bf16 %v6159, %v6155
      %v6244 = vpack.c.bf16 %v6160, %v6156
      %v6245 = vpack.c.bf16 %v6161, %v6157
      %v6246 = vpack.c.bf16 %v6162, %v6158
      %v6247 = vpack.c.bf16 %v6167, %v6163
      %v6248 = vpack.c.bf16 %v6168, %v6164
      %v6249 = vpack.c.bf16 %v6169, %v6165
      %v6250 = vpack.c.bf16 %v6170, %v6166
      %v6251 = vpack.c.bf16 %v6175, %v6171
      %v6252 = vpack.c.bf16 %v6176, %v6172
      %v6253 = vpack.c.bf16 %v6177, %v6173
      %v6254 = vpack.c.bf16 %v6178, %v6174
      %v6255 = vpack.c.bf16 %v6183, %v6179
      %v6256 = vpack.c.bf16 %v6184, %v6180
      %v6257 = vpack.c.bf16 %v6185, %v6181
      %v6258 = vpack.c.bf16 %v6186, %v6182
      %v6259 = vpack.c.bf16 %v6191, %v6187
      %v6260 = vpack.c.bf16 %v6192, %v6188
      %v6261 = vpack.c.bf16 %v6193, %v6189
      %v6262 = vpack.c.bf16 %v6194, %v6190
      %v6263 = vpack.c.bf16 %v6199, %v6195
      %v6264 = vpack.c.bf16 %v6200, %v6196
      %v6265 = vpack.c.bf16 %v6201, %v6197
      %v6266 = vpack.c.bf16 %v6202, %v6198
      %v6267 = vpack.c.bf16 %v6207, %v6203
      %v6268 = vpack.c.bf16 %v6208, %v6204
      %v6269 = vpack.c.bf16 %v6209, %v6205
      %v6270 = vpack.c.bf16 %v6210, %v6206
      %v6271 = vpack.c.bf16 %v6215, %v6211
      %v6272 = vpack.c.bf16 %v6216, %v6212
      %v6273 = vpack.c.bf16 %v6217, %v6213
      %v6274 = vpack.c.bf16 %v6218, %v6214
      %v6275 = vpack.c.bf16 %v6219, %v6219
      %v6276 = vpack.c.bf16 %v6220, %v6220
      %v6277 = vpack.c.bf16 %v6221, %v6221
      %v6278 = vpack.c.bf16 %v6222, %v6222
      %v6279 = vld [vmem:[#allocation3] sm:$0xff]
      %v6280 = vld [vmem:[#allocation3 + $0x8] sm:$0xff]
      %v6281 = vld [vmem:[#allocation3 + $0x10] sm:$0xff]
      %v6282 = vld [vmem:[#allocation3 + $0x18] sm:$0xff]
      %v6283 = vld [vmem:[#allocation3 + $0x20] sm:$0xff]
      %v6284 = vld [vmem:[#allocation3 + $0x28] sm:$0xff]
      %v6285 = vld [vmem:[#allocation3 + $0x30] sm:$0xff]
      %v6286 = vld [vmem:[#allocation3 + $0x38] sm:$0xff]
      %v6287 = vld [vmem:[#allocation3 + $0x40] sm:$0xff]
      %v6288 = vld [vmem:[#allocation3 + $0x48] sm:$0xff]
      %v6289 = vld [vmem:[#allocation3 + $0x50] sm:$0xff]
      %v6290 = vld [vmem:[#allocation3 + $0x58] sm:$0xff]
      %v6291 = vld [vmem:[#allocation3 + $0x60] sm:$0xff]
      %v6292 = vld [vmem:[#allocation3 + $0x68] sm:$0xff]
      %v6293 = vld [vmem:[#allocation3 + $0x70] sm:$0xff]
      %v6294 = vld [vmem:[#allocation3 + $0x78] sm:$0xff]
      %v6295 = vld [vmem:[#allocation3 + $0x80] sm:$0xff]
      %v6296 = vld [vmem:[#allocation3 + $0x88] sm:$0xff]
      %v6297 = vld [vmem:[#allocation3 + $0x90] sm:$0xff]
      %v6298 = vld [vmem:[#allocation3 + $0x98] sm:$0xff]
      %v6299 = vld [vmem:[#allocation3 + $0xa0] sm:$0xff]
      %v6300 = vld [vmem:[#allocation3 + $0xa8] sm:$0xff]
      %v6301 = vld [vmem:[#allocation3 + $0xb0] sm:$0xff]
      %v6302 = vld [vmem:[#allocation3 + $0xb8] sm:$0xff]
      %v6303 = vld [vmem:[#allocation3 + $0xc0] sm:$0xff]
      %v6304 = vld [vmem:[#allocation3 + $0xc8] sm:$0xff]
      %v6305 = vld [vmem:[#allocation3 + $0xd0] sm:$0xff]
      %v6306 = vld [vmem:[#allocation3 + $0xd8] sm:$0xff]
      %v6307 = vld [vmem:[#allocation3 + $0xe0] sm:$0xff]
      %v6308 = vld [vmem:[#allocation3 + $0xe8] sm:$0xff]
      %v6309 = vld [vmem:[#allocation3 + $0xf0] sm:$0xff]
      %v6310 = vld [vmem:[#allocation3 + $0xf8] sm:$0xff]
      %v6311 = vld [vmem:[#allocation3 + $0x100] sm:$0xff]
      %v6312 = vld [vmem:[#allocation3 + $0x108] sm:$0xff]
      %v6313 = vld [vmem:[#allocation3 + $0x110] sm:$0xff]
      %v6314 = vld [vmem:[#allocation3 + $0x118] sm:$0xff]
      %v6315 = vld [vmem:[#allocation3 + $0x120] sm:$0xff]
      %v6316 = vld [vmem:[#allocation3 + $0x128] sm:$0xff]
      %v6317 = vld [vmem:[#allocation3 + $0x130] sm:$0xff]
      %v6318 = vld [vmem:[#allocation3 + $0x138] sm:$0xff]
      %v6319 = vld [vmem:[#allocation3 + $0x140] sm:$0xff]
      %v6320 = vld [vmem:[#allocation3 + $0x148] sm:$0xff]
      %v6321 = vld [vmem:[#allocation3 + $0x150] sm:$0xff]
      %v6322 = vld [vmem:[#allocation3 + $0x158] sm:$0xff]
      %v6323 = vld [vmem:[#allocation3 + $0x160] sm:$0xff]
      %v6324 = vld [vmem:[#allocation3 + $0x168] sm:$0xff]
      %v6325 = vld [vmem:[#allocation3 + $0x170] sm:$0xff]
      %v6326 = vld [vmem:[#allocation3 + $0x178] sm:$0xff]
      %v6327 = vld [vmem:[#allocation3 + $0x180] sm:$0xff]
      %v6328 = vld [vmem:[#allocation3 + $0x188] sm:$0xff]
      %v6329 = vld [vmem:[#allocation3 + $0x190] sm:$0xff]
      %v6330 = vld [vmem:[#allocation3 + $0x198] sm:$0xff]
      %v6331 = vld [vmem:[#allocation3 + $0x1a0] sm:$0xff]
      %v6332 = vld [vmem:[#allocation3 + $0x1a8] sm:$0xff]
      %v6333 = vld [vmem:[#allocation3 + $0x1b0] sm:$0xff]
      %v6334 = vld [vmem:[#allocation3 + $0x1b8] sm:$0xff]
      %v6335 = vld [vmem:[#allocation3 + $0x1c0] sm:$0xff]
      %v6336 = vld [vmem:[#allocation3 + $0x1c8] sm:$0xff]
      %v6337 = vld [vmem:[#allocation3 + $0x1d0] sm:$0xff]
      %v6338 = vld [vmem:[#allocation3 + $0x1d8] sm:$0xff]
      %v6339 = vld [vmem:[#allocation3 + $0x1e0] sm:$0xff]
      %v6340 = vld [vmem:[#allocation3 + $0x1e8] sm:$0xff]
      %v6341 = vld [vmem:[#allocation3 + $0x1f0] sm:$0xff]
      %v6342 = vld [vmem:[#allocation3 + $0x1f8] sm:$0xff]
      %v6343 = vld [vmem:[#allocation3 + $0x200] sm:$0xff]
      %v6344 = vld [vmem:[#allocation3 + $0x208] sm:$0xff]
      %v6345 = vld [vmem:[#allocation3 + $0x210] sm:$0xff]
      %v6346 = vld [vmem:[#allocation3 + $0x218] sm:$0xff]
      %v6347 = vld [vmem:[#allocation3 + $0x220] sm:$0xff]
      %v6348 = vld [vmem:[#allocation3 + $0x228] sm:$0xff]
      %v6349 = vld [vmem:[#allocation3 + $0x230] sm:$0xff]
      %v6350 = vld [vmem:[#allocation3 + $0x238] sm:$0xff]
      %v6351 = vld [vmem:[#allocation3 + $0x240] sm:$0xff]
      %v6352 = vld [vmem:[#allocation3 + $0x248] sm:$0xff]
      %v6353 = vld [vmem:[#allocation3 + $0x250] sm:$0xff]
      %v6354 = vld [vmem:[#allocation3 + $0x258] sm:$0xff]
      %v6355 = vld [vmem:[#allocation3 + $0x260] sm:$0xff]
      %v6356 = vld [vmem:[#allocation3 + $0x268] sm:$0xff]
      %v6357 = vld [vmem:[#allocation3 + $0x270] sm:$0xff]
      %v6358 = vld [vmem:[#allocation3 + $0x278] sm:$0xff]
      %v6359 = vld [vmem:[#allocation3 + $0x280] sm:$0xff]
      %v6360 = vld [vmem:[#allocation3 + $0x288] sm:$0xff]
      %v6361 = vld [vmem:[#allocation3 + $0x290] sm:$0xff]
      %v6362 = vld [vmem:[#allocation3 + $0x298] sm:$0xff]
      %v6363 = vld [vmem:[#allocation3 + $0x2a0] sm:$0xff]
      %v6364 = vld [vmem:[#allocation3 + $0x2a8] sm:$0xff]
      %v6365 = vld [vmem:[#allocation3 + $0x2b0] sm:$0xff]
      %v6366 = vld [vmem:[#allocation3 + $0x2b8] sm:$0xff]
      %v6367 = vld [vmem:[#allocation3 + $0x2c0] sm:$0xff]
      %v6368 = vld [vmem:[#allocation3 + $0x2c8] sm:$0xff]
      %v6369 = vld [vmem:[#allocation3 + $0x2d0] sm:$0xff]
      %v6370 = vld [vmem:[#allocation3 + $0x2d8] sm:$0xff]
      %v6371 = vld [vmem:[#allocation3 + $0x2e0] sm:$0xff]
      %v6372 = vld [vmem:[#allocation3 + $0x2e8] sm:$0xff]
      %v6373 = vld [vmem:[#allocation3 + $0x2f0] sm:$0xff]
      %v6374 = vld [vmem:[#allocation3 + $0x2f8] sm:$0xff]
      %v6375 = vld [vmem:[#allocation3 + $0x300] sm:$0xff]
      %v6376 = vld [vmem:[#allocation3 + $0x308] sm:$0xff]
      %v6377 = vld [vmem:[#allocation3 + $0x310] sm:$0xff]
      %v6378 = vld [vmem:[#allocation3 + $0x318] sm:$0xff]
      %v6379 = vld [vmem:[#allocation3 + $0x320] sm:$0xff]
      %v6380 = vld [vmem:[#allocation3 + $0x328] sm:$0xff]
      %v6381 = vld [vmem:[#allocation3 + $0x330] sm:$0xff]
      %v6382 = vld [vmem:[#allocation3 + $0x338] sm:$0xff]
      %v6383 = vld [vmem:[#allocation3 + $0x340] sm:$0xff]
      %v6384 = vld [vmem:[#allocation3 + $0x348] sm:$0xff]
      %v6385 = vld [vmem:[#allocation3 + $0x350] sm:$0xff]
      %v6386 = vld [vmem:[#allocation3 + $0x358] sm:$0xff]
      %v6387 = vpack.c.bf16 %v6283, %v6279
      %v6388 = vpack.c.bf16 %v6284, %v6280
      %v6389 = vpack.c.bf16 %v6285, %v6281
      %v6390 = vpack.c.bf16 %v6286, %v6282
      %v6391 = vpack.c.bf16 %v6291, %v6287
      %v6392 = vpack.c.bf16 %v6292, %v6288
      %v6393 = vpack.c.bf16 %v6293, %v6289
      %v6394 = vpack.c.bf16 %v6294, %v6290
      %v6395 = vpack.c.bf16 %v6299, %v6295
      %v6396 = vpack.c.bf16 %v6300, %v6296
      %v6397 = vpack.c.bf16 %v6301, %v6297
      %v6398 = vpack.c.bf16 %v6302, %v6298
      %v6399 = vpack.c.bf16 %v6307, %v6303
      %v6400 = vpack.c.bf16 %v6308, %v6304
      %v6401 = vpack.c.bf16 %v6309, %v6305
      %v6402 = vpack.c.bf16 %v6310, %v6306
      %v6403 = vpack.c.bf16 %v6315, %v6311
      %v6404 = vpack.c.bf16 %v6316, %v6312
      %v6405 = vpack.c.bf16 %v6317, %v6313
      %v6406 = vpack.c.bf16 %v6318, %v6314
      %v6407 = vpack.c.bf16 %v6323, %v6319
      %v6408 = vpack.c.bf16 %v6324, %v6320
      %v6409 = vpack.c.bf16 %v6325, %v6321
      %v6410 = vpack.c.bf16 %v6326, %v6322
      %v6411 = vpack.c.bf16 %v6331, %v6327
      %v6412 = vpack.c.bf16 %v6332, %v6328
      %v6413 = vpack.c.bf16 %v6333, %v6329
      %v6414 = vpack.c.bf16 %v6334, %v6330
      %v6415 = vpack.c.bf16 %v6339, %v6335
      %v6416 = vpack.c.bf16 %v6340, %v6336
      %v6417 = vpack.c.bf16 %v6341, %v6337
      %v6418 = vpack.c.bf16 %v6342, %v6338
      %v6419 = vpack.c.bf16 %v6347, %v6343
      %v6420 = vpack.c.bf16 %v6348, %v6344
      %v6421 = vpack.c.bf16 %v6349, %v6345
      %v6422 = vpack.c.bf16 %v6350, %v6346
      %v6423 = vpack.c.bf16 %v6355, %v6351
      %v6424 = vpack.c.bf16 %v6356, %v6352
      %v6425 = vpack.c.bf16 %v6357, %v6353
      %v6426 = vpack.c.bf16 %v6358, %v6354
      %v6427 = vpack.c.bf16 %v6363, %v6359
      %v6428 = vpack.c.bf16 %v6364, %v6360
      %v6429 = vpack.c.bf16 %v6365, %v6361
      %v6430 = vpack.c.bf16 %v6366, %v6362
      %v6431 = vpack.c.bf16 %v6371, %v6367
      %v6432 = vpack.c.bf16 %v6372, %v6368
      %v6433 = vpack.c.bf16 %v6373, %v6369
      %v6434 = vpack.c.bf16 %v6374, %v6370
      %v6435 = vpack.c.bf16 %v6379, %v6375
      %v6436 = vpack.c.bf16 %v6380, %v6376
      %v6437 = vpack.c.bf16 %v6381, %v6377
      %v6438 = vpack.c.bf16 %v6382, %v6378
      %v6439 = vpack.c.bf16 %v6383, %v6383
      %v6440 = vpack.c.bf16 %v6384, %v6384
      %v6441 = vpack.c.bf16 %v6385, %v6385
      %v6442 = vpack.c.bf16 %v6386, %v6386
      %v6443 = vld [vmem:[%s23] sm:$0xff]
      %v6444 = vld [vmem:[%s23 + $0x8] sm:$0x33]
      %v6445 = vld [vmem:[%s24] sm:$0xff]
      %v6446 = vld [vmem:[%s24 + $0x8] sm:$0x33]
      %v6449 = vunpack.c.l.b16 %v6443
      %v6450 = vunpack.c.h.b16 %v6443
      %v6451 = vunpack.c.l.b16 %v6444
      %v6452 = vunpack.c.h.b16 %v6444
      %v6453 = vpack.c.b16 %v6451, %v6449
      %v6454 = vpack.c.b16 %v6452, %v6450
      %vm6456 = vcmask 719872
      %v6458 = vsel %vm6456, %v6454, 0
      %v6461 = vsel %vm1497, %v6275, 0
      %v6464 = vsel %vm1497, %v6276, 0
      %v6467 = vsel %vm1497, %v6277, 0
      %v6470 = vsel %vm1497, %v6278, 0
      %6472 = vmatprep.subr.bf16.mxu0 %v6224
      %6473 = vmatpush1.bf16.msra.mxu0 %v6223
      %6474 = vmatprep.subr.bf16.mxu0 %v6228
      %6475 = vmatpush1.bf16.msra.mxu0 %v6227
      %6476 = vmatprep.subr.bf16.mxu0 %v6232
      %6477 = vmatpush1.bf16.msra.mxu0 %v6231
      %6478 = vmatprep.subr.bf16.mxu0 %v6236
      %6479 = vmatpush1.bf16.msra.mxu0 %v6235
      %6480 = vmatprep.subr.bf16.mxu0 %v6240
      %6481 = vmatpush1.bf16.msra.mxu0 %v6239
      %6482 = vmatprep.subr.bf16.mxu0 %v6244
      %6483 = vmatpush1.bf16.msra.mxu0 %v6243
      %6484 = vmatprep.subr.bf16.mxu0 %v6248
      %6485 = vmatpush1.bf16.msra.mxu0 %v6247
      %6486 = vmatprep.subr.bf16.mxu0 %v6252
      %6487 = vmatpush1.bf16.msra.mxu0 %v6251
      %6488 = vmatprep.subr.bf16.mxu0 %v6256
      %6489 = vmatpush1.bf16.msra.mxu0 %v6255
      %6490 = vmatprep.subr.bf16.mxu0 %v6260
      %6491 = vmatpush1.bf16.msra.mxu0 %v6259
      %6492 = vmatprep.subr.bf16.mxu0 %v6264
      %6493 = vmatpush1.bf16.msra.mxu0 %v6263
      %6494 = vmatprep.subr.bf16.mxu0 %v6268
      %6495 = vmatpush1.bf16.msra.mxu0 %v6267
      %6496 = vmatprep.subr.bf16.mxu0 %v6272
      %6497 = vmatpush1.bf16.msra.mxu0 %v6271
      %6498 = vmatprep.subr.bf16.mxu0 %v6464
      %6499 = vmatpush1.bf16.msra.mxu0 %v6461
      %6500 = vmatprep.subr.bf16.mxu0 0
      %6501 = vmatpush1.bf16.msra.mxu0 0
      %6502 = vmatprep.subr.bf16.mxu0 0
      %6503 = vmatpush1.bf16.msra.mxu0 0
      %6504 = vmatprep.mubr.bf16.mxu0 %v6458
      %6505 = vmatmul.mubr.bf16.gmra.mrb[0].mxu0 %v6453
      %v6506 = vpop.f32.mrb[0].mxu0
      %v6507 = vadd.f32 0.0, %v6506
      %v6508 = vpop.f32.mrb[0].mxu0
      %v6509 = vadd.f32 0.0, %v6508
      %v6510 = vpop.f32.mrb[0].mxu0
      %v6511 = vadd.f32 0.0, %v6510
      %v6512 = vpop.f32.mrb[0].mxu0
      %v6513 = vadd.f32 0.0, %v6512
      %6514 = vdwg.mxu0
      %6515 = vmatprep.subr.bf16.mxu0 %v6226
      %6516 = vmatpush1.bf16.msra.mxu0 %v6225
      %6517 = vmatprep.subr.bf16.mxu0 %v6230
      %6518 = vmatpush1.bf16.msra.mxu0 %v6229
      %6519 = vmatprep.subr.bf16.mxu0 %v6234
      %6520 = vmatpush1.bf16.msra.mxu0 %v6233
      %6521 = vmatprep.subr.bf16.mxu0 %v6238
      %6522 = vmatpush1.bf16.msra.mxu0 %v6237
      %6523 = vmatprep.subr.bf16.mxu0 %v6242
      %6524 = vmatpush1.bf16.msra.mxu0 %v6241
      %6525 = vmatprep.subr.bf16.mxu0 %v6246
      %6526 = vmatpush1.bf16.msra.mxu0 %v6245
      %6527 = vmatprep.subr.bf16.mxu0 %v6250
      %6528 = vmatpush1.bf16.msra.mxu0 %v6249
      %6529 = vmatprep.subr.bf16.mxu0 %v6254
      %6530 = vmatpush1.bf16.msra.mxu0 %v6253
      %6531 = vmatprep.subr.bf16.mxu0 %v6258
      %6532 = vmatpush1.bf16.msra.mxu0 %v6257
      %6533 = vmatprep.subr.bf16.mxu0 %v6262
      %6534 = vmatpush1.bf16.msra.mxu0 %v6261
      %6535 = vmatprep.subr.bf16.mxu0 %v6266
      %6536 = vmatpush1.bf16.msra.mxu0 %v6265
      %6537 = vmatprep.subr.bf16.mxu0 %v6270
      %6538 = vmatpush1.bf16.msra.mxu0 %v6269
      %6539 = vmatprep.subr.bf16.mxu0 %v6274
      %6540 = vmatpush1.bf16.msra.mxu0 %v6273
      %6541 = vmatprep.subr.bf16.mxu0 %v6470
      %6542 = vmatpush1.bf16.msra.mxu0 %v6467
      %6543 = vmatprep.subr.bf16.mxu0 0
      %6544 = vmatpush1.bf16.msra.mxu0 0
      %6545 = vmatprep.subr.bf16.mxu0 0
      %6546 = vmatpush1.bf16.msra.mxu0 0
      %6547 = vmatprep.mubr.bf16.mxu0 %v6458
      %6548 = vmatmul.mubr.bf16.gmra.mrb[0].mxu0 %v6453
      %v6549 = vpop.f32.mrb[0].mxu0
      %v6550 = vadd.f32 0.0, %v6549
      %v6551 = vpop.f32.mrb[0].mxu0
      %v6552 = vadd.f32 0.0, %v6551
      %v6553 = vpop.f32.mrb[0].mxu0
      %v6554 = vadd.f32 0.0, %v6553
      %v6555 = vpop.f32.mrb[0].mxu0
      %v6556 = vadd.f32 0.0, %v6555
      %6557 = vdwg.mxu0
      %v6560 = vunpack.c.l.b16 %v6445
      %v6561 = vunpack.c.h.b16 %v6445
      %v6562 = vunpack.c.l.b16 %v6446
      %v6563 = vunpack.c.h.b16 %v6446
      %v6564 = vpack.c.b16 %v6562, %v6560
      %v6565 = vpack.c.b16 %v6563, %v6561
      %v6568 = vsel %vm6456, %v6565, 0
      %v6571 = vsel %vm1497, %v6439, 0
      %v6574 = vsel %vm1497, %v6440, 0
      %v6577 = vsel %vm1497, %v6441, 0
      %v6580 = vsel %vm1497, %v6442, 0
      %6582 = vmatprep.subr.bf16.mxu0 %v6388
      %6583 = vmatpush1.bf16.msra.mxu0 %v6387
      %6584 = vmatprep.subr.bf16.mxu0 %v6392
      %6585 = vmatpush1.bf16.msra.mxu0 %v6391
      %6586 = vmatprep.subr.bf16.mxu0 %v6396
      %6587 = vmatpush1.bf16.msra.mxu0 %v6395
      %6588 = vmatprep.subr.bf16.mxu0 %v6400
      %6589 = vmatpush1.bf16.msra.mxu0 %v6399
      %6590 = vmatprep.subr.bf16.mxu0 %v6404
      %6591 = vmatpush1.bf16.msra.mxu0 %v6403
      %6592 = vmatprep.subr.bf16.mxu0 %v6408
      %6593 = vmatpush1.bf16.msra.mxu0 %v6407
      %6594 = vmatprep.subr.bf16.mxu0 %v6412
      %6595 = vmatpush1.bf16.msra.mxu0 %v6411
      %6596 = vmatprep.subr.bf16.mxu0 %v6416
      %6597 = vmatpush1.bf16.msra.mxu0 %v6415
      %6598 = vmatprep.subr.bf16.mxu0 %v6420
      %6599 = vmatpush1.bf16.msra.mxu0 %v6419
      %6600 = vmatprep.subr.bf16.mxu0 %v6424
      %6601 = vmatpush1.bf16.msra.mxu0 %v6423
      %6602 = vmatprep.subr.bf16.mxu0 %v6428
      %6603 = vmatpush1.bf16.msra.mxu0 %v6427
      %6604 = vmatprep.subr.bf16.mxu0 %v6432
      %6605 = vmatpush1.bf16.msra.mxu0 %v6431
      %6606 = vmatprep.subr.bf16.mxu0 %v6436
      %6607 = vmatpush1.bf16.msra.mxu0 %v6435
      %6608 = vmatprep.subr.bf16.mxu0 %v6574
      %6609 = vmatpush1.bf16.msra.mxu0 %v6571
      %6610 = vmatprep.subr.bf16.mxu0 0
      %6611 = vmatpush1.bf16.msra.mxu0 0
      %6612 = vmatprep.subr.bf16.mxu0 0
      %6613 = vmatpush1.bf16.msra.mxu0 0
      %6614 = vmatprep.mubr.bf16.mxu0 %v6568
      %6615 = vmatmul.mubr.bf16.gmra.mrb[0].mxu0 %v6564
      %v6616 = vpop.f32.mrb[0].mxu0
      %v6617 = vadd.f32 0.0, %v6616
      %v6618 = vpop.f32.mrb[0].mxu0
      %v6619 = vadd.f32 0.0, %v6618
      %v6620 = vpop.f32.mrb[0].mxu0
      %v6621 = vadd.f32 0.0, %v6620
      %v6622 = vpop.f32.mrb[0].mxu0
      %v6623 = vadd.f32 0.0, %v6622
      %6624 = vdwg.mxu0
      %6625 = vmatprep.subr.bf16.mxu0 %v6390
      %6626 = vmatpush1.bf16.msra.mxu0 %v6389
      %6627 = vmatprep.subr.bf16.mxu0 %v6394
      %6628 = vmatpush1.bf16.msra.mxu0 %v6393
      %6629 = vmatprep.subr.bf16.mxu0 %v6398
      %6630 = vmatpush1.bf16.msra.mxu0 %v6397
      %6631 = vmatprep.subr.bf16.mxu0 %v6402
      %6632 = vmatpush1.bf16.msra.mxu0 %v6401
      %6633 = vmatprep.subr.bf16.mxu0 %v6406
      %6634 = vmatpush1.bf16.msra.mxu0 %v6405
      %6635 = vmatprep.subr.bf16.mxu0 %v6410
      %6636 = vmatpush1.bf16.msra.mxu0 %v6409
      %6637 = vmatprep.subr.bf16.mxu0 %v6414
      %6638 = vmatpush1.bf16.msra.mxu0 %v6413
      %6639 = vmatprep.subr.bf16.mxu0 %v6418
      %6640 = vmatpush1.bf16.msra.mxu0 %v6417
      %6641 = vmatprep.subr.bf16.mxu0 %v6422
      %6642 = vmatpush1.bf16.msra.mxu0 %v6421
      %6643 = vmatprep.subr.bf16.mxu0 %v6426
      %6644 = vmatpush1.bf16.msra.mxu0 %v6425
      %6645 = vmatprep.subr.bf16.mxu0 %v6430
      %6646 = vmatpush1.bf16.msra.mxu0 %v6429
      %6647 = vmatprep.subr.bf16.mxu0 %v6434
      %6648 = vmatpush1.bf16.msra.mxu0 %v6433
      %6649 = vmatprep.subr.bf16.mxu0 %v6438
      %6650 = vmatpush1.bf16.msra.mxu0 %v6437
      %6651 = vmatprep.subr.bf16.mxu0 %v6580
      %6652 = vmatpush1.bf16.msra.mxu0 %v6577
      %6653 = vmatprep.subr.bf16.mxu0 0
      %6654 = vmatpush1.bf16.msra.mxu0 0
      %6655 = vmatprep.subr.bf16.mxu0 0
      %6656 = vmatpush1.bf16.msra.mxu0 0
      %6657 = vmatprep.mubr.bf16.mxu0 %v6568
      %6658 = vmatmul.mubr.bf16.gmra.mrb[0].mxu0 %v6564
      %v6659 = vpop.f32.mrb[0].mxu0
      %v6660 = vadd.f32 0.0, %v6659
      %v6661 = vpop.f32.mrb[0].mxu0
      %v6662 = vadd.f32 0.0, %v6661
      %v6663 = vpop.f32.mrb[0].mxu0
      %v6664 = vadd.f32 0.0, %v6663
      %v6665 = vpop.f32.mrb[0].mxu0
      %v6666 = vadd.f32 0.0, %v6665
      %6667 = vdwg.mxu0
      %6668 = vmatprep.subr.bf16.mxu0 %v6224
      %6669 = vmatpush1.bf16.msra.mxu0 %v6223
      %6670 = vmatprep.subr.bf16.mxu0 %v6228
      %6671 = vmatpush1.bf16.msra.mxu0 %v6227
      %6672 = vmatprep.subr.bf16.mxu0 %v6232
      %6673 = vmatpush1.bf16.msra.mxu0 %v6231
      %6674 = vmatprep.subr.bf16.mxu0 %v6236
      %6675 = vmatpush1.bf16.msra.mxu0 %v6235
      %6676 = vmatprep.subr.bf16.mxu0 %v6240
      %6677 = vmatpush1.bf16.msra.mxu0 %v6239
      %6678 = vmatprep.subr.bf16.mxu0 %v6244
      %6679 = vmatpush1.bf16.msra.mxu0 %v6243
      %6680 = vmatprep.subr.bf16.mxu0 %v6248
      %6681 = vmatpush1.bf16.msra.mxu0 %v6247
      %6682 = vmatprep.subr.bf16.mxu0 %v6252
      %6683 = vmatpush1.bf16.msra.mxu0 %v6251
      %6684 = vmatprep.subr.bf16.mxu0 %v6256
      %6685 = vmatpush1.bf16.msra.mxu0 %v6255
      %6686 = vmatprep.subr.bf16.mxu0 %v6260
      %6687 = vmatpush1.bf16.msra.mxu0 %v6259
      %6688 = vmatprep.subr.bf16.mxu0 %v6264
      %6689 = vmatpush1.bf16.msra.mxu0 %v6263
      %6690 = vmatprep.subr.bf16.mxu0 %v6268
      %6691 = vmatpush1.bf16.msra.mxu0 %v6267
      %6692 = vmatprep.subr.bf16.mxu0 %v6272
      %6693 = vmatpush1.bf16.msra.mxu0 %v6271
      %6694 = vmatprep.subr.bf16.mxu0 %v6464
      %6695 = vmatpush1.bf16.msra.mxu0 %v6461
      %6696 = vmatprep.subr.bf16.mxu0 0
      %6697 = vmatpush1.bf16.msra.mxu0 0
      %6698 = vmatprep.subr.bf16.mxu0 0
      %6699 = vmatpush1.bf16.msra.mxu0 0
      %6700 = vmatprep.mubr.bf16.mxu0 %v6568
      %6701 = vmatmul.mubr.bf16.gmra.mrb[0].mxu0 %v6564
      %v6702 = vpop.f32.mrb[0].mxu0
      %v6703 = vadd.f32 0.0, %v6702
      %v6704 = vpop.f32.mrb[0].mxu0
      %v6705 = vadd.f32 0.0, %v6704
      %v6706 = vpop.f32.mrb[0].mxu0
      %v6707 = vadd.f32 0.0, %v6706
      %v6708 = vpop.f32.mrb[0].mxu0
      %v6709 = vadd.f32 0.0, %v6708
      %6710 = vdwg.mxu0
      %6711 = vmatprep.subr.bf16.mxu0 %v6226
      %6712 = vmatpush1.bf16.msra.mxu0 %v6225
      %6713 = vmatprep.subr.bf16.mxu0 %v6230
      %6714 = vmatpush1.bf16.msra.mxu0 %v6229
      %6715 = vmatprep.subr.bf16.mxu0 %v6234
      %6716 = vmatpush1.bf16.msra.mxu0 %v6233
      %6717 = vmatprep.subr.bf16.mxu0 %v6238
      %6718 = vmatpush1.bf16.msra.mxu0 %v6237
      %6719 = vmatprep.subr.bf16.mxu0 %v6242
      %6720 = vmatpush1.bf16.msra.mxu0 %v6241
      %6721 = vmatprep.subr.bf16.mxu0 %v6246
      %6722 = vmatpush1.bf16.msra.mxu0 %v6245
      %6723 = vmatprep.subr.bf16.mxu0 %v6250
      %6724 = vmatpush1.bf16.msra.mxu0 %v6249
      %6725 = vmatprep.subr.bf16.mxu0 %v6254
      %6726 = vmatpush1.bf16.msra.mxu0 %v6253
      %6727 = vmatprep.subr.bf16.mxu0 %v6258
      %6728 = vmatpush1.bf16.msra.mxu0 %v6257
      %6729 = vmatprep.subr.bf16.mxu0 %v6262
      %6730 = vmatpush1.bf16.msra.mxu0 %v6261
      %6731 = vmatprep.subr.bf16.mxu0 %v6266
      %6732 = vmatpush1.bf16.msra.mxu0 %v6265
      %6733 = vmatprep.subr.bf16.mxu0 %v6270
      %6734 = vmatpush1.bf16.msra.mxu0 %v6269
      %6735 = vmatprep.subr.bf16.mxu0 %v6274
      %6736 = vmatpush1.bf16.msra.mxu0 %v6273
      %6737 = vmatprep.subr.bf16.mxu0 %v6470
      %6738 = vmatpush1.bf16.msra.mxu0 %v6467
      %6739 = vmatprep.subr.bf16.mxu0 0
      %6740 = vmatpush1.bf16.msra.mxu0 0
      %6741 = vmatprep.subr.bf16.mxu0 0
      %6742 = vmatpush1.bf16.msra.mxu0 0
      %6743 = vmatprep.mubr.bf16.mxu0 %v6568
      %6744 = vmatmul.mubr.bf16.gmra.mrb[0].mxu0 %v6564
      %v6745 = vpop.f32.mrb[0].mxu0
      %v6746 = vadd.f32 0.0, %v6745
      %v6747 = vpop.f32.mrb[0].mxu0
      %v6748 = vadd.f32 0.0, %v6747
      %v6749 = vpop.f32.mrb[0].mxu0
      %v6750 = vadd.f32 0.0, %v6749
      %v6751 = vpop.f32.mrb[0].mxu0
      %v6752 = vadd.f32 0.0, %v6751
      %6753 = vdwg.mxu0
      %v6754 = vsub.f32 %v6507, %v6617
      %v6755 = vsub.f32 %v6509, %v6619
      %v6756 = vsub.f32 %v6550, %v6660
      %v6757 = vsub.f32 %v6552, %v6662
      %v6758 = vsub.f32 %v6511, %v6621
      %v6759 = vsub.f32 %v6513, %v6623
      %v6760 = vsub.f32 %v6554, %v6664
      %v6761 = vsub.f32 %v6556, %v6666
      %v6762 = vld [vmem:[%s25] sm:$0xff]
      %v6763 = vld [vmem:[%s25 + $0x8] sm:$0xf]
      %6765 = vset.pattern.permute.xlu0 0
      %6766 = vperm.xlu0 %6765, %v6762
      %v6767 = vpop.permute.xlu0 %6766
      %6770 = vset.pattern.permute.xlu0 0
      %6771 = vperm.xlu0 %6770, %v6763
      %v6772 = vpop.permute.xlu0 %6771
      %v6774 = vadd.f32 %v6754, %v6767
      %v6775 = vadd.f32 %v6755, %v6767
      %v6776 = vadd.f32 %v6756, %v6767
      %v6777 = vadd.f32 %v6757, %v6767
      %v6778 = vadd.f32 %v6758, %v6772
      %v6779 = vadd.f32 %v6759, %v6772
      %v6780 = vadd.f32 %v6760, %v6772
      %v6781 = vadd.f32 %v6761, %v6772
      %6782 = vmatprep.subr.bf16.mxu0 %v6388
      %6783 = vmatpush1.bf16.msra.mxu0 %v6387
      %6784 = vmatprep.subr.bf16.mxu0 %v6392
      %6785 = vmatpush1.bf16.msra.mxu0 %v6391
      %6786 = vmatprep.subr.bf16.mxu0 %v6396
      %6787 = vmatpush1.bf16.msra.mxu0 %v6395
      %6788 = vmatprep.subr.bf16.mxu0 %v6400
      %6789 = vmatpush1.bf16.msra.mxu0 %v6399
      %6790 = vmatprep.subr.bf16.mxu0 %v6404
      %6791 = vmatpush1.bf16.msra.mxu0 %v6403
      %6792 = vmatprep.subr.bf16.mxu0 %v6408
      %6793 = vmatpush1.bf16.msra.mxu0 %v6407
      %6794 = vmatprep.subr.bf16.mxu0 %v6412
      %6795 = vmatpush1.bf16.msra.mxu0 %v6411
      %6796 = vmatprep.subr.bf16.mxu0 %v6416
      %6797 = vmatpush1.bf16.msra.mxu0 %v6415
      %6798 = vmatprep.subr.bf16.mxu0 %v6420
      %6799 = vmatpush1.bf16.msra.mxu0 %v6419
      %6800 = vmatprep.subr.bf16.mxu0 %v6424
      %6801 = vmatpush1.bf16.msra.mxu0 %v6423
      %6802 = vmatprep.subr.bf16.mxu0 %v6428
      %6803 = vmatpush1.bf16.msra.mxu0 %v6427
      %6804 = vmatprep.subr.bf16.mxu0 %v6432
      %6805 = vmatpush1.bf16.msra.mxu0 %v6431
      %6806 = vmatprep.subr.bf16.mxu0 %v6436
      %6807 = vmatpush1.bf16.msra.mxu0 %v6435
      %6808 = vmatprep.subr.bf16.mxu0 %v6574
      %6809 = vmatpush1.bf16.msra.mxu0 %v6571
      %6810 = vmatprep.subr.bf16.mxu0 0
      %6811 = vmatpush1.bf16.msra.mxu0 0
      %6812 = vmatprep.subr.bf16.mxu0 0
      %6813 = vmatpush1.bf16.msra.mxu0 0
      %6814 = vmatprep.mubr.bf16.mxu0 %v6458
      %6815 = vmatmul.mubr.bf16.gmra.mrb[0].mxu0 %v6453
      %v6816 = vpop.f32.mrb[0].mxu0
      %v6817 = vadd.f32 %v6703, %v6816
      %v6818 = vpop.f32.mrb[0].mxu0
      %v6819 = vadd.f32 %v6705, %v6818
      %v6820 = vpop.f32.mrb[0].mxu0
      %v6821 = vadd.f32 %v6707, %v6820
      %v6822 = vpop.f32.mrb[0].mxu0
      %v6823 = vadd.f32 %v6709, %v6822
      %6824 = vdwg.mxu0
      %6825 = vmatprep.subr.bf16.mxu0 %v6390
      %6826 = vmatpush1.bf16.msra.mxu0 %v6389
      %6827 = vmatprep.subr.bf16.mxu0 %v6394
      %6828 = vmatpush1.bf16.msra.mxu0 %v6393
      %6829 = vmatprep.subr.bf16.mxu0 %v6398
      %6830 = vmatpush1.bf16.msra.mxu0 %v6397
      %6831 = vmatprep.subr.bf16.mxu0 %v6402
      %6832 = vmatpush1.bf16.msra.mxu0 %v6401
      %6833 = vmatprep.subr.bf16.mxu0 %v6406
      %6834 = vmatpush1.bf16.msra.mxu0 %v6405
      %6835 = vmatprep.subr.bf16.mxu0 %v6410
      %6836 = vmatpush1.bf16.msra.mxu0 %v6409
      %6837 = vmatprep.subr.bf16.mxu0 %v6414
      %6838 = vmatpush1.bf16.msra.mxu0 %v6413
      %6839 = vmatprep.subr.bf16.mxu0 %v6418
      %6840 = vmatpush1.bf16.msra.mxu0 %v6417
      %6841 = vmatprep.subr.bf16.mxu0 %v6422
      %6842 = vmatpush1.bf16.msra.mxu0 %v6421
      %6843 = vmatprep.subr.bf16.mxu0 %v6426
      %6844 = vmatpush1.bf16.msra.mxu0 %v6425
      %6845 = vmatprep.subr.bf16.mxu0 %v6430
      %6846 = vmatpush1.bf16.msra.mxu0 %v6429
      %6847 = vmatprep.subr.bf16.mxu0 %v6434
      %6848 = vmatpush1.bf16.msra.mxu0 %v6433
      %6849 = vmatprep.subr.bf16.mxu0 %v6438
      %6850 = vmatpush1.bf16.msra.mxu0 %v6437
      %6851 = vmatprep.subr.bf16.mxu0 %v6580
      %6852 = vmatpush1.bf16.msra.mxu0 %v6577
      %6853 = vmatprep.subr.bf16.mxu0 0
      %6854 = vmatpush1.bf16.msra.mxu0 0
      %6855 = vmatprep.subr.bf16.mxu0 0
      %6856 = vmatpush1.bf16.msra.mxu0 0
      %6857 = vmatprep.mubr.bf16.mxu0 %v6458
      %6858 = vmatmul.mubr.bf16.gmra.mrb[0].mxu0 %v6453
      %v6859 = vpop.f32.mrb[0].mxu0
      %v6860 = vadd.f32 %v6746, %v6859
      %v6861 = vpop.f32.mrb[0].mxu0
      %v6862 = vadd.f32 %v6748, %v6861
      %v6863 = vpop.f32.mrb[0].mxu0
      %v6864 = vadd.f32 %v6750, %v6863
      %v6865 = vpop.f32.mrb[0].mxu0
      %v6866 = vadd.f32 %v6752, %v6865
      %6867 = vdwg.mxu0
      %v6868 = vld [vmem:[%s26] sm:$0xff]
      %v6869 = vld [vmem:[%s26 + $0x8] sm:$0xf]
      %6871 = vset.pattern.permute.xlu0 0
      %6872 = vperm.xlu0 %6871, %v6868
      %v6873 = vpop.permute.xlu0 %6872
      %6876 = vset.pattern.permute.xlu0 0
      %6877 = vperm.xlu0 %6876, %v6869
      %v6878 = vpop.permute.xlu0 %6877
      %v6880 = vadd.f32 %v6817, %v6873
      %v6881 = vadd.f32 %v6819, %v6873
      %v6882 = vadd.f32 %v6860, %v6873
      %v6883 = vadd.f32 %v6862, %v6873
      %v6884 = vadd.f32 %v6821, %v6878
      %v6885 = vadd.f32 %v6823, %v6878
      %v6886 = vadd.f32 %v6864, %v6878
      %v6887 = vadd.f32 %v6866, %v6878
      %6888 = vst [vmem:[%s873] sm:$0xff] %v6774
      %6889 = vst [vmem:[%s873 + $0x8] sm:$0xff] %v6775
      %6890 = vst [vmem:[%s873 + $0x10] sm:$0xff] %v6776
      %6891 = vst [vmem:[%s873 + $0x18] sm:$0xff] %v6777
      %6892 = vst [vmem:[%s873 + $0x20] sm:$0xf] %v6778
      %6893 = vst [vmem:[%s873 + $0x28] sm:$0xf] %v6779
      %6894 = vst [vmem:[%s873 + $0x30] sm:$0xf] %v6780
      %6895 = vst [vmem:[%s873 + $0x38] sm:$0xf] %v6781
      %6896 = vst [vmem:[%s878] sm:$0xff] %v6880
      %6897 = vst [vmem:[%s878 + $0x8] sm:$0xff] %v6881
      %6898 = vst [vmem:[%s878 + $0x10] sm:$0xff] %v6882
      %6899 = vst [vmem:[%s878 + $0x18] sm:$0xff] %v6883
      %6900 = vst [vmem:[%s878 + $0x20] sm:$0xf] %v6884
      %6901 = vst [vmem:[%s878 + $0x28] sm:$0xf] %v6885
      %6902 = vst [vmem:[%s878 + $0x30] sm:$0xf] %v6886
      %6903 = vst [vmem:[%s878 + $0x38] sm:$0xf] %v6887
      %p6904 = scmp.lt.s32.totalorder %s40, 1
      %s6905 = scalar_select %p6904, %s40, 1
      %s6906 = smul.addr %s6905, 8
      %s6907 = smul.addr %s6906, 8
      %s6908 = scalar_lea.vmem %s27, %s6907
      %p6909 = scmp.lt.s32.totalorder %s40, 1
      %s6910 = scalar_select %p6909, %s40, 1
      %s6911 = smul.addr %s6910, 8
      %s6912 = smul.addr %s6911, 8
      %s6913 = scalar_lea.vmem %s28, %s6912
      // Predicated region
      $region129: #{mixed_dilations_block_1_forward.1} parent=127 // pred_check
        %p6914 = pneg %p635
      $region130: #{mixed_dilations_block_1_forward.1} parent=127 // pred_check_branch
        %6916 = sbr.rel (%p6914) target = $region132
      $region131: #{mixed_dilations_block_1_forward.1} parent=127 // pred_region
        _
      $region132: #{mixed_dilations_block_1_forward.1} parent=127 // pred_fallthru
        _
      // Predicated region
      $region133: #{mixed_dilations_block_1_forward.1} parent=127 // pred_check
        %p6917 = pneg %p661
      $region134: #{mixed_dilations_block_1_forward.1} parent=127 // pred_check_branch
        %6919 = sbr.rel (%p6917) target = $region136
      $region135: #{mixed_dilations_block_1_forward.1} parent=127 // pred_region
        _
      $region136: #{mixed_dilations_block_1_forward.1} parent=127 // pred_fallthru
        _
    $region128: #{mixed_dilations_block_1_forward.1} parent=5 // pred_fallthru
      _
    %p6920 = scmp.le.s32.totalorder 2, %s35
    // Predicated region
    $region137: #{mixed_dilations_block_1_forward.1} parent=5 // pred_check
      %p6921 = pneg %p6920
    $region138: #{mixed_dilations_block_1_forward.1} parent=5 // pred_check_branch
      %6923 = sbr.rel (%p6921) target = $region140
    $region139: #{mixed_dilations_block_1_forward.1} parent=5 // pred_region
      %s6924 = ssub.s32 %s35, 2
      // Predicated region
      $region141: #{mixed_dilations_block_1_forward.1} parent=139 // pred_check
        %p6925 = pneg %p641
      $region142: #{mixed_dilations_block_1_forward.1} parent=139 // pred_check_branch
        %6927 = sbr.rel (%p6925) target = $region144
      $region143: #{mixed_dilations_block_1_forward.1} parent=139 // pred_region
        %p6928 = scmp.lt.s32.totalorder %s41, 1
        %s6929 = scalar_select %p6928, %s41, 1
        %s6930 = smul.addr %s6929, 8
        %s6931 = smul.addr %s6930, 8
        %s6932 = scalar_lea.vmem %s27, %s6931
      $region144: #{mixed_dilations_block_1_forward.1} parent=139 // pred_fallthru
        _
      // Predicated region
      $region145: #{mixed_dilations_block_1_forward.1} parent=139 // pred_check
        %p6933 = pneg %p667
      $region146: #{mixed_dilations_block_1_forward.1} parent=139 // pred_check_branch
        %6935 = sbr.rel (%p6933) target = $region148
      $region147: #{mixed_dilations_block_1_forward.1} parent=139 // pred_region
        %p6936 = scmp.lt.s32.totalorder %s41, 1
        %s6937 = scalar_select %p6936, %s41, 1
        %s6938 = smul.addr %s6937, 8
        %s6939 = smul.addr %s6938, 8
        %s6940 = scalar_lea.vmem %s28, %s6939
      $region148: #{mixed_dilations_block_1_forward.1} parent=139 // pred_fallthru
        _
    $region140: #{mixed_dilations_block_1_forward.1} parent=5 // pred_fallthru
      _
  $region6: #{mixed_dilations_block_1_forward.1} parent=0 // loop_footer
    %s39 = sadd.s32 1, %s35
  $region7: #{mixed_dilations_block_1_forward.1} parent=0 // loop_footer_branch
    %34 = sbr.rel target = $region3
  $region8: #{mixed_dilations_block_1_forward.1} parent=0 // loop_exit
    _

</llo_original>
